<compile_context>
chip_gen: v7x
topology: tpu7x:2x2x1
jax: 0.10.0
libtpu: 0.0.40
codegen_flags: <defaults>
</compile_context>

<pallas_src>
import functools
import math

import numpy as np

import jax
import jax.numpy as jnp
from jax import lax
from jax.experimental import pallas as pl
from jax.experimental.pallas import tpu as pltpu

LANE = 128                       # pad feature/hidden/class dims to lane width
TILE_M = 256                     # A_hat row tile (keeps >=4 row tiles for megacore)
TILE_K = 1024                    # A_hat reduction tile (large -> amortize step overhead)
FT_TILE_M = 512                  # row tile for the X @ W feature transform
VMEM_LIMIT = 48 * 1024 * 1024    # <= v7x 64 MiB physical; generous on v5e/v6e


def _round_up(x, m):
    return (x + m - 1) // m * m


# ---------------------------------------------------------------------------
# Kernel 1: feature transform XW = X @ W (computed once for layer 1).
# ---------------------------------------------------------------------------
def _feature_transform_kernel(x_ref, w_ref, o_ref):
    o_ref[...] = jnp.dot(
        x_ref[...], w_ref[...], preferred_element_type=jnp.float32
    ).astype(o_ref.dtype)


def feature_transform(x, w, *, tile_m=FT_TILE_M):
    n, f = x.shape
    d = w.shape[1]
    return pl.pallas_call(
        _feature_transform_kernel,
        out_shape=jax.ShapeDtypeStruct((n, d), jnp.bfloat16),
        grid_spec=pltpu.PrefetchScalarGridSpec(
            num_scalar_prefetch=0,
            grid=(n // tile_m,),
            in_specs=[
                pl.BlockSpec((tile_m, f), lambda i: (i, 0)),
                pl.BlockSpec((f, d), lambda i: (0, 0)),
            ],
            out_specs=pl.BlockSpec((tile_m, d), lambda i: (i, 0)),
        ),
        compiler_params=pltpu.CompilerParams(
            dimension_semantics=("parallel",),
            vmem_limit_bytes=VMEM_LIMIT,
        ),
    )(x, w)


# ---------------------------------------------------------------------------
# Kernel 2: tiled block-sparse aggregation
#   out = finalize(A_hat @ XW + b)
# finalize is either  relu(.) @ W2   (layer 1, fused layer-2 transform)
# or                  log_softmax(.) (layer 2)
# A_hat blocks are fetched via a data-dependent index_map driven by a
# scalar-prefetched list of nonzero column-block ids per row tile, so all-zero
# blocks are never DMA'd. XW is fully VMEM-resident (constant index_map).
# ---------------------------------------------------------------------------
def _aggregate_kernel(col_ids_ref, nnz_ref, a_ref, xw_ref, b_ref, *rest,
                      activation, num_valid):
    if activation == "relu_proj":
        w2_ref, o_ref, acc_ref = rest
    else:
        o_ref, acc_ref = rest

    i = pl.program_id(0)
    k = pl.program_id(1)

    @pl.when(k == 0)
    def _init():
        acc_ref[...] = jnp.zeros_like(acc_ref)

    # Only blocks that actually contain edges are enumerated; for k >= nnz[i]
    # the A_hat index_map repeats the previous block (no extra DMA) and the
    # MXU work is skipped here.
    @pl.when(k < nnz_ref[i])
    def _accumulate():
        xw_blk = xw_ref[col_ids_ref[i, k]]          # (tile_k, d) from resident XW
        acc_ref[...] += jnp.dot(
            a_ref[...], xw_blk, preferred_element_type=jnp.float32
        )

    @pl.when(k == pl.num_programs(1) - 1)
    def _finalize():
        h = acc_ref[...] + b_ref[...]
        if activation == "relu_proj":
            # Fused layer-2 feature transform: emit relu(H) @ W2 directly.
            h = jnp.maximum(h, 0.0).astype(jnp.bfloat16)
            o_ref[...] = jnp.dot(
                h, w2_ref[...], preferred_element_type=jnp.float32
            ).astype(o_ref.dtype)
        elif activation == "log_softmax":
            # Mask padded class lanes so they don't affect the reduction,
            # then zero them in the output (no -inf leakage downstream).
            col = lax.broadcasted_iota(jnp.int32, h.shape, 1)
            hm = jnp.where(col < num_valid, h, -jnp.inf)
            m = jnp.max(hm, axis=1, keepdims=True)
            lse = m + jnp.log(jnp.sum(jnp.exp(hm - m), axis=1, keepdims=True))
            out = jnp.where(col < num_valid, hm - lse, 0.0)
            o_ref[...] = out.astype(o_ref.dtype)
        else:
            o_ref[...] = h.astype(o_ref.dtype)


def aggregate(a_hat, col_ids, nnz, xw_blocks, b, *, activation, num_valid,
              out_dtype, proj=None, tile_m=TILE_M, tile_k=TILE_K):
    n = a_hat.shape[0]
    n_blocks, _, d_acc = xw_blocks.shape
    max_nnz = col_ids.shape[1]
    d_out = proj.shape[1] if proj is not None else d_acc

    kernel = functools.partial(
        _aggregate_kernel, activation=activation, num_valid=num_valid)

    in_specs = [
        # A_hat tile: data-dependent column-block index (DMA-level skip).
        pl.BlockSpec((tile_m, tile_k),
                     lambda i, k, cids, cnt: (i, cids[i, k])),
        # XW kept fully resident in VMEM (fetched once).
        pl.BlockSpec((n_blocks, tile_k, d_acc),
                     lambda i, k, cids, cnt: (0, 0, 0)),
        # bias row.
        pl.BlockSpec((1, d_acc), lambda i, k, cids, cnt: (0, 0)),
    ]
    args = [col_ids, nnz, a_hat, xw_blocks, b]
    if proj is not None:
        in_specs.append(
            pl.BlockSpec(proj.shape, lambda i, k, cids, cnt: (0, 0)))
        args.append(proj)

    return pl.pallas_call(
        kernel,
        out_shape=jax.ShapeDtypeStruct((n, d_out), out_dtype),
        grid_spec=pltpu.PrefetchScalarGridSpec(
            num_scalar_prefetch=2,            # col_ids, nnz -> SMEM
            grid=(n // tile_m, max_nnz),
            in_specs=in_specs,
            out_specs=pl.BlockSpec((tile_m, d_out),
                                   lambda i, k, cids, cnt: (i, 0)),
            scratch_shapes=[pltpu.VMEM((tile_m, d_acc), jnp.float32)],
        ),
        compiler_params=pltpu.CompilerParams(
            dimension_semantics=("parallel", "arbitrary"),
            vmem_limit_bytes=VMEM_LIMIT,
        ),
    )(*args)


# ---------------------------------------------------------------------------
# Graph / parameter preprocessing (host-side, outside the per-inference jit).
# ---------------------------------------------------------------------------
def build_normalized_adjacency(edge_index, num_nodes):
    """A_hat = D^{-1/2}(A + remaining self loops)D^{-1/2}.

    Matches PyG gcn_norm: self loops are only added to nodes that do not
    already have an explicit self-loop edge.
    """
    src = np.asarray(edge_index[0])
    dst = np.asarray(edge_index[1])
    adj = np.zeros((num_nodes, num_nodes), np.float32)
    np.add.at(adj, (dst, src), 1.0)
    idx = np.arange(num_nodes)
    diag = adj[idx, idx].copy()
    adj[idx, idx] = np.where(diag > 0, diag, 1.0)   # add_remaining_self_loops
    deg = adj.sum(axis=1)
    dinv = np.where(deg > 0, 1.0 / np.sqrt(deg), 0.0)
    return adj * dinv[:, None] * dinv[None, :]


def preprocess_graph(edge_index, num_nodes, n_pad,
                     tile_m=TILE_M, tile_k=TILE_K):
    """Returns (bf16 padded A_hat, col_ids, nnz) for block-sparse aggregation.

    col_ids[i, k] is the k-th nonzero (tile_m x tile_k) column block of row
    tile i; trailing entries repeat the last valid block (so no extra DMA is
    issued for padded grid steps). nnz[i] is the count of nonzero blocks.
    """
    a_hat = build_normalized_adjacency(edge_index, num_nodes)
    a_pad = np.zeros((n_pad, n_pad), np.float32)
    a_pad[:num_nodes, :num_nodes] = a_hat

    nrt, nct = n_pad // tile_m, n_pad // tile_k
    occ = (np.abs(a_pad).reshape(nrt, tile_m, nct, tile_k).sum(axis=(1, 3)) > 0)
    nnz = occ.sum(axis=1).astype(np.int32)
    max_nnz = max(1, int(nnz.max()))
    col_ids = np.zeros((nrt, max_nnz), np.int32)
    for i in range(nrt):
        cols = np.nonzero(occ[i])[0]
        if cols.size:
            col_ids[i, :cols.size] = cols
            col_ids[i, cols.size:] = cols[-1]

    return (jnp.asarray(a_pad, dtype=jnp.bfloat16),
            jnp.asarray(col_ids), jnp.asarray(nnz))


def pad_params(params, f_in, hidden, n_classes):
    f_pad = _round_up(f_in, LANE)
    h_pad = _round_up(hidden, LANE)
    c_pad = _round_up(n_classes, LANE)
    w1 = (jnp.zeros((f_pad, h_pad), jnp.float32)
          .at[:f_in, :hidden].set(params["w1"]).astype(jnp.bfloat16))
    b1 = jnp.zeros((1, h_pad), jnp.float32).at[0, :hidden].set(params["b1"])
    w2 = (jnp.zeros((h_pad, c_pad), jnp.float32)
          .at[:hidden, :n_classes].set(params["w2"]).astype(jnp.bfloat16))
    b2 = jnp.zeros((1, c_pad), jnp.float32).at[0, :n_classes].set(params["b2"])
    return {"w1": w1, "b1": b1, "w2": w2, "b2": b2}


# ---------------------------------------------------------------------------
# Forward pass (jitted; operates on padded/bf16 inputs, returns padded logits)
# ---------------------------------------------------------------------------
@functools.partial(jax.jit, static_argnames=("num_classes",))
def gcn_forward(x_pad, a_hat, col_ids, nnz, params, *, num_classes):
    n = a_hat.shape[0]
    # layer 1 feature transform (hoisted; once per layer, not per row tile)
    xw1 = feature_transform(x_pad, params["w1"])
    # layer 1 aggregation fused with relu + layer-2 feature transform:
    #   HW2 = relu(A_hat @ XW1 + b1) @ W2
    hw2 = aggregate(
        a_hat, col_ids, nnz,
        xw1.reshape(n // TILE_K, TILE_K, -1), params["b1"],
        activation="relu_proj", num_valid=0,
        out_dtype=jnp.bfloat16, proj=params["w2"])
    # F.dropout(training=False) -> identity
    # layer 2 aggregation: log_softmax(A_hat @ HW2 + b2)
    z = aggregate(
        a_hat, col_ids, nnz,
        hw2.reshape(n // TILE_K, TILE_K, -1), params["b2"],
        activation="log_softmax", num_valid=num_classes,
        out_dtype=jnp.float32)
    return z


if __name__ == "__main__":
    # Small synthetic sizes standing in for the Planetoid dataset.
    N = 32            # number of nodes
    F_IN = 32         # dataset.num_features
    HIDDEN = 16       # GCNConv hidden size (matches module)
    N_CLASSES = 8     # dataset.num_classes
    E = 64            # number of edges

    key = jax.random.PRNGKey(0)
    k_x, k_e, k_w1, k_w2 = jax.random.split(key, 4)

    x = jax.random.normal(k_x, (N, F_IN), dtype=jnp.float32)
    edge_index = jax.random.randint(k_e, (2, E), 0, N, dtype=jnp.int32)

    # Deterministic parameter init (Glorot-style scale), biases zero.
    params = {
        "w1": jax.random.normal(k_w1, (F_IN, HIDDEN), jnp.float32)
        * (1.0 / jnp.sqrt(F_IN)),
        "b1": jnp.zeros((HIDDEN,), jnp.float32),
        "w2": jax.random.normal(k_w2, (HIDDEN, N_CLASSES), jnp.float32)
        * (1.0 / jnp.sqrt(HIDDEN)),
        "b2": jnp.zeros((N_CLASSES,), jnp.float32),
    }

    # Padding: nodes to a tile multiple, feature/hidden/class dims to 128.
    n_pad = _round_up(N, math.lcm(TILE_M, TILE_K, FT_TILE_M))
    f_pad = _round_up(F_IN, LANE)

    a_hat_pad, col_ids, nnz = preprocess_graph(edge_index, N, n_pad)
    params_pad = pad_params(params, F_IN, HIDDEN, N_CLASSES)
    x_pad = (jnp.zeros((n_pad, f_pad), jnp.float32)
             .at[:N, :F_IN].set(x).astype(jnp.bfloat16))

    z_pad = gcn_forward(x_pad, a_hat_pad, col_ids, nnz, params_pad,
                        num_classes=N_CLASSES)
    jax.block_until_ready(z_pad)

    out = z_pad[:N, :N_CLASSES]
    assert out.shape == (N, N_CLASSES)
    # rows of log_softmax must exp-sum to 1
    assert bool(jnp.allclose(jnp.sum(jnp.exp(out), axis=1), 1.0, atol=1e-3))

    # pure-JAX dense f32 reference for the same semantics
    a_ref_mat = jnp.asarray(build_normalized_adjacency(edge_index, N))
    h_ref = jnp.maximum(a_ref_mat @ (x @ params["w1"]) + params["b1"], 0.0)
    z_ref = a_ref_mat @ (h_ref @ params["w2"]) + params["b2"]
    z_ref = jax.nn.log_softmax(z_ref, axis=1)
    assert bool(jnp.allclose(out, z_ref, atol=1e-1)), \
        f"max err {jnp.max(jnp.abs(out - z_ref))}"

    print("KERNEL_OK")
</pallas_src>

<mosaic_0001>
module attributes {stable_mosaic.version = 11 : i64} {
  func.func @_feature_transform_kernel(%arg0: i32, %arg1: memref<512x128xbf16, #tpu.memory_space<vmem>>, %arg2: memref<128x128xbf16, #tpu.memory_space<vmem>>, %arg3: memref<512x128xbf16, #tpu.memory_space<vmem>>) attributes {dimension_semantics = [#tpu.dimension_semantics<parallel>], iteration_bounds = array<i64: 2>, scalar_prefetch = 0 : i64, scratch_operands = 0 : i64, tpu.core_type = #tpu.core_type<tc>, window_params = [{transform_indices = @transform_0, window_bounds = array<i64: 512, 128>}, {pipeline_mode = #tpu.pipeline_mode<synchronous>, transform_indices = @transform_1, window_bounds = array<i64: 128, 128>}, {transform_indices = @transform_2, window_bounds = array<i64: 512, 128>}]} {
    %c0 = arith.constant 0 : index
    %c0_0 = arith.constant 0 : index
    %0 = vector.load %arg1[%c0, %c0_0] : memref<512x128xbf16, #tpu.memory_space<vmem>>, vector<512x128xbf16>
    %c0_1 = arith.constant 0 : index
    %c0_2 = arith.constant 0 : index
    %1 = vector.load %arg2[%c0_1, %c0_2] : memref<128x128xbf16, #tpu.memory_space<vmem>>, vector<128x128xbf16>
    %cst = arith.constant dense<0.000000e+00> : vector<512x128xf32>
    %2 = tpu.matmul %0, %1, %cst {dimension_numbers = #tpu.dot_dimension_numbers<[1], [0], [0], [1], [0, 0, 1, 1], [], []>} : vector<512x128xbf16>, vector<128x128xbf16>, vector<512x128xf32> -> vector<512x128xf32>
    %3 = arith.truncf %2 : vector<512x128xf32> to vector<512x128xbf16>
    %c0_3 = arith.constant 0 : index
    %c0_4 = arith.constant 0 : index
    %4 = vector.load %arg3[%c0_3, %c0_4] : memref<512x128xbf16, #tpu.memory_space<vmem>>, vector<512x128xbf16>
    tpu.vector_store %arg3[%c0_3, %c0_4], %3 {strides = array<i32>} : memref<512x128xbf16, #tpu.memory_space<vmem>>, vector<512x128xbf16>,
    return
  }
  func.func @transform_0(%arg0: i32) -> (i32, i32) {
    %c0_i32 = arith.constant 0 : i32
    %c0_i32_0 = arith.constant 0 : i32
    return %arg0, %c0_i32 : i32, i32
  }
  func.func @transform_1(%arg0: i32) -> (i32, i32) {
    %c0_i32 = arith.constant 0 : i32
    %c0_i32_0 = arith.constant 0 : i32
    %c0_i32_1 = arith.constant 0 : i32
    return %c0_i32, %c0_i32_0 : i32, i32
  }
  func.func @transform_2(%arg0: i32) -> (i32, i32) {
    %c0_i32 = arith.constant 0 : i32
    %c0_i32_0 = arith.constant 0 : i32
    return %arg0, %c0_i32 : i32, i32
  }
}

module attributes {stable_mosaic.version = 11 : i64} {
  func.func @_aggregate_kernel(%arg0: i32, %arg1: i32, %arg2: memref<4x1xi32, #tpu.memory_space<smem>>, %arg3: memref<4xi32, #tpu.memory_space<smem>>, %arg4: memref<256x1024xbf16, #tpu.memory_space<vmem>>, %arg5: memref<1x1024x128xbf16, #tpu.memory_space<vmem>>, %arg6: memref<1x128xf32, #tpu.memory_space<vmem>>, %arg7: memref<128x128xbf16, #tpu.memory_space<vmem>>, %arg8: memref<256x128xbf16, #tpu.memory_space<vmem>>, %arg9: memref<256x128xf32, #tpu.memory_space<vmem>>) attributes {dimension_semantics = [#tpu.dimension_semantics<parallel>, #tpu.dimension_semantics<arbitrary>], iteration_bounds = array<i64: 4, 1>, scalar_prefetch = 2 : i64, scratch_operands = 1 : i64, tpu.core_type = #tpu.core_type<tc>, window_params = [{transform_indices = @transform_0, window_bounds = array<i64: 256, 1024>}, {pipeline_mode = #tpu.pipeline_mode<synchronous>, transform_indices = @transform_1, window_bounds = array<i64: 1, 1024, 128>}, {pipeline_mode = #tpu.pipeline_mode<synchronous>, transform_indices = @transform_2, window_bounds = array<i64: 1, 128>}, {pipeline_mode = #tpu.pipeline_mode<synchronous>, transform_indices = @transform_3, window_bounds = array<i64: 128, 128>}, {transform_indices = @transform_4, window_bounds = array<i64: 256, 128>}]} {
    %c0_i32 = arith.constant 0 : i32
    %0 = arith.cmpi eq, %arg1, %c0_i32 : i32
    %1 = arith.extui %0 : i1 to i32
    %c0_i32_0 = arith.constant 0 : i32
    %2 = arith.cmpi ne, %1, %c0_i32_0 : i32
    scf.if %2 {
      %cst = arith.constant 0.000000e+00 : f32
      %11 = vector.broadcast %cst : f32 to vector<256x128xf32>
      %c0 = arith.constant 0 : index
      %c0_4 = arith.constant 0 : index
      %12 = vector.load %arg9[%c0, %c0_4] : memref<256x128xf32, #tpu.memory_space<vmem>>, vector<256x128xf32>
      tpu.vector_store %arg9[%c0, %c0_4], %11 {strides = array<i32>} : memref<256x128xf32, #tpu.memory_space<vmem>>, vector<256x128xf32>,
    } else {
    }
    %3 = arith.index_cast %arg0 : i32 to index
    %4 = memref.load %arg3[%3] : memref<4xi32, #tpu.memory_space<smem>>
    %5 = arith.cmpi slt, %arg1, %4 : i32
    %6 = arith.extui %5 : i1 to i32
    %c0_i32_1 = arith.constant 0 : i32
    %7 = arith.cmpi ne, %6, %c0_i32_1 : i32
    scf.if %7 {
      %11 = arith.index_cast %arg0 : i32 to index
      %12 = arith.index_cast %arg1 : i32 to index
      %13 = memref.load %arg2[%11, %12] : memref<4x1xi32, #tpu.memory_space<smem>>
      %14 = arith.index_cast %13 : i32 to index
      %c0 = arith.constant 0 : index
      %c0_4 = arith.constant 0 : index
      %15 = vector.load %arg5[%14, %c0, %c0_4] : memref<1x1024x128xbf16, #tpu.memory_space<vmem>>, vector<1x1024x128xbf16>
      %16 = vector.shape_cast %15 : vector<1x1024x128xbf16> to vector<1024x128xbf16>
      %c0_5 = arith.constant 0 : index
      %c0_6 = arith.constant 0 : index
      %17 = vector.load %arg9[%c0_5, %c0_6] : memref<256x128xf32, #tpu.memory_space<vmem>>, vector<256x128xf32>
      %c0_7 = arith.constant 0 : index
      %c0_8 = arith.constant 0 : index
      %18 = vector.load %arg4[%c0_7, %c0_8] : memref<256x1024xbf16, #tpu.memory_space<vmem>>, vector<256x1024xbf16>
      %cst = arith.constant dense<0.000000e+00> : vector<256x128xf32>
      %19 = tpu.matmul %18, %16, %cst {dimension_numbers = #tpu.dot_dimension_numbers<[1], [0], [0], [1], [0, 0, 1, 1], [], []>} : vector<256x1024xbf16>, vector<1024x128xbf16>, vector<256x128xf32> -> vector<256x128xf32>
      %20 = arith.addf %17, %19 : vector<256x128xf32>
      %c0_9 = arith.constant 0 : index
      %c0_10 = arith.constant 0 : index
      %21 = vector.load %arg9[%c0_9, %c0_10] : memref<256x128xf32, #tpu.memory_space<vmem>>, vector<256x128xf32>
      tpu.vector_store %arg9[%c0_9, %c0_10], %20 {strides = array<i32>} : memref<256x128xf32, #tpu.memory_space<vmem>>, vector<256x128xf32>,
    } else {
    }
    %c0_i32_2 = arith.constant 0 : i32
    %8 = arith.cmpi eq, %arg1, %c0_i32_2 : i32
    %9 = arith.extui %8 : i1 to i32
    %c0_i32_3 = arith.constant 0 : i32
    %10 = arith.cmpi ne, %9, %c0_i32_3 : i32
    scf.if %10 {
      %c0 = arith.constant 0 : index
      %c0_4 = arith.constant 0 : index
      %11 = vector.load %arg9[%c0, %c0_4] : memref<256x128xf32, #tpu.memory_space<vmem>>, vector<256x128xf32>
      %c0_5 = arith.constant 0 : index
      %c0_6 = arith.constant 0 : index
      %12 = vector.load %arg6[%c0_5, %c0_6] : memref<1x128xf32, #tpu.memory_space<vmem>>, vector<1x128xf32>
      %13 = vector.broadcast %12 : vector<1x128xf32> to vector<256x128xf32>
      %14 = arith.addf %11, %13 : vector<256x128xf32>
      %cst = arith.constant 0.000000e+00 : f32
      %15 = vector.broadcast %cst : f32 to vector<256x128xf32>
      %16 = arith.maximumf %14, %15 : vector<256x128xf32>
      %17 = arith.truncf %16 : vector<256x128xf32> to vector<256x128xbf16>
      %c0_7 = arith.constant 0 : index
      %c0_8 = arith.constant 0 : index
      %18 = vector.load %arg7[%c0_7, %c0_8] : memref<128x128xbf16, #tpu.memory_space<vmem>>, vector<128x128xbf16>
      %cst_9 = arith.constant dense<0.000000e+00> : vector<256x128xf32>
      %19 = tpu.matmul %17, %18, %cst_9 {dimension_numbers = #tpu.dot_dimension_numbers<[1], [0], [0], [1], [0, 0, 1, 1], [], []>} : vector<256x128xbf16>, vector<128x128xbf16>, vector<256x128xf32> -> vector<256x128xf32>
      %20 = arith.truncf %19 : vector<256x128xf32> to vector<256x128xbf16>
      %c0_10 = arith.constant 0 : index
      %c0_11 = arith.constant 0 : index
      %21 = vector.load %arg8[%c0_10, %c0_11] : memref<256x128xbf16, #tpu.memory_space<vmem>>, vector<256x128xbf16>
      tpu.vector_store %arg8[%c0_10, %c0_11], %20 {strides = array<i32>} : memref<256x128xbf16, #tpu.memory_space<vmem>>, vector<256x128xbf16>,
    } else {
    }
    return
  }
  func.func @transform_0(%arg0: i32, %arg1: i32, %arg2: memref<4x1xi32, #tpu.memory_space<smem>>, %arg3: memref<4xi32, #tpu.memory_space<smem>>) -> (i32, i32) {
    %0 = arith.index_cast %arg0 : i32 to index
    %1 = arith.index_cast %arg1 : i32 to index
    %2 = memref.load %arg2[%0, %1] : memref<4x1xi32, #tpu.memory_space<smem>>
    %c0_i32 = arith.constant 0 : i32
    return %arg0, %2 : i32, i32
  }
  func.func @transform_1(%arg0: i32, %arg1: i32, %arg2: memref<4x1xi32, #tpu.memory_space<smem>>, %arg3: memref<4xi32, #tpu.memory_space<smem>>) -> (i32, i32, i32) {
    %c0_i32 = arith.constant 0 : i32
    %c0_i32_0 = arith.constant 0 : i32
    %c0_i32_1 = arith.constant 0 : i32
    %c0_i32_2 = arith.constant 0 : i32
    return %c0_i32, %c0_i32_0, %c0_i32_1 : i32, i32, i32
  }
  func.func @transform_2(%arg0: i32, %arg1: i32, %arg2: memref<4x1xi32, #tpu.memory_space<smem>>, %arg3: memref<4xi32, #tpu.memory_space<smem>>) -> (i32, i32) {
    %c0_i32 = arith.constant 0 : i32
    %c0_i32_0 = arith.constant 0 : i32
    %c0_i32_1 = arith.constant 0 : i32
    return %c0_i32, %c0_i32_0 : i32, i32
  }
  func.func @transform_3(%arg0: i32, %arg1: i32, %arg2: memref<4x1xi32, #tpu.memory_space<smem>>, %arg3: memref<4xi32, #tpu.memory_space<smem>>) -> (i32, i32) {
    %c0_i32 = arith.constant 0 : i32
    %c0_i32_0 = arith.constant 0 : i32
    %c0_i32_1 = arith.constant 0 : i32
    return %c0_i32, %c0_i32_0 : i32, i32
  }
  func.func @transform_4(%arg0: i32, %arg1: i32, %arg2: memref<4x1xi32, #tpu.memory_space<smem>>, %arg3: memref<4xi32, #tpu.memory_space<smem>>) -> (i32, i32) {
    %c0_i32 = arith.constant 0 : i32
    %c0_i32_0 = arith.constant 0 : i32
    return %arg0, %c0_i32 : i32, i32
  }
}

module attributes {stable_mosaic.version = 11 : i64} {
  func.func @_aggregate_kernel(%arg0: i32, %arg1: i32, %arg2: memref<4x1xi32, #tpu.memory_space<smem>>, %arg3: memref<4xi32, #tpu.memory_space<smem>>, %arg4: memref<256x1024xbf16, #tpu.memory_space<vmem>>, %arg5: memref<1x1024x128xbf16, #tpu.memory_space<vmem>>, %arg6: memref<1x128xf32, #tpu.memory_space<vmem>>, %arg7: memref<256x128xf32, #tpu.memory_space<vmem>>, %arg8: memref<256x128xf32, #tpu.memory_space<vmem>>) attributes {dimension_semantics = [#tpu.dimension_semantics<parallel>, #tpu.dimension_semantics<arbitrary>], iteration_bounds = array<i64: 4, 1>, scalar_prefetch = 2 : i64, scratch_operands = 1 : i64, tpu.core_type = #tpu.core_type<tc>, window_params = [{transform_indices = @transform_0, window_bounds = array<i64: 256, 1024>}, {pipeline_mode = #tpu.pipeline_mode<synchronous>, transform_indices = @transform_1, window_bounds = array<i64: 1, 1024, 128>}, {pipeline_mode = #tpu.pipeline_mode<synchronous>, transform_indices = @transform_2, window_bounds = array<i64: 1, 128>}, {transform_indices = @transform_3, window_bounds = array<i64: 256, 128>}]} {
    %c0_i32 = arith.constant 0 : i32
    %0 = arith.cmpi eq, %arg1, %c0_i32 : i32
    %1 = arith.extui %0 : i1 to i32
    %c0_i32_0 = arith.constant 0 : i32
    %2 = arith.cmpi ne, %1, %c0_i32_0 : i32
    scf.if %2 {
      %cst = arith.constant 0.000000e+00 : f32
      %11 = vector.broadcast %cst : f32 to vector<256x128xf32>
      %c0 = arith.constant 0 : index
      %c0_4 = arith.constant 0 : index
      %12 = vector.load %arg8[%c0, %c0_4] : memref<256x128xf32, #tpu.memory_space<vmem>>, vector<256x128xf32>
      tpu.vector_store %arg8[%c0, %c0_4], %11 {strides = array<i32>} : memref<256x128xf32, #tpu.memory_space<vmem>>, vector<256x128xf32>,
    } else {
    }
    %3 = arith.index_cast %arg0 : i32 to index
    %4 = memref.load %arg3[%3] : memref<4xi32, #tpu.memory_space<smem>>
    %5 = arith.cmpi slt, %arg1, %4 : i32
    %6 = arith.extui %5 : i1 to i32
    %c0_i32_1 = arith.constant 0 : i32
    %7 = arith.cmpi ne, %6, %c0_i32_1 : i32
    scf.if %7 {
      %11 = arith.index_cast %arg0 : i32 to index
      %12 = arith.index_cast %arg1 : i32 to index
      %13 = memref.load %arg2[%11, %12] : memref<4x1xi32, #tpu.memory_space<smem>>
      %14 = arith.index_cast %13 : i32 to index
      %c0 = arith.constant 0 : index
      %c0_4 = arith.constant 0 : index
      %15 = vector.load %arg5[%14, %c0, %c0_4] : memref<1x1024x128xbf16, #tpu.memory_space<vmem>>, vector<1x1024x128xbf16>
      %16 = vector.shape_cast %15 : vector<1x1024x128xbf16> to vector<1024x128xbf16>
      %c0_5 = arith.constant 0 : index
      %c0_6 = arith.constant 0 : index
      %17 = vector.load %arg8[%c0_5, %c0_6] : memref<256x128xf32, #tpu.memory_space<vmem>>, vector<256x128xf32>
      %c0_7 = arith.constant 0 : index
      %c0_8 = arith.constant 0 : index
      %18 = vector.load %arg4[%c0_7, %c0_8] : memref<256x1024xbf16, #tpu.memory_space<vmem>>, vector<256x1024xbf16>
      %cst = arith.constant dense<0.000000e+00> : vector<256x128xf32>
      %19 = tpu.matmul %18, %16, %cst {dimension_numbers = #tpu.dot_dimension_numbers<[1], [0], [0], [1], [0, 0, 1, 1], [], []>} : vector<256x1024xbf16>, vector<1024x128xbf16>, vector<256x128xf32> -> vector<256x128xf32>
      %20 = arith.addf %17, %19 : vector<256x128xf32>
      %c0_9 = arith.constant 0 : index
      %c0_10 = arith.constant 0 : index
      %21 = vector.load %arg8[%c0_9, %c0_10] : memref<256x128xf32, #tpu.memory_space<vmem>>, vector<256x128xf32>
      tpu.vector_store %arg8[%c0_9, %c0_10], %20 {strides = array<i32>} : memref<256x128xf32, #tpu.memory_space<vmem>>, vector<256x128xf32>,
    } else {
    }
    %c0_i32_2 = arith.constant 0 : i32
    %8 = arith.cmpi eq, %arg1, %c0_i32_2 : i32
    %9 = arith.extui %8 : i1 to i32
    %c0_i32_3 = arith.constant 0 : i32
    %10 = arith.cmpi ne, %9, %c0_i32_3 : i32
    scf.if %10 {
      %c0 = arith.constant 0 : index
      %c0_4 = arith.constant 0 : index
      %11 = vector.load %arg8[%c0, %c0_4] : memref<256x128xf32, #tpu.memory_space<vmem>>, vector<256x128xf32>
      %c0_5 = arith.constant 0 : index
      %c0_6 = arith.constant 0 : index
      %12 = vector.load %arg6[%c0_5, %c0_6] : memref<1x128xf32, #tpu.memory_space<vmem>>, vector<1x128xf32>
      %13 = vector.broadcast %12 : vector<1x128xf32> to vector<256x128xf32>
      %14 = arith.addf %11, %13 : vector<256x128xf32>
      %15 = tpu.iota {dimensions = array<i32: 1>} : vector<256x128xi32>
      %c8_i32 = arith.constant 8 : i32
      %16 = vector.broadcast %c8_i32 : i32 to vector<256x128xi32>
      %17 = arith.cmpi slt, %15, %16 : vector<256x128xi32>
      %cst = arith.constant 0xFF800000 : f32
      %18 = vector.broadcast %cst : f32 to vector<256x128xf32>
      %19 = arith.select %17, %14, %18 : vector<256x128xi1>, vector<256x128xf32>
      %cst_7 = arith.constant dense<0xFF800000> : vector<256xf32>
      %20 = vector.multi_reduction <maximumf>, %19, %cst_7 [1] : vector<256x128xf32> to vector<256xf32>
      %21 = vector.shape_cast %20 : vector<256xf32> to vector<256x1xf32>
      %22 = vector.broadcast %21 : vector<256x1xf32> to vector<256x128xf32>
      %23 = arith.subf %19, %22 : vector<256x128xf32>
      %24 = math.exp %23 : vector<256x128xf32>
      %cst_8 = arith.constant dense<0.000000e+00> : vector<256xf32>
      %25 = vector.multi_reduction <add>, %24, %cst_8 [1] : vector<256x128xf32> to vector<256xf32>
      %26 = vector.shape_cast %25 : vector<256xf32> to vector<256x1xf32>
      %27 = math.log %26 : vector<256x1xf32>
      %28 = arith.addf %21, %27 : vector<256x1xf32>
      %c8_i32_9 = arith.constant 8 : i32
      %29 = vector.broadcast %c8_i32_9 : i32 to vector<256x128xi32>
      %30 = arith.cmpi slt, %15, %29 : vector<256x128xi32>
      %31 = vector.broadcast %28 : vector<256x1xf32> to vector<256x128xf32>
      %32 = arith.subf %19, %31 : vector<256x128xf32>
      %cst_10 = arith.constant 0.000000e+00 : f32
      %33 = vector.broadcast %cst_10 : f32 to vector<256x128xf32>
      %34 = arith.select %30, %32, %33 : vector<256x128xi1>, vector<256x128xf32>
      %c0_11 = arith.constant 0 : index
      %c0_12 = arith.constant 0 : index
      %35 = vector.load %arg7[%c0_11, %c0_12] : memref<256x128xf32, #tpu.memory_space<vmem>>, vector<256x128xf32>
      tpu.vector_store %arg7[%c0_11, %c0_12], %34 {strides = array<i32>} : memref<256x128xf32, #tpu.memory_space<vmem>>, vector<256x128xf32>,
    } else {
    }
    return
  }
  func.func @transform_0(%arg0: i32, %arg1: i32, %arg2: memref<4x1xi32, #tpu.memory_space<smem>>, %arg3: memref<4xi32, #tpu.memory_space<smem>>) -> (i32, i32) {
    %0 = arith.index_cast %arg0 : i32 to index
    %1 = arith.index_cast %arg1 : i32 to index
    %2 = memref.load %arg2[%0, %1] : memref<4x1xi32, #tpu.memory_space<smem>>
    %c0_i32 = arith.constant 0 : i32
    return %arg0, %2 : i32, i32
  }
  func.func @transform_1(%arg0: i32, %arg1: i32, %arg2: memref<4x1xi32, #tpu.memory_space<smem>>, %arg3: memref<4xi32, #tpu.memory_space<smem>>) -> (i32, i32, i32) {
    %c0_i32 = arith.constant 0 : i32
    %c0_i32_0 = arith.constant 0 : i32
    %c0_i32_1 = arith.constant 0 : i32
    %c0_i32_2 = arith.constant 0 : i32
    return %c0_i32, %c0_i32_0, %c0_i32_1 : i32, i32, i32
  }
  func.func @transform_2(%arg0: i32, %arg1: i32, %arg2: memref<4x1xi32, #tpu.memory_space<smem>>, %arg3: memref<4xi32, #tpu.memory_space<smem>>) -> (i32, i32) {
    %c0_i32 = arith.constant 0 : i32
    %c0_i32_0 = arith.constant 0 : i32
    %c0_i32_1 = arith.constant 0 : i32
    return %c0_i32, %c0_i32_0 : i32, i32
  }
  func.func @transform_3(%arg0: i32, %arg1: i32, %arg2: memref<4x1xi32, #tpu.memory_space<smem>>, %arg3: memref<4xi32, #tpu.memory_space<smem>>) -> (i32, i32) {
    %c0_i32 = arith.constant 0 : i32
    %c0_i32_0 = arith.constant 0 : i32
    return %arg0, %c0_i32 : i32, i32
  }
}

</mosaic_0001>

<llo_original>
// kernel: gcn_forward.3
$region0: #{gcn_forward.3}
  #allocation0 [shape = 'u32[]', space=smem, size = 0x4, offset = 0x4, fixed_abs, tag = 'smem constant byte address 0x4 - core index']
  #allocation1 [shape = 'u32[144,128]{1,0:T(1,128)}', space=vmem, size = 0x12000, scoped, tag = 'internal scratch']
  %s0 = inlined_call_operand.hbm [shape: bf16[1024,128], index: 0, kind: input, shape index: {}]
  %s1 = inlined_call_operand.hbm [shape: bf16[128,128], index: 1, kind: input, shape index: {}]
  %s2 = inlined_call_operand.vmem [shape: bf16[1024,128], index: 2, kind: output, shape index: {}]
  %s3 = sld [smem:[#allocation0]]
  $region49: #{gcn_forward.3} parent=0
    _
  %s5 = ssub.s32 1, %s3
  %s6 = scalar_select 0, %s5, %s3
  $region1: #{gcn_forward.3} parent=0
    #allocation2 [shape = 'u8[262144]{0}', space=vmem, size = 0x40000, scoped, tag = 'input window, operand 0']
    #allocation3 [shape = 's32[2]{0}', space=sflag, size = 0x8, scoped, tag = 'scoped memory for gcn_forward.3']
    #allocation4 [shape = 'u8[32768]{0}', space=vmem, size = 0x8000, scoped, tag = 'input window, operand 1, single buffered']
    #allocation5 [shape = 's32[1]{0}', space=sflag, size = 0x4, scoped, tag = 'scoped memory for gcn_forward.3']
    %7 = vsyncpa [#allocation3], 0
    %s8 = scalar_lea.sflag [#allocation3], 1
    %9 = vsyncpa %s8, 0
    %10 = vsyncpa [#allocation5], 0
    loop: start=0, step=1, limit=4
    $region2: #{gcn_forward.3} parent=1 // loop_pre_header
      _
    $region3: #{gcn_forward.3} parent=1 // loop_header
      %s12 = sphi 0, %s16
      %p13 = scmp.ge.s32.totalorder %s12, 4
      %s22 = sphi 0, %s24
      %s25 = sphi 0, %s22
      %s26 = sphi 0, %s25
      %s42 = sphi 0, %s26
      %s46 = sphi 0, %s46
      %s48 = sphi 0, %s46
      %s49 = sphi 0, %s48
      %s63 = sphi 0, %s49
      %s69 = sphi 0, %s71
      %s72 = sphi 0, %s69
      %s73 = sphi 0, %s72
      %s89 = sphi 0, %s73
    $region4: #{gcn_forward.3} parent=1 // loop_header_branch
      %15 = sbr.rel (%p13) target = $region8
    $region5: #{gcn_forward.3} parent=1 // loop_body
      %s17 = ssub.s32 %s12, 1
      %s18 = ssub.s32 %s12, 2
      %s19 = sadd.s32 %s12, 1
      %s20 = ssub.s32 %s12, %s19
      %p21 = scmp.eq.s32.totalorder %s20, 0
      %s23 = sadd.s32 %s22, 1
      %s24 = scalar_select %p21, %s22, %s23
      %p27 = pneg %p21
      %p28 = scmp.eq.s32.totalorder %s12, 1
      %p29 = por %p27, %p28
      %p30 = scmp.ne.s32.totalorder %s22, %s25
      %p31 = scmp.eq.s32.totalorder %s12, 0
      %p32 = por %p30, %p31
      %p33 = scmp.ne.s32.totalorder %s22, %s25
      %p34 = scmp.eq.s32.totalorder %s17, 1
      %p35 = por %p33, %p34
      %p36 = scmp.ne.s32.totalorder %s25, %s26
      %p37 = scmp.eq.s32.totalorder %s17, 0
      %p38 = por %p36, %p37
      %p39 = scmp.ne.s32.totalorder %s25, %s26
      %p40 = scmp.eq.s32.totalorder %s18, 1
      %p41 = por %p39, %p40
      %p43 = scmp.ne.s32.totalorder %s26, %s42
      %p44 = scmp.eq.s32.totalorder %s18, 0
      %p45 = por %p43, %p44
      %s47 = sadd.s32 %s46, 1
      %p50 = scmp.eq.s32.totalorder %s12, 1
      %p51 = scmp.ne.s32.totalorder %s46, %s48
      %p52 = scmp.eq.s32.totalorder %s12, 0
      %p53 = por %p51, %p52
      %p54 = scmp.ne.s32.totalorder %s46, %s48
      %p55 = scmp.eq.s32.totalorder %s17, 1
      %p56 = por %p54, %p55
      %p57 = scmp.ne.s32.totalorder %s48, %s49
      %p58 = scmp.eq.s32.totalorder %s17, 0
      %p59 = por %p57, %p58
      %p60 = scmp.ne.s32.totalorder %s48, %s49
      %p61 = scmp.eq.s32.totalorder %s18, 1
      %p62 = por %p60, %p61
      %p64 = scmp.ne.s32.totalorder %s49, %s63
      %p65 = scmp.eq.s32.totalorder %s18, 0
      %p66 = por %p64, %p65
      %s67 = ssub.s32 %s12, %s19
      %p68 = scmp.eq.s32.totalorder %s67, 0
      %s70 = sadd.s32 %s69, 1
      %s71 = scalar_select %p68, %s69, %s70
      %p74 = pneg %p68
      %p75 = scmp.eq.s32.totalorder %s12, 1
      %p76 = por %p74, %p75
      %p77 = scmp.ne.s32.totalorder %s69, %s72
      %p78 = scmp.eq.s32.totalorder %s12, 0
      %p79 = por %p77, %p78
      %p80 = scmp.ne.s32.totalorder %s69, %s72
      %p81 = scmp.eq.s32.totalorder %s17, 1
      %p82 = por %p80, %p81
      %p83 = scmp.ne.s32.totalorder %s72, %s73
      %p84 = scmp.eq.s32.totalorder %s17, 0
      %p85 = por %p83, %p84
      %p86 = scmp.ne.s32.totalorder %s72, %s73
      %p87 = scmp.eq.s32.totalorder %s18, 1
      %p88 = por %p86, %p87
      %p90 = scmp.ne.s32.totalorder %s73, %s89
      %p91 = scmp.eq.s32.totalorder %s18, 0
      %p92 = por %p90, %p91
      %p93 = scmp.le.s32.totalorder 1, %s12
      %p94 = scmp.lt.s32.totalorder %s12, 3
      %p95 = pnand %p93, %p94
      %p96 = pneg %p95
      // Predicated region
      $region9: #{gcn_forward.3} parent=5 // pred_check
        _
      $region10: #{gcn_forward.3} parent=5 // pred_check_branch
        %98 = sbr.rel (%p95) target = $region12
      $region11: #{gcn_forward.3} parent=5 // pred_region
        %s99 = ssub.s32 %s12, 1
        // Predicated region
        $region13: #{gcn_forward.3} parent=11 // pred_check
          %p100 = pneg %p59
        $region14: #{gcn_forward.3} parent=11 // pred_check_branch
          %102 = sbr.rel (%p100) target = $region16
        $region15: #{gcn_forward.3} parent=11 // pred_region
          %s104 = ssub.s32 1024, 1024
          %105 = vsyncadd [#allocation5], %s104
          %s106 = sshll.u32 [#allocation4], 4
          %s107 = int_to_ptr.vmem [resolvable:$true] %s106
          %112 = dma.hbm_to_vmem [thread:$0]  %s1, 1024, %s107, [#allocation5], 64, 64, 4
        $region16: #{gcn_forward.3} parent=11 // pred_fallthru
          _
      $region12: #{gcn_forward.3} parent=5 // pred_fallthru
        _
      %p113 = scmp.lt.s32.totalorder %s12, 2
      // Predicated region
      $region17: #{gcn_forward.3} parent=5 // pred_check
        %p114 = pneg %p113
      $region18: #{gcn_forward.3} parent=5 // pred_check_branch
        %116 = sbr.rel (%p114) target = $region20
      $region19: #{gcn_forward.3} parent=5 // pred_region
        // Predicated region
        $region21: #{gcn_forward.3} parent=19 // pred_check
          %p117 = pneg %p32
        $region22: #{gcn_forward.3} parent=19 // pred_check_branch
          %119 = sbr.rel (%p117) target = $region24
        $region23: #{gcn_forward.3} parent=19 // pred_region
          %s120 = sand.u32 %s22, 1
          %s121 = scalar_lea.sflag [#allocation3], %s120
          %s122 = sand.u32 %s22, 1
          %s123 = smul.addr %s122, 256
          %s124 = scalar_lea.vmem [#allocation2], %s123
          %s125 = smul.u32 64, %s12
          %s127 = ssub.s32 4096, 4096
          %128 = vsyncadd %s121, %s127
          %s129 = smul.addr %s125, 64
          %s130 = scalar_lea.hbm %s0, %s129
          %s131 = sshll.u32 %s124, 4
          %s132 = int_to_ptr.vmem [resolvable:$true] %s131
          %137 = dma.hbm_to_vmem [thread:$0]  %s130, 4096, %s132, %s121, 64, 64, 4
        $region24: #{gcn_forward.3} parent=19 // pred_fallthru
          _
      $region20: #{gcn_forward.3} parent=5 // pred_fallthru
        _
      %p138 = scmp.le.s32.totalorder 1, %s12
      %p139 = scmp.lt.s32.totalorder %s12, 3
      %p140 = pnand %p138, %p139
      %p141 = pneg %p140
      // Predicated region
      $region25: #{gcn_forward.3} parent=5 // pred_check
        _
      $region26: #{gcn_forward.3} parent=5 // pred_check_branch
        %143 = sbr.rel (%p140) target = $region28
      $region27: #{gcn_forward.3} parent=5 // pred_region
        %s144 = ssub.s32 %s12, 1
        %s145 = sand.u32 %s25, 1
        %s146 = scalar_lea.sflag [#allocation3], %s145
        %s147 = sand.u32 %s25, 1
        %s148 = smul.addr %s147, 256
        %s149 = scalar_lea.vmem [#allocation2], %s148
        // Predicated region
        $region29: #{gcn_forward.3} parent=27 // pred_check
          %p150 = pneg %p38
        $region30: #{gcn_forward.3} parent=27 // pred_check_branch
          %152 = sbr.rel (%p150) target = $region32
        $region31: #{gcn_forward.3} parent=27 // pred_region
          %153 = dma.done %s146, 4096
        $region32: #{gcn_forward.3} parent=27 // pred_fallthru
          _
        // Predicated region
        $region33: #{gcn_forward.3} parent=27 // pred_check
          %p154 = pneg %p59
        $region34: #{gcn_forward.3} parent=27 // pred_check_branch
          %156 = sbr.rel (%p154) target = $region36
        $region35: #{gcn_forward.3} parent=27 // pred_region
          %157 = dma.done [#allocation5], 1024
        $region36: #{gcn_forward.3} parent=27 // pred_fallthru
          _
        %s158 = sand.u32 %s25, 1
        %s159 = scalar_lea.sflag [#allocation3], %s158
        %s160 = sand.u32 %s25, 1
        %s161 = smul.addr %s160, 256
        %s162 = scalar_lea.vmem [#allocation2], %s161
        %p163 = pneg %p38
        %p164 = pneg %p35
        %p165 = pneg %p59
        %p166 = pneg %p56
        %p167 = pneg %p85
        %p168 = pneg %p82
        %s169 = smul.u32 64, %s17
        %p170 = scmp.lt.s32.totalorder %s169, 127
        %s171 = scalar_select %p170, %s169, 127
        %s172 = smul.addr %s171, 4
        %s173 = scalar_lea.vmem %s2, %s172
        %s174 = smul.u32 64, %s17
        %s175 = smul.u32 64, %s17
        %p176 = scmp.lt.s32.totalorder %s175, 127
        %s177 = scalar_select %p176, %s175, 127
        %s178 = smul.addr %s177, 4
        %s179 = scalar_lea.vmem %s2, %s178
        %s180 = smul.u32 64, %s17
        %v182 = vld [vmem:[%s149] sm:$0xf]
        %v183 = vld [vmem:[%s149 + $0x4] sm:$0xf]
        %v184 = vld [vmem:[%s149 + $0x8] sm:$0xf]
        %v185 = vld [vmem:[%s149 + $0xc] sm:$0xf]
        %v186 = vld [vmem:[%s149 + $0x10] sm:$0xf]
        %v187 = vld [vmem:[%s149 + $0x14] sm:$0xf]
        %v188 = vld [vmem:[%s149 + $0x18] sm:$0xf]
        %v189 = vld [vmem:[%s149 + $0x1c] sm:$0xf]
        %v190 = vld [vmem:[%s149 + $0x20] sm:$0xf]
        %v191 = vld [vmem:[%s149 + $0x24] sm:$0xf]
        %v192 = vld [vmem:[%s149 + $0x28] sm:$0xf]
        %v193 = vld [vmem:[%s149 + $0x2c] sm:$0xf]
        %v194 = vld [vmem:[%s149 + $0x30] sm:$0xf]
        %v195 = vld [vmem:[%s149 + $0x34] sm:$0xf]
        %v196 = vld [vmem:[%s149 + $0x38] sm:$0xf]
        %v197 = vld [vmem:[%s149 + $0x3c] sm:$0xf]
        %v198 = vld [vmem:[%s149 + $0x40] sm:$0xf]
        %v199 = vld [vmem:[%s149 + $0x44] sm:$0xf]
        %v200 = vld [vmem:[%s149 + $0x48] sm:$0xf]
        %v201 = vld [vmem:[%s149 + $0x4c] sm:$0xf]
        %v202 = vld [vmem:[%s149 + $0x50] sm:$0xf]
        %v203 = vld [vmem:[%s149 + $0x54] sm:$0xf]
        %v204 = vld [vmem:[%s149 + $0x58] sm:$0xf]
        %v205 = vld [vmem:[%s149 + $0x5c] sm:$0xf]
        %v206 = vld [vmem:[%s149 + $0x60] sm:$0xf]
        %v207 = vld [vmem:[%s149 + $0x64] sm:$0xf]
        %v208 = vld [vmem:[%s149 + $0x68] sm:$0xf]
        %v209 = vld [vmem:[%s149 + $0x6c] sm:$0xf]
        %v210 = vld [vmem:[%s149 + $0x70] sm:$0xf]
        %v211 = vld [vmem:[%s149 + $0x74] sm:$0xf]
        %v212 = vld [vmem:[%s149 + $0x78] sm:$0xf]
        %v213 = vld [vmem:[%s149 + $0x7c] sm:$0xf]
        %v214 = vld [vmem:[%s149 + $0x80] sm:$0xf]
        %v215 = vld [vmem:[%s149 + $0x84] sm:$0xf]
        %v216 = vld [vmem:[%s149 + $0x88] sm:$0xf]
        %v217 = vld [vmem:[%s149 + $0x8c] sm:$0xf]
        %v218 = vld [vmem:[%s149 + $0x90] sm:$0xf]
        %v219 = vld [vmem:[%s149 + $0x94] sm:$0xf]
        %v220 = vld [vmem:[%s149 + $0x98] sm:$0xf]
        %v221 = vld [vmem:[%s149 + $0x9c] sm:$0xf]
        %v222 = vld [vmem:[%s149 + $0xa0] sm:$0xf]
        %v223 = vld [vmem:[%s149 + $0xa4] sm:$0xf]
        %v224 = vld [vmem:[%s149 + $0xa8] sm:$0xf]
        %v225 = vld [vmem:[%s149 + $0xac] sm:$0xf]
        %v226 = vld [vmem:[%s149 + $0xb0] sm:$0xf]
        %v227 = vld [vmem:[%s149 + $0xb4] sm:$0xf]
        %v228 = vld [vmem:[%s149 + $0xb8] sm:$0xf]
        %v229 = vld [vmem:[%s149 + $0xbc] sm:$0xf]
        %v230 = vld [vmem:[%s149 + $0xc0] sm:$0xf]
        %v231 = vld [vmem:[%s149 + $0xc4] sm:$0xf]
        %v232 = vld [vmem:[%s149 + $0xc8] sm:$0xf]
        %v233 = vld [vmem:[%s149 + $0xcc] sm:$0xf]
        %v234 = vld [vmem:[%s149 + $0xd0] sm:$0xf]
        %v235 = vld [vmem:[%s149 + $0xd4] sm:$0xf]
        %v236 = vld [vmem:[%s149 + $0xd8] sm:$0xf]
        %v237 = vld [vmem:[%s149 + $0xdc] sm:$0xf]
        %v238 = vld [vmem:[%s149 + $0xe0] sm:$0xf]
        %v239 = vld [vmem:[%s149 + $0xe4] sm:$0xf]
        %v240 = vld [vmem:[%s149 + $0xe8] sm:$0xf]
        %v241 = vld [vmem:[%s149 + $0xec] sm:$0xf]
        %v242 = vld [vmem:[%s149 + $0xf0] sm:$0xf]
        %v243 = vld [vmem:[%s149 + $0xf4] sm:$0xf]
        %v244 = vld [vmem:[%s149 + $0xf8] sm:$0xf]
        %v245 = vld [vmem:[%s149 + $0xfc] sm:$0xf]
        %v246 = vld [vmem:[#allocation4] sm:$0xf]
        %v247 = vld [vmem:[#allocation4 + $0x4] sm:$0xf]
        %v248 = vld [vmem:[#allocation4 + $0x8] sm:$0xf]
        %v249 = vld [vmem:[#allocation4 + $0xc] sm:$0xf]
        %v250 = vld [vmem:[#allocation4 + $0x10] sm:$0xf]
        %v251 = vld [vmem:[#allocation4 + $0x14] sm:$0xf]
        %v252 = vld [vmem:[#allocation4 + $0x18] sm:$0xf]
        %v253 = vld [vmem:[#allocation4 + $0x1c] sm:$0xf]
        %v254 = vld [vmem:[#allocation4 + $0x20] sm:$0xf]
        %v255 = vld [vmem:[#allocation4 + $0x24] sm:$0xf]
        %v256 = vld [vmem:[#allocation4 + $0x28] sm:$0xf]
        %v257 = vld [vmem:[#allocation4 + $0x2c] sm:$0xf]
        %v258 = vld [vmem:[#allocation4 + $0x30] sm:$0xf]
        %v259 = vld [vmem:[#allocation4 + $0x34] sm:$0xf]
        %v260 = vld [vmem:[#allocation4 + $0x38] sm:$0xf]
        %v261 = vld [vmem:[#allocation4 + $0x3c] sm:$0xf]
        %v326 = vunpack.c.l.b16 %v182
        %v327 = vunpack.c.l.b16 %v183
        %v328 = vunpack.c.l.b16 %v184
        %v329 = vunpack.c.l.b16 %v185
        %v330 = vunpack.c.l.b16 %v186
        %v331 = vunpack.c.l.b16 %v187
        %v332 = vunpack.c.l.b16 %v188
        %v333 = vunpack.c.l.b16 %v189
        %v334 = vunpack.c.l.b16 %v190
        %v335 = vunpack.c.l.b16 %v191
        %v336 = vunpack.c.l.b16 %v192
        %v337 = vunpack.c.l.b16 %v193
        %v338 = vunpack.c.l.b16 %v194
        %v339 = vunpack.c.l.b16 %v195
        %v340 = vunpack.c.l.b16 %v196
        %v341 = vunpack.c.l.b16 %v197
        %v342 = vunpack.c.l.b16 %v198
        %v343 = vunpack.c.l.b16 %v199
        %v344 = vunpack.c.l.b16 %v200
        %v345 = vunpack.c.l.b16 %v201
        %v346 = vunpack.c.l.b16 %v202
        %v347 = vunpack.c.l.b16 %v203
        %v348 = vunpack.c.l.b16 %v204
        %v349 = vunpack.c.l.b16 %v205
        %v350 = vunpack.c.l.b16 %v206
        %v351 = vunpack.c.l.b16 %v207
        %v352 = vunpack.c.l.b16 %v208
        %v353 = vunpack.c.l.b16 %v209
        %v354 = vunpack.c.l.b16 %v210
        %v355 = vunpack.c.l.b16 %v211
        %v356 = vunpack.c.l.b16 %v212
        %v357 = vunpack.c.l.b16 %v213
        %v358 = vunpack.c.l.b16 %v214
        %v359 = vunpack.c.l.b16 %v215
        %v360 = vunpack.c.l.b16 %v216
        %v361 = vunpack.c.l.b16 %v217
        %v362 = vunpack.c.l.b16 %v218
        %v363 = vunpack.c.l.b16 %v219
        %v364 = vunpack.c.l.b16 %v220
        %v365 = vunpack.c.l.b16 %v221
        %v366 = vunpack.c.l.b16 %v222
        %v367 = vunpack.c.l.b16 %v223
        %v368 = vunpack.c.l.b16 %v224
        %v369 = vunpack.c.l.b16 %v225
        %v370 = vunpack.c.l.b16 %v226
        %v371 = vunpack.c.l.b16 %v227
        %v372 = vunpack.c.l.b16 %v228
        %v373 = vunpack.c.l.b16 %v229
        %v374 = vunpack.c.l.b16 %v230
        %v375 = vunpack.c.l.b16 %v231
        %v376 = vunpack.c.l.b16 %v232
        %v377 = vunpack.c.l.b16 %v233
        %v378 = vunpack.c.l.b16 %v234
        %v379 = vunpack.c.l.b16 %v235
        %v380 = vunpack.c.l.b16 %v236
        %v381 = vunpack.c.l.b16 %v237
        %v382 = vunpack.c.l.b16 %v238
        %v383 = vunpack.c.l.b16 %v239
        %v384 = vunpack.c.l.b16 %v240
        %v385 = vunpack.c.l.b16 %v241
        %v386 = vunpack.c.l.b16 %v242
        %v387 = vunpack.c.l.b16 %v243
        %v388 = vunpack.c.l.b16 %v244
        %v389 = vunpack.c.l.b16 %v245
        %v390 = vpack.c.b16 %v327, %v326
        %v391 = vpack.c.b16 %v329, %v328
        %v392 = vpack.c.b16 %v331, %v330
        %v393 = vpack.c.b16 %v333, %v332
        %v394 = vpack.c.b16 %v335, %v334
        %v395 = vpack.c.b16 %v337, %v336
        %v396 = vpack.c.b16 %v339, %v338
        %v397 = vpack.c.b16 %v341, %v340
        %v398 = vpack.c.b16 %v343, %v342
        %v399 = vpack.c.b16 %v345, %v344
        %v400 = vpack.c.b16 %v347, %v346
        %v401 = vpack.c.b16 %v349, %v348
        %v402 = vpack.c.b16 %v351, %v350
        %v403 = vpack.c.b16 %v353, %v352
        %v404 = vpack.c.b16 %v355, %v354
        %v405 = vpack.c.b16 %v357, %v356
        %v406 = vpack.c.b16 %v359, %v358
        %v407 = vpack.c.b16 %v361, %v360
        %v408 = vpack.c.b16 %v363, %v362
        %v409 = vpack.c.b16 %v365, %v364
        %v410 = vpack.c.b16 %v367, %v366
        %v411 = vpack.c.b16 %v369, %v368
        %v412 = vpack.c.b16 %v371, %v370
        %v413 = vpack.c.b16 %v373, %v372
        %v414 = vpack.c.b16 %v375, %v374
        %v415 = vpack.c.b16 %v377, %v376
        %v416 = vpack.c.b16 %v379, %v378
        %v417 = vpack.c.b16 %v381, %v380
        %v418 = vpack.c.b16 %v383, %v382
        %v419 = vpack.c.b16 %v385, %v384
        %v420 = vpack.c.b16 %v387, %v386
        %v421 = vpack.c.b16 %v389, %v388
        %v470 = vunpack.c.l.b16 %v246
        %v471 = vunpack.c.l.b16 %v247
        %v472 = vunpack.c.l.b16 %v248
        %v473 = vunpack.c.l.b16 %v249
        %v474 = vunpack.c.l.b16 %v250
        %v475 = vunpack.c.l.b16 %v251
        %v476 = vunpack.c.l.b16 %v252
        %v477 = vunpack.c.l.b16 %v253
        %v478 = vunpack.c.l.b16 %v254
        %v479 = vunpack.c.l.b16 %v255
        %v480 = vunpack.c.l.b16 %v256
        %v481 = vunpack.c.l.b16 %v257
        %v482 = vunpack.c.l.b16 %v258
        %v483 = vunpack.c.l.b16 %v259
        %v484 = vunpack.c.l.b16 %v260
        %v485 = vunpack.c.l.b16 %v261
        %v486 = vpack.c.b16 %v471, %v470
        %v487 = vpack.c.b16 %v473, %v472
        %v488 = vpack.c.b16 %v475, %v474
        %v489 = vpack.c.b16 %v477, %v476
        %v490 = vpack.c.b16 %v479, %v478
        %v491 = vpack.c.b16 %v481, %v480
        %v492 = vpack.c.b16 %v483, %v482
        %v493 = vpack.c.b16 %v485, %v484
        %502 = vmatprep.subr.bf16.mxu0 0
        %503 = vmatpush1.bf16.msra.mxu0 %v486
        %504 = vmatprep.subr.bf16.mxu0 0
        %505 = vmatpush1.bf16.msra.mxu0 %v487
        %506 = vmatprep.subr.bf16.mxu0 0
        %507 = vmatpush1.bf16.msra.mxu0 %v488
        %508 = vmatprep.subr.bf16.mxu0 0
        %509 = vmatpush1.bf16.msra.mxu0 %v489
        %510 = vmatprep.subr.bf16.mxu0 0
        %511 = vmatpush1.bf16.msra.mxu0 %v490
        %512 = vmatprep.subr.bf16.mxu0 0
        %513 = vmatpush1.bf16.msra.mxu0 %v491
        %514 = vmatprep.subr.bf16.mxu0 0
        %515 = vmatpush1.bf16.msra.mxu0 %v492
        %516 = vmatprep.subr.bf16.mxu0 0
        %517 = vmatpush1.bf16.msra.mxu0 %v493
        %518 = vmatprep.subr.bf16.mxu0 0
        %519 = vmatpush1.bf16.msra.mxu0 0
        %520 = vmatprep.subr.bf16.mxu0 0
        %521 = vmatpush1.bf16.msra.mxu0 0
        %522 = vmatprep.subr.bf16.mxu0 0
        %523 = vmatpush1.bf16.msra.mxu0 0
        %524 = vmatprep.subr.bf16.mxu0 0
        %525 = vmatpush1.bf16.msra.mxu0 0
        %526 = vmatprep.subr.bf16.mxu0 0
        %527 = vmatpush1.bf16.msra.mxu0 0
        %528 = vmatprep.subr.bf16.mxu0 0
        %529 = vmatpush1.bf16.msra.mxu0 0
        %530 = vmatprep.subr.bf16.mxu0 0
        %531 = vmatpush1.bf16.msra.mxu0 0
        %532 = vmatprep.subr.bf16.mxu0 0
        %533 = vmatpush1.bf16.msra.mxu0 0
        %534 = vmatprep.mubr.bf16.mxu0 0
        %535 = vmatmul.mubr.bf16.gmra.mrb[0].mxu0 %v390
        %v536 = vpop.f32.mrb[0].mxu0
        %v537 = vadd.f32 0.0, %v536
        %v538 = vpop.f32.mrb[0].mxu0
        %v539 = vpop.f32.mrb[0].mxu0
        %v540 = vadd.f32 0.0, %v539
        %v541 = vpop.f32.mrb[0].mxu0
        %542 = vmatprep.mubr.bf16.mxu0 0
        %543 = vmatmul.mubr.bf16.gmra.mrb[0].mxu0 %v391
        %v544 = vpop.f32.mrb[0].mxu0
        %v545 = vadd.f32 0.0, %v544
        %v546 = vpop.f32.mrb[0].mxu0
        %v547 = vpop.f32.mrb[0].mxu0
        %v548 = vadd.f32 0.0, %v547
        %v549 = vpop.f32.mrb[0].mxu0
        %550 = vmatprep.mubr.bf16.mxu0 0
        %551 = vmatmul.mubr.bf16.gmra.mrb[0].mxu0 %v392
        %v552 = vpop.f32.mrb[0].mxu0
        %v553 = vadd.f32 0.0, %v552
        %v554 = vpop.f32.mrb[0].mxu0
        %v555 = vpop.f32.mrb[0].mxu0
        %v556 = vadd.f32 0.0, %v555
        %v557 = vpop.f32.mrb[0].mxu0
        %558 = vmatprep.mubr.bf16.mxu0 0
        %559 = vmatmul.mubr.bf16.gmra.mrb[0].mxu0 %v393
        %v560 = vpop.f32.mrb[0].mxu0
        %v561 = vadd.f32 0.0, %v560
        %v562 = vpop.f32.mrb[0].mxu0
        %v563 = vpop.f32.mrb[0].mxu0
        %v564 = vadd.f32 0.0, %v563
        %v565 = vpop.f32.mrb[0].mxu0
        %566 = vmatprep.mubr.bf16.mxu0 0
        %567 = vmatmul.mubr.bf16.gmra.mrb[0].mxu0 %v394
        %v568 = vpop.f32.mrb[0].mxu0
        %v569 = vadd.f32 0.0, %v568
        %v570 = vpop.f32.mrb[0].mxu0
        %v571 = vpop.f32.mrb[0].mxu0
        %v572 = vadd.f32 0.0, %v571
        %v573 = vpop.f32.mrb[0].mxu0
        %574 = vmatprep.mubr.bf16.mxu0 0
        %575 = vmatmul.mubr.bf16.gmra.mrb[0].mxu0 %v395
        %v576 = vpop.f32.mrb[0].mxu0
        %v577 = vadd.f32 0.0, %v576
        %v578 = vpop.f32.mrb[0].mxu0
        %v579 = vpop.f32.mrb[0].mxu0
        %v580 = vadd.f32 0.0, %v579
        %v581 = vpop.f32.mrb[0].mxu0
        %582 = vmatprep.mubr.bf16.mxu0 0
        %583 = vmatmul.mubr.bf16.gmra.mrb[0].mxu0 %v396
        %v584 = vpop.f32.mrb[0].mxu0
        %v585 = vadd.f32 0.0, %v584
        %v586 = vpop.f32.mrb[0].mxu0
        %v587 = vpop.f32.mrb[0].mxu0
        %v588 = vadd.f32 0.0, %v587
        %v589 = vpop.f32.mrb[0].mxu0
        %590 = vmatprep.mubr.bf16.mxu0 0
        %591 = vmatmul.mubr.bf16.gmra.mrb[0].mxu0 %v397
        %v592 = vpop.f32.mrb[0].mxu0
        %v593 = vadd.f32 0.0, %v592
        %v594 = vpop.f32.mrb[0].mxu0
        %v595 = vpop.f32.mrb[0].mxu0
        %v596 = vadd.f32 0.0, %v595
        %v597 = vpop.f32.mrb[0].mxu0
        %598 = vmatprep.mubr.bf16.mxu0 0
        %599 = vmatmul.mubr.bf16.gmra.mrb[0].mxu0 %v398
        %v600 = vpop.f32.mrb[0].mxu0
        %v601 = vadd.f32 0.0, %v600
        %v602 = vpop.f32.mrb[0].mxu0
        %v603 = vpop.f32.mrb[0].mxu0
        %v604 = vadd.f32 0.0, %v603
        %v605 = vpop.f32.mrb[0].mxu0
        %606 = vmatprep.mubr.bf16.mxu0 0
        %607 = vmatmul.mubr.bf16.gmra.mrb[0].mxu0 %v399
        %v608 = vpop.f32.mrb[0].mxu0
        %v609 = vadd.f32 0.0, %v608
        %v610 = vpop.f32.mrb[0].mxu0
        %v611 = vpop.f32.mrb[0].mxu0
        %v612 = vadd.f32 0.0, %v611
        %v613 = vpop.f32.mrb[0].mxu0
        %614 = vmatprep.mubr.bf16.mxu0 0
        %615 = vmatmul.mubr.bf16.gmra.mrb[0].mxu0 %v400
        %v616 = vpop.f32.mrb[0].mxu0
        %v617 = vadd.f32 0.0, %v616
        %v618 = vpop.f32.mrb[0].mxu0
        %v619 = vpop.f32.mrb[0].mxu0
        %v620 = vadd.f32 0.0, %v619
        %v621 = vpop.f32.mrb[0].mxu0
        %622 = vmatprep.mubr.bf16.mxu0 0
        %623 = vmatmul.mubr.bf16.gmra.mrb[0].mxu0 %v401
        %v624 = vpop.f32.mrb[0].mxu0
        %v625 = vadd.f32 0.0, %v624
        %v626 = vpop.f32.mrb[0].mxu0
        %v627 = vpop.f32.mrb[0].mxu0
        %v628 = vadd.f32 0.0, %v627
        %v629 = vpop.f32.mrb[0].mxu0
        %630 = vmatprep.mubr.bf16.mxu0 0
        %631 = vmatmul.mubr.bf16.gmra.mrb[0].mxu0 %v402
        %v632 = vpop.f32.mrb[0].mxu0
        %v633 = vadd.f32 0.0, %v632
        %v634 = vpop.f32.mrb[0].mxu0
        %v635 = vpop.f32.mrb[0].mxu0
        %v636 = vadd.f32 0.0, %v635
        %v637 = vpop.f32.mrb[0].mxu0
        %638 = vmatprep.mubr.bf16.mxu0 0
        %639 = vmatmul.mubr.bf16.gmra.mrb[0].mxu0 %v403
        %v640 = vpop.f32.mrb[0].mxu0
        %v641 = vadd.f32 0.0, %v640
        %v642 = vpop.f32.mrb[0].mxu0
        %v643 = vpop.f32.mrb[0].mxu0
        %v644 = vadd.f32 0.0, %v643
        %v645 = vpop.f32.mrb[0].mxu0
        %646 = vmatprep.mubr.bf16.mxu0 0
        %647 = vmatmul.mubr.bf16.gmra.mrb[0].mxu0 %v404
        %v648 = vpop.f32.mrb[0].mxu0
        %v649 = vadd.f32 0.0, %v648
        %v650 = vpop.f32.mrb[0].mxu0
        %v651 = vpop.f32.mrb[0].mxu0
        %v652 = vadd.f32 0.0, %v651
        %v653 = vpop.f32.mrb[0].mxu0
        %654 = vmatprep.mubr.bf16.mxu0 0
        %655 = vmatmul.mubr.bf16.gmra.mrb[0].mxu0 %v405
        %v656 = vpop.f32.mrb[0].mxu0
        %v657 = vadd.f32 0.0, %v656
        %v658 = vpop.f32.mrb[0].mxu0
        %v659 = vpop.f32.mrb[0].mxu0
        %v660 = vadd.f32 0.0, %v659
        %v661 = vpop.f32.mrb[0].mxu0
        %662 = vmatprep.mubr.bf16.mxu0 0
        %663 = vmatmul.mubr.bf16.gmra.mrb[0].mxu0 %v406
        %v664 = vpop.f32.mrb[0].mxu0
        %v665 = vadd.f32 0.0, %v664
        %v666 = vpop.f32.mrb[0].mxu0
        %v667 = vpop.f32.mrb[0].mxu0
        %v668 = vadd.f32 0.0, %v667
        %v669 = vpop.f32.mrb[0].mxu0
        %670 = vmatprep.mubr.bf16.mxu0 0
        %671 = vmatmul.mubr.bf16.gmra.mrb[0].mxu0 %v407
        %v672 = vpop.f32.mrb[0].mxu0
        %v673 = vadd.f32 0.0, %v672
        %v674 = vpop.f32.mrb[0].mxu0
        %v675 = vpop.f32.mrb[0].mxu0
        %v676 = vadd.f32 0.0, %v675
        %v677 = vpop.f32.mrb[0].mxu0
        %678 = vmatprep.mubr.bf16.mxu0 0
        %679 = vmatmul.mubr.bf16.gmra.mrb[0].mxu0 %v408
        %v680 = vpop.f32.mrb[0].mxu0
        %v681 = vadd.f32 0.0, %v680
        %v682 = vpop.f32.mrb[0].mxu0
        %v683 = vpop.f32.mrb[0].mxu0
        %v684 = vadd.f32 0.0, %v683
        %v685 = vpop.f32.mrb[0].mxu0
        %686 = vmatprep.mubr.bf16.mxu0 0
        %687 = vmatmul.mubr.bf16.gmra.mrb[0].mxu0 %v409
        %v688 = vpop.f32.mrb[0].mxu0
        %v689 = vadd.f32 0.0, %v688
        %v690 = vpop.f32.mrb[0].mxu0
        %v691 = vpop.f32.mrb[0].mxu0
        %v692 = vadd.f32 0.0, %v691
        %v693 = vpop.f32.mrb[0].mxu0
        %694 = vmatprep.mubr.bf16.mxu0 0
        %695 = vmatmul.mubr.bf16.gmra.mrb[0].mxu0 %v410
        %v696 = vpop.f32.mrb[0].mxu0
        %v697 = vadd.f32 0.0, %v696
        %v698 = vpop.f32.mrb[0].mxu0
        %v699 = vpop.f32.mrb[0].mxu0
        %v700 = vadd.f32 0.0, %v699
        %v701 = vpop.f32.mrb[0].mxu0
        %702 = vmatprep.mubr.bf16.mxu0 0
        %703 = vmatmul.mubr.bf16.gmra.mrb[0].mxu0 %v411
        %v704 = vpop.f32.mrb[0].mxu0
        %v705 = vadd.f32 0.0, %v704
        %v706 = vpop.f32.mrb[0].mxu0
        %v707 = vpop.f32.mrb[0].mxu0
        %v708 = vadd.f32 0.0, %v707
        %v709 = vpop.f32.mrb[0].mxu0
        %710 = vmatprep.mubr.bf16.mxu0 0
        %711 = vmatmul.mubr.bf16.gmra.mrb[0].mxu0 %v412
        %v712 = vpop.f32.mrb[0].mxu0
        %v713 = vadd.f32 0.0, %v712
        %v714 = vpop.f32.mrb[0].mxu0
        %v715 = vpop.f32.mrb[0].mxu0
        %v716 = vadd.f32 0.0, %v715
        %v717 = vpop.f32.mrb[0].mxu0
        %718 = vmatprep.mubr.bf16.mxu0 0
        %719 = vmatmul.mubr.bf16.gmra.mrb[0].mxu0 %v413
        %v720 = vpop.f32.mrb[0].mxu0
        %v721 = vadd.f32 0.0, %v720
        %v722 = vpop.f32.mrb[0].mxu0
        %v723 = vpop.f32.mrb[0].mxu0
        %v724 = vadd.f32 0.0, %v723
        %v725 = vpop.f32.mrb[0].mxu0
        %726 = vmatprep.mubr.bf16.mxu0 0
        %727 = vmatmul.mubr.bf16.gmra.mrb[0].mxu0 %v414
        %v728 = vpop.f32.mrb[0].mxu0
        %v729 = vadd.f32 0.0, %v728
        %v730 = vpop.f32.mrb[0].mxu0
        %v731 = vpop.f32.mrb[0].mxu0
        %v732 = vadd.f32 0.0, %v731
        %v733 = vpop.f32.mrb[0].mxu0
        %734 = vmatprep.mubr.bf16.mxu0 0
        %735 = vmatmul.mubr.bf16.gmra.mrb[0].mxu0 %v415
        %v736 = vpop.f32.mrb[0].mxu0
        %v737 = vadd.f32 0.0, %v736
        %v738 = vpop.f32.mrb[0].mxu0
        %v739 = vpop.f32.mrb[0].mxu0
        %v740 = vadd.f32 0.0, %v739
        %v741 = vpop.f32.mrb[0].mxu0
        %742 = vmatprep.mubr.bf16.mxu0 0
        %743 = vmatmul.mubr.bf16.gmra.mrb[0].mxu0 %v416
        %v744 = vpop.f32.mrb[0].mxu0
        %v745 = vadd.f32 0.0, %v744
        %v746 = vpop.f32.mrb[0].mxu0
        %v747 = vpop.f32.mrb[0].mxu0
        %v748 = vadd.f32 0.0, %v747
        %v749 = vpop.f32.mrb[0].mxu0
        %750 = vmatprep.mubr.bf16.mxu0 0
        %751 = vmatmul.mubr.bf16.gmra.mrb[0].mxu0 %v417
        %v752 = vpop.f32.mrb[0].mxu0
        %v753 = vadd.f32 0.0, %v752
        %v754 = vpop.f32.mrb[0].mxu0
        %v755 = vpop.f32.mrb[0].mxu0
        %v756 = vadd.f32 0.0, %v755
        %v757 = vpop.f32.mrb[0].mxu0
        %758 = vmatprep.mubr.bf16.mxu0 0
        %759 = vmatmul.mubr.bf16.gmra.mrb[0].mxu0 %v418
        %v760 = vpop.f32.mrb[0].mxu0
        %v761 = vadd.f32 0.0, %v760
        %v762 = vpop.f32.mrb[0].mxu0
        %v763 = vpop.f32.mrb[0].mxu0
        %v764 = vadd.f32 0.0, %v763
        %v765 = vpop.f32.mrb[0].mxu0
        %766 = vmatprep.mubr.bf16.mxu0 0
        %767 = vmatmul.mubr.bf16.gmra.mrb[0].mxu0 %v419
        %v768 = vpop.f32.mrb[0].mxu0
        %v769 = vadd.f32 0.0, %v768
        %v770 = vpop.f32.mrb[0].mxu0
        %v771 = vpop.f32.mrb[0].mxu0
        %v772 = vadd.f32 0.0, %v771
        %v773 = vpop.f32.mrb[0].mxu0
        %774 = vmatprep.mubr.bf16.mxu0 0
        %775 = vmatmul.mubr.bf16.gmra.mrb[0].mxu0 %v420
        %v776 = vpop.f32.mrb[0].mxu0
        %v777 = vadd.f32 0.0, %v776
        %v778 = vpop.f32.mrb[0].mxu0
        %v779 = vpop.f32.mrb[0].mxu0
        %v780 = vadd.f32 0.0, %v779
        %v781 = vpop.f32.mrb[0].mxu0
        %782 = vmatprep.mubr.bf16.mxu0 0
        %783 = vmatmul.mubr.bf16.gmra.mrb[0].mxu0 %v421
        %v784 = vpop.f32.mrb[0].mxu0
        %v785 = vadd.f32 0.0, %v784
        %v786 = vpop.f32.mrb[0].mxu0
        %v787 = vpop.f32.mrb[0].mxu0
        %v788 = vadd.f32 0.0, %v787
        %v789 = vpop.f32.mrb[0].mxu0
        %790 = vdwg.mxu0
        %v791 = vpack.c.bf16 %v540, %v537
        %v792 = vpack.c.bf16 %v548, %v545
        %v793 = vpack.c.bf16 %v556, %v553
        %v794 = vpack.c.bf16 %v564, %v561
        %v795 = vpack.c.bf16 %v572, %v569
        %v796 = vpack.c.bf16 %v580, %v577
        %v797 = vpack.c.bf16 %v588, %v585
        %v798 = vpack.c.bf16 %v596, %v593
        %v799 = vpack.c.bf16 %v604, %v601
        %v800 = vpack.c.bf16 %v612, %v609
        %v801 = vpack.c.bf16 %v620, %v617
        %v802 = vpack.c.bf16 %v628, %v625
        %v803 = vpack.c.bf16 %v636, %v633
        %v804 = vpack.c.bf16 %v644, %v641
        %v805 = vpack.c.bf16 %v652, %v649
        %v806 = vpack.c.bf16 %v660, %v657
        %v807 = vpack.c.bf16 %v668, %v665
        %v808 = vpack.c.bf16 %v676, %v673
        %v809 = vpack.c.bf16 %v684, %v681
        %v810 = vpack.c.bf16 %v692, %v689
        %v811 = vpack.c.bf16 %v700, %v697
        %v812 = vpack.c.bf16 %v708, %v705
        %v813 = vpack.c.bf16 %v716, %v713
        %v814 = vpack.c.bf16 %v724, %v721
        %v815 = vpack.c.bf16 %v732, %v729
        %v816 = vpack.c.bf16 %v740, %v737
        %v817 = vpack.c.bf16 %v748, %v745
        %v818 = vpack.c.bf16 %v756, %v753
        %v819 = vpack.c.bf16 %v764, %v761
        %v820 = vpack.c.bf16 %v772, %v769
        %v821 = vpack.c.bf16 %v780, %v777
        %v822 = vpack.c.bf16 %v788, %v785
        %v855 = vunpack.c.l.b16 %v791
        %v856 = vunpack.c.h.b16 %v791
        %v857 = vunpack.c.l.b16 %v792
        %v858 = vunpack.c.h.b16 %v792
        %v859 = vunpack.c.l.b16 %v793
        %v860 = vunpack.c.h.b16 %v793
        %v861 = vunpack.c.l.b16 %v794
        %v862 = vunpack.c.h.b16 %v794
        %v863 = vunpack.c.l.b16 %v795
        %v864 = vunpack.c.h.b16 %v795
        %v865 = vunpack.c.l.b16 %v796
        %v866 = vunpack.c.h.b16 %v796
        %v867 = vunpack.c.l.b16 %v797
        %v868 = vunpack.c.h.b16 %v797
        %v869 = vunpack.c.l.b16 %v798
        %v870 = vunpack.c.h.b16 %v798
        %v871 = vunpack.c.l.b16 %v799
        %v872 = vunpack.c.h.b16 %v799
        %v873 = vunpack.c.l.b16 %v800
        %v874 = vunpack.c.h.b16 %v800
        %v875 = vunpack.c.l.b16 %v801
        %v876 = vunpack.c.h.b16 %v801
        %v877 = vunpack.c.l.b16 %v802
        %v878 = vunpack.c.h.b16 %v802
        %v879 = vunpack.c.l.b16 %v803
        %v880 = vunpack.c.h.b16 %v803
        %v881 = vunpack.c.l.b16 %v804
        %v882 = vunpack.c.h.b16 %v804
        %v883 = vunpack.c.l.b16 %v805
        %v884 = vunpack.c.h.b16 %v805
        %v885 = vunpack.c.l.b16 %v806
        %v886 = vunpack.c.h.b16 %v806
        %v887 = vunpack.c.l.b16 %v807
        %v888 = vunpack.c.h.b16 %v807
        %v889 = vunpack.c.l.b16 %v808
        %v890 = vunpack.c.h.b16 %v808
        %v891 = vunpack.c.l.b16 %v809
        %v892 = vunpack.c.h.b16 %v809
        %v893 = vunpack.c.l.b16 %v810
        %v894 = vunpack.c.h.b16 %v810
        %v895 = vunpack.c.l.b16 %v811
        %v896 = vunpack.c.h.b16 %v811
        %v897 = vunpack.c.l.b16 %v812
        %v898 = vunpack.c.h.b16 %v812
        %v899 = vunpack.c.l.b16 %v813
        %v900 = vunpack.c.h.b16 %v813
        %v901 = vunpack.c.l.b16 %v814
        %v902 = vunpack.c.h.b16 %v814
        %v903 = vunpack.c.l.b16 %v815
        %v904 = vunpack.c.h.b16 %v815
        %v905 = vunpack.c.l.b16 %v816
        %v906 = vunpack.c.h.b16 %v816
        %v907 = vunpack.c.l.b16 %v817
        %v908 = vunpack.c.h.b16 %v817
        %v909 = vunpack.c.l.b16 %v818
        %v910 = vunpack.c.h.b16 %v818
        %v911 = vunpack.c.l.b16 %v819
        %v912 = vunpack.c.h.b16 %v819
        %v913 = vunpack.c.l.b16 %v820
        %v914 = vunpack.c.h.b16 %v820
        %v915 = vunpack.c.l.b16 %v821
        %v916 = vunpack.c.h.b16 %v821
        %v917 = vunpack.c.l.b16 %v822
        %v918 = vunpack.c.h.b16 %v822
        %v919 = vpack.c.b16 %v855, %v855
        %v920 = vpack.c.b16 %v856, %v856
        %v921 = vpack.c.b16 %v857, %v857
        %v922 = vpack.c.b16 %v858, %v858
        %v923 = vpack.c.b16 %v859, %v859
        %v924 = vpack.c.b16 %v860, %v860
        %v925 = vpack.c.b16 %v861, %v861
        %v926 = vpack.c.b16 %v862, %v862
        %v927 = vpack.c.b16 %v863, %v863
        %v928 = vpack.c.b16 %v864, %v864
        %v929 = vpack.c.b16 %v865, %v865
        %v930 = vpack.c.b16 %v866, %v866
        %v931 = vpack.c.b16 %v867, %v867
        %v932 = vpack.c.b16 %v868, %v868
        %v933 = vpack.c.b16 %v869, %v869
        %v934 = vpack.c.b16 %v870, %v870
        %v935 = vpack.c.b16 %v871, %v871
        %v936 = vpack.c.b16 %v872, %v872
        %v937 = vpack.c.b16 %v873, %v873
        %v938 = vpack.c.b16 %v874, %v874
        %v939 = vpack.c.b16 %v875, %v875
        %v940 = vpack.c.b16 %v876, %v876
        %v941 = vpack.c.b16 %v877, %v877
        %v942 = vpack.c.b16 %v878, %v878
        %v943 = vpack.c.b16 %v879, %v879
        %v944 = vpack.c.b16 %v880, %v880
        %v945 = vpack.c.b16 %v881, %v881
        %v946 = vpack.c.b16 %v882, %v882
        %v947 = vpack.c.b16 %v883, %v883
        %v948 = vpack.c.b16 %v884, %v884
        %v949 = vpack.c.b16 %v885, %v885
        %v950 = vpack.c.b16 %v886, %v886
        %v951 = vpack.c.b16 %v887, %v887
        %v952 = vpack.c.b16 %v888, %v888
        %v953 = vpack.c.b16 %v889, %v889
        %v954 = vpack.c.b16 %v890, %v890
        %v955 = vpack.c.b16 %v891, %v891
        %v956 = vpack.c.b16 %v892, %v892
        %v957 = vpack.c.b16 %v893, %v893
        %v958 = vpack.c.b16 %v894, %v894
        %v959 = vpack.c.b16 %v895, %v895
        %v960 = vpack.c.b16 %v896, %v896
        %v961 = vpack.c.b16 %v897, %v897
        %v962 = vpack.c.b16 %v898, %v898
        %v963 = vpack.c.b16 %v899, %v899
        %v964 = vpack.c.b16 %v900, %v900
        %v965 = vpack.c.b16 %v901, %v901
        %v966 = vpack.c.b16 %v902, %v902
        %v967 = vpack.c.b16 %v903, %v903
        %v968 = vpack.c.b16 %v904, %v904
        %v969 = vpack.c.b16 %v905, %v905
        %v970 = vpack.c.b16 %v906, %v906
        %v971 = vpack.c.b16 %v907, %v907
        %v972 = vpack.c.b16 %v908, %v908
        %v973 = vpack.c.b16 %v909, %v909
        %v974 = vpack.c.b16 %v910, %v910
        %v975 = vpack.c.b16 %v911, %v911
        %v976 = vpack.c.b16 %v912, %v912
        %v977 = vpack.c.b16 %v913, %v913
        %v978 = vpack.c.b16 %v914, %v914
        %v979 = vpack.c.b16 %v915, %v915
        %v980 = vpack.c.b16 %v916, %v916
        %v981 = vpack.c.b16 %v917, %v917
        %v982 = vpack.c.b16 %v918, %v918
        %1047 = vst [vmem:[%s179] sm:$0xf] %v919
        %1048 = vst [vmem:[%s179 + $0x4] sm:$0xf] %v920
        %1049 = vst [vmem:[%s179 + $0x8] sm:$0xf] %v921
        %1050 = vst [vmem:[%s179 + $0xc] sm:$0xf] %v922
        %1051 = vst [vmem:[%s179 + $0x10] sm:$0xf] %v923
        %1052 = vst [vmem:[%s179 + $0x14] sm:$0xf] %v924
        %1053 = vst [vmem:[%s179 + $0x18] sm:$0xf] %v925
        %1054 = vst [vmem:[%s179 + $0x1c] sm:$0xf] %v926
        %1055 = vst [vmem:[%s179 + $0x20] sm:$0xf] %v927
        %1056 = vst [vmem:[%s179 + $0x24] sm:$0xf] %v928
        %1057 = vst [vmem:[%s179 + $0x28] sm:$0xf] %v929
        %1058 = vst [vmem:[%s179 + $0x2c] sm:$0xf] %v930
        %1059 = vst [vmem:[%s179 + $0x30] sm:$0xf] %v931
        %1060 = vst [vmem:[%s179 + $0x34] sm:$0xf] %v932
        %1061 = vst [vmem:[%s179 + $0x38] sm:$0xf] %v933
        %1062 = vst [vmem:[%s179 + $0x3c] sm:$0xf] %v934
        %1063 = vst [vmem:[%s179 + $0x40] sm:$0xf] %v935
        %1064 = vst [vmem:[%s179 + $0x44] sm:$0xf] %v936
        %1065 = vst [vmem:[%s179 + $0x48] sm:$0xf] %v937
        %1066 = vst [vmem:[%s179 + $0x4c] sm:$0xf] %v938
        %1067 = vst [vmem:[%s179 + $0x50] sm:$0xf] %v939
        %1068 = vst [vmem:[%s179 + $0x54] sm:$0xf] %v940
        %1069 = vst [vmem:[%s179 + $0x58] sm:$0xf] %v941
        %1070 = vst [vmem:[%s179 + $0x5c] sm:$0xf] %v942
        %1071 = vst [vmem:[%s179 + $0x60] sm:$0xf] %v943
        %1072 = vst [vmem:[%s179 + $0x64] sm:$0xf] %v944
        %1073 = vst [vmem:[%s179 + $0x68] sm:$0xf] %v945
        %1074 = vst [vmem:[%s179 + $0x6c] sm:$0xf] %v946
        %1075 = vst [vmem:[%s179 + $0x70] sm:$0xf] %v947
        %1076 = vst [vmem:[%s179 + $0x74] sm:$0xf] %v948
        %1077 = vst [vmem:[%s179 + $0x78] sm:$0xf] %v949
        %1078 = vst [vmem:[%s179 + $0x7c] sm:$0xf] %v950
        %1079 = vst [vmem:[%s179 + $0x80] sm:$0xf] %v951
        %1080 = vst [vmem:[%s179 + $0x84] sm:$0xf] %v952
        %1081 = vst [vmem:[%s179 + $0x88] sm:$0xf] %v953
        %1082 = vst [vmem:[%s179 + $0x8c] sm:$0xf] %v954
        %1083 = vst [vmem:[%s179 + $0x90] sm:$0xf] %v955
        %1084 = vst [vmem:[%s179 + $0x94] sm:$0xf] %v956
        %1085 = vst [vmem:[%s179 + $0x98] sm:$0xf] %v957
        %1086 = vst [vmem:[%s179 + $0x9c] sm:$0xf] %v958
        %1087 = vst [vmem:[%s179 + $0xa0] sm:$0xf] %v959
        %1088 = vst [vmem:[%s179 + $0xa4] sm:$0xf] %v960
        %1089 = vst [vmem:[%s179 + $0xa8] sm:$0xf] %v961
        %1090 = vst [vmem:[%s179 + $0xac] sm:$0xf] %v962
        %1091 = vst [vmem:[%s179 + $0xb0] sm:$0xf] %v963
        %1092 = vst [vmem:[%s179 + $0xb4] sm:$0xf] %v964
        %1093 = vst [vmem:[%s179 + $0xb8] sm:$0xf] %v965
        %1094 = vst [vmem:[%s179 + $0xbc] sm:$0xf] %v966
        %1095 = vst [vmem:[%s179 + $0xc0] sm:$0xf] %v967
        %1096 = vst [vmem:[%s179 + $0xc4] sm:$0xf] %v968
        %1097 = vst [vmem:[%s179 + $0xc8] sm:$0xf] %v969
        %1098 = vst [vmem:[%s179 + $0xcc] sm:$0xf] %v970
        %1099 = vst [vmem:[%s179 + $0xd0] sm:$0xf] %v971
        %1100 = vst [vmem:[%s179 + $0xd4] sm:$0xf] %v972
        %1101 = vst [vmem:[%s179 + $0xd8] sm:$0xf] %v973
        %1102 = vst [vmem:[%s179 + $0xdc] sm:$0xf] %v974
        %1103 = vst [vmem:[%s179 + $0xe0] sm:$0xf] %v975
        %1104 = vst [vmem:[%s179 + $0xe4] sm:$0xf] %v976
        %1105 = vst [vmem:[%s179 + $0xe8] sm:$0xf] %v977
        %1106 = vst [vmem:[%s179 + $0xec] sm:$0xf] %v978
        %1107 = vst [vmem:[%s179 + $0xf0] sm:$0xf] %v979
        %1108 = vst [vmem:[%s179 + $0xf4] sm:$0xf] %v980
        %1109 = vst [vmem:[%s179 + $0xf8] sm:$0xf] %v981
        %1110 = vst [vmem:[%s179 + $0xfc] sm:$0xf] %v982
        %s1111 = smul.u32 64, %s17
        %p1112 = scmp.lt.s32.totalorder %s1111, 127
        %s1113 = scalar_select %p1112, %s1111, 127
        %s1114 = smul.addr %s1113, 4
        %s1115 = scalar_lea.vmem %s2, %s1114
        // Predicated region
        $region37: #{gcn_forward.3} parent=27 // pred_check
          %p1116 = pneg %p82
        $region38: #{gcn_forward.3} parent=27 // pred_check_branch
          %1118 = sbr.rel (%p1116) target = $region40
        $region39: #{gcn_forward.3} parent=27 // pred_region
          %s1119 = smul.u32 64, %s17
        $region40: #{gcn_forward.3} parent=27 // pred_fallthru
          _
      $region28: #{gcn_forward.3} parent=5 // pred_fallthru
        _
      %p1120 = scmp.le.s32.totalorder 2, %s12
      // Predicated region
      $region41: #{gcn_forward.3} parent=5 // pred_check
        %p1121 = pneg %p1120
      $region42: #{gcn_forward.3} parent=5 // pred_check_branch
        %1123 = sbr.rel (%p1121) target = $region44
      $region43: #{gcn_forward.3} parent=5 // pred_region
        %s1124 = ssub.s32 %s12, 2
        // Predicated region
        $region45: #{gcn_forward.3} parent=43 // pred_check
          %p1125 = pneg %p88
        $region46: #{gcn_forward.3} parent=43 // pred_check_branch
          %1127 = sbr.rel (%p1125) target = $region48
        $region47: #{gcn_forward.3} parent=43 // pred_region
          %s1128 = smul.u32 64, %s18
          %p1129 = scmp.lt.s32.totalorder %s1128, 127
          %s1130 = scalar_select %p1129, %s1128, 127
          %s1131 = smul.addr %s1130, 4
          %s1132 = scalar_lea.vmem %s2, %s1131
        $region48: #{gcn_forward.3} parent=43 // pred_fallthru
          _
      $region44: #{gcn_forward.3} parent=5 // pred_fallthru
        _
    $region6: #{gcn_forward.3} parent=1 // loop_footer
      %s16 = sadd.s32 1, %s12
    $region7: #{gcn_forward.3} parent=1 // loop_footer_branch
      %11 = sbr.rel target = $region3
    $region8: #{gcn_forward.3} parent=1 // loop_exit
      _
    %1133 = vsyncpa [#allocation3], 1
    %s1134 = scalar_lea.sflag [#allocation3], 1
    %1135 = vsyncpa %s1134, 1
    %1136 = vsyncpa [#allocation5], 1

// kernel: gcn_forward.4
$region0: #{gcn_forward.4}
  #allocation0 [shape = 'u32[]', space=smem, size = 0x4, offset = 0x4, fixed_abs, tag = 'smem constant byte address 0x4 - core index']
  #allocation1 [shape = 'u32[144,128]{1,0:T(1,128)}', space=vmem, size = 0x12000, scoped, tag = 'internal scratch']
  #allocation2 [shape = 'f32[256,128]{1,0:T(8,128)}', space=vmem, size = 0x20000, scoped, tag = 'scratch operand']
  #allocation3 [shape = 's32[1]{0}', space=sflag, size = 0x4, scoped, tag = 'scoped memory for gcn_forward.4']
  #allocation4 [shape = 'u8[2048]{0}', space=smem, size = 0x800, scoped, tag = 'prefetched SMEM operand 0']
  #allocation5 [shape = 'u8[512]{0}', space=smem, size = 0x200, scoped, tag = 'prefetched SMEM operand 1']
  %s0 = inlined_call_operand.vmem [shape: s32[4,1], index: 0, kind: input, shape index: {}]
  %s1 = inlined_call_operand.hbm [shape: s32[4], index: 1, kind: input, shape index: {}]
  %s2 = inlined_call_operand.hbm [shape: bf16[1024,1024], index: 2, kind: input, shape index: {}]
  %s3 = inlined_call_operand.vmem [shape: bf16[1,1024,128], index: 3, kind: input, shape index: {}]
  %s4 = inlined_call_operand.hbm [shape: f32[1,128], index: 4, kind: input, shape index: {}]
  %s5 = inlined_call_operand.hbm [shape: bf16[128,128], index: 5, kind: input, shape index: {}]
  %s6 = inlined_call_operand.vmem [shape: bf16[1024,128], index: 6, kind: output, shape index: {}]
  %s7 = sld [smem:[#allocation0]]
  $region73: #{gcn_forward.4} parent=0
    _
  %s9 = ssub.s32 1, %s7
  %s10 = scalar_select 0, %s9, %s7
  %s11 = sshll.u32 %s0, 4
  %s12 = int_to_ptr.vmem [resolvable:$true] %s11
  %14 = dma.vmem_to_smem %s12, 64, [#allocation4], [#allocation3]
  %16 = dma.hbm_to_smem %s1, 16, [#allocation5], [#allocation3]
  %17 = dma.done [#allocation3], 80
  %18 = sfence
  $region1: #{gcn_forward.4} parent=0
    #allocation6 [shape = 'u8[1048576]{0}', space=vmem, size = 0x100000, scoped, tag = 'input window, operand 2']
    #allocation7 [shape = 's32[2]{0}', space=sflag, size = 0x8, scoped, tag = 'scoped memory for gcn_forward.4']
    #allocation8 [shape = 'u8[512]{0}', space=vmem, size = 0x400, scoped, tag = 'input window, operand 4, single buffered']
    #allocation9 [shape = 's32[1]{0}', space=sflag, size = 0x4, scoped, tag = 'scoped memory for gcn_forward.4']
    #allocation10 [shape = 'u8[32768]{0}', space=vmem, size = 0x8000, scoped, tag = 'input window, operand 5, single buffered']
    %19 = vsyncpa [#allocation7], 0
    %s20 = scalar_lea.sflag [#allocation7], 1
    %21 = vsyncpa %s20, 0
    %22 = vsyncpa [#allocation9], 0
    loop: start=0, step=1, limit=6
    $region2: #{gcn_forward.4} parent=1 // loop_pre_header
      _
    $region3: #{gcn_forward.4} parent=1 // loop_header
      %s24 = sphi 0, %s28
      %p25 = scmp.ge.s32.totalorder %s24, 6
      %s31 = sphi 0, %s43
      %s32 = sphi 0, %s39
      %s33 = sphi 0, %s31
      %s34 = sphi 0, %s32
      %s35 = sphi 0, %s33
      %s36 = sphi 0, %s34
      %s64 = sphi 0, %s66
      %s67 = sphi 0, %s64
      %s68 = sphi 0, %s67
      %s84 = sphi 0, %s68
      %s88 = sphi 0, %s88
      %s90 = sphi 0, %s88
      %s91 = sphi 0, %s90
      %s105 = sphi 0, %s91
      %s109 = sphi 0, %s109
      %s111 = sphi 0, %s109
      %s112 = sphi 0, %s111
      %s126 = sphi 0, %s112
      %s130 = sphi 0, %s130
      %s132 = sphi 0, %s130
      %s133 = sphi 0, %s132
      %s147 = sphi 0, %s133
      %s153 = sphi 0, %s155
      %s156 = sphi 0, %s153
      %s157 = sphi 0, %s156
      %s173 = sphi 0, %s157
    $region4: #{gcn_forward.4} parent=1 // loop_header_branch
      %27 = sbr.rel (%p25) target = $region8
    $region5: #{gcn_forward.4} parent=1 // loop_body
      %s29 = ssub.s32 %s24, 1
      %s30 = ssub.s32 %s24, 2
      %s37 = sadd.s32 1, %s32
      %p38 = scmp.ge.s32.totalorder %s37, 1
      %s39 = scalar_select %p38, 0, %s37
      %s40 = sadd.s32 1, %s31
      %s41 = scalar_select %p38, %s40, %s31
      %p42 = scmp.ge.s32.totalorder %s41, 4
      %s43 = scalar_select %p42, 0, %s41
      %s44 = sshra.s32 %s32, 7
      %s45 = sand.u32 %s32, 127
      %s46 = sadd.s32 %s44, %s31
      %s47 = smul.u32 %s46, 128
      %s48 = sshra.s32 %s32, 7
      %s49 = sand.u32 %s32, 127
      %s50 = sadd.s32 %s47, %s49
      %s51 = sld [smem:[#allocation4 + %s50]]
      %s52 = sshra.s32 %s39, 7
      %s53 = sand.u32 %s39, 127
      %s54 = sadd.s32 %s52, %s43
      %s55 = smul.u32 %s54, 128
      %s56 = sshra.s32 %s39, 7
      %s57 = sand.u32 %s39, 127
      %s58 = sadd.s32 %s55, %s57
      %s59 = sld [smem:[#allocation4 + %s58]]
      %s60 = ssub.s32 %s31, %s43
      %s61 = ssub.s32 %s51, %s59
      %s62 = sor.u32 %s60, %s61
      %p63 = scmp.eq.s32.totalorder %s62, 0
      %s65 = sadd.s32 %s64, 1
      %s66 = scalar_select %p63, %s64, %s65
      %p69 = pneg %p63
      %p70 = scmp.eq.s32.totalorder %s24, 3
      %p71 = por %p69, %p70
      %p72 = scmp.ne.s32.totalorder %s64, %s67
      %p73 = scmp.eq.s32.totalorder %s24, 0
      %p74 = por %p72, %p73
      %p75 = scmp.ne.s32.totalorder %s64, %s67
      %p76 = scmp.eq.s32.totalorder %s29, 3
      %p77 = por %p75, %p76
      %p78 = scmp.ne.s32.totalorder %s67, %s68
      %p79 = scmp.eq.s32.totalorder %s29, 0
      %p80 = por %p78, %p79
      %p81 = scmp.ne.s32.totalorder %s67, %s68
      %p82 = scmp.eq.s32.totalorder %s30, 3
      %p83 = por %p81, %p82
      %p85 = scmp.ne.s32.totalorder %s68, %s84
      %p86 = scmp.eq.s32.totalorder %s30, 0
      %p87 = por %p85, %p86
      %s89 = sadd.s32 %s88, 1
      %p92 = scmp.eq.s32.totalorder %s24, 3
      %p93 = scmp.ne.s32.totalorder %s88, %s90
      %p94 = scmp.eq.s32.totalorder %s24, 0
      %p95 = por %p93, %p94
      %p96 = scmp.ne.s32.totalorder %s88, %s90
      %p97 = scmp.eq.s32.totalorder %s29, 3
      %p98 = por %p96, %p97
      %p99 = scmp.ne.s32.totalorder %s90, %s91
      %p100 = scmp.eq.s32.totalorder %s29, 0
      %p101 = por %p99, %p100
      %p102 = scmp.ne.s32.totalorder %s90, %s91
      %p103 = scmp.eq.s32.totalorder %s30, 3
      %p104 = por %p102, %p103
      %p106 = scmp.ne.s32.totalorder %s91, %s105
      %p107 = scmp.eq.s32.totalorder %s30, 0
      %p108 = por %p106, %p107
      %s110 = sadd.s32 %s109, 1
      %p113 = scmp.eq.s32.totalorder %s24, 3
      %p114 = scmp.ne.s32.totalorder %s109, %s111
      %p115 = scmp.eq.s32.totalorder %s24, 0
      %p116 = por %p114, %p115
      %p117 = scmp.ne.s32.totalorder %s109, %s111
      %p118 = scmp.eq.s32.totalorder %s29, 3
      %p119 = por %p117, %p118
      %p120 = scmp.ne.s32.totalorder %s111, %s112
      %p121 = scmp.eq.s32.totalorder %s29, 0
      %p122 = por %p120, %p121
      %p123 = scmp.ne.s32.totalorder %s111, %s112
      %p124 = scmp.eq.s32.totalorder %s30, 3
      %p125 = por %p123, %p124
      %p127 = scmp.ne.s32.totalorder %s112, %s126
      %p128 = scmp.eq.s32.totalorder %s30, 0
      %p129 = por %p127, %p128
      %s131 = sadd.s32 %s130, 1
      %p134 = scmp.eq.s32.totalorder %s24, 3
      %p135 = scmp.ne.s32.totalorder %s130, %s132
      %p136 = scmp.eq.s32.totalorder %s24, 0
      %p137 = por %p135, %p136
      %p138 = scmp.ne.s32.totalorder %s130, %s132
      %p139 = scmp.eq.s32.totalorder %s29, 3
      %p140 = por %p138, %p139
      %p141 = scmp.ne.s32.totalorder %s132, %s133
      %p142 = scmp.eq.s32.totalorder %s29, 0
      %p143 = por %p141, %p142
      %p144 = scmp.ne.s32.totalorder %s132, %s133
      %p145 = scmp.eq.s32.totalorder %s30, 3
      %p146 = por %p144, %p145
      %p148 = scmp.ne.s32.totalorder %s133, %s147
      %p149 = scmp.eq.s32.totalorder %s30, 0
      %p150 = por %p148, %p149
      %s151 = ssub.s32 %s31, %s43
      %p152 = scmp.eq.s32.totalorder %s151, 0
      %s154 = sadd.s32 %s153, 1
      %s155 = scalar_select %p152, %s153, %s154
      %p158 = pneg %p152
      %p159 = scmp.eq.s32.totalorder %s24, 3
      %p160 = por %p158, %p159
      %p161 = scmp.ne.s32.totalorder %s153, %s156
      %p162 = scmp.eq.s32.totalorder %s24, 0
      %p163 = por %p161, %p162
      %p164 = scmp.ne.s32.totalorder %s153, %s156
      %p165 = scmp.eq.s32.totalorder %s29, 3
      %p166 = por %p164, %p165
      %p167 = scmp.ne.s32.totalorder %s156, %s157
      %p168 = scmp.eq.s32.totalorder %s29, 0
      %p169 = por %p167, %p168
      %p170 = scmp.ne.s32.totalorder %s156, %s157
      %p171 = scmp.eq.s32.totalorder %s30, 3
      %p172 = por %p170, %p171
      %p174 = scmp.ne.s32.totalorder %s157, %s173
      %p175 = scmp.eq.s32.totalorder %s30, 0
      %p176 = por %p174, %p175
      %p177 = scmp.le.s32.totalorder 1, %s24
      %p178 = scmp.lt.s32.totalorder %s24, 5
      %p179 = pnand %p177, %p178
      %p180 = pneg %p179
      // Predicated region
      $region9: #{gcn_forward.4} parent=5 // pred_check
        _
      $region10: #{gcn_forward.4} parent=5 // pred_check_branch
        %182 = sbr.rel (%p179) target = $region12
      $region11: #{gcn_forward.4} parent=5 // pred_region
        %s183 = ssub.s32 %s24, 1
        // Predicated region
        $region13: #{gcn_forward.4} parent=11 // pred_check
          %p184 = pneg %p101
        $region14: #{gcn_forward.4} parent=11 // pred_check_branch
          %186 = sbr.rel (%p184) target = $region16
        $region15: #{gcn_forward.4} parent=11 // pred_region
          _
        $region16: #{gcn_forward.4} parent=11 // pred_fallthru
          _
        // Predicated region
        $region17: #{gcn_forward.4} parent=11 // pred_check
          %p187 = pneg %p122
        $region18: #{gcn_forward.4} parent=11 // pred_check_branch
          %189 = sbr.rel (%p187) target = $region20
        $region19: #{gcn_forward.4} parent=11 // pred_region
          %s191 = ssub.s32 16, 16
          %192 = vsyncadd [#allocation9], %s191
          %s194 = sshll.u32 [#allocation8], 4
          %s195 = int_to_ptr.vmem [resolvable:$true] %s194
          %197 = dma.hbm_to_vmem [thread:$0]  %s4, 16, %s195, [#allocation9]
        $region20: #{gcn_forward.4} parent=11 // pred_fallthru
          _
        // Predicated region
        $region21: #{gcn_forward.4} parent=11 // pred_check
          %p198 = pneg %p143
        $region22: #{gcn_forward.4} parent=11 // pred_check_branch
          %200 = sbr.rel (%p198) target = $region24
        $region23: #{gcn_forward.4} parent=11 // pred_region
          %s202 = ssub.s32 1024, 1024
          %203 = vsyncadd [#allocation9], %s202
          %s204 = sshll.u32 [#allocation10], 4
          %s205 = int_to_ptr.vmem [resolvable:$true] %s204
          %210 = dma.hbm_to_vmem [thread:$0]  %s5, 1024, %s205, [#allocation9], 64, 64, 4
        $region24: #{gcn_forward.4} parent=11 // pred_fallthru
          _
      $region12: #{gcn_forward.4} parent=5 // pred_fallthru
        _
      %p211 = scmp.lt.s32.totalorder %s24, 4
      // Predicated region
      $region25: #{gcn_forward.4} parent=5 // pred_check
        %p212 = pneg %p211
      $region26: #{gcn_forward.4} parent=5 // pred_check_branch
        %214 = sbr.rel (%p212) target = $region28
      $region27: #{gcn_forward.4} parent=5 // pred_region
        // Predicated region
        $region29: #{gcn_forward.4} parent=27 // pred_check
          %p215 = pneg %p74
        $region30: #{gcn_forward.4} parent=27 // pred_check_branch
          %217 = sbr.rel (%p215) target = $region32
        $region31: #{gcn_forward.4} parent=27 // pred_region
          %s218 = sand.u32 %s64, 1
          %s219 = scalar_lea.sflag [#allocation7], %s218
          %s220 = sand.u32 %s64, 1
          %s221 = smul.addr %s220, 1024
          %s222 = scalar_lea.vmem [#allocation6], %s221
          %s223 = sshra.s32 %s32, 7
          %s224 = sand.u32 %s32, 127
          %s225 = sadd.s32 %s223, %s31
          %s226 = smul.u32 %s225, 128
          %s227 = sshra.s32 %s32, 7
          %s228 = sand.u32 %s32, 127
          %s229 = sadd.s32 %s226, %s228
          %s230 = sld [smem:[#allocation4 + %s229]]
          %s231 = smul.u32 32, %s31
          %s232 = smul.u32 8, %s230
          %s234 = ssub.s32 16384, 16384
          %235 = vsyncadd %s219, %s234
          %s236 = smul.addr %s231, 8
          %s237 = sadd.s32 %s232, %s236
          %s238 = smul.addr %s237, 64
          %s239 = scalar_lea.hbm %s2, %s238
          %s240 = sshll.u32 %s222, 4
          %s241 = int_to_ptr.vmem [resolvable:$true] %s240
          %246 = dma.hbm_to_vmem [thread:$0]  %s239, 16384, %s241, %s219, 512, 512, 32
        $region32: #{gcn_forward.4} parent=27 // pred_fallthru
          _
      $region28: #{gcn_forward.4} parent=5 // pred_fallthru
        _
      %p247 = scmp.le.s32.totalorder 1, %s24
      %p248 = scmp.lt.s32.totalorder %s24, 5
      %p249 = pnand %p247, %p248
      %p250 = pneg %p249
      // Predicated region
      $region33: #{gcn_forward.4} parent=5 // pred_check
        _
      $region34: #{gcn_forward.4} parent=5 // pred_check_branch
        %252 = sbr.rel (%p249) target = $region36
      $region35: #{gcn_forward.4} parent=5 // pred_region
        %s253 = ssub.s32 %s24, 1
        %s254 = sand.u32 %s67, 1
        %s255 = scalar_lea.sflag [#allocation7], %s254
        %s256 = sand.u32 %s67, 1
        %s257 = smul.addr %s256, 1024
        %s258 = scalar_lea.vmem [#allocation6], %s257
        // Predicated region
        $region37: #{gcn_forward.4} parent=35 // pred_check
          %p259 = pneg %p80
        $region38: #{gcn_forward.4} parent=35 // pred_check_branch
          %261 = sbr.rel (%p259) target = $region40
        $region39: #{gcn_forward.4} parent=35 // pred_region
          %262 = dma.done %s255, 16384
        $region40: #{gcn_forward.4} parent=35 // pred_fallthru
          _
        // Predicated region
        $region41: #{gcn_forward.4} parent=35 // pred_check
          %p263 = pneg %p122
        $region42: #{gcn_forward.4} parent=35 // pred_check_branch
          %265 = sbr.rel (%p263) target = $region44
        $region43: #{gcn_forward.4} parent=35 // pred_region
          %266 = dma.done [#allocation9], 16
        $region44: #{gcn_forward.4} parent=35 // pred_fallthru
          _
        // Predicated region
        $region45: #{gcn_forward.4} parent=35 // pred_check
          %p267 = pneg %p143
        $region46: #{gcn_forward.4} parent=35 // pred_check_branch
          %269 = sbr.rel (%p267) target = $region48
        $region47: #{gcn_forward.4} parent=35 // pred_region
          %270 = dma.done [#allocation9], 1024
        $region48: #{gcn_forward.4} parent=35 // pred_fallthru
          _
        %s271 = sand.u32 %s67, 1
        %s272 = scalar_lea.sflag [#allocation7], %s271
        %s273 = sand.u32 %s67, 1
        %s274 = smul.addr %s273, 1024
        %s275 = scalar_lea.vmem [#allocation6], %s274
        %p276 = pneg %p80
        %p277 = pneg %p77
        %p278 = pneg %p101
        %p279 = pneg %p98
        %p280 = pneg %p122
        %p281 = pneg %p119
        %p282 = pneg %p143
        %p283 = pneg %p140
        %p284 = pneg %p169
        %p285 = pneg %p166
        %s286 = smul.u32 32, %s33
        %p287 = scmp.lt.s32.totalorder %s286, 127
        %s288 = scalar_select %p287, %s286, 127
        %s289 = smul.addr %s288, 4
        %s290 = scalar_lea.vmem %s6, %s289
        %s291 = sshra.s32 %s34, 7
        %s292 = sand.u32 %s34, 127
        %s293 = sadd.s32 %s291, %s33
        %s294 = smul.u32 %s293, 128
        %s295 = sshra.s32 %s34, 7
        %s296 = sand.u32 %s34, 127
        %s297 = sadd.s32 %s294, %s296
        %s298 = sld [smem:[#allocation4 + %s297]]
        %s299 = smul.u32 32, %s33
        %s300 = smul.u32 8, %s298
        %s301 = smul.u32 32, %s33
        %p302 = scmp.lt.s32.totalorder %s301, 127
        %s303 = scalar_select %p302, %s301, 127
        %s304 = smul.addr %s303, 4
        %s305 = scalar_lea.vmem %s6, %s304
        %s306 = smul.u32 32, %s33
        %p308 = scmp.eq.s32.totalorder %s34, 0
        // Predicated region
        $region49: #{gcn_forward.4} parent=35 // pred_check
          %p309 = pneg %p308
        $region50: #{gcn_forward.4} parent=35 // pred_check_branch
          %311 = sbr.rel (%p309) target = $region52
        $region51: #{gcn_forward.4} parent=35 // pred_region
          %312 = vst [vmem:[#allocation2] sm:$0xff] 0.0
          %313 = vst [vmem:[#allocation2 + $0x8] sm:$0xff] 0.0
          %314 = vst [vmem:[#allocation2 + $0x10] sm:$0xff] 0.0
          %315 = vst [vmem:[#allocation2 + $0x18] sm:$0xff] 0.0
          %316 = vst [vmem:[#allocation2 + $0x20] sm:$0xff] 0.0
          %317 = vst [vmem:[#allocation2 + $0x28] sm:$0xff] 0.0
          %318 = vst [vmem:[#allocation2 + $0x30] sm:$0xff] 0.0
          %319 = vst [vmem:[#allocation2 + $0x38] sm:$0xff] 0.0
          %320 = vst [vmem:[#allocation2 + $0x40] sm:$0xff] 0.0
          %321 = vst [vmem:[#allocation2 + $0x48] sm:$0xff] 0.0
          %322 = vst [vmem:[#allocation2 + $0x50] sm:$0xff] 0.0
          %323 = vst [vmem:[#allocation2 + $0x58] sm:$0xff] 0.0
          %324 = vst [vmem:[#allocation2 + $0x60] sm:$0xff] 0.0
          %325 = vst [vmem:[#allocation2 + $0x68] sm:$0xff] 0.0
          %326 = vst [vmem:[#allocation2 + $0x70] sm:$0xff] 0.0
          %327 = vst [vmem:[#allocation2 + $0x78] sm:$0xff] 0.0
          %328 = vst [vmem:[#allocation2 + $0x80] sm:$0xff] 0.0
          %329 = vst [vmem:[#allocation2 + $0x88] sm:$0xff] 0.0
          %330 = vst [vmem:[#allocation2 + $0x90] sm:$0xff] 0.0
          %331 = vst [vmem:[#allocation2 + $0x98] sm:$0xff] 0.0
          %332 = vst [vmem:[#allocation2 + $0xa0] sm:$0xff] 0.0
          %333 = vst [vmem:[#allocation2 + $0xa8] sm:$0xff] 0.0
          %334 = vst [vmem:[#allocation2 + $0xb0] sm:$0xff] 0.0
          %335 = vst [vmem:[#allocation2 + $0xb8] sm:$0xff] 0.0
          %336 = vst [vmem:[#allocation2 + $0xc0] sm:$0xff] 0.0
          %337 = vst [vmem:[#allocation2 + $0xc8] sm:$0xff] 0.0
          %338 = vst [vmem:[#allocation2 + $0xd0] sm:$0xff] 0.0
          %339 = vst [vmem:[#allocation2 + $0xd8] sm:$0xff] 0.0
          %340 = vst [vmem:[#allocation2 + $0xe0] sm:$0xff] 0.0
          %341 = vst [vmem:[#allocation2 + $0xe8] sm:$0xff] 0.0
          %342 = vst [vmem:[#allocation2 + $0xf0] sm:$0xff] 0.0
          %343 = vst [vmem:[#allocation2 + $0xf8] sm:$0xff] 0.0
        $region52: #{gcn_forward.4} parent=35 // pred_fallthru
          _
        %s344 = sld [smem:[#allocation5 + %s33]]
        %p345 = scmp.lt.s32.totalorder %s34, %s344
        // Predicated region
        $region53: #{gcn_forward.4} parent=35 // pred_check
          %p346 = pneg %p345
        $region54: #{gcn_forward.4} parent=35 // pred_check_branch
          %348 = sbr.rel (%p346) target = $region56
        $region55: #{gcn_forward.4} parent=35 // pred_region
          %s349 = sshra.s32 %s34, 7
          %s350 = sand.u32 %s34, 127
          %s351 = sadd.s32 %s349, %s33
          %s352 = smul.u32 %s351, 128
          %s353 = sshra.s32 %s34, 7
          %s354 = sand.u32 %s34, 127
          %s355 = sadd.s32 %s352, %s354
          %s356 = sld [smem:[#allocation4 + %s355]]
          %s357 = smul.u32 %s356, 128
          %s358 = smul.addr %s357, 4
          %s359 = scalar_lea.vmem %s3, %s358
          %v360 = vld [vmem:[%s359] sm:$0xf]
          %v361 = vld [vmem:[%s359 + $0x4] sm:$0xf]
          %v362 = vld [vmem:[%s359 + $0x8] sm:$0xf]
          %v363 = vld [vmem:[%s359 + $0xc] sm:$0xf]
          %v364 = vld [vmem:[%s359 + $0x10] sm:$0xf]
          %v365 = vld [vmem:[%s359 + $0x14] sm:$0xf]
          %v366 = vld [vmem:[%s359 + $0x18] sm:$0xf]
          %v367 = vld [vmem:[%s359 + $0x1c] sm:$0xf]
          %v368 = vld [vmem:[%s359 + $0x20] sm:$0xf]
          %v369 = vld [vmem:[%s359 + $0x24] sm:$0xf]
          %v370 = vld [vmem:[%s359 + $0x28] sm:$0xf]
          %v371 = vld [vmem:[%s359 + $0x2c] sm:$0xf]
          %v372 = vld [vmem:[%s359 + $0x30] sm:$0xf]
          %v373 = vld [vmem:[%s359 + $0x34] sm:$0xf]
          %v374 = vld [vmem:[%s359 + $0x38] sm:$0xf]
          %v375 = vld [vmem:[%s359 + $0x3c] sm:$0xf]
          %v376 = vld [vmem:[%s359 + $0x40] sm:$0xf]
          %v377 = vld [vmem:[%s359 + $0x44] sm:$0xf]
          %v378 = vld [vmem:[%s359 + $0x48] sm:$0xf]
          %v379 = vld [vmem:[%s359 + $0x4c] sm:$0xf]
          %v380 = vld [vmem:[%s359 + $0x50] sm:$0xf]
          %v381 = vld [vmem:[%s359 + $0x54] sm:$0xf]
          %v382 = vld [vmem:[%s359 + $0x58] sm:$0xf]
          %v383 = vld [vmem:[%s359 + $0x5c] sm:$0xf]
          %v384 = vld [vmem:[%s359 + $0x60] sm:$0xf]
          %v385 = vld [vmem:[%s359 + $0x64] sm:$0xf]
          %v386 = vld [vmem:[%s359 + $0x68] sm:$0xf]
          %v387 = vld [vmem:[%s359 + $0x6c] sm:$0xf]
          %v388 = vld [vmem:[%s359 + $0x70] sm:$0xf]
          %v389 = vld [vmem:[%s359 + $0x74] sm:$0xf]
          %v390 = vld [vmem:[%s359 + $0x78] sm:$0xf]
          %v391 = vld [vmem:[%s359 + $0x7c] sm:$0xf]
          %v392 = vld [vmem:[%s359 + $0x80] sm:$0xf]
          %v393 = vld [vmem:[%s359 + $0x84] sm:$0xf]
          %v394 = vld [vmem:[%s359 + $0x88] sm:$0xf]
          %v395 = vld [vmem:[%s359 + $0x8c] sm:$0xf]
          %v396 = vld [vmem:[%s359 + $0x90] sm:$0xf]
          %v397 = vld [vmem:[%s359 + $0x94] sm:$0xf]
          %v398 = vld [vmem:[%s359 + $0x98] sm:$0xf]
          %v399 = vld [vmem:[%s359 + $0x9c] sm:$0xf]
          %v400 = vld [vmem:[%s359 + $0xa0] sm:$0xf]
          %v401 = vld [vmem:[%s359 + $0xa4] sm:$0xf]
          %v402 = vld [vmem:[%s359 + $0xa8] sm:$0xf]
          %v403 = vld [vmem:[%s359 + $0xac] sm:$0xf]
          %v404 = vld [vmem:[%s359 + $0xb0] sm:$0xf]
          %v405 = vld [vmem:[%s359 + $0xb4] sm:$0xf]
          %v406 = vld [vmem:[%s359 + $0xb8] sm:$0xf]
          %v407 = vld [vmem:[%s359 + $0xbc] sm:$0xf]
          %v408 = vld [vmem:[%s359 + $0xc0] sm:$0xf]
          %v409 = vld [vmem:[%s359 + $0xc4] sm:$0xf]
          %v410 = vld [vmem:[%s359 + $0xc8] sm:$0xf]
          %v411 = vld [vmem:[%s359 + $0xcc] sm:$0xf]
          %v412 = vld [vmem:[%s359 + $0xd0] sm:$0xf]
          %v413 = vld [vmem:[%s359 + $0xd4] sm:$0xf]
          %v414 = vld [vmem:[%s359 + $0xd8] sm:$0xf]
          %v415 = vld [vmem:[%s359 + $0xdc] sm:$0xf]
          %v416 = vld [vmem:[%s359 + $0xe0] sm:$0xf]
          %v417 = vld [vmem:[%s359 + $0xe4] sm:$0xf]
          %v418 = vld [vmem:[%s359 + $0xe8] sm:$0xf]
          %v419 = vld [vmem:[%s359 + $0xec] sm:$0xf]
          %v420 = vld [vmem:[%s359 + $0xf0] sm:$0xf]
          %v421 = vld [vmem:[%s359 + $0xf4] sm:$0xf]
          %v422 = vld [vmem:[%s359 + $0xf8] sm:$0xf]
          %v423 = vld [vmem:[%s359 + $0xfc] sm:$0xf]
          %v424 = vld [vmem:[%s359 + $0x100] sm:$0xf]
          %v425 = vld [vmem:[%s359 + $0x104] sm:$0xf]
          %v426 = vld [vmem:[%s359 + $0x108] sm:$0xf]
          %v427 = vld [vmem:[%s359 + $0x10c] sm:$0xf]
          %v428 = vld [vmem:[%s359 + $0x110] sm:$0xf]
          %v429 = vld [vmem:[%s359 + $0x114] sm:$0xf]
          %v430 = vld [vmem:[%s359 + $0x118] sm:$0xf]
          %v431 = vld [vmem:[%s359 + $0x11c] sm:$0xf]
          %v432 = vld [vmem:[%s359 + $0x120] sm:$0xf]
          %v433 = vld [vmem:[%s359 + $0x124] sm:$0xf]
          %v434 = vld [vmem:[%s359 + $0x128] sm:$0xf]
          %v435 = vld [vmem:[%s359 + $0x12c] sm:$0xf]
          %v436 = vld [vmem:[%s359 + $0x130] sm:$0xf]
          %v437 = vld [vmem:[%s359 + $0x134] sm:$0xf]
          %v438 = vld [vmem:[%s359 + $0x138] sm:$0xf]
          %v439 = vld [vmem:[%s359 + $0x13c] sm:$0xf]
          %v440 = vld [vmem:[%s359 + $0x140] sm:$0xf]
          %v441 = vld [vmem:[%s359 + $0x144] sm:$0xf]
          %v442 = vld [vmem:[%s359 + $0x148] sm:$0xf]
          %v443 = vld [vmem:[%s359 + $0x14c] sm:$0xf]
          %v444 = vld [vmem:[%s359 + $0x150] sm:$0xf]
          %v445 = vld [vmem:[%s359 + $0x154] sm:$0xf]
          %v446 = vld [vmem:[%s359 + $0x158] sm:$0xf]
          %v447 = vld [vmem:[%s359 + $0x15c] sm:$0xf]
          %v448 = vld [vmem:[%s359 + $0x160] sm:$0xf]
          %v449 = vld [vmem:[%s359 + $0x164] sm:$0xf]
          %v450 = vld [vmem:[%s359 + $0x168] sm:$0xf]
          %v451 = vld [vmem:[%s359 + $0x16c] sm:$0xf]
          %v452 = vld [vmem:[%s359 + $0x170] sm:$0xf]
          %v453 = vld [vmem:[%s359 + $0x174] sm:$0xf]
          %v454 = vld [vmem:[%s359 + $0x178] sm:$0xf]
          %v455 = vld [vmem:[%s359 + $0x17c] sm:$0xf]
          %v456 = vld [vmem:[%s359 + $0x180] sm:$0xf]
          %v457 = vld [vmem:[%s359 + $0x184] sm:$0xf]
          %v458 = vld [vmem:[%s359 + $0x188] sm:$0xf]
          %v459 = vld [vmem:[%s359 + $0x18c] sm:$0xf]
          %v460 = vld [vmem:[%s359 + $0x190] sm:$0xf]
          %v461 = vld [vmem:[%s359 + $0x194] sm:$0xf]
          %v462 = vld [vmem:[%s359 + $0x198] sm:$0xf]
          %v463 = vld [vmem:[%s359 + $0x19c] sm:$0xf]
          %v464 = vld [vmem:[%s359 + $0x1a0] sm:$0xf]
          %v465 = vld [vmem:[%s359 + $0x1a4] sm:$0xf]
          %v466 = vld [vmem:[%s359 + $0x1a8] sm:$0xf]
          %v467 = vld [vmem:[%s359 + $0x1ac] sm:$0xf]
          %v468 = vld [vmem:[%s359 + $0x1b0] sm:$0xf]
          %v469 = vld [vmem:[%s359 + $0x1b4] sm:$0xf]
          %v470 = vld [vmem:[%s359 + $0x1b8] sm:$0xf]
          %v471 = vld [vmem:[%s359 + $0x1bc] sm:$0xf]
          %v472 = vld [vmem:[%s359 + $0x1c0] sm:$0xf]
          %v473 = vld [vmem:[%s359 + $0x1c4] sm:$0xf]
          %v474 = vld [vmem:[%s359 + $0x1c8] sm:$0xf]
          %v475 = vld [vmem:[%s359 + $0x1cc] sm:$0xf]
          %v476 = vld [vmem:[%s359 + $0x1d0] sm:$0xf]
          %v477 = vld [vmem:[%s359 + $0x1d4] sm:$0xf]
          %v478 = vld [vmem:[%s359 + $0x1d8] sm:$0xf]
          %v479 = vld [vmem:[%s359 + $0x1dc] sm:$0xf]
          %v480 = vld [vmem:[%s359 + $0x1e0] sm:$0xf]
          %v481 = vld [vmem:[%s359 + $0x1e4] sm:$0xf]
          %v482 = vld [vmem:[%s359 + $0x1e8] sm:$0xf]
          %v483 = vld [vmem:[%s359 + $0x1ec] sm:$0xf]
          %v484 = vld [vmem:[%s359 + $0x1f0] sm:$0xf]
          %v485 = vld [vmem:[%s359 + $0x1f4] sm:$0xf]
          %v486 = vld [vmem:[%s359 + $0x1f8] sm:$0xf]
          %v487 = vld [vmem:[%s359 + $0x1fc] sm:$0xf]
          %v488 = vld [vmem:[#allocation2] sm:$0xff]
          %v489 = vld [vmem:[#allocation2 + $0x8] sm:$0xff]
          %v490 = vld [vmem:[#allocation2 + $0x10] sm:$0xff]
          %v491 = vld [vmem:[#allocation2 + $0x18] sm:$0xff]
          %v492 = vld [vmem:[#allocation2 + $0x20] sm:$0xff]
          %v493 = vld [vmem:[#allocation2 + $0x28] sm:$0xff]
          %v494 = vld [vmem:[#allocation2 + $0x30] sm:$0xff]
          %v495 = vld [vmem:[#allocation2 + $0x38] sm:$0xff]
          %v496 = vld [vmem:[#allocation2 + $0x40] sm:$0xff]
          %v497 = vld [vmem:[#allocation2 + $0x48] sm:$0xff]
          %v498 = vld [vmem:[#allocation2 + $0x50] sm:$0xff]
          %v499 = vld [vmem:[#allocation2 + $0x58] sm:$0xff]
          %v500 = vld [vmem:[#allocation2 + $0x60] sm:$0xff]
          %v501 = vld [vmem:[#allocation2 + $0x68] sm:$0xff]
          %v502 = vld [vmem:[#allocation2 + $0x70] sm:$0xff]
          %v503 = vld [vmem:[#allocation2 + $0x78] sm:$0xff]
          %v504 = vld [vmem:[#allocation2 + $0x80] sm:$0xff]
          %v505 = vld [vmem:[#allocation2 + $0x88] sm:$0xff]
          %v506 = vld [vmem:[#allocation2 + $0x90] sm:$0xff]
          %v507 = vld [vmem:[#allocation2 + $0x98] sm:$0xff]
          %v508 = vld [vmem:[#allocation2 + $0xa0] sm:$0xff]
          %v509 = vld [vmem:[#allocation2 + $0xa8] sm:$0xff]
          %v510 = vld [vmem:[#allocation2 + $0xb0] sm:$0xff]
          %v511 = vld [vmem:[#allocation2 + $0xb8] sm:$0xff]
          %v512 = vld [vmem:[#allocation2 + $0xc0] sm:$0xff]
          %v513 = vld [vmem:[#allocation2 + $0xc8] sm:$0xff]
          %v514 = vld [vmem:[#allocation2 + $0xd0] sm:$0xff]
          %v515 = vld [vmem:[#allocation2 + $0xd8] sm:$0xff]
          %v516 = vld [vmem:[#allocation2 + $0xe0] sm:$0xff]
          %v517 = vld [vmem:[#allocation2 + $0xe8] sm:$0xff]
          %v518 = vld [vmem:[#allocation2 + $0xf0] sm:$0xff]
          %v519 = vld [vmem:[#allocation2 + $0xf8] sm:$0xff]
          %v520 = vld [vmem:[%s258] sm:$0xff]
          %v521 = vld [vmem:[%s258 + $0x8] sm:$0xff]
          %v522 = vld [vmem:[%s258 + $0x10] sm:$0xff]
          %v523 = vld [vmem:[%s258 + $0x18] sm:$0xff]
          %v524 = vld [vmem:[%s258 + $0x20] sm:$0xff]
          %v525 = vld [vmem:[%s258 + $0x28] sm:$0xff]
          %v526 = vld [vmem:[%s258 + $0x30] sm:$0xff]
          %v527 = vld [vmem:[%s258 + $0x38] sm:$0xff]
          %v528 = vld [vmem:[%s258 + $0x40] sm:$0xff]
          %v529 = vld [vmem:[%s258 + $0x48] sm:$0xff]
          %v530 = vld [vmem:[%s258 + $0x50] sm:$0xff]
          %v531 = vld [vmem:[%s258 + $0x58] sm:$0xff]
          %v532 = vld [vmem:[%s258 + $0x60] sm:$0xff]
          %v533 = vld [vmem:[%s258 + $0x68] sm:$0xff]
          %v534 = vld [vmem:[%s258 + $0x70] sm:$0xff]
          %v535 = vld [vmem:[%s258 + $0x78] sm:$0xff]
          %v536 = vld [vmem:[%s258 + $0x80] sm:$0xff]
          %v537 = vld [vmem:[%s258 + $0x88] sm:$0xff]
          %v538 = vld [vmem:[%s258 + $0x90] sm:$0xff]
          %v539 = vld [vmem:[%s258 + $0x98] sm:$0xff]
          %v540 = vld [vmem:[%s258 + $0xa0] sm:$0xff]
          %v541 = vld [vmem:[%s258 + $0xa8] sm:$0xff]
          %v542 = vld [vmem:[%s258 + $0xb0] sm:$0xff]
          %v543 = vld [vmem:[%s258 + $0xb8] sm:$0xff]
          %v544 = vld [vmem:[%s258 + $0xc0] sm:$0xff]
          %v545 = vld [vmem:[%s258 + $0xc8] sm:$0xff]
          %v546 = vld [vmem:[%s258 + $0xd0] sm:$0xff]
          %v547 = vld [vmem:[%s258 + $0xd8] sm:$0xff]
          %v548 = vld [vmem:[%s258 + $0xe0] sm:$0xff]
          %v549 = vld [vmem:[%s258 + $0xe8] sm:$0xff]
          %v550 = vld [vmem:[%s258 + $0xf0] sm:$0xff]
          %v551 = vld [vmem:[%s258 + $0xf8] sm:$0xff]
          %v552 = vld [vmem:[%s258 + $0x100] sm:$0xff]
          %v553 = vld [vmem:[%s258 + $0x108] sm:$0xff]
          %v554 = vld [vmem:[%s258 + $0x110] sm:$0xff]
          %v555 = vld [vmem:[%s258 + $0x118] sm:$0xff]
          %v556 = vld [vmem:[%s258 + $0x120] sm:$0xff]
          %v557 = vld [vmem:[%s258 + $0x128] sm:$0xff]
          %v558 = vld [vmem:[%s258 + $0x130] sm:$0xff]
          %v559 = vld [vmem:[%s258 + $0x138] sm:$0xff]
          %v560 = vld [vmem:[%s258 + $0x140] sm:$0xff]
          %v561 = vld [vmem:[%s258 + $0x148] sm:$0xff]
          %v562 = vld [vmem:[%s258 + $0x150] sm:$0xff]
          %v563 = vld [vmem:[%s258 + $0x158] sm:$0xff]
          %v564 = vld [vmem:[%s258 + $0x160] sm:$0xff]
          %v565 = vld [vmem:[%s258 + $0x168] sm:$0xff]
          %v566 = vld [vmem:[%s258 + $0x170] sm:$0xff]
          %v567 = vld [vmem:[%s258 + $0x178] sm:$0xff]
          %v568 = vld [vmem:[%s258 + $0x180] sm:$0xff]
          %v569 = vld [vmem:[%s258 + $0x188] sm:$0xff]
          %v570 = vld [vmem:[%s258 + $0x190] sm:$0xff]
          %v571 = vld [vmem:[%s258 + $0x198] sm:$0xff]
          %v572 = vld [vmem:[%s258 + $0x1a0] sm:$0xff]
          %v573 = vld [vmem:[%s258 + $0x1a8] sm:$0xff]
          %v574 = vld [vmem:[%s258 + $0x1b0] sm:$0xff]
          %v575 = vld [vmem:[%s258 + $0x1b8] sm:$0xff]
          %v576 = vld [vmem:[%s258 + $0x1c0] sm:$0xff]
          %v577 = vld [vmem:[%s258 + $0x1c8] sm:$0xff]
          %v578 = vld [vmem:[%s258 + $0x1d0] sm:$0xff]
          %v579 = vld [vmem:[%s258 + $0x1d8] sm:$0xff]
          %v580 = vld [vmem:[%s258 + $0x1e0] sm:$0xff]
          %v581 = vld [vmem:[%s258 + $0x1e8] sm:$0xff]
          %v582 = vld [vmem:[%s258 + $0x1f0] sm:$0xff]
          %v583 = vld [vmem:[%s258 + $0x1f8] sm:$0xff]
          %v584 = vld [vmem:[%s258 + $0x200] sm:$0xff]
          %v585 = vld [vmem:[%s258 + $0x208] sm:$0xff]
          %v586 = vld [vmem:[%s258 + $0x210] sm:$0xff]
          %v587 = vld [vmem:[%s258 + $0x218] sm:$0xff]
          %v588 = vld [vmem:[%s258 + $0x220] sm:$0xff]
          %v589 = vld [vmem:[%s258 + $0x228] sm:$0xff]
          %v590 = vld [vmem:[%s258 + $0x230] sm:$0xff]
          %v591 = vld [vmem:[%s258 + $0x238] sm:$0xff]
          %v592 = vld [vmem:[%s258 + $0x240] sm:$0xff]
          %v593 = vld [vmem:[%s258 + $0x248] sm:$0xff]
          %v594 = vld [vmem:[%s258 + $0x250] sm:$0xff]
          %v595 = vld [vmem:[%s258 + $0x258] sm:$0xff]
          %v596 = vld [vmem:[%s258 + $0x260] sm:$0xff]
          %v597 = vld [vmem:[%s258 + $0x268] sm:$0xff]
          %v598 = vld [vmem:[%s258 + $0x270] sm:$0xff]
          %v599 = vld [vmem:[%s258 + $0x278] sm:$0xff]
          %v600 = vld [vmem:[%s258 + $0x280] sm:$0xff]
          %v601 = vld [vmem:[%s258 + $0x288] sm:$0xff]
          %v602 = vld [vmem:[%s258 + $0x290] sm:$0xff]
          %v603 = vld [vmem:[%s258 + $0x298] sm:$0xff]
          %v604 = vld [vmem:[%s258 + $0x2a0] sm:$0xff]
          %v605 = vld [vmem:[%s258 + $0x2a8] sm:$0xff]
          %v606 = vld [vmem:[%s258 + $0x2b0] sm:$0xff]
          %v607 = vld [vmem:[%s258 + $0x2b8] sm:$0xff]
          %v608 = vld [vmem:[%s258 + $0x2c0] sm:$0xff]
          %v609 = vld [vmem:[%s258 + $0x2c8] sm:$0xff]
          %v610 = vld [vmem:[%s258 + $0x2d0] sm:$0xff]
          %v611 = vld [vmem:[%s258 + $0x2d8] sm:$0xff]
          %v612 = vld [vmem:[%s258 + $0x2e0] sm:$0xff]
          %v613 = vld [vmem:[%s258 + $0x2e8] sm:$0xff]
          %v614 = vld [vmem:[%s258 + $0x2f0] sm:$0xff]
          %v615 = vld [vmem:[%s258 + $0x2f8] sm:$0xff]
          %v616 = vld [vmem:[%s258 + $0x300] sm:$0xff]
          %v617 = vld [vmem:[%s258 + $0x308] sm:$0xff]
          %v618 = vld [vmem:[%s258 + $0x310] sm:$0xff]
          %v619 = vld [vmem:[%s258 + $0x318] sm:$0xff]
          %v620 = vld [vmem:[%s258 + $0x320] sm:$0xff]
          %v621 = vld [vmem:[%s258 + $0x328] sm:$0xff]
          %v622 = vld [vmem:[%s258 + $0x330] sm:$0xff]
          %v623 = vld [vmem:[%s258 + $0x338] sm:$0xff]
          %v624 = vld [vmem:[%s258 + $0x340] sm:$0xff]
          %v625 = vld [vmem:[%s258 + $0x348] sm:$0xff]
          %v626 = vld [vmem:[%s258 + $0x350] sm:$0xff]
          %v627 = vld [vmem:[%s258 + $0x358] sm:$0xff]
          %v628 = vld [vmem:[%s258 + $0x360] sm:$0xff]
          %v629 = vld [vmem:[%s258 + $0x368] sm:$0xff]
          %v630 = vld [vmem:[%s258 + $0x370] sm:$0xff]
          %v631 = vld [vmem:[%s258 + $0x378] sm:$0xff]
          %v632 = vld [vmem:[%s258 + $0x380] sm:$0xff]
          %v633 = vld [vmem:[%s258 + $0x388] sm:$0xff]
          %v634 = vld [vmem:[%s258 + $0x390] sm:$0xff]
          %v635 = vld [vmem:[%s258 + $0x398] sm:$0xff]
          %v636 = vld [vmem:[%s258 + $0x3a0] sm:$0xff]
          %v637 = vld [vmem:[%s258 + $0x3a8] sm:$0xff]
          %v638 = vld [vmem:[%s258 + $0x3b0] sm:$0xff]
          %v639 = vld [vmem:[%s258 + $0x3b8] sm:$0xff]
          %v640 = vld [vmem:[%s258 + $0x3c0] sm:$0xff]
          %v641 = vld [vmem:[%s258 + $0x3c8] sm:$0xff]
          %v642 = vld [vmem:[%s258 + $0x3d0] sm:$0xff]
          %v643 = vld [vmem:[%s258 + $0x3d8] sm:$0xff]
          %v644 = vld [vmem:[%s258 + $0x3e0] sm:$0xff]
          %v645 = vld [vmem:[%s258 + $0x3e8] sm:$0xff]
          %v646 = vld [vmem:[%s258 + $0x3f0] sm:$0xff]
          %v647 = vld [vmem:[%s258 + $0x3f8] sm:$0xff]
          %v776 = vunpack.c.l.b16 %v520
          %v777 = vunpack.c.h.b16 %v520
          %v778 = vunpack.c.l.b16 %v521
          %v779 = vunpack.c.h.b16 %v521
          %v780 = vunpack.c.l.b16 %v522
          %v781 = vunpack.c.h.b16 %v522
          %v782 = vunpack.c.l.b16 %v523
          %v783 = vunpack.c.h.b16 %v523
          %v784 = vunpack.c.l.b16 %v524
          %v785 = vunpack.c.h.b16 %v524
          %v786 = vunpack.c.l.b16 %v525
          %v787 = vunpack.c.h.b16 %v525
          %v788 = vunpack.c.l.b16 %v526
          %v789 = vunpack.c.h.b16 %v526
          %v790 = vunpack.c.l.b16 %v527
          %v791 = vunpack.c.h.b16 %v527
          %v792 = vunpack.c.l.b16 %v528
          %v793 = vunpack.c.h.b16 %v528
          %v794 = vunpack.c.l.b16 %v529
          %v795 = vunpack.c.h.b16 %v529
          %v796 = vunpack.c.l.b16 %v530
          %v797 = vunpack.c.h.b16 %v530
          %v798 = vunpack.c.l.b16 %v531
          %v799 = vunpack.c.h.b16 %v531
          %v800 = vunpack.c.l.b16 %v532
          %v801 = vunpack.c.h.b16 %v532
          %v802 = vunpack.c.l.b16 %v533
          %v803 = vunpack.c.h.b16 %v533
          %v804 = vunpack.c.l.b16 %v534
          %v805 = vunpack.c.h.b16 %v534
          %v806 = vunpack.c.l.b16 %v535
          %v807 = vunpack.c.h.b16 %v535
          %v808 = vunpack.c.l.b16 %v536
          %v809 = vunpack.c.h.b16 %v536
          %v810 = vunpack.c.l.b16 %v537
          %v811 = vunpack.c.h.b16 %v537
          %v812 = vunpack.c.l.b16 %v538
          %v813 = vunpack.c.h.b16 %v538
          %v814 = vunpack.c.l.b16 %v539
          %v815 = vunpack.c.h.b16 %v539
          %v816 = vunpack.c.l.b16 %v540
          %v817 = vunpack.c.h.b16 %v540
          %v818 = vunpack.c.l.b16 %v541
          %v819 = vunpack.c.h.b16 %v541
          %v820 = vunpack.c.l.b16 %v542
          %v821 = vunpack.c.h.b16 %v542
          %v822 = vunpack.c.l.b16 %v543
          %v823 = vunpack.c.h.b16 %v543
          %v824 = vunpack.c.l.b16 %v544
          %v825 = vunpack.c.h.b16 %v544
          %v826 = vunpack.c.l.b16 %v545
          %v827 = vunpack.c.h.b16 %v545
          %v828 = vunpack.c.l.b16 %v546
          %v829 = vunpack.c.h.b16 %v546
          %v830 = vunpack.c.l.b16 %v547
          %v831 = vunpack.c.h.b16 %v547
          %v832 = vunpack.c.l.b16 %v548
          %v833 = vunpack.c.h.b16 %v548
          %v834 = vunpack.c.l.b16 %v549
          %v835 = vunpack.c.h.b16 %v549
          %v836 = vunpack.c.l.b16 %v550
          %v837 = vunpack.c.h.b16 %v550
          %v838 = vunpack.c.l.b16 %v551
          %v839 = vunpack.c.h.b16 %v551
          %v840 = vunpack.c.l.b16 %v552
          %v841 = vunpack.c.h.b16 %v552
          %v842 = vunpack.c.l.b16 %v553
          %v843 = vunpack.c.h.b16 %v553
          %v844 = vunpack.c.l.b16 %v554
          %v845 = vunpack.c.h.b16 %v554
          %v846 = vunpack.c.l.b16 %v555
          %v847 = vunpack.c.h.b16 %v555
          %v848 = vunpack.c.l.b16 %v556
          %v849 = vunpack.c.h.b16 %v556
          %v850 = vunpack.c.l.b16 %v557
          %v851 = vunpack.c.h.b16 %v557
          %v852 = vunpack.c.l.b16 %v558
          %v853 = vunpack.c.h.b16 %v558
          %v854 = vunpack.c.l.b16 %v559
          %v855 = vunpack.c.h.b16 %v559
          %v856 = vunpack.c.l.b16 %v560
          %v857 = vunpack.c.h.b16 %v560
          %v858 = vunpack.c.l.b16 %v561
          %v859 = vunpack.c.h.b16 %v561
          %v860 = vunpack.c.l.b16 %v562
          %v861 = vunpack.c.h.b16 %v562
          %v862 = vunpack.c.l.b16 %v563
          %v863 = vunpack.c.h.b16 %v563
          %v864 = vunpack.c.l.b16 %v564
          %v865 = vunpack.c.h.b16 %v564
          %v866 = vunpack.c.l.b16 %v565
          %v867 = vunpack.c.h.b16 %v565
          %v868 = vunpack.c.l.b16 %v566
          %v869 = vunpack.c.h.b16 %v566
          %v870 = vunpack.c.l.b16 %v567
          %v871 = vunpack.c.h.b16 %v567
          %v872 = vunpack.c.l.b16 %v568
          %v873 = vunpack.c.h.b16 %v568
          %v874 = vunpack.c.l.b16 %v569
          %v875 = vunpack.c.h.b16 %v569
          %v876 = vunpack.c.l.b16 %v570
          %v877 = vunpack.c.h.b16 %v570
          %v878 = vunpack.c.l.b16 %v571
          %v879 = vunpack.c.h.b16 %v571
          %v880 = vunpack.c.l.b16 %v572
          %v881 = vunpack.c.h.b16 %v572
          %v882 = vunpack.c.l.b16 %v573
          %v883 = vunpack.c.h.b16 %v573
          %v884 = vunpack.c.l.b16 %v574
          %v885 = vunpack.c.h.b16 %v574
          %v886 = vunpack.c.l.b16 %v575
          %v887 = vunpack.c.h.b16 %v575
          %v888 = vunpack.c.l.b16 %v576
          %v889 = vunpack.c.h.b16 %v576
          %v890 = vunpack.c.l.b16 %v577
          %v891 = vunpack.c.h.b16 %v577
          %v892 = vunpack.c.l.b16 %v578
          %v893 = vunpack.c.h.b16 %v578
          %v894 = vunpack.c.l.b16 %v579
          %v895 = vunpack.c.h.b16 %v579
          %v896 = vunpack.c.l.b16 %v580
          %v897 = vunpack.c.h.b16 %v580
          %v898 = vunpack.c.l.b16 %v581
          %v899 = vunpack.c.h.b16 %v581
          %v900 = vunpack.c.l.b16 %v582
          %v901 = vunpack.c.h.b16 %v582
          %v902 = vunpack.c.l.b16 %v583
          %v903 = vunpack.c.h.b16 %v583
          %v904 = vunpack.c.l.b16 %v584
          %v905 = vunpack.c.h.b16 %v584
          %v906 = vunpack.c.l.b16 %v585
          %v907 = vunpack.c.h.b16 %v585
          %v908 = vunpack.c.l.b16 %v586
          %v909 = vunpack.c.h.b16 %v586
          %v910 = vunpack.c.l.b16 %v587
          %v911 = vunpack.c.h.b16 %v587
          %v912 = vunpack.c.l.b16 %v588
          %v913 = vunpack.c.h.b16 %v588
          %v914 = vunpack.c.l.b16 %v589
          %v915 = vunpack.c.h.b16 %v589
          %v916 = vunpack.c.l.b16 %v590
          %v917 = vunpack.c.h.b16 %v590
          %v918 = vunpack.c.l.b16 %v591
          %v919 = vunpack.c.h.b16 %v591
          %v920 = vunpack.c.l.b16 %v592
          %v921 = vunpack.c.h.b16 %v592
          %v922 = vunpack.c.l.b16 %v593
          %v923 = vunpack.c.h.b16 %v593
          %v924 = vunpack.c.l.b16 %v594
          %v925 = vunpack.c.h.b16 %v594
          %v926 = vunpack.c.l.b16 %v595
          %v927 = vunpack.c.h.b16 %v595
          %v928 = vunpack.c.l.b16 %v596
          %v929 = vunpack.c.h.b16 %v596
          %v930 = vunpack.c.l.b16 %v597
          %v931 = vunpack.c.h.b16 %v597
          %v932 = vunpack.c.l.b16 %v598
          %v933 = vunpack.c.h.b16 %v598
          %v934 = vunpack.c.l.b16 %v599
          %v935 = vunpack.c.h.b16 %v599
          %v936 = vunpack.c.l.b16 %v600
          %v937 = vunpack.c.h.b16 %v600
          %v938 = vunpack.c.l.b16 %v601
          %v939 = vunpack.c.h.b16 %v601
          %v940 = vunpack.c.l.b16 %v602
          %v941 = vunpack.c.h.b16 %v602
          %v942 = vunpack.c.l.b16 %v603
          %v943 = vunpack.c.h.b16 %v603
          %v944 = vunpack.c.l.b16 %v604
          %v945 = vunpack.c.h.b16 %v604
          %v946 = vunpack.c.l.b16 %v605
          %v947 = vunpack.c.h.b16 %v605
          %v948 = vunpack.c.l.b16 %v606
          %v949 = vunpack.c.h.b16 %v606
          %v950 = vunpack.c.l.b16 %v607
          %v951 = vunpack.c.h.b16 %v607
          %v952 = vunpack.c.l.b16 %v608
          %v953 = vunpack.c.h.b16 %v608
          %v954 = vunpack.c.l.b16 %v609
          %v955 = vunpack.c.h.b16 %v609
          %v956 = vunpack.c.l.b16 %v610
          %v957 = vunpack.c.h.b16 %v610
          %v958 = vunpack.c.l.b16 %v611
          %v959 = vunpack.c.h.b16 %v611
          %v960 = vunpack.c.l.b16 %v612
          %v961 = vunpack.c.h.b16 %v612
          %v962 = vunpack.c.l.b16 %v613
          %v963 = vunpack.c.h.b16 %v613
          %v964 = vunpack.c.l.b16 %v614
          %v965 = vunpack.c.h.b16 %v614
          %v966 = vunpack.c.l.b16 %v615
          %v967 = vunpack.c.h.b16 %v615
          %v968 = vunpack.c.l.b16 %v616
          %v969 = vunpack.c.h.b16 %v616
          %v970 = vunpack.c.l.b16 %v617
          %v971 = vunpack.c.h.b16 %v617
          %v972 = vunpack.c.l.b16 %v618
          %v973 = vunpack.c.h.b16 %v618
          %v974 = vunpack.c.l.b16 %v619
          %v975 = vunpack.c.h.b16 %v619
          %v976 = vunpack.c.l.b16 %v620
          %v977 = vunpack.c.h.b16 %v620
          %v978 = vunpack.c.l.b16 %v621
          %v979 = vunpack.c.h.b16 %v621
          %v980 = vunpack.c.l.b16 %v622
          %v981 = vunpack.c.h.b16 %v622
          %v982 = vunpack.c.l.b16 %v623
          %v983 = vunpack.c.h.b16 %v623
          %v984 = vunpack.c.l.b16 %v624
          %v985 = vunpack.c.h.b16 %v624
          %v986 = vunpack.c.l.b16 %v625
          %v987 = vunpack.c.h.b16 %v625
          %v988 = vunpack.c.l.b16 %v626
          %v989 = vunpack.c.h.b16 %v626
          %v990 = vunpack.c.l.b16 %v627
          %v991 = vunpack.c.h.b16 %v627
          %v992 = vunpack.c.l.b16 %v628
          %v993 = vunpack.c.h.b16 %v628
          %v994 = vunpack.c.l.b16 %v629
          %v995 = vunpack.c.h.b16 %v629
          %v996 = vunpack.c.l.b16 %v630
          %v997 = vunpack.c.h.b16 %v630
          %v998 = vunpack.c.l.b16 %v631
          %v999 = vunpack.c.h.b16 %v631
          %v1000 = vunpack.c.l.b16 %v632
          %v1001 = vunpack.c.h.b16 %v632
          %v1002 = vunpack.c.l.b16 %v633
          %v1003 = vunpack.c.h.b16 %v633
          %v1004 = vunpack.c.l.b16 %v634
          %v1005 = vunpack.c.h.b16 %v634
          %v1006 = vunpack.c.l.b16 %v635
          %v1007 = vunpack.c.h.b16 %v635
          %v1008 = vunpack.c.l.b16 %v636
          %v1009 = vunpack.c.h.b16 %v636
          %v1010 = vunpack.c.l.b16 %v637
          %v1011 = vunpack.c.h.b16 %v637
          %v1012 = vunpack.c.l.b16 %v638
          %v1013 = vunpack.c.h.b16 %v638
          %v1014 = vunpack.c.l.b16 %v639
          %v1015 = vunpack.c.h.b16 %v639
          %v1016 = vunpack.c.l.b16 %v640
          %v1017 = vunpack.c.h.b16 %v640
          %v1018 = vunpack.c.l.b16 %v641
          %v1019 = vunpack.c.h.b16 %v641
          %v1020 = vunpack.c.l.b16 %v642
          %v1021 = vunpack.c.h.b16 %v642
          %v1022 = vunpack.c.l.b16 %v643
          %v1023 = vunpack.c.h.b16 %v643
          %v1024 = vunpack.c.l.b16 %v644
          %v1025 = vunpack.c.h.b16 %v644
          %v1026 = vunpack.c.l.b16 %v645
          %v1027 = vunpack.c.h.b16 %v645
          %v1028 = vunpack.c.l.b16 %v646
          %v1029 = vunpack.c.h.b16 %v646
          %v1030 = vunpack.c.l.b16 %v647
          %v1031 = vunpack.c.h.b16 %v647
          %v1032 = vpack.c.b16 %v784, %v776
          %v1033 = vpack.c.b16 %v785, %v777
          %v1034 = vpack.c.b16 %v786, %v778
          %v1035 = vpack.c.b16 %v787, %v779
          %v1036 = vpack.c.b16 %v788, %v780
          %v1037 = vpack.c.b16 %v789, %v781
          %v1038 = vpack.c.b16 %v790, %v782
          %v1039 = vpack.c.b16 %v791, %v783
          %v1040 = vpack.c.b16 %v800, %v792
          %v1041 = vpack.c.b16 %v801, %v793
          %v1042 = vpack.c.b16 %v802, %v794
          %v1043 = vpack.c.b16 %v803, %v795
          %v1044 = vpack.c.b16 %v804, %v796
          %v1045 = vpack.c.b16 %v805, %v797
          %v1046 = vpack.c.b16 %v806, %v798
          %v1047 = vpack.c.b16 %v807, %v799
          %v1048 = vpack.c.b16 %v816, %v808
          %v1049 = vpack.c.b16 %v817, %v809
          %v1050 = vpack.c.b16 %v818, %v810
          %v1051 = vpack.c.b16 %v819, %v811
          %v1052 = vpack.c.b16 %v820, %v812
          %v1053 = vpack.c.b16 %v821, %v813
          %v1054 = vpack.c.b16 %v822, %v814
          %v1055 = vpack.c.b16 %v823, %v815
          %v1056 = vpack.c.b16 %v832, %v824
          %v1057 = vpack.c.b16 %v833, %v825
          %v1058 = vpack.c.b16 %v834, %v826
          %v1059 = vpack.c.b16 %v835, %v827
          %v1060 = vpack.c.b16 %v836, %v828
          %v1061 = vpack.c.b16 %v837, %v829
          %v1062 = vpack.c.b16 %v838, %v830
          %v1063 = vpack.c.b16 %v839, %v831
          %v1064 = vpack.c.b16 %v848, %v840
          %v1065 = vpack.c.b16 %v849, %v841
          %v1066 = vpack.c.b16 %v850, %v842
          %v1067 = vpack.c.b16 %v851, %v843
          %v1068 = vpack.c.b16 %v852, %v844
          %v1069 = vpack.c.b16 %v853, %v845
          %v1070 = vpack.c.b16 %v854, %v846
          %v1071 = vpack.c.b16 %v855, %v847
          %v1072 = vpack.c.b16 %v864, %v856
          %v1073 = vpack.c.b16 %v865, %v857
          %v1074 = vpack.c.b16 %v866, %v858
          %v1075 = vpack.c.b16 %v867, %v859
          %v1076 = vpack.c.b16 %v868, %v860
          %v1077 = vpack.c.b16 %v869, %v861
          %v1078 = vpack.c.b16 %v870, %v862
          %v1079 = vpack.c.b16 %v871, %v863
          %v1080 = vpack.c.b16 %v880, %v872
          %v1081 = vpack.c.b16 %v881, %v873
          %v1082 = vpack.c.b16 %v882, %v874
          %v1083 = vpack.c.b16 %v883, %v875
          %v1084 = vpack.c.b16 %v884, %v876
          %v1085 = vpack.c.b16 %v885, %v877
          %v1086 = vpack.c.b16 %v886, %v878
          %v1087 = vpack.c.b16 %v887, %v879
          %v1088 = vpack.c.b16 %v896, %v888
          %v1089 = vpack.c.b16 %v897, %v889
          %v1090 = vpack.c.b16 %v898, %v890
          %v1091 = vpack.c.b16 %v899, %v891
          %v1092 = vpack.c.b16 %v900, %v892
          %v1093 = vpack.c.b16 %v901, %v893
          %v1094 = vpack.c.b16 %v902, %v894
          %v1095 = vpack.c.b16 %v903, %v895
          %v1096 = vpack.c.b16 %v912, %v904
          %v1097 = vpack.c.b16 %v913, %v905
          %v1098 = vpack.c.b16 %v914, %v906
          %v1099 = vpack.c.b16 %v915, %v907
          %v1100 = vpack.c.b16 %v916, %v908
          %v1101 = vpack.c.b16 %v917, %v909
          %v1102 = vpack.c.b16 %v918, %v910
          %v1103 = vpack.c.b16 %v919, %v911
          %v1104 = vpack.c.b16 %v928, %v920
          %v1105 = vpack.c.b16 %v929, %v921
          %v1106 = vpack.c.b16 %v930, %v922
          %v1107 = vpack.c.b16 %v931, %v923
          %v1108 = vpack.c.b16 %v932, %v924
          %v1109 = vpack.c.b16 %v933, %v925
          %v1110 = vpack.c.b16 %v934, %v926
          %v1111 = vpack.c.b16 %v935, %v927
          %v1112 = vpack.c.b16 %v944, %v936
          %v1113 = vpack.c.b16 %v945, %v937
          %v1114 = vpack.c.b16 %v946, %v938
          %v1115 = vpack.c.b16 %v947, %v939
          %v1116 = vpack.c.b16 %v948, %v940
          %v1117 = vpack.c.b16 %v949, %v941
          %v1118 = vpack.c.b16 %v950, %v942
          %v1119 = vpack.c.b16 %v951, %v943
          %v1120 = vpack.c.b16 %v960, %v952
          %v1121 = vpack.c.b16 %v961, %v953
          %v1122 = vpack.c.b16 %v962, %v954
          %v1123 = vpack.c.b16 %v963, %v955
          %v1124 = vpack.c.b16 %v964, %v956
          %v1125 = vpack.c.b16 %v965, %v957
          %v1126 = vpack.c.b16 %v966, %v958
          %v1127 = vpack.c.b16 %v967, %v959
          %v1128 = vpack.c.b16 %v976, %v968
          %v1129 = vpack.c.b16 %v977, %v969
          %v1130 = vpack.c.b16 %v978, %v970
          %v1131 = vpack.c.b16 %v979, %v971
          %v1132 = vpack.c.b16 %v980, %v972
          %v1133 = vpack.c.b16 %v981, %v973
          %v1134 = vpack.c.b16 %v982, %v974
          %v1135 = vpack.c.b16 %v983, %v975
          %v1136 = vpack.c.b16 %v992, %v984
          %v1137 = vpack.c.b16 %v993, %v985
          %v1138 = vpack.c.b16 %v994, %v986
          %v1139 = vpack.c.b16 %v995, %v987
          %v1140 = vpack.c.b16 %v996, %v988
          %v1141 = vpack.c.b16 %v997, %v989
          %v1142 = vpack.c.b16 %v998, %v990
          %v1143 = vpack.c.b16 %v999, %v991
          %v1144 = vpack.c.b16 %v1008, %v1000
          %v1145 = vpack.c.b16 %v1009, %v1001
          %v1146 = vpack.c.b16 %v1010, %v1002
          %v1147 = vpack.c.b16 %v1011, %v1003
          %v1148 = vpack.c.b16 %v1012, %v1004
          %v1149 = vpack.c.b16 %v1013, %v1005
          %v1150 = vpack.c.b16 %v1014, %v1006
          %v1151 = vpack.c.b16 %v1015, %v1007
          %v1152 = vpack.c.b16 %v1024, %v1016
          %v1153 = vpack.c.b16 %v1025, %v1017
          %v1154 = vpack.c.b16 %v1026, %v1018
          %v1155 = vpack.c.b16 %v1027, %v1019
          %v1156 = vpack.c.b16 %v1028, %v1020
          %v1157 = vpack.c.b16 %v1029, %v1021
          %v1158 = vpack.c.b16 %v1030, %v1022
          %v1159 = vpack.c.b16 %v1031, %v1023
          %v1416 = vunpack.c.l.b16 %v360
          %v1417 = vunpack.c.l.b16 %v361
          %v1418 = vunpack.c.l.b16 %v362
          %v1419 = vunpack.c.l.b16 %v363
          %v1420 = vunpack.c.l.b16 %v364
          %v1421 = vunpack.c.l.b16 %v365
          %v1422 = vunpack.c.l.b16 %v366
          %v1423 = vunpack.c.l.b16 %v367
          %v1424 = vunpack.c.l.b16 %v368
          %v1425 = vunpack.c.l.b16 %v369
          %v1426 = vunpack.c.l.b16 %v370
          %v1427 = vunpack.c.l.b16 %v371
          %v1428 = vunpack.c.l.b16 %v372
          %v1429 = vunpack.c.l.b16 %v373
          %v1430 = vunpack.c.l.b16 %v374
          %v1431 = vunpack.c.l.b16 %v375
          %v1432 = vunpack.c.l.b16 %v376
          %v1433 = vunpack.c.l.b16 %v377
          %v1434 = vunpack.c.l.b16 %v378
          %v1435 = vunpack.c.l.b16 %v379
          %v1436 = vunpack.c.l.b16 %v380
          %v1437 = vunpack.c.l.b16 %v381
          %v1438 = vunpack.c.l.b16 %v382
          %v1439 = vunpack.c.l.b16 %v383
          %v1440 = vunpack.c.l.b16 %v384
          %v1441 = vunpack.c.l.b16 %v385
          %v1442 = vunpack.c.l.b16 %v386
          %v1443 = vunpack.c.l.b16 %v387
          %v1444 = vunpack.c.l.b16 %v388
          %v1445 = vunpack.c.l.b16 %v389
          %v1446 = vunpack.c.l.b16 %v390
          %v1447 = vunpack.c.l.b16 %v391
          %v1448 = vunpack.c.l.b16 %v392
          %v1449 = vunpack.c.l.b16 %v393
          %v1450 = vunpack.c.l.b16 %v394
          %v1451 = vunpack.c.l.b16 %v395
          %v1452 = vunpack.c.l.b16 %v396
          %v1453 = vunpack.c.l.b16 %v397
          %v1454 = vunpack.c.l.b16 %v398
          %v1455 = vunpack.c.l.b16 %v399
          %v1456 = vunpack.c.l.b16 %v400
          %v1457 = vunpack.c.l.b16 %v401
          %v1458 = vunpack.c.l.b16 %v402
          %v1459 = vunpack.c.l.b16 %v403
          %v1460 = vunpack.c.l.b16 %v404
          %v1461 = vunpack.c.l.b16 %v405
          %v1462 = vunpack.c.l.b16 %v406
          %v1463 = vunpack.c.l.b16 %v407
          %v1464 = vunpack.c.l.b16 %v408
          %v1465 = vunpack.c.l.b16 %v409
          %v1466 = vunpack.c.l.b16 %v410
          %v1467 = vunpack.c.l.b16 %v411
          %v1468 = vunpack.c.l.b16 %v412
          %v1469 = vunpack.c.l.b16 %v413
          %v1470 = vunpack.c.l.b16 %v414
          %v1471 = vunpack.c.l.b16 %v415
          %v1472 = vunpack.c.l.b16 %v416
          %v1473 = vunpack.c.l.b16 %v417
          %v1474 = vunpack.c.l.b16 %v418
          %v1475 = vunpack.c.l.b16 %v419
          %v1476 = vunpack.c.l.b16 %v420
          %v1477 = vunpack.c.l.b16 %v421
          %v1478 = vunpack.c.l.b16 %v422
          %v1479 = vunpack.c.l.b16 %v423
          %v1480 = vunpack.c.l.b16 %v424
          %v1481 = vunpack.c.l.b16 %v425
          %v1482 = vunpack.c.l.b16 %v426
          %v1483 = vunpack.c.l.b16 %v427
          %v1484 = vunpack.c.l.b16 %v428
          %v1485 = vunpack.c.l.b16 %v429
          %v1486 = vunpack.c.l.b16 %v430
          %v1487 = vunpack.c.l.b16 %v431
          %v1488 = vunpack.c.l.b16 %v432
          %v1489 = vunpack.c.l.b16 %v433
          %v1490 = vunpack.c.l.b16 %v434
          %v1491 = vunpack.c.l.b16 %v435
          %v1492 = vunpack.c.l.b16 %v436
          %v1493 = vunpack.c.l.b16 %v437
          %v1494 = vunpack.c.l.b16 %v438
          %v1495 = vunpack.c.l.b16 %v439
          %v1496 = vunpack.c.l.b16 %v440
          %v1497 = vunpack.c.l.b16 %v441
          %v1498 = vunpack.c.l.b16 %v442
          %v1499 = vunpack.c.l.b16 %v443
          %v1500 = vunpack.c.l.b16 %v444
          %v1501 = vunpack.c.l.b16 %v445
          %v1502 = vunpack.c.l.b16 %v446
          %v1503 = vunpack.c.l.b16 %v447
          %v1504 = vunpack.c.l.b16 %v448
          %v1505 = vunpack.c.l.b16 %v449
          %v1506 = vunpack.c.l.b16 %v450
          %v1507 = vunpack.c.l.b16 %v451
          %v1508 = vunpack.c.l.b16 %v452
          %v1509 = vunpack.c.l.b16 %v453
          %v1510 = vunpack.c.l.b16 %v454
          %v1511 = vunpack.c.l.b16 %v455
          %v1512 = vunpack.c.l.b16 %v456
          %v1513 = vunpack.c.l.b16 %v457
          %v1514 = vunpack.c.l.b16 %v458
          %v1515 = vunpack.c.l.b16 %v459
          %v1516 = vunpack.c.l.b16 %v460
          %v1517 = vunpack.c.l.b16 %v461
          %v1518 = vunpack.c.l.b16 %v462
          %v1519 = vunpack.c.l.b16 %v463
          %v1520 = vunpack.c.l.b16 %v464
          %v1521 = vunpack.c.l.b16 %v465
          %v1522 = vunpack.c.l.b16 %v466
          %v1523 = vunpack.c.l.b16 %v467
          %v1524 = vunpack.c.l.b16 %v468
          %v1525 = vunpack.c.l.b16 %v469
          %v1526 = vunpack.c.l.b16 %v470
          %v1527 = vunpack.c.l.b16 %v471
          %v1528 = vunpack.c.l.b16 %v472
          %v1529 = vunpack.c.l.b16 %v473
          %v1530 = vunpack.c.l.b16 %v474
          %v1531 = vunpack.c.l.b16 %v475
          %v1532 = vunpack.c.l.b16 %v476
          %v1533 = vunpack.c.l.b16 %v477
          %v1534 = vunpack.c.l.b16 %v478
          %v1535 = vunpack.c.l.b16 %v479
          %v1536 = vunpack.c.l.b16 %v480
          %v1537 = vunpack.c.l.b16 %v481
          %v1538 = vunpack.c.l.b16 %v482
          %v1539 = vunpack.c.l.b16 %v483
          %v1540 = vunpack.c.l.b16 %v484
          %v1541 = vunpack.c.l.b16 %v485
          %v1542 = vunpack.c.l.b16 %v486
          %v1543 = vunpack.c.l.b16 %v487
          %v1544 = vpack.c.b16 %v1417, %v1416
          %v1545 = vpack.c.b16 %v1419, %v1418
          %v1546 = vpack.c.b16 %v1421, %v1420
          %v1547 = vpack.c.b16 %v1423, %v1422
          %v1548 = vpack.c.b16 %v1425, %v1424
          %v1549 = vpack.c.b16 %v1427, %v1426
          %v1550 = vpack.c.b16 %v1429, %v1428
          %v1551 = vpack.c.b16 %v1431, %v1430
          %v1552 = vpack.c.b16 %v1433, %v1432
          %v1553 = vpack.c.b16 %v1435, %v1434
          %v1554 = vpack.c.b16 %v1437, %v1436
          %v1555 = vpack.c.b16 %v1439, %v1438
          %v1556 = vpack.c.b16 %v1441, %v1440
          %v1557 = vpack.c.b16 %v1443, %v1442
          %v1558 = vpack.c.b16 %v1445, %v1444
          %v1559 = vpack.c.b16 %v1447, %v1446
          %v1560 = vpack.c.b16 %v1449, %v1448
          %v1561 = vpack.c.b16 %v1451, %v1450
          %v1562 = vpack.c.b16 %v1453, %v1452
          %v1563 = vpack.c.b16 %v1455, %v1454
          %v1564 = vpack.c.b16 %v1457, %v1456
          %v1565 = vpack.c.b16 %v1459, %v1458
          %v1566 = vpack.c.b16 %v1461, %v1460
          %v1567 = vpack.c.b16 %v1463, %v1462
          %v1568 = vpack.c.b16 %v1465, %v1464
          %v1569 = vpack.c.b16 %v1467, %v1466
          %v1570 = vpack.c.b16 %v1469, %v1468
          %v1571 = vpack.c.b16 %v1471, %v1470
          %v1572 = vpack.c.b16 %v1473, %v1472
          %v1573 = vpack.c.b16 %v1475, %v1474
          %v1574 = vpack.c.b16 %v1477, %v1476
          %v1575 = vpack.c.b16 %v1479, %v1478
          %v1576 = vpack.c.b16 %v1481, %v1480
          %v1577 = vpack.c.b16 %v1483, %v1482
          %v1578 = vpack.c.b16 %v1485, %v1484
          %v1579 = vpack.c.b16 %v1487, %v1486
          %v1580 = vpack.c.b16 %v1489, %v1488
          %v1581 = vpack.c.b16 %v1491, %v1490
          %v1582 = vpack.c.b16 %v1493, %v1492
          %v1583 = vpack.c.b16 %v1495, %v1494
          %v1584 = vpack.c.b16 %v1497, %v1496
          %v1585 = vpack.c.b16 %v1499, %v1498
          %v1586 = vpack.c.b16 %v1501, %v1500
          %v1587 = vpack.c.b16 %v1503, %v1502
          %v1588 = vpack.c.b16 %v1505, %v1504
          %v1589 = vpack.c.b16 %v1507, %v1506
          %v1590 = vpack.c.b16 %v1509, %v1508
          %v1591 = vpack.c.b16 %v1511, %v1510
          %v1592 = vpack.c.b16 %v1513, %v1512
          %v1593 = vpack.c.b16 %v1515, %v1514
          %v1594 = vpack.c.b16 %v1517, %v1516
          %v1595 = vpack.c.b16 %v1519, %v1518
          %v1596 = vpack.c.b16 %v1521, %v1520
          %v1597 = vpack.c.b16 %v1523, %v1522
          %v1598 = vpack.c.b16 %v1525, %v1524
          %v1599 = vpack.c.b16 %v1527, %v1526
          %v1600 = vpack.c.b16 %v1529, %v1528
          %v1601 = vpack.c.b16 %v1531, %v1530
          %v1602 = vpack.c.b16 %v1533, %v1532
          %v1603 = vpack.c.b16 %v1535, %v1534
          %v1604 = vpack.c.b16 %v1537, %v1536
          %v1605 = vpack.c.b16 %v1539, %v1538
          %v1606 = vpack.c.b16 %v1541, %v1540
          %v1607 = vpack.c.b16 %v1543, %v1542
          %1672 = vmatprep.subr.bf16.mxu0 0
          %1673 = vmatpush1.bf16.msra.mxu0 %v1544
          %1674 = vmatprep.subr.bf16.mxu0 0
          %1675 = vmatpush1.bf16.msra.mxu0 %v1545
          %1676 = vmatprep.subr.bf16.mxu0 0
          %1677 = vmatpush1.bf16.msra.mxu0 %v1546
          %1678 = vmatprep.subr.bf16.mxu0 0
          %1679 = vmatpush1.bf16.msra.mxu0 %v1547
          %1680 = vmatprep.subr.bf16.mxu0 0
          %1681 = vmatpush1.bf16.msra.mxu0 %v1548
          %1682 = vmatprep.subr.bf16.mxu0 0
          %1683 = vmatpush1.bf16.msra.mxu0 %v1549
          %1684 = vmatprep.subr.bf16.mxu0 0
          %1685 = vmatpush1.bf16.msra.mxu0 %v1550
          %1686 = vmatprep.subr.bf16.mxu0 0
          %1687 = vmatpush1.bf16.msra.mxu0 %v1551
          %1688 = vmatprep.subr.bf16.mxu0 0
          %1689 = vmatpush1.bf16.msra.mxu0 %v1552
          %1690 = vmatprep.subr.bf16.mxu0 0
          %1691 = vmatpush1.bf16.msra.mxu0 %v1553
          %1692 = vmatprep.subr.bf16.mxu0 0
          %1693 = vmatpush1.bf16.msra.mxu0 %v1554
          %1694 = vmatprep.subr.bf16.mxu0 0
          %1695 = vmatpush1.bf16.msra.mxu0 %v1555
          %1696 = vmatprep.subr.bf16.mxu0 0
          %1697 = vmatpush1.bf16.msra.mxu0 %v1556
          %1698 = vmatprep.subr.bf16.mxu0 0
          %1699 = vmatpush1.bf16.msra.mxu0 %v1557
          %1700 = vmatprep.subr.bf16.mxu0 0
          %1701 = vmatpush1.bf16.msra.mxu0 %v1558
          %1702 = vmatprep.subr.bf16.mxu0 0
          %1703 = vmatpush1.bf16.msra.mxu0 %v1559
          %1704 = vmatprep.mubr.bf16.mxu0 %v1033
          %1705 = vmatmul.mubr.bf16.gmra.mrb[0].mxu0 %v1032
          %v1706 = vpop.f32.mrb[0].mxu0
          %v1707 = vadd.f32 0.0, %v1706
          %v1708 = vpop.f32.mrb[0].mxu0
          %v1709 = vpop.f32.mrb[0].mxu0
          %v1710 = vadd.f32 0.0, %v1709
          %v1711 = vpop.f32.mrb[0].mxu0
          %1712 = vmatprep.mubr.bf16.mxu0 %v1041
          %1713 = vmatmul.mubr.bf16.gmra.mrb[0].mxu0 %v1040
          %v1714 = vpop.f32.mrb[0].mxu0
          %v1715 = vadd.f32 0.0, %v1714
          %v1716 = vpop.f32.mrb[0].mxu0
          %v1717 = vpop.f32.mrb[0].mxu0
          %v1718 = vadd.f32 0.0, %v1717
          %v1719 = vpop.f32.mrb[0].mxu0
          %1720 = vmatprep.mubr.bf16.mxu0 %v1049
          %1721 = vmatmul.mubr.bf16.gmra.mrb[0].mxu0 %v1048
          %v1722 = vpop.f32.mrb[0].mxu0
          %v1723 = vadd.f32 0.0, %v1722
          %v1724 = vpop.f32.mrb[0].mxu0
          %v1725 = vpop.f32.mrb[0].mxu0
          %v1726 = vadd.f32 0.0, %v1725
          %v1727 = vpop.f32.mrb[0].mxu0
          %1728 = vmatprep.mubr.bf16.mxu0 %v1057
          %1729 = vmatmul.mubr.bf16.gmra.mrb[0].mxu0 %v1056
          %v1730 = vpop.f32.mrb[0].mxu0
          %v1731 = vadd.f32 0.0, %v1730
          %v1732 = vpop.f32.mrb[0].mxu0
          %v1733 = vpop.f32.mrb[0].mxu0
          %v1734 = vadd.f32 0.0, %v1733
          %v1735 = vpop.f32.mrb[0].mxu0
          %1736 = vmatprep.mubr.bf16.mxu0 %v1065
          %1737 = vmatmul.mubr.bf16.gmra.mrb[0].mxu0 %v1064
          %v1738 = vpop.f32.mrb[0].mxu0
          %v1739 = vadd.f32 0.0, %v1738
          %v1740 = vpop.f32.mrb[0].mxu0
          %v1741 = vpop.f32.mrb[0].mxu0
          %v1742 = vadd.f32 0.0, %v1741
          %v1743 = vpop.f32.mrb[0].mxu0
          %1744 = vmatprep.mubr.bf16.mxu0 %v1073
          %1745 = vmatmul.mubr.bf16.gmra.mrb[0].mxu0 %v1072
          %v1746 = vpop.f32.mrb[0].mxu0
          %v1747 = vadd.f32 0.0, %v1746
          %v1748 = vpop.f32.mrb[0].mxu0
          %v1749 = vpop.f32.mrb[0].mxu0
          %v1750 = vadd.f32 0.0, %v1749
          %v1751 = vpop.f32.mrb[0].mxu0
          %1752 = vmatprep.mubr.bf16.mxu0 %v1081
          %1753 = vmatmul.mubr.bf16.gmra.mrb[0].mxu0 %v1080
          %v1754 = vpop.f32.mrb[0].mxu0
          %v1755 = vadd.f32 0.0, %v1754
          %v1756 = vpop.f32.mrb[0].mxu0
          %v1757 = vpop.f32.mrb[0].mxu0
          %v1758 = vadd.f32 0.0, %v1757
          %v1759 = vpop.f32.mrb[0].mxu0
          %1760 = vmatprep.mubr.bf16.mxu0 %v1089
          %1761 = vmatmul.mubr.bf16.gmra.mrb[0].mxu0 %v1088
          %v1762 = vpop.f32.mrb[0].mxu0
          %v1763 = vadd.f32 0.0, %v1762
          %v1764 = vpop.f32.mrb[0].mxu0
          %v1765 = vpop.f32.mrb[0].mxu0
          %v1766 = vadd.f32 0.0, %v1765
          %v1767 = vpop.f32.mrb[0].mxu0
          %1768 = vmatprep.mubr.bf16.mxu0 %v1097
          %1769 = vmatmul.mubr.bf16.gmra.mrb[0].mxu0 %v1096
          %v1770 = vpop.f32.mrb[0].mxu0
          %v1771 = vadd.f32 0.0, %v1770
          %v1772 = vpop.f32.mrb[0].mxu0
          %v1773 = vpop.f32.mrb[0].mxu0
          %v1774 = vadd.f32 0.0, %v1773
          %v1775 = vpop.f32.mrb[0].mxu0
          %1776 = vmatprep.mubr.bf16.mxu0 %v1105
          %1777 = vmatmul.mubr.bf16.gmra.mrb[0].mxu0 %v1104
          %v1778 = vpop.f32.mrb[0].mxu0
          %v1779 = vadd.f32 0.0, %v1778
          %v1780 = vpop.f32.mrb[0].mxu0
          %v1781 = vpop.f32.mrb[0].mxu0
          %v1782 = vadd.f32 0.0, %v1781
          %v1783 = vpop.f32.mrb[0].mxu0
          %1784 = vmatprep.mubr.bf16.mxu0 %v1113
          %1785 = vmatmul.mubr.bf16.gmra.mrb[0].mxu0 %v1112
          %v1786 = vpop.f32.mrb[0].mxu0
          %v1787 = vadd.f32 0.0, %v1786
          %v1788 = vpop.f32.mrb[0].mxu0
          %v1789 = vpop.f32.mrb[0].mxu0
          %v1790 = vadd.f32 0.0, %v1789
          %v1791 = vpop.f32.mrb[0].mxu0
          %1792 = vmatprep.mubr.bf16.mxu0 %v1121
          %1793 = vmatmul.mubr.bf16.gmra.mrb[0].mxu0 %v1120
          %v1794 = vpop.f32.mrb[0].mxu0
          %v1795 = vadd.f32 0.0, %v1794
          %v1796 = vpop.f32.mrb[0].mxu0
          %v1797 = vpop.f32.mrb[0].mxu0
          %v1798 = vadd.f32 0.0, %v1797
          %v1799 = vpop.f32.mrb[0].mxu0
          %1800 = vmatprep.mubr.bf16.mxu0 %v1129
          %1801 = vmatmul.mubr.bf16.gmra.mrb[0].mxu0 %v1128
          %v1802 = vpop.f32.mrb[0].mxu0
          %v1803 = vadd.f32 0.0, %v1802
          %v1804 = vpop.f32.mrb[0].mxu0
          %v1805 = vpop.f32.mrb[0].mxu0
          %v1806 = vadd.f32 0.0, %v1805
          %v1807 = vpop.f32.mrb[0].mxu0
          %1808 = vmatprep.mubr.bf16.mxu0 %v1137
          %1809 = vmatmul.mubr.bf16.gmra.mrb[0].mxu0 %v1136
          %v1810 = vpop.f32.mrb[0].mxu0
          %v1811 = vadd.f32 0.0, %v1810
          %v1812 = vpop.f32.mrb[0].mxu0
          %v1813 = vpop.f32.mrb[0].mxu0
          %v1814 = vadd.f32 0.0, %v1813
          %v1815 = vpop.f32.mrb[0].mxu0
          %1816 = vmatprep.mubr.bf16.mxu0 %v1145
          %1817 = vmatmul.mubr.bf16.gmra.mrb[0].mxu0 %v1144
          %v1818 = vpop.f32.mrb[0].mxu0
          %v1819 = vadd.f32 0.0, %v1818
          %v1820 = vpop.f32.mrb[0].mxu0
          %v1821 = vpop.f32.mrb[0].mxu0
          %v1822 = vadd.f32 0.0, %v1821
          %v1823 = vpop.f32.mrb[0].mxu0
          %1824 = vmatprep.mubr.bf16.mxu0 %v1153
          %1825 = vmatmul.mubr.bf16.gmra.mrb[0].mxu0 %v1152
          %v1826 = vpop.f32.mrb[0].mxu0
          %v1827 = vadd.f32 0.0, %v1826
          %v1828 = vpop.f32.mrb[0].mxu0
          %v1829 = vpop.f32.mrb[0].mxu0
          %v1830 = vadd.f32 0.0, %v1829
          %v1831 = vpop.f32.mrb[0].mxu0
          %1832 = vdwg.mxu0
          %1833 = vmatprep.subr.bf16.mxu0 0
          %1834 = vmatpush1.bf16.msra.mxu0 %v1560
          %1835 = vmatprep.subr.bf16.mxu0 0
          %1836 = vmatpush1.bf16.msra.mxu0 %v1561
          %1837 = vmatprep.subr.bf16.mxu0 0
          %1838 = vmatpush1.bf16.msra.mxu0 %v1562
          %1839 = vmatprep.subr.bf16.mxu0 0
          %1840 = vmatpush1.bf16.msra.mxu0 %v1563
          %1841 = vmatprep.subr.bf16.mxu0 0
          %1842 = vmatpush1.bf16.msra.mxu0 %v1564
          %1843 = vmatprep.subr.bf16.mxu0 0
          %1844 = vmatpush1.bf16.msra.mxu0 %v1565
          %1845 = vmatprep.subr.bf16.mxu0 0
          %1846 = vmatpush1.bf16.msra.mxu0 %v1566
          %1847 = vmatprep.subr.bf16.mxu0 0
          %1848 = vmatpush1.bf16.msra.mxu0 %v1567
          %1849 = vmatprep.subr.bf16.mxu0 0
          %1850 = vmatpush1.bf16.msra.mxu0 %v1568
          %1851 = vmatprep.subr.bf16.mxu0 0
          %1852 = vmatpush1.bf16.msra.mxu0 %v1569
          %1853 = vmatprep.subr.bf16.mxu0 0
          %1854 = vmatpush1.bf16.msra.mxu0 %v1570
          %1855 = vmatprep.subr.bf16.mxu0 0
          %1856 = vmatpush1.bf16.msra.mxu0 %v1571
          %1857 = vmatprep.subr.bf16.mxu0 0
          %1858 = vmatpush1.bf16.msra.mxu0 %v1572
          %1859 = vmatprep.subr.bf16.mxu0 0
          %1860 = vmatpush1.bf16.msra.mxu0 %v1573
          %1861 = vmatprep.subr.bf16.mxu0 0
          %1862 = vmatpush1.bf16.msra.mxu0 %v1574
          %1863 = vmatprep.subr.bf16.mxu0 0
          %1864 = vmatpush1.bf16.msra.mxu0 %v1575
          %1865 = vmatprep.mubr.bf16.mxu0 %v1035
          %1866 = vmatmul.mubr.bf16.gmra.mrb[0].mxu0 %v1034
          %v1867 = vpop.f32.mrb[0].mxu0
          %v1868 = vadd.f32 %v1707, %v1867
          %v1869 = vpop.f32.mrb[0].mxu0
          %v1870 = vpop.f32.mrb[0].mxu0
          %v1871 = vadd.f32 %v1710, %v1870
          %v1872 = vpop.f32.mrb[0].mxu0
          %1873 = vmatprep.mubr.bf16.mxu0 %v1043
          %1874 = vmatmul.mubr.bf16.gmra.mrb[0].mxu0 %v1042
          %v1875 = vpop.f32.mrb[0].mxu0
          %v1876 = vadd.f32 %v1715, %v1875
          %v1877 = vpop.f32.mrb[0].mxu0
          %v1878 = vpop.f32.mrb[0].mxu0
          %v1879 = vadd.f32 %v1718, %v1878
          %v1880 = vpop.f32.mrb[0].mxu0
          %1881 = vmatprep.mubr.bf16.mxu0 %v1051
          %1882 = vmatmul.mubr.bf16.gmra.mrb[0].mxu0 %v1050
          %v1883 = vpop.f32.mrb[0].mxu0
          %v1884 = vadd.f32 %v1723, %v1883
          %v1885 = vpop.f32.mrb[0].mxu0
          %v1886 = vpop.f32.mrb[0].mxu0
          %v1887 = vadd.f32 %v1726, %v1886
          %v1888 = vpop.f32.mrb[0].mxu0
          %1889 = vmatprep.mubr.bf16.mxu0 %v1059
          %1890 = vmatmul.mubr.bf16.gmra.mrb[0].mxu0 %v1058
          %v1891 = vpop.f32.mrb[0].mxu0
          %v1892 = vadd.f32 %v1731, %v1891
          %v1893 = vpop.f32.mrb[0].mxu0
          %v1894 = vpop.f32.mrb[0].mxu0
          %v1895 = vadd.f32 %v1734, %v1894
          %v1896 = vpop.f32.mrb[0].mxu0
          %1897 = vmatprep.mubr.bf16.mxu0 %v1067
          %1898 = vmatmul.mubr.bf16.gmra.mrb[0].mxu0 %v1066
          %v1899 = vpop.f32.mrb[0].mxu0
          %v1900 = vadd.f32 %v1739, %v1899
          %v1901 = vpop.f32.mrb[0].mxu0
          %v1902 = vpop.f32.mrb[0].mxu0
          %v1903 = vadd.f32 %v1742, %v1902
          %v1904 = vpop.f32.mrb[0].mxu0
          %1905 = vmatprep.mubr.bf16.mxu0 %v1075
          %1906 = vmatmul.mubr.bf16.gmra.mrb[0].mxu0 %v1074
          %v1907 = vpop.f32.mrb[0].mxu0
          %v1908 = vadd.f32 %v1747, %v1907
          %v1909 = vpop.f32.mrb[0].mxu0
          %v1910 = vpop.f32.mrb[0].mxu0
          %v1911 = vadd.f32 %v1750, %v1910
          %v1912 = vpop.f32.mrb[0].mxu0
          %1913 = vmatprep.mubr.bf16.mxu0 %v1083
          %1914 = vmatmul.mubr.bf16.gmra.mrb[0].mxu0 %v1082
          %v1915 = vpop.f32.mrb[0].mxu0
          %v1916 = vadd.f32 %v1755, %v1915
          %v1917 = vpop.f32.mrb[0].mxu0
          %v1918 = vpop.f32.mrb[0].mxu0
          %v1919 = vadd.f32 %v1758, %v1918
          %v1920 = vpop.f32.mrb[0].mxu0
          %1921 = vmatprep.mubr.bf16.mxu0 %v1091
          %1922 = vmatmul.mubr.bf16.gmra.mrb[0].mxu0 %v1090
          %v1923 = vpop.f32.mrb[0].mxu0
          %v1924 = vadd.f32 %v1763, %v1923
          %v1925 = vpop.f32.mrb[0].mxu0
          %v1926 = vpop.f32.mrb[0].mxu0
          %v1927 = vadd.f32 %v1766, %v1926
          %v1928 = vpop.f32.mrb[0].mxu0
          %1929 = vmatprep.mubr.bf16.mxu0 %v1099
          %1930 = vmatmul.mubr.bf16.gmra.mrb[0].mxu0 %v1098
          %v1931 = vpop.f32.mrb[0].mxu0
          %v1932 = vadd.f32 %v1771, %v1931
          %v1933 = vpop.f32.mrb[0].mxu0
          %v1934 = vpop.f32.mrb[0].mxu0
          %v1935 = vadd.f32 %v1774, %v1934
          %v1936 = vpop.f32.mrb[0].mxu0
          %1937 = vmatprep.mubr.bf16.mxu0 %v1107
          %1938 = vmatmul.mubr.bf16.gmra.mrb[0].mxu0 %v1106
          %v1939 = vpop.f32.mrb[0].mxu0
          %v1940 = vadd.f32 %v1779, %v1939
          %v1941 = vpop.f32.mrb[0].mxu0
          %v1942 = vpop.f32.mrb[0].mxu0
          %v1943 = vadd.f32 %v1782, %v1942
          %v1944 = vpop.f32.mrb[0].mxu0
          %1945 = vmatprep.mubr.bf16.mxu0 %v1115
          %1946 = vmatmul.mubr.bf16.gmra.mrb[0].mxu0 %v1114
          %v1947 = vpop.f32.mrb[0].mxu0
          %v1948 = vadd.f32 %v1787, %v1947
          %v1949 = vpop.f32.mrb[0].mxu0
          %v1950 = vpop.f32.mrb[0].mxu0
          %v1951 = vadd.f32 %v1790, %v1950
          %v1952 = vpop.f32.mrb[0].mxu0
          %1953 = vmatprep.mubr.bf16.mxu0 %v1123
          %1954 = vmatmul.mubr.bf16.gmra.mrb[0].mxu0 %v1122
          %v1955 = vpop.f32.mrb[0].mxu0
          %v1956 = vadd.f32 %v1795, %v1955
          %v1957 = vpop.f32.mrb[0].mxu0
          %v1958 = vpop.f32.mrb[0].mxu0
          %v1959 = vadd.f32 %v1798, %v1958
          %v1960 = vpop.f32.mrb[0].mxu0
          %1961 = vmatprep.mubr.bf16.mxu0 %v1131
          %1962 = vmatmul.mubr.bf16.gmra.mrb[0].mxu0 %v1130
          %v1963 = vpop.f32.mrb[0].mxu0
          %v1964 = vadd.f32 %v1803, %v1963
          %v1965 = vpop.f32.mrb[0].mxu0
          %v1966 = vpop.f32.mrb[0].mxu0
          %v1967 = vadd.f32 %v1806, %v1966
          %v1968 = vpop.f32.mrb[0].mxu0
          %1969 = vmatprep.mubr.bf16.mxu0 %v1139
          %1970 = vmatmul.mubr.bf16.gmra.mrb[0].mxu0 %v1138
          %v1971 = vpop.f32.mrb[0].mxu0
          %v1972 = vadd.f32 %v1811, %v1971
          %v1973 = vpop.f32.mrb[0].mxu0
          %v1974 = vpop.f32.mrb[0].mxu0
          %v1975 = vadd.f32 %v1814, %v1974
          %v1976 = vpop.f32.mrb[0].mxu0
          %1977 = vmatprep.mubr.bf16.mxu0 %v1147
          %1978 = vmatmul.mubr.bf16.gmra.mrb[0].mxu0 %v1146
          %v1979 = vpop.f32.mrb[0].mxu0
          %v1980 = vadd.f32 %v1819, %v1979
          %v1981 = vpop.f32.mrb[0].mxu0
          %v1982 = vpop.f32.mrb[0].mxu0
          %v1983 = vadd.f32 %v1822, %v1982
          %v1984 = vpop.f32.mrb[0].mxu0
          %1985 = vmatprep.mubr.bf16.mxu0 %v1155
          %1986 = vmatmul.mubr.bf16.gmra.mrb[0].mxu0 %v1154
          %v1987 = vpop.f32.mrb[0].mxu0
          %v1988 = vadd.f32 %v1827, %v1987
          %v1989 = vpop.f32.mrb[0].mxu0
          %v1990 = vpop.f32.mrb[0].mxu0
          %v1991 = vadd.f32 %v1830, %v1990
          %v1992 = vpop.f32.mrb[0].mxu0
          %1993 = vdwg.mxu0
          %1994 = vmatprep.subr.bf16.mxu0 0
          %1995 = vmatpush1.bf16.msra.mxu0 %v1576
          %1996 = vmatprep.subr.bf16.mxu0 0
          %1997 = vmatpush1.bf16.msra.mxu0 %v1577
          %1998 = vmatprep.subr.bf16.mxu0 0
          %1999 = vmatpush1.bf16.msra.mxu0 %v1578
          %2000 = vmatprep.subr.bf16.mxu0 0
          %2001 = vmatpush1.bf16.msra.mxu0 %v1579
          %2002 = vmatprep.subr.bf16.mxu0 0
          %2003 = vmatpush1.bf16.msra.mxu0 %v1580
          %2004 = vmatprep.subr.bf16.mxu0 0
          %2005 = vmatpush1.bf16.msra.mxu0 %v1581
          %2006 = vmatprep.subr.bf16.mxu0 0
          %2007 = vmatpush1.bf16.msra.mxu0 %v1582
          %2008 = vmatprep.subr.bf16.mxu0 0
          %2009 = vmatpush1.bf16.msra.mxu0 %v1583
          %2010 = vmatprep.subr.bf16.mxu0 0
          %2011 = vmatpush1.bf16.msra.mxu0 %v1584
          %2012 = vmatprep.subr.bf16.mxu0 0
          %2013 = vmatpush1.bf16.msra.mxu0 %v1585
          %2014 = vmatprep.subr.bf16.mxu0 0
          %2015 = vmatpush1.bf16.msra.mxu0 %v1586
          %2016 = vmatprep.subr.bf16.mxu0 0
          %2017 = vmatpush1.bf16.msra.mxu0 %v1587
          %2018 = vmatprep.subr.bf16.mxu0 0
          %2019 = vmatpush1.bf16.msra.mxu0 %v1588
          %2020 = vmatprep.subr.bf16.mxu0 0
          %2021 = vmatpush1.bf16.msra.mxu0 %v1589
          %2022 = vmatprep.subr.bf16.mxu0 0
          %2023 = vmatpush1.bf16.msra.mxu0 %v1590
          %2024 = vmatprep.subr.bf16.mxu0 0
          %2025 = vmatpush1.bf16.msra.mxu0 %v1591
          %2026 = vmatprep.mubr.bf16.mxu0 %v1037
          %2027 = vmatmul.mubr.bf16.gmra.mrb[0].mxu0 %v1036
          %v2028 = vpop.f32.mrb[0].mxu0
          %v2029 = vadd.f32 %v1868, %v2028
          %v2030 = vpop.f32.mrb[0].mxu0
          %v2031 = vpop.f32.mrb[0].mxu0
          %v2032 = vadd.f32 %v1871, %v2031
          %v2033 = vpop.f32.mrb[0].mxu0
          %2034 = vmatprep.mubr.bf16.mxu0 %v1045
          %2035 = vmatmul.mubr.bf16.gmra.mrb[0].mxu0 %v1044
          %v2036 = vpop.f32.mrb[0].mxu0
          %v2037 = vadd.f32 %v1876, %v2036
          %v2038 = vpop.f32.mrb[0].mxu0
          %v2039 = vpop.f32.mrb[0].mxu0
          %v2040 = vadd.f32 %v1879, %v2039
          %v2041 = vpop.f32.mrb[0].mxu0
          %2042 = vmatprep.mubr.bf16.mxu0 %v1053
          %2043 = vmatmul.mubr.bf16.gmra.mrb[0].mxu0 %v1052
          %v2044 = vpop.f32.mrb[0].mxu0
          %v2045 = vadd.f32 %v1884, %v2044
          %v2046 = vpop.f32.mrb[0].mxu0
          %v2047 = vpop.f32.mrb[0].mxu0
          %v2048 = vadd.f32 %v1887, %v2047
          %v2049 = vpop.f32.mrb[0].mxu0
          %2050 = vmatprep.mubr.bf16.mxu0 %v1061
          %2051 = vmatmul.mubr.bf16.gmra.mrb[0].mxu0 %v1060
          %v2052 = vpop.f32.mrb[0].mxu0
          %v2053 = vadd.f32 %v1892, %v2052
          %v2054 = vpop.f32.mrb[0].mxu0
          %v2055 = vpop.f32.mrb[0].mxu0
          %v2056 = vadd.f32 %v1895, %v2055
          %v2057 = vpop.f32.mrb[0].mxu0
          %2058 = vmatprep.mubr.bf16.mxu0 %v1069
          %2059 = vmatmul.mubr.bf16.gmra.mrb[0].mxu0 %v1068
          %v2060 = vpop.f32.mrb[0].mxu0
          %v2061 = vadd.f32 %v1900, %v2060
          %v2062 = vpop.f32.mrb[0].mxu0
          %v2063 = vpop.f32.mrb[0].mxu0
          %v2064 = vadd.f32 %v1903, %v2063
          %v2065 = vpop.f32.mrb[0].mxu0
          %2066 = vmatprep.mubr.bf16.mxu0 %v1077
          %2067 = vmatmul.mubr.bf16.gmra.mrb[0].mxu0 %v1076
          %v2068 = vpop.f32.mrb[0].mxu0
          %v2069 = vadd.f32 %v1908, %v2068
          %v2070 = vpop.f32.mrb[0].mxu0
          %v2071 = vpop.f32.mrb[0].mxu0
          %v2072 = vadd.f32 %v1911, %v2071
          %v2073 = vpop.f32.mrb[0].mxu0
          %2074 = vmatprep.mubr.bf16.mxu0 %v1085
          %2075 = vmatmul.mubr.bf16.gmra.mrb[0].mxu0 %v1084
          %v2076 = vpop.f32.mrb[0].mxu0
          %v2077 = vadd.f32 %v1916, %v2076
          %v2078 = vpop.f32.mrb[0].mxu0
          %v2079 = vpop.f32.mrb[0].mxu0
          %v2080 = vadd.f32 %v1919, %v2079
          %v2081 = vpop.f32.mrb[0].mxu0
          %2082 = vmatprep.mubr.bf16.mxu0 %v1093
          %2083 = vmatmul.mubr.bf16.gmra.mrb[0].mxu0 %v1092
          %v2084 = vpop.f32.mrb[0].mxu0
          %v2085 = vadd.f32 %v1924, %v2084
          %v2086 = vpop.f32.mrb[0].mxu0
          %v2087 = vpop.f32.mrb[0].mxu0
          %v2088 = vadd.f32 %v1927, %v2087
          %v2089 = vpop.f32.mrb[0].mxu0
          %2090 = vmatprep.mubr.bf16.mxu0 %v1101
          %2091 = vmatmul.mubr.bf16.gmra.mrb[0].mxu0 %v1100
          %v2092 = vpop.f32.mrb[0].mxu0
          %v2093 = vadd.f32 %v1932, %v2092
          %v2094 = vpop.f32.mrb[0].mxu0
          %v2095 = vpop.f32.mrb[0].mxu0
          %v2096 = vadd.f32 %v1935, %v2095
          %v2097 = vpop.f32.mrb[0].mxu0
          %2098 = vmatprep.mubr.bf16.mxu0 %v1109
          %2099 = vmatmul.mubr.bf16.gmra.mrb[0].mxu0 %v1108
          %v2100 = vpop.f32.mrb[0].mxu0
          %v2101 = vadd.f32 %v1940, %v2100
          %v2102 = vpop.f32.mrb[0].mxu0
          %v2103 = vpop.f32.mrb[0].mxu0
          %v2104 = vadd.f32 %v1943, %v2103
          %v2105 = vpop.f32.mrb[0].mxu0
          %2106 = vmatprep.mubr.bf16.mxu0 %v1117
          %2107 = vmatmul.mubr.bf16.gmra.mrb[0].mxu0 %v1116
          %v2108 = vpop.f32.mrb[0].mxu0
          %v2109 = vadd.f32 %v1948, %v2108
          %v2110 = vpop.f32.mrb[0].mxu0
          %v2111 = vpop.f32.mrb[0].mxu0
          %v2112 = vadd.f32 %v1951, %v2111
          %v2113 = vpop.f32.mrb[0].mxu0
          %2114 = vmatprep.mubr.bf16.mxu0 %v1125
          %2115 = vmatmul.mubr.bf16.gmra.mrb[0].mxu0 %v1124
          %v2116 = vpop.f32.mrb[0].mxu0
          %v2117 = vadd.f32 %v1956, %v2116
          %v2118 = vpop.f32.mrb[0].mxu0
          %v2119 = vpop.f32.mrb[0].mxu0
          %v2120 = vadd.f32 %v1959, %v2119
          %v2121 = vpop.f32.mrb[0].mxu0
          %2122 = vmatprep.mubr.bf16.mxu0 %v1133
          %2123 = vmatmul.mubr.bf16.gmra.mrb[0].mxu0 %v1132
          %v2124 = vpop.f32.mrb[0].mxu0
          %v2125 = vadd.f32 %v1964, %v2124
          %v2126 = vpop.f32.mrb[0].mxu0
          %v2127 = vpop.f32.mrb[0].mxu0
          %v2128 = vadd.f32 %v1967, %v2127
          %v2129 = vpop.f32.mrb[0].mxu0
          %2130 = vmatprep.mubr.bf16.mxu0 %v1141
          %2131 = vmatmul.mubr.bf16.gmra.mrb[0].mxu0 %v1140
          %v2132 = vpop.f32.mrb[0].mxu0
          %v2133 = vadd.f32 %v1972, %v2132
          %v2134 = vpop.f32.mrb[0].mxu0
          %v2135 = vpop.f32.mrb[0].mxu0
          %v2136 = vadd.f32 %v1975, %v2135
          %v2137 = vpop.f32.mrb[0].mxu0
          %2138 = vmatprep.mubr.bf16.mxu0 %v1149
          %2139 = vmatmul.mubr.bf16.gmra.mrb[0].mxu0 %v1148
          %v2140 = vpop.f32.mrb[0].mxu0
          %v2141 = vadd.f32 %v1980, %v2140
          %v2142 = vpop.f32.mrb[0].mxu0
          %v2143 = vpop.f32.mrb[0].mxu0
          %v2144 = vadd.f32 %v1983, %v2143
          %v2145 = vpop.f32.mrb[0].mxu0
          %2146 = vmatprep.mubr.bf16.mxu0 %v1157
          %2147 = vmatmul.mubr.bf16.gmra.mrb[0].mxu0 %v1156
          %v2148 = vpop.f32.mrb[0].mxu0
          %v2149 = vadd.f32 %v1988, %v2148
          %v2150 = vpop.f32.mrb[0].mxu0
          %v2151 = vpop.f32.mrb[0].mxu0
          %v2152 = vadd.f32 %v1991, %v2151
          %v2153 = vpop.f32.mrb[0].mxu0
          %2154 = vdwg.mxu0
          %2155 = vmatprep.subr.bf16.mxu0 0
          %2156 = vmatpush1.bf16.msra.mxu0 %v1592
          %2157 = vmatprep.subr.bf16.mxu0 0
          %2158 = vmatpush1.bf16.msra.mxu0 %v1593
          %2159 = vmatprep.subr.bf16.mxu0 0
          %2160 = vmatpush1.bf16.msra.mxu0 %v1594
          %2161 = vmatprep.subr.bf16.mxu0 0
          %2162 = vmatpush1.bf16.msra.mxu0 %v1595
          %2163 = vmatprep.subr.bf16.mxu0 0
          %2164 = vmatpush1.bf16.msra.mxu0 %v1596
          %2165 = vmatprep.subr.bf16.mxu0 0
          %2166 = vmatpush1.bf16.msra.mxu0 %v1597
          %2167 = vmatprep.subr.bf16.mxu0 0
          %2168 = vmatpush1.bf16.msra.mxu0 %v1598
          %2169 = vmatprep.subr.bf16.mxu0 0
          %2170 = vmatpush1.bf16.msra.mxu0 %v1599
          %2171 = vmatprep.subr.bf16.mxu0 0
          %2172 = vmatpush1.bf16.msra.mxu0 %v1600
          %2173 = vmatprep.subr.bf16.mxu0 0
          %2174 = vmatpush1.bf16.msra.mxu0 %v1601
          %2175 = vmatprep.subr.bf16.mxu0 0
          %2176 = vmatpush1.bf16.msra.mxu0 %v1602
          %2177 = vmatprep.subr.bf16.mxu0 0
          %2178 = vmatpush1.bf16.msra.mxu0 %v1603
          %2179 = vmatprep.subr.bf16.mxu0 0
          %2180 = vmatpush1.bf16.msra.mxu0 %v1604
          %2181 = vmatprep.subr.bf16.mxu0 0
          %2182 = vmatpush1.bf16.msra.mxu0 %v1605
          %2183 = vmatprep.subr.bf16.mxu0 0
          %2184 = vmatpush1.bf16.msra.mxu0 %v1606
          %2185 = vmatprep.subr.bf16.mxu0 0
          %2186 = vmatpush1.bf16.msra.mxu0 %v1607
          %2187 = vmatprep.mubr.bf16.mxu0 %v1039
          %2188 = vmatmul.mubr.bf16.gmra.mrb[0].mxu0 %v1038
          %v2189 = vpop.f32.mrb[0].mxu0
          %v2190 = vadd.f32 %v2029, %v2189
          %v2191 = vpop.f32.mrb[0].mxu0
          %v2192 = vpop.f32.mrb[0].mxu0
          %v2193 = vadd.f32 %v2032, %v2192
          %v2194 = vpop.f32.mrb[0].mxu0
          %2195 = vmatprep.mubr.bf16.mxu0 %v1047
          %2196 = vmatmul.mubr.bf16.gmra.mrb[0].mxu0 %v1046
          %v2197 = vpop.f32.mrb[0].mxu0
          %v2198 = vadd.f32 %v2037, %v2197
          %v2199 = vpop.f32.mrb[0].mxu0
          %v2200 = vpop.f32.mrb[0].mxu0
          %v2201 = vadd.f32 %v2040, %v2200
          %v2202 = vpop.f32.mrb[0].mxu0
          %2203 = vmatprep.mubr.bf16.mxu0 %v1055
          %2204 = vmatmul.mubr.bf16.gmra.mrb[0].mxu0 %v1054
          %v2205 = vpop.f32.mrb[0].mxu0
          %v2206 = vadd.f32 %v2045, %v2205
          %v2207 = vpop.f32.mrb[0].mxu0
          %v2208 = vpop.f32.mrb[0].mxu0
          %v2209 = vadd.f32 %v2048, %v2208
          %v2210 = vpop.f32.mrb[0].mxu0
          %2211 = vmatprep.mubr.bf16.mxu0 %v1063
          %2212 = vmatmul.mubr.bf16.gmra.mrb[0].mxu0 %v1062
          %v2213 = vpop.f32.mrb[0].mxu0
          %v2214 = vadd.f32 %v2053, %v2213
          %v2215 = vpop.f32.mrb[0].mxu0
          %v2216 = vpop.f32.mrb[0].mxu0
          %v2217 = vadd.f32 %v2056, %v2216
          %v2218 = vpop.f32.mrb[0].mxu0
          %2219 = vmatprep.mubr.bf16.mxu0 %v1071
          %2220 = vmatmul.mubr.bf16.gmra.mrb[0].mxu0 %v1070
          %v2221 = vpop.f32.mrb[0].mxu0
          %v2222 = vadd.f32 %v2061, %v2221
          %v2223 = vpop.f32.mrb[0].mxu0
          %v2224 = vpop.f32.mrb[0].mxu0
          %v2225 = vadd.f32 %v2064, %v2224
          %v2226 = vpop.f32.mrb[0].mxu0
          %2227 = vmatprep.mubr.bf16.mxu0 %v1079
          %2228 = vmatmul.mubr.bf16.gmra.mrb[0].mxu0 %v1078
          %v2229 = vpop.f32.mrb[0].mxu0
          %v2230 = vadd.f32 %v2069, %v2229
          %v2231 = vpop.f32.mrb[0].mxu0
          %v2232 = vpop.f32.mrb[0].mxu0
          %v2233 = vadd.f32 %v2072, %v2232
          %v2234 = vpop.f32.mrb[0].mxu0
          %2235 = vmatprep.mubr.bf16.mxu0 %v1087
          %2236 = vmatmul.mubr.bf16.gmra.mrb[0].mxu0 %v1086
          %v2237 = vpop.f32.mrb[0].mxu0
          %v2238 = vadd.f32 %v2077, %v2237
          %v2239 = vpop.f32.mrb[0].mxu0
          %v2240 = vpop.f32.mrb[0].mxu0
          %v2241 = vadd.f32 %v2080, %v2240
          %v2242 = vpop.f32.mrb[0].mxu0
          %2243 = vmatprep.mubr.bf16.mxu0 %v1095
          %2244 = vmatmul.mubr.bf16.gmra.mrb[0].mxu0 %v1094
          %v2245 = vpop.f32.mrb[0].mxu0
          %v2246 = vadd.f32 %v2085, %v2245
          %v2247 = vpop.f32.mrb[0].mxu0
          %v2248 = vpop.f32.mrb[0].mxu0
          %v2249 = vadd.f32 %v2088, %v2248
          %v2250 = vpop.f32.mrb[0].mxu0
          %2251 = vmatprep.mubr.bf16.mxu0 %v1103
          %2252 = vmatmul.mubr.bf16.gmra.mrb[0].mxu0 %v1102
          %v2253 = vpop.f32.mrb[0].mxu0
          %v2254 = vadd.f32 %v2093, %v2253
          %v2255 = vpop.f32.mrb[0].mxu0
          %v2256 = vpop.f32.mrb[0].mxu0
          %v2257 = vadd.f32 %v2096, %v2256
          %v2258 = vpop.f32.mrb[0].mxu0
          %2259 = vmatprep.mubr.bf16.mxu0 %v1111
          %2260 = vmatmul.mubr.bf16.gmra.mrb[0].mxu0 %v1110
          %v2261 = vpop.f32.mrb[0].mxu0
          %v2262 = vadd.f32 %v2101, %v2261
          %v2263 = vpop.f32.mrb[0].mxu0
          %v2264 = vpop.f32.mrb[0].mxu0
          %v2265 = vadd.f32 %v2104, %v2264
          %v2266 = vpop.f32.mrb[0].mxu0
          %2267 = vmatprep.mubr.bf16.mxu0 %v1119
          %2268 = vmatmul.mubr.bf16.gmra.mrb[0].mxu0 %v1118
          %v2269 = vpop.f32.mrb[0].mxu0
          %v2270 = vadd.f32 %v2109, %v2269
          %v2271 = vpop.f32.mrb[0].mxu0
          %v2272 = vpop.f32.mrb[0].mxu0
          %v2273 = vadd.f32 %v2112, %v2272
          %v2274 = vpop.f32.mrb[0].mxu0
          %2275 = vmatprep.mubr.bf16.mxu0 %v1127
          %2276 = vmatmul.mubr.bf16.gmra.mrb[0].mxu0 %v1126
          %v2277 = vpop.f32.mrb[0].mxu0
          %v2278 = vadd.f32 %v2117, %v2277
          %v2279 = vpop.f32.mrb[0].mxu0
          %v2280 = vpop.f32.mrb[0].mxu0
          %v2281 = vadd.f32 %v2120, %v2280
          %v2282 = vpop.f32.mrb[0].mxu0
          %2283 = vmatprep.mubr.bf16.mxu0 %v1135
          %2284 = vmatmul.mubr.bf16.gmra.mrb[0].mxu0 %v1134
          %v2285 = vpop.f32.mrb[0].mxu0
          %v2286 = vadd.f32 %v2125, %v2285
          %v2287 = vpop.f32.mrb[0].mxu0
          %v2288 = vpop.f32.mrb[0].mxu0
          %v2289 = vadd.f32 %v2128, %v2288
          %v2290 = vpop.f32.mrb[0].mxu0
          %2291 = vmatprep.mubr.bf16.mxu0 %v1143
          %2292 = vmatmul.mubr.bf16.gmra.mrb[0].mxu0 %v1142
          %v2293 = vpop.f32.mrb[0].mxu0
          %v2294 = vadd.f32 %v2133, %v2293
          %v2295 = vpop.f32.mrb[0].mxu0
          %v2296 = vpop.f32.mrb[0].mxu0
          %v2297 = vadd.f32 %v2136, %v2296
          %v2298 = vpop.f32.mrb[0].mxu0
          %2299 = vmatprep.mubr.bf16.mxu0 %v1151
          %2300 = vmatmul.mubr.bf16.gmra.mrb[0].mxu0 %v1150
          %v2301 = vpop.f32.mrb[0].mxu0
          %v2302 = vadd.f32 %v2141, %v2301
          %v2303 = vpop.f32.mrb[0].mxu0
          %v2304 = vpop.f32.mrb[0].mxu0
          %v2305 = vadd.f32 %v2144, %v2304
          %v2306 = vpop.f32.mrb[0].mxu0
          %2307 = vmatprep.mubr.bf16.mxu0 %v1159
          %2308 = vmatmul.mubr.bf16.gmra.mrb[0].mxu0 %v1158
          %v2309 = vpop.f32.mrb[0].mxu0
          %v2310 = vadd.f32 %v2149, %v2309
          %v2311 = vpop.f32.mrb[0].mxu0
          %v2312 = vpop.f32.mrb[0].mxu0
          %v2313 = vadd.f32 %v2152, %v2312
          %v2314 = vpop.f32.mrb[0].mxu0
          %2315 = vdwg.mxu0
          %v2316 = vadd.f32 %v488, %v2190
          %v2317 = vadd.f32 %v489, %v2193
          %v2318 = vadd.f32 %v490, %v2198
          %v2319 = vadd.f32 %v491, %v2201
          %v2320 = vadd.f32 %v492, %v2206
          %v2321 = vadd.f32 %v493, %v2209
          %v2322 = vadd.f32 %v494, %v2214
          %v2323 = vadd.f32 %v495, %v2217
          %v2324 = vadd.f32 %v496, %v2222
          %v2325 = vadd.f32 %v497, %v2225
          %v2326 = vadd.f32 %v498, %v2230
          %v2327 = vadd.f32 %v499, %v2233
          %v2328 = vadd.f32 %v500, %v2238
          %v2329 = vadd.f32 %v501, %v2241
          %v2330 = vadd.f32 %v502, %v2246
          %v2331 = vadd.f32 %v503, %v2249
          %v2332 = vadd.f32 %v504, %v2254
          %v2333 = vadd.f32 %v505, %v2257
          %v2334 = vadd.f32 %v506, %v2262
          %v2335 = vadd.f32 %v507, %v2265
          %v2336 = vadd.f32 %v508, %v2270
          %v2337 = vadd.f32 %v509, %v2273
          %v2338 = vadd.f32 %v510, %v2278
          %v2339 = vadd.f32 %v511, %v2281
          %v2340 = vadd.f32 %v512, %v2286
          %v2341 = vadd.f32 %v513, %v2289
          %v2342 = vadd.f32 %v514, %v2294
          %v2343 = vadd.f32 %v515, %v2297
          %v2344 = vadd.f32 %v516, %v2302
          %v2345 = vadd.f32 %v517, %v2305
          %v2346 = vadd.f32 %v518, %v2310
          %v2347 = vadd.f32 %v519, %v2313
          %2348 = vst [vmem:[#allocation2] sm:$0xff] %v2316
          %2349 = vst [vmem:[#allocation2 + $0x8] sm:$0xff] %v2317
          %2350 = vst [vmem:[#allocation2 + $0x10] sm:$0xff] %v2318
          %2351 = vst [vmem:[#allocation2 + $0x18] sm:$0xff] %v2319
          %2352 = vst [vmem:[#allocation2 + $0x20] sm:$0xff] %v2320
          %2353 = vst [vmem:[#allocation2 + $0x28] sm:$0xff] %v2321
          %2354 = vst [vmem:[#allocation2 + $0x30] sm:$0xff] %v2322
          %2355 = vst [vmem:[#allocation2 + $0x38] sm:$0xff] %v2323
          %2356 = vst [vmem:[#allocation2 + $0x40] sm:$0xff] %v2324
          %2357 = vst [vmem:[#allocation2 + $0x48] sm:$0xff] %v2325
          %2358 = vst [vmem:[#allocation2 + $0x50] sm:$0xff] %v2326
          %2359 = vst [vmem:[#allocation2 + $0x58] sm:$0xff] %v2327
          %2360 = vst [vmem:[#allocation2 + $0x60] sm:$0xff] %v2328
          %2361 = vst [vmem:[#allocation2 + $0x68] sm:$0xff] %v2329
          %2362 = vst [vmem:[#allocation2 + $0x70] sm:$0xff] %v2330
          %2363 = vst [vmem:[#allocation2 + $0x78] sm:$0xff] %v2331
          %2364 = vst [vmem:[#allocation2 + $0x80] sm:$0xff] %v2332
          %2365 = vst [vmem:[#allocation2 + $0x88] sm:$0xff] %v2333
          %2366 = vst [vmem:[#allocation2 + $0x90] sm:$0xff] %v2334
          %2367 = vst [vmem:[#allocation2 + $0x98] sm:$0xff] %v2335
          %2368 = vst [vmem:[#allocation2 + $0xa0] sm:$0xff] %v2336
          %2369 = vst [vmem:[#allocation2 + $0xa8] sm:$0xff] %v2337
          %2370 = vst [vmem:[#allocation2 + $0xb0] sm:$0xff] %v2338
          %2371 = vst [vmem:[#allocation2 + $0xb8] sm:$0xff] %v2339
          %2372 = vst [vmem:[#allocation2 + $0xc0] sm:$0xff] %v2340
          %2373 = vst [vmem:[#allocation2 + $0xc8] sm:$0xff] %v2341
          %2374 = vst [vmem:[#allocation2 + $0xd0] sm:$0xff] %v2342
          %2375 = vst [vmem:[#allocation2 + $0xd8] sm:$0xff] %v2343
          %2376 = vst [vmem:[#allocation2 + $0xe0] sm:$0xff] %v2344
          %2377 = vst [vmem:[#allocation2 + $0xe8] sm:$0xff] %v2345
          %2378 = vst [vmem:[#allocation2 + $0xf0] sm:$0xff] %v2346
          %2379 = vst [vmem:[#allocation2 + $0xf8] sm:$0xff] %v2347
        $region56: #{gcn_forward.4} parent=35 // pred_fallthru
          _
        // Predicated region
        $region57: #{gcn_forward.4} parent=35 // pred_check
          %p2380 = pneg %p308
        $region58: #{gcn_forward.4} parent=35 // pred_check_branch
          %2382 = sbr.rel (%p2380) target = $region60
        $region59: #{gcn_forward.4} parent=35 // pred_region
          %v2383 = vld [vmem:[#allocation2] sm:$0xff]
          %v2384 = vld [vmem:[#allocation2 + $0x8] sm:$0xff]
          %v2385 = vld [vmem:[#allocation2 + $0x10] sm:$0xff]
          %v2386 = vld [vmem:[#allocation2 + $0x18] sm:$0xff]
          %v2387 = vld [vmem:[#allocation2 + $0x20] sm:$0xff]
          %v2388 = vld [vmem:[#allocation2 + $0x28] sm:$0xff]
          %v2389 = vld [vmem:[#allocation2 + $0x30] sm:$0xff]
          %v2390 = vld [vmem:[#allocation2 + $0x38] sm:$0xff]
          %v2391 = vld [vmem:[#allocation2 + $0x40] sm:$0xff]
          %v2392 = vld [vmem:[#allocation2 + $0x48] sm:$0xff]
          %v2393 = vld [vmem:[#allocation2 + $0x50] sm:$0xff]
          %v2394 = vld [vmem:[#allocation2 + $0x58] sm:$0xff]
          %v2395 = vld [vmem:[#allocation2 + $0x60] sm:$0xff]
          %v2396 = vld [vmem:[#allocation2 + $0x68] sm:$0xff]
          %v2397 = vld [vmem:[#allocation2 + $0x70] sm:$0xff]
          %v2398 = vld [vmem:[#allocation2 + $0x78] sm:$0xff]
          %v2399 = vld [vmem:[#allocation2 + $0x80] sm:$0xff]
          %v2400 = vld [vmem:[#allocation2 + $0x88] sm:$0xff]
          %v2401 = vld [vmem:[#allocation2 + $0x90] sm:$0xff]
          %v2402 = vld [vmem:[#allocation2 + $0x98] sm:$0xff]
          %v2403 = vld [vmem:[#allocation2 + $0xa0] sm:$0xff]
          %v2404 = vld [vmem:[#allocation2 + $0xa8] sm:$0xff]
          %v2405 = vld [vmem:[#allocation2 + $0xb0] sm:$0xff]
          %v2406 = vld [vmem:[#allocation2 + $0xb8] sm:$0xff]
          %v2407 = vld [vmem:[#allocation2 + $0xc0] sm:$0xff]
          %v2408 = vld [vmem:[#allocation2 + $0xc8] sm:$0xff]
          %v2409 = vld [vmem:[#allocation2 + $0xd0] sm:$0xff]
          %v2410 = vld [vmem:[#allocation2 + $0xd8] sm:$0xff]
          %v2411 = vld [vmem:[#allocation2 + $0xe0] sm:$0xff]
          %v2412 = vld [vmem:[#allocation2 + $0xe8] sm:$0xff]
          %v2413 = vld [vmem:[#allocation2 + $0xf0] sm:$0xff]
          %v2414 = vld [vmem:[#allocation2 + $0xf8] sm:$0xff]
          %v2415 = vld [vmem:[#allocation8] sm:$0x1]
          %v2417 = vlaneseq
          %v2418 = vshrl.u32 %v2417, 7
          %v2419 = vsub.s32 0, %v2418
          %v2420 = vrot.slane %v2415, %v2419
          %v2422 = vadd.f32 %v2383, %v2420
          %v2423 = vadd.f32 %v2384, %v2420
          %v2424 = vadd.f32 %v2385, %v2420
          %v2425 = vadd.f32 %v2386, %v2420
          %v2426 = vadd.f32 %v2387, %v2420
          %v2427 = vadd.f32 %v2388, %v2420
          %v2428 = vadd.f32 %v2389, %v2420
          %v2429 = vadd.f32 %v2390, %v2420
          %v2430 = vadd.f32 %v2391, %v2420
          %v2431 = vadd.f32 %v2392, %v2420
          %v2432 = vadd.f32 %v2393, %v2420
          %v2433 = vadd.f32 %v2394, %v2420
          %v2434 = vadd.f32 %v2395, %v2420
          %v2435 = vadd.f32 %v2396, %v2420
          %v2436 = vadd.f32 %v2397, %v2420
          %v2437 = vadd.f32 %v2398, %v2420
          %v2438 = vadd.f32 %v2399, %v2420
          %v2439 = vadd.f32 %v2400, %v2420
          %v2440 = vadd.f32 %v2401, %v2420
          %v2441 = vadd.f32 %v2402, %v2420
          %v2442 = vadd.f32 %v2403, %v2420
          %v2443 = vadd.f32 %v2404, %v2420
          %v2444 = vadd.f32 %v2405, %v2420
          %v2445 = vadd.f32 %v2406, %v2420
          %v2446 = vadd.f32 %v2407, %v2420
          %v2447 = vadd.f32 %v2408, %v2420
          %v2448 = vadd.f32 %v2409, %v2420
          %v2449 = vadd.f32 %v2410, %v2420
          %v2450 = vadd.f32 %v2411, %v2420
          %v2451 = vadd.f32 %v2412, %v2420
          %v2452 = vadd.f32 %v2413, %v2420
          %v2453 = vadd.f32 %v2414, %v2420
          %v2454 = vmax.f32 %v2422, 0.0
          %v2455 = vmax.f32 %v2423, 0.0
          %v2456 = vmax.f32 %v2424, 0.0
          %v2457 = vmax.f32 %v2425, 0.0
          %v2458 = vmax.f32 %v2426, 0.0
          %v2459 = vmax.f32 %v2427, 0.0
          %v2460 = vmax.f32 %v2428, 0.0
          %v2461 = vmax.f32 %v2429, 0.0
          %v2462 = vmax.f32 %v2430, 0.0
          %v2463 = vmax.f32 %v2431, 0.0
          %v2464 = vmax.f32 %v2432, 0.0
          %v2465 = vmax.f32 %v2433, 0.0
          %v2466 = vmax.f32 %v2434, 0.0
          %v2467 = vmax.f32 %v2435, 0.0
          %v2468 = vmax.f32 %v2436, 0.0
          %v2469 = vmax.f32 %v2437, 0.0
          %v2470 = vmax.f32 %v2438, 0.0
          %v2471 = vmax.f32 %v2439, 0.0
          %v2472 = vmax.f32 %v2440, 0.0
          %v2473 = vmax.f32 %v2441, 0.0
          %v2474 = vmax.f32 %v2442, 0.0
          %v2475 = vmax.f32 %v2443, 0.0
          %v2476 = vmax.f32 %v2444, 0.0
          %v2477 = vmax.f32 %v2445, 0.0
          %v2478 = vmax.f32 %v2446, 0.0
          %v2479 = vmax.f32 %v2447, 0.0
          %v2480 = vmax.f32 %v2448, 0.0
          %v2481 = vmax.f32 %v2449, 0.0
          %v2482 = vmax.f32 %v2450, 0.0
          %v2483 = vmax.f32 %v2451, 0.0
          %v2484 = vmax.f32 %v2452, 0.0
          %v2485 = vmax.f32 %v2453, 0.0
          %v2486 = vpack.c.bf16 %v2455, %v2454
          %v2487 = vpack.c.bf16 %v2457, %v2456
          %v2488 = vpack.c.bf16 %v2459, %v2458
          %v2489 = vpack.c.bf16 %v2461, %v2460
          %v2490 = vpack.c.bf16 %v2463, %v2462
          %v2491 = vpack.c.bf16 %v2465, %v2464
          %v2492 = vpack.c.bf16 %v2467, %v2466
          %v2493 = vpack.c.bf16 %v2469, %v2468
          %v2494 = vpack.c.bf16 %v2471, %v2470
          %v2495 = vpack.c.bf16 %v2473, %v2472
          %v2496 = vpack.c.bf16 %v2475, %v2474
          %v2497 = vpack.c.bf16 %v2477, %v2476
          %v2498 = vpack.c.bf16 %v2479, %v2478
          %v2499 = vpack.c.bf16 %v2481, %v2480
          %v2500 = vpack.c.bf16 %v2483, %v2482
          %v2501 = vpack.c.bf16 %v2485, %v2484
          %v2502 = vld [vmem:[#allocation10] sm:$0xf]
          %v2503 = vld [vmem:[#allocation10 + $0x4] sm:$0xf]
          %v2504 = vld [vmem:[#allocation10 + $0x8] sm:$0xf]
          %v2505 = vld [vmem:[#allocation10 + $0xc] sm:$0xf]
          %v2506 = vld [vmem:[#allocation10 + $0x10] sm:$0xf]
          %v2507 = vld [vmem:[#allocation10 + $0x14] sm:$0xf]
          %v2508 = vld [vmem:[#allocation10 + $0x18] sm:$0xf]
          %v2509 = vld [vmem:[#allocation10 + $0x1c] sm:$0xf]
          %v2510 = vld [vmem:[#allocation10 + $0x20] sm:$0xf]
          %v2511 = vld [vmem:[#allocation10 + $0x24] sm:$0xf]
          %v2512 = vld [vmem:[#allocation10 + $0x28] sm:$0xf]
          %v2513 = vld [vmem:[#allocation10 + $0x2c] sm:$0xf]
          %v2514 = vld [vmem:[#allocation10 + $0x30] sm:$0xf]
          %v2515 = vld [vmem:[#allocation10 + $0x34] sm:$0xf]
          %v2516 = vld [vmem:[#allocation10 + $0x38] sm:$0xf]
          %v2517 = vld [vmem:[#allocation10 + $0x3c] sm:$0xf]
          %v2534 = vunpack.c.l.b16 %v2502
          %v2535 = vunpack.c.l.b16 %v2503
          %v2536 = vunpack.c.l.b16 %v2504
          %v2537 = vunpack.c.l.b16 %v2505
          %v2538 = vunpack.c.l.b16 %v2506
          %v2539 = vunpack.c.l.b16 %v2507
          %v2540 = vunpack.c.l.b16 %v2508
          %v2541 = vunpack.c.l.b16 %v2509
          %v2542 = vunpack.c.l.b16 %v2510
          %v2543 = vunpack.c.l.b16 %v2511
          %v2544 = vunpack.c.l.b16 %v2512
          %v2545 = vunpack.c.l.b16 %v2513
          %v2546 = vunpack.c.l.b16 %v2514
          %v2547 = vunpack.c.l.b16 %v2515
          %v2548 = vunpack.c.l.b16 %v2516
          %v2549 = vunpack.c.l.b16 %v2517
          %v2550 = vpack.c.b16 %v2535, %v2534
          %v2551 = vpack.c.b16 %v2537, %v2536
          %v2552 = vpack.c.b16 %v2539, %v2538
          %v2553 = vpack.c.b16 %v2541, %v2540
          %v2554 = vpack.c.b16 %v2543, %v2542
          %v2555 = vpack.c.b16 %v2545, %v2544
          %v2556 = vpack.c.b16 %v2547, %v2546
          %v2557 = vpack.c.b16 %v2549, %v2548
          %2566 = vmatprep.subr.bf16.mxu0 0
          %2567 = vmatpush1.bf16.msra.mxu0 %v2550
          %2568 = vmatprep.subr.bf16.mxu0 0
          %2569 = vmatpush1.bf16.msra.mxu0 %v2551
          %2570 = vmatprep.subr.bf16.mxu0 0
          %2571 = vmatpush1.bf16.msra.mxu0 %v2552
          %2572 = vmatprep.subr.bf16.mxu0 0
          %2573 = vmatpush1.bf16.msra.mxu0 %v2553
          %2574 = vmatprep.subr.bf16.mxu0 0
          %2575 = vmatpush1.bf16.msra.mxu0 %v2554
          %2576 = vmatprep.subr.bf16.mxu0 0
          %2577 = vmatpush1.bf16.msra.mxu0 %v2555
          %2578 = vmatprep.subr.bf16.mxu0 0
          %2579 = vmatpush1.bf16.msra.mxu0 %v2556
          %2580 = vmatprep.subr.bf16.mxu0 0
          %2581 = vmatpush1.bf16.msra.mxu0 %v2557
          %2582 = vmatprep.subr.bf16.mxu0 0
          %2583 = vmatpush1.bf16.msra.mxu0 0
          %2584 = vmatprep.subr.bf16.mxu0 0
          %2585 = vmatpush1.bf16.msra.mxu0 0
          %2586 = vmatprep.subr.bf16.mxu0 0
          %2587 = vmatpush1.bf16.msra.mxu0 0
          %2588 = vmatprep.subr.bf16.mxu0 0
          %2589 = vmatpush1.bf16.msra.mxu0 0
          %2590 = vmatprep.subr.bf16.mxu0 0
          %2591 = vmatpush1.bf16.msra.mxu0 0
          %2592 = vmatprep.subr.bf16.mxu0 0
          %2593 = vmatpush1.bf16.msra.mxu0 0
          %2594 = vmatprep.subr.bf16.mxu0 0
          %2595 = vmatpush1.bf16.msra.mxu0 0
          %2596 = vmatprep.subr.bf16.mxu0 0
          %2597 = vmatpush1.bf16.msra.mxu0 0
          %2598 = vmatprep.mubr.bf16.mxu0 0
          %2599 = vmatmul.mubr.bf16.gmra.mrb[0].mxu0 %v2486
          %v2600 = vpop.f32.mrb[0].mxu0
          %v2601 = vadd.f32 0.0, %v2600
          %v2602 = vpop.f32.mrb[0].mxu0
          %v2603 = vpop.f32.mrb[0].mxu0
          %v2604 = vadd.f32 0.0, %v2603
          %v2605 = vpop.f32.mrb[0].mxu0
          %2606 = vmatprep.mubr.bf16.mxu0 0
          %2607 = vmatmul.mubr.bf16.gmra.mrb[0].mxu0 %v2487
          %v2608 = vpop.f32.mrb[0].mxu0
          %v2609 = vadd.f32 0.0, %v2608
          %v2610 = vpop.f32.mrb[0].mxu0
          %v2611 = vpop.f32.mrb[0].mxu0
          %v2612 = vadd.f32 0.0, %v2611
          %v2613 = vpop.f32.mrb[0].mxu0
          %2614 = vmatprep.mubr.bf16.mxu0 0
          %2615 = vmatmul.mubr.bf16.gmra.mrb[0].mxu0 %v2488
          %v2616 = vpop.f32.mrb[0].mxu0
          %v2617 = vadd.f32 0.0, %v2616
          %v2618 = vpop.f32.mrb[0].mxu0
          %v2619 = vpop.f32.mrb[0].mxu0
          %v2620 = vadd.f32 0.0, %v2619
          %v2621 = vpop.f32.mrb[0].mxu0
          %2622 = vmatprep.mubr.bf16.mxu0 0
          %2623 = vmatmul.mubr.bf16.gmra.mrb[0].mxu0 %v2489
          %v2624 = vpop.f32.mrb[0].mxu0
          %v2625 = vadd.f32 0.0, %v2624
          %v2626 = vpop.f32.mrb[0].mxu0
          %v2627 = vpop.f32.mrb[0].mxu0
          %v2628 = vadd.f32 0.0, %v2627
          %v2629 = vpop.f32.mrb[0].mxu0
          %2630 = vmatprep.mubr.bf16.mxu0 0
          %2631 = vmatmul.mubr.bf16.gmra.mrb[0].mxu0 %v2490
          %v2632 = vpop.f32.mrb[0].mxu0
          %v2633 = vadd.f32 0.0, %v2632
          %v2634 = vpop.f32.mrb[0].mxu0
          %v2635 = vpop.f32.mrb[0].mxu0
          %v2636 = vadd.f32 0.0, %v2635
          %v2637 = vpop.f32.mrb[0].mxu0
          %2638 = vmatprep.mubr.bf16.mxu0 0
          %2639 = vmatmul.mubr.bf16.gmra.mrb[0].mxu0 %v2491
          %v2640 = vpop.f32.mrb[0].mxu0
          %v2641 = vadd.f32 0.0, %v2640
          %v2642 = vpop.f32.mrb[0].mxu0
          %v2643 = vpop.f32.mrb[0].mxu0
          %v2644 = vadd.f32 0.0, %v2643
          %v2645 = vpop.f32.mrb[0].mxu0
          %2646 = vmatprep.mubr.bf16.mxu0 0
          %2647 = vmatmul.mubr.bf16.gmra.mrb[0].mxu0 %v2492
          %v2648 = vpop.f32.mrb[0].mxu0
          %v2649 = vadd.f32 0.0, %v2648
          %v2650 = vpop.f32.mrb[0].mxu0
          %v2651 = vpop.f32.mrb[0].mxu0
          %v2652 = vadd.f32 0.0, %v2651
          %v2653 = vpop.f32.mrb[0].mxu0
          %2654 = vmatprep.mubr.bf16.mxu0 0
          %2655 = vmatmul.mubr.bf16.gmra.mrb[0].mxu0 %v2493
          %v2656 = vpop.f32.mrb[0].mxu0
          %v2657 = vadd.f32 0.0, %v2656
          %v2658 = vpop.f32.mrb[0].mxu0
          %v2659 = vpop.f32.mrb[0].mxu0
          %v2660 = vadd.f32 0.0, %v2659
          %v2661 = vpop.f32.mrb[0].mxu0
          %2662 = vmatprep.mubr.bf16.mxu0 0
          %2663 = vmatmul.mubr.bf16.gmra.mrb[0].mxu0 %v2494
          %v2664 = vpop.f32.mrb[0].mxu0
          %v2665 = vadd.f32 0.0, %v2664
          %v2666 = vpop.f32.mrb[0].mxu0
          %v2667 = vpop.f32.mrb[0].mxu0
          %v2668 = vadd.f32 0.0, %v2667
          %v2669 = vpop.f32.mrb[0].mxu0
          %2670 = vmatprep.mubr.bf16.mxu0 0
          %2671 = vmatmul.mubr.bf16.gmra.mrb[0].mxu0 %v2495
          %v2672 = vpop.f32.mrb[0].mxu0
          %v2673 = vadd.f32 0.0, %v2672
          %v2674 = vpop.f32.mrb[0].mxu0
          %v2675 = vpop.f32.mrb[0].mxu0
          %v2676 = vadd.f32 0.0, %v2675
          %v2677 = vpop.f32.mrb[0].mxu0
          %2678 = vmatprep.mubr.bf16.mxu0 0
          %2679 = vmatmul.mubr.bf16.gmra.mrb[0].mxu0 %v2496
          %v2680 = vpop.f32.mrb[0].mxu0
          %v2681 = vadd.f32 0.0, %v2680
          %v2682 = vpop.f32.mrb[0].mxu0
          %v2683 = vpop.f32.mrb[0].mxu0
          %v2684 = vadd.f32 0.0, %v2683
          %v2685 = vpop.f32.mrb[0].mxu0
          %2686 = vmatprep.mubr.bf16.mxu0 0
          %2687 = vmatmul.mubr.bf16.gmra.mrb[0].mxu0 %v2497
          %v2688 = vpop.f32.mrb[0].mxu0
          %v2689 = vadd.f32 0.0, %v2688
          %v2690 = vpop.f32.mrb[0].mxu0
          %v2691 = vpop.f32.mrb[0].mxu0
          %v2692 = vadd.f32 0.0, %v2691
          %v2693 = vpop.f32.mrb[0].mxu0
          %2694 = vmatprep.mubr.bf16.mxu0 0
          %2695 = vmatmul.mubr.bf16.gmra.mrb[0].mxu0 %v2498
          %v2696 = vpop.f32.mrb[0].mxu0
          %v2697 = vadd.f32 0.0, %v2696
          %v2698 = vpop.f32.mrb[0].mxu0
          %v2699 = vpop.f32.mrb[0].mxu0
          %v2700 = vadd.f32 0.0, %v2699
          %v2701 = vpop.f32.mrb[0].mxu0
          %2702 = vmatprep.mubr.bf16.mxu0 0
          %2703 = vmatmul.mubr.bf16.gmra.mrb[0].mxu0 %v2499
          %v2704 = vpop.f32.mrb[0].mxu0
          %v2705 = vadd.f32 0.0, %v2704
          %v2706 = vpop.f32.mrb[0].mxu0
          %v2707 = vpop.f32.mrb[0].mxu0
          %v2708 = vadd.f32 0.0, %v2707
          %v2709 = vpop.f32.mrb[0].mxu0
          %2710 = vmatprep.mubr.bf16.mxu0 0
          %2711 = vmatmul.mubr.bf16.gmra.mrb[0].mxu0 %v2500
          %v2712 = vpop.f32.mrb[0].mxu0
          %v2713 = vadd.f32 0.0, %v2712
          %v2714 = vpop.f32.mrb[0].mxu0
          %v2715 = vpop.f32.mrb[0].mxu0
          %v2716 = vadd.f32 0.0, %v2715
          %v2717 = vpop.f32.mrb[0].mxu0
          %2718 = vmatprep.mubr.bf16.mxu0 0
          %2719 = vmatmul.mubr.bf16.gmra.mrb[0].mxu0 %v2501
          %v2720 = vpop.f32.mrb[0].mxu0
          %v2721 = vadd.f32 0.0, %v2720
          %v2722 = vpop.f32.mrb[0].mxu0
          %v2723 = vpop.f32.mrb[0].mxu0
          %v2724 = vadd.f32 0.0, %v2723
          %v2725 = vpop.f32.mrb[0].mxu0
          %2726 = vdwg.mxu0
          %v2727 = vpack.c.bf16 %v2604, %v2601
          %v2728 = vpack.c.bf16 %v2612, %v2609
          %v2729 = vpack.c.bf16 %v2620, %v2617
          %v2730 = vpack.c.bf16 %v2628, %v2625
          %v2731 = vpack.c.bf16 %v2636, %v2633
          %v2732 = vpack.c.bf16 %v2644, %v2641
          %v2733 = vpack.c.bf16 %v2652, %v2649
          %v2734 = vpack.c.bf16 %v2660, %v2657
          %v2735 = vpack.c.bf16 %v2668, %v2665
          %v2736 = vpack.c.bf16 %v2676, %v2673
          %v2737 = vpack.c.bf16 %v2684, %v2681
          %v2738 = vpack.c.bf16 %v2692, %v2689
          %v2739 = vpack.c.bf16 %v2700, %v2697
          %v2740 = vpack.c.bf16 %v2708, %v2705
          %v2741 = vpack.c.bf16 %v2716, %v2713
          %v2742 = vpack.c.bf16 %v2724, %v2721
          %v2759 = vunpack.c.l.b16 %v2727
          %v2760 = vunpack.c.h.b16 %v2727
          %v2761 = vunpack.c.l.b16 %v2728
          %v2762 = vunpack.c.h.b16 %v2728
          %v2763 = vunpack.c.l.b16 %v2729
          %v2764 = vunpack.c.h.b16 %v2729
          %v2765 = vunpack.c.l.b16 %v2730
          %v2766 = vunpack.c.h.b16 %v2730
          %v2767 = vunpack.c.l.b16 %v2731
          %v2768 = vunpack.c.h.b16 %v2731
          %v2769 = vunpack.c.l.b16 %v2732
          %v2770 = vunpack.c.h.b16 %v2732
          %v2771 = vunpack.c.l.b16 %v2733
          %v2772 = vunpack.c.h.b16 %v2733
          %v2773 = vunpack.c.l.b16 %v2734
          %v2774 = vunpack.c.h.b16 %v2734
          %v2775 = vunpack.c.l.b16 %v2735
          %v2776 = vunpack.c.h.b16 %v2735
          %v2777 = vunpack.c.l.b16 %v2736
          %v2778 = vunpack.c.h.b16 %v2736
          %v2779 = vunpack.c.l.b16 %v2737
          %v2780 = vunpack.c.h.b16 %v2737
          %v2781 = vunpack.c.l.b16 %v2738
          %v2782 = vunpack.c.h.b16 %v2738
          %v2783 = vunpack.c.l.b16 %v2739
          %v2784 = vunpack.c.h.b16 %v2739
          %v2785 = vunpack.c.l.b16 %v2740
          %v2786 = vunpack.c.h.b16 %v2740
          %v2787 = vunpack.c.l.b16 %v2741
          %v2788 = vunpack.c.h.b16 %v2741
          %v2789 = vunpack.c.l.b16 %v2742
          %v2790 = vunpack.c.h.b16 %v2742
          %v2791 = vpack.c.b16 %v2759, %v2759
          %v2792 = vpack.c.b16 %v2760, %v2760
          %v2793 = vpack.c.b16 %v2761, %v2761
          %v2794 = vpack.c.b16 %v2762, %v2762
          %v2795 = vpack.c.b16 %v2763, %v2763
          %v2796 = vpack.c.b16 %v2764, %v2764
          %v2797 = vpack.c.b16 %v2765, %v2765
          %v2798 = vpack.c.b16 %v2766, %v2766
          %v2799 = vpack.c.b16 %v2767, %v2767
          %v2800 = vpack.c.b16 %v2768, %v2768
          %v2801 = vpack.c.b16 %v2769, %v2769
          %v2802 = vpack.c.b16 %v2770, %v2770
          %v2803 = vpack.c.b16 %v2771, %v2771
          %v2804 = vpack.c.b16 %v2772, %v2772
          %v2805 = vpack.c.b16 %v2773, %v2773
          %v2806 = vpack.c.b16 %v2774, %v2774
          %v2807 = vpack.c.b16 %v2775, %v2775
          %v2808 = vpack.c.b16 %v2776, %v2776
          %v2809 = vpack.c.b16 %v2777, %v2777
          %v2810 = vpack.c.b16 %v2778, %v2778
          %v2811 = vpack.c.b16 %v2779, %v2779
          %v2812 = vpack.c.b16 %v2780, %v2780
          %v2813 = vpack.c.b16 %v2781, %v2781
          %v2814 = vpack.c.b16 %v2782, %v2782
          %v2815 = vpack.c.b16 %v2783, %v2783
          %v2816 = vpack.c.b16 %v2784, %v2784
          %v2817 = vpack.c.b16 %v2785, %v2785
          %v2818 = vpack.c.b16 %v2786, %v2786
          %v2819 = vpack.c.b16 %v2787, %v2787
          %v2820 = vpack.c.b16 %v2788, %v2788
          %v2821 = vpack.c.b16 %v2789, %v2789
          %v2822 = vpack.c.b16 %v2790, %v2790
          %2855 = vst [vmem:[%s305] sm:$0xf] %v2791
          %2856 = vst [vmem:[%s305 + $0x4] sm:$0xf] %v2792
          %2857 = vst [vmem:[%s305 + $0x8] sm:$0xf] %v2793
          %2858 = vst [vmem:[%s305 + $0xc] sm:$0xf] %v2794
          %2859 = vst [vmem:[%s305 + $0x10] sm:$0xf] %v2795
          %2860 = vst [vmem:[%s305 + $0x14] sm:$0xf] %v2796
          %2861 = vst [vmem:[%s305 + $0x18] sm:$0xf] %v2797
          %2862 = vst [vmem:[%s305 + $0x1c] sm:$0xf] %v2798
          %2863 = vst [vmem:[%s305 + $0x20] sm:$0xf] %v2799
          %2864 = vst [vmem:[%s305 + $0x24] sm:$0xf] %v2800
          %2865 = vst [vmem:[%s305 + $0x28] sm:$0xf] %v2801
          %2866 = vst [vmem:[%s305 + $0x2c] sm:$0xf] %v2802
          %2867 = vst [vmem:[%s305 + $0x30] sm:$0xf] %v2803
          %2868 = vst [vmem:[%s305 + $0x34] sm:$0xf] %v2804
          %2869 = vst [vmem:[%s305 + $0x38] sm:$0xf] %v2805
          %2870 = vst [vmem:[%s305 + $0x3c] sm:$0xf] %v2806
          %2871 = vst [vmem:[%s305 + $0x40] sm:$0xf] %v2807
          %2872 = vst [vmem:[%s305 + $0x44] sm:$0xf] %v2808
          %2873 = vst [vmem:[%s305 + $0x48] sm:$0xf] %v2809
          %2874 = vst [vmem:[%s305 + $0x4c] sm:$0xf] %v2810
          %2875 = vst [vmem:[%s305 + $0x50] sm:$0xf] %v2811
          %2876 = vst [vmem:[%s305 + $0x54] sm:$0xf] %v2812
          %2877 = vst [vmem:[%s305 + $0x58] sm:$0xf] %v2813
          %2878 = vst [vmem:[%s305 + $0x5c] sm:$0xf] %v2814
          %2879 = vst [vmem:[%s305 + $0x60] sm:$0xf] %v2815
          %2880 = vst [vmem:[%s305 + $0x64] sm:$0xf] %v2816
          %2881 = vst [vmem:[%s305 + $0x68] sm:$0xf] %v2817
          %2882 = vst [vmem:[%s305 + $0x6c] sm:$0xf] %v2818
          %2883 = vst [vmem:[%s305 + $0x70] sm:$0xf] %v2819
          %2884 = vst [vmem:[%s305 + $0x74] sm:$0xf] %v2820
          %2885 = vst [vmem:[%s305 + $0x78] sm:$0xf] %v2821
          %2886 = vst [vmem:[%s305 + $0x7c] sm:$0xf] %v2822
        $region60: #{gcn_forward.4} parent=35 // pred_fallthru
          _
        %s2887 = smul.u32 32, %s33
        %p2888 = scmp.lt.s32.totalorder %s2887, 127
        %s2889 = scalar_select %p2888, %s2887, 127
        %s2890 = smul.addr %s2889, 4
        %s2891 = scalar_lea.vmem %s6, %s2890
        // Predicated region
        $region61: #{gcn_forward.4} parent=35 // pred_check
          %p2892 = pneg %p166
        $region62: #{gcn_forward.4} parent=35 // pred_check_branch
          %2894 = sbr.rel (%p2892) target = $region64
        $region63: #{gcn_forward.4} parent=35 // pred_region
          %s2895 = smul.u32 32, %s33
        $region64: #{gcn_forward.4} parent=35 // pred_fallthru
          _
      $region36: #{gcn_forward.4} parent=5 // pred_fallthru
        _
      %p2896 = scmp.le.s32.totalorder 2, %s24
      // Predicated region
      $region65: #{gcn_forward.4} parent=5 // pred_check
        %p2897 = pneg %p2896
      $region66: #{gcn_forward.4} parent=5 // pred_check_branch
        %2899 = sbr.rel (%p2897) target = $region68
      $region67: #{gcn_forward.4} parent=5 // pred_region
        %s2900 = ssub.s32 %s24, 2
        // Predicated region
        $region69: #{gcn_forward.4} parent=67 // pred_check
          %p2901 = pneg %p172
        $region70: #{gcn_forward.4} parent=67 // pred_check_branch
          %2903 = sbr.rel (%p2901) target = $region72
        $region71: #{gcn_forward.4} parent=67 // pred_region
          %s2904 = smul.u32 32, %s35
          %p2905 = scmp.lt.s32.totalorder %s2904, 127
          %s2906 = scalar_select %p2905, %s2904, 127
          %s2907 = smul.addr %s2906, 4
          %s2908 = scalar_lea.vmem %s6, %s2907
        $region72: #{gcn_forward.4} parent=67 // pred_fallthru
          _
      $region68: #{gcn_forward.4} parent=5 // pred_fallthru
        _
    $region6: #{gcn_forward.4} parent=1 // loop_footer
      %s28 = sadd.s32 1, %s24
    $region7: #{gcn_forward.4} parent=1 // loop_footer_branch
      %23 = sbr.rel target = $region3
    $region8: #{gcn_forward.4} parent=1 // loop_exit
      _
    %2909 = vsyncpa [#allocation7], 1
    %s2910 = scalar_lea.sflag [#allocation7], 1
    %2911 = vsyncpa %s2910, 1
    %2912 = vsyncpa [#allocation9], 1

// kernel: gcn_forward.5
$region0: #{gcn_forward.5}
  #allocation0 [shape = 'u32[]', space=smem, size = 0x4, offset = 0x4, fixed_abs, tag = 'smem constant byte address 0x4 - core index']
  #allocation1 [shape = 'u32[144,128]{1,0:T(1,128)}', space=vmem, size = 0x12000, scoped, tag = 'internal scratch']
  #allocation2 [shape = 'f32[256,128]{1,0:T(8,128)}', space=vmem, size = 0x20000, scoped, tag = 'scratch operand']
  #allocation3 [shape = 's32[1]{0}', space=sflag, size = 0x4, scoped, tag = 'scoped memory for gcn_forward.5']
  #allocation4 [shape = 'u8[2048]{0}', space=smem, size = 0x800, scoped, tag = 'prefetched SMEM operand 0']
  #allocation5 [shape = 'u8[512]{0}', space=smem, size = 0x200, scoped, tag = 'prefetched SMEM operand 1']
  %s0 = inlined_call_operand.vmem [shape: s32[4,1], index: 0, kind: input, shape index: {}]
  %s1 = inlined_call_operand.vmem [shape: s32[4], index: 1, kind: input, shape index: {}]
  %s2 = inlined_call_operand.vmem [shape: bf16[1024,1024], index: 2, kind: input, shape index: {}]
  %s3 = inlined_call_operand.vmem [shape: bf16[1,1024,128], index: 3, kind: input, shape index: {}]
  %s4 = inlined_call_operand.vmem [shape: f32[1,128], index: 4, kind: input, shape index: {}]
  %s5 = inlined_call_operand.hbm [shape: f32[1024,128], index: 5, kind: output, shape index: {}]
  %s6 = sld [smem:[#allocation0]]
  $region57: #{gcn_forward.5} parent=0
    _
  %s8 = ssub.s32 1, %s6
  %s9 = scalar_select 0, %s8, %s6
  %s10 = sshll.u32 %s0, 4
  %s11 = int_to_ptr.vmem [resolvable:$true] %s10
  %13 = dma.vmem_to_smem %s11, 64, [#allocation4], [#allocation3]
  %s14 = sshll.u32 %s1, 4
  %s15 = int_to_ptr.vmem [resolvable:$true] %s14
  %17 = dma.vmem_to_smem %s15, 16, [#allocation5], [#allocation3]
  %18 = dma.done [#allocation3], 80
  %19 = sfence
  $region1: #{gcn_forward.5} parent=0
    #allocation6 [shape = 'u8[262144]{0}', space=vmem, size = 0x40000, scoped, tag = 'output window, operand 0']
    #allocation7 [shape = 's32[2]{0}', space=sflag, size = 0x8, scoped, tag = 'scoped memory for gcn_forward.5']
    %20 = vsyncpa [#allocation7], 0
    %s21 = scalar_lea.sflag [#allocation7], 1
    %22 = vsyncpa %s21, 0
    loop: start=0, step=1, limit=6
    $region2: #{gcn_forward.5} parent=1 // loop_pre_header
      _
    $region3: #{gcn_forward.5} parent=1 // loop_header
      %s24 = sphi 0, %s28
      %p25 = scmp.ge.s32.totalorder %s24, 6
      %s31 = sphi 0, %s43
      %s32 = sphi 0, %s39
      %s33 = sphi 0, %s31
      %s34 = sphi 0, %s32
      %s35 = sphi 0, %s33
      %s36 = sphi 0, %s34
      %s64 = sphi 0, %s66
      %s67 = sphi 0, %s64
      %s68 = sphi 0, %s67
      %s84 = sphi 0, %s68
      %s88 = sphi 0, %s88
      %s90 = sphi 0, %s88
      %s91 = sphi 0, %s90
      %s105 = sphi 0, %s91
      %s109 = sphi 0, %s109
      %s111 = sphi 0, %s109
      %s112 = sphi 0, %s111
      %s126 = sphi 0, %s112
      %s132 = sphi 0, %s134
      %s135 = sphi 0, %s132
      %s136 = sphi 0, %s135
      %s152 = sphi 0, %s136
    $region4: #{gcn_forward.5} parent=1 // loop_header_branch
      %27 = sbr.rel (%p25) target = $region8
    $region5: #{gcn_forward.5} parent=1 // loop_body
      %s29 = ssub.s32 %s24, 1
      %s30 = ssub.s32 %s24, 2
      %s37 = sadd.s32 1, %s32
      %p38 = scmp.ge.s32.totalorder %s37, 1
      %s39 = scalar_select %p38, 0, %s37
      %s40 = sadd.s32 1, %s31
      %s41 = scalar_select %p38, %s40, %s31
      %p42 = scmp.ge.s32.totalorder %s41, 4
      %s43 = scalar_select %p42, 0, %s41
      %s44 = sshra.s32 %s32, 7
      %s45 = sand.u32 %s32, 127
      %s46 = sadd.s32 %s44, %s31
      %s47 = smul.u32 %s46, 128
      %s48 = sshra.s32 %s32, 7
      %s49 = sand.u32 %s32, 127
      %s50 = sadd.s32 %s47, %s49
      %s51 = sld [smem:[#allocation4 + %s50]]
      %s52 = sshra.s32 %s39, 7
      %s53 = sand.u32 %s39, 127
      %s54 = sadd.s32 %s52, %s43
      %s55 = smul.u32 %s54, 128
      %s56 = sshra.s32 %s39, 7
      %s57 = sand.u32 %s39, 127
      %s58 = sadd.s32 %s55, %s57
      %s59 = sld [smem:[#allocation4 + %s58]]
      %s60 = ssub.s32 %s31, %s43
      %s61 = ssub.s32 %s51, %s59
      %s62 = sor.u32 %s60, %s61
      %p63 = scmp.eq.s32.totalorder %s62, 0
      %s65 = sadd.s32 %s64, 1
      %s66 = scalar_select %p63, %s64, %s65
      %p69 = pneg %p63
      %p70 = scmp.eq.s32.totalorder %s24, 3
      %p71 = por %p69, %p70
      %p72 = scmp.ne.s32.totalorder %s64, %s67
      %p73 = scmp.eq.s32.totalorder %s24, 0
      %p74 = por %p72, %p73
      %p75 = scmp.ne.s32.totalorder %s64, %s67
      %p76 = scmp.eq.s32.totalorder %s29, 3
      %p77 = por %p75, %p76
      %p78 = scmp.ne.s32.totalorder %s67, %s68
      %p79 = scmp.eq.s32.totalorder %s29, 0
      %p80 = por %p78, %p79
      %p81 = scmp.ne.s32.totalorder %s67, %s68
      %p82 = scmp.eq.s32.totalorder %s30, 3
      %p83 = por %p81, %p82
      %p85 = scmp.ne.s32.totalorder %s68, %s84
      %p86 = scmp.eq.s32.totalorder %s30, 0
      %p87 = por %p85, %p86
      %s89 = sadd.s32 %s88, 1
      %p92 = scmp.eq.s32.totalorder %s24, 3
      %p93 = scmp.ne.s32.totalorder %s88, %s90
      %p94 = scmp.eq.s32.totalorder %s24, 0
      %p95 = por %p93, %p94
      %p96 = scmp.ne.s32.totalorder %s88, %s90
      %p97 = scmp.eq.s32.totalorder %s29, 3
      %p98 = por %p96, %p97
      %p99 = scmp.ne.s32.totalorder %s90, %s91
      %p100 = scmp.eq.s32.totalorder %s29, 0
      %p101 = por %p99, %p100
      %p102 = scmp.ne.s32.totalorder %s90, %s91
      %p103 = scmp.eq.s32.totalorder %s30, 3
      %p104 = por %p102, %p103
      %p106 = scmp.ne.s32.totalorder %s91, %s105
      %p107 = scmp.eq.s32.totalorder %s30, 0
      %p108 = por %p106, %p107
      %s110 = sadd.s32 %s109, 1
      %p113 = scmp.eq.s32.totalorder %s24, 3
      %p114 = scmp.ne.s32.totalorder %s109, %s111
      %p115 = scmp.eq.s32.totalorder %s24, 0
      %p116 = por %p114, %p115
      %p117 = scmp.ne.s32.totalorder %s109, %s111
      %p118 = scmp.eq.s32.totalorder %s29, 3
      %p119 = por %p117, %p118
      %p120 = scmp.ne.s32.totalorder %s111, %s112
      %p121 = scmp.eq.s32.totalorder %s29, 0
      %p122 = por %p120, %p121
      %p123 = scmp.ne.s32.totalorder %s111, %s112
      %p124 = scmp.eq.s32.totalorder %s30, 3
      %p125 = por %p123, %p124
      %p127 = scmp.ne.s32.totalorder %s112, %s126
      %p128 = scmp.eq.s32.totalorder %s30, 0
      %p129 = por %p127, %p128
      %s130 = ssub.s32 %s31, %s43
      %p131 = scmp.eq.s32.totalorder %s130, 0
      %s133 = sadd.s32 %s132, 1
      %s134 = scalar_select %p131, %s132, %s133
      %p137 = pneg %p131
      %p138 = scmp.eq.s32.totalorder %s24, 3
      %p139 = por %p137, %p138
      %p140 = scmp.ne.s32.totalorder %s132, %s135
      %p141 = scmp.eq.s32.totalorder %s24, 0
      %p142 = por %p140, %p141
      %p143 = scmp.ne.s32.totalorder %s132, %s135
      %p144 = scmp.eq.s32.totalorder %s29, 3
      %p145 = por %p143, %p144
      %p146 = scmp.ne.s32.totalorder %s135, %s136
      %p147 = scmp.eq.s32.totalorder %s29, 0
      %p148 = por %p146, %p147
      %p149 = scmp.ne.s32.totalorder %s135, %s136
      %p150 = scmp.eq.s32.totalorder %s30, 3
      %p151 = por %p149, %p150
      %p153 = scmp.ne.s32.totalorder %s136, %s152
      %p154 = scmp.eq.s32.totalorder %s30, 0
      %p155 = por %p153, %p154
      %p156 = scmp.le.s32.totalorder 1, %s24
      %p157 = scmp.lt.s32.totalorder %s24, 5
      %p158 = pnand %p156, %p157
      %p159 = pneg %p158
      // Predicated region
      $region9: #{gcn_forward.5} parent=5 // pred_check
        _
      $region10: #{gcn_forward.5} parent=5 // pred_check_branch
        %161 = sbr.rel (%p158) target = $region12
      $region11: #{gcn_forward.5} parent=5 // pred_region
        %s162 = ssub.s32 %s24, 1
        // Predicated region
        $region13: #{gcn_forward.5} parent=11 // pred_check
          %p163 = pneg %p101
        $region14: #{gcn_forward.5} parent=11 // pred_check_branch
          %165 = sbr.rel (%p163) target = $region16
        $region15: #{gcn_forward.5} parent=11 // pred_region
          _
        $region16: #{gcn_forward.5} parent=11 // pred_fallthru
          _
        // Predicated region
        $region17: #{gcn_forward.5} parent=11 // pred_check
          %p166 = pneg %p122
        $region18: #{gcn_forward.5} parent=11 // pred_check_branch
          %168 = sbr.rel (%p166) target = $region20
        $region19: #{gcn_forward.5} parent=11 // pred_region
          _
        $region20: #{gcn_forward.5} parent=11 // pred_fallthru
          _
      $region12: #{gcn_forward.5} parent=5 // pred_fallthru
        _
      %p169 = scmp.lt.s32.totalorder %s24, 4
      // Predicated region
      $region21: #{gcn_forward.5} parent=5 // pred_check
        %p170 = pneg %p169
      $region22: #{gcn_forward.5} parent=5 // pred_check_branch
        %172 = sbr.rel (%p170) target = $region24
      $region23: #{gcn_forward.5} parent=5 // pred_region
        // Predicated region
        $region25: #{gcn_forward.5} parent=23 // pred_check
          %p173 = pneg %p74
        $region26: #{gcn_forward.5} parent=23 // pred_check_branch
          %175 = sbr.rel (%p173) target = $region28
        $region27: #{gcn_forward.5} parent=23 // pred_region
          %s176 = sshra.s32 %s32, 7
          %s177 = sand.u32 %s32, 127
          %s178 = sadd.s32 %s176, %s31
          %s179 = smul.u32 %s178, 128
          %s180 = sshra.s32 %s32, 7
          %s181 = sand.u32 %s32, 127
          %s182 = sadd.s32 %s179, %s181
          %s183 = sld [smem:[#allocation4 + %s182]]
          %s184 = smul.u32 32, %s31
          %s185 = smul.u32 8, %s183
          %p186 = scmp.lt.s32.totalorder %s184, 127
          %s187 = scalar_select %p186, %s184, 127
          %p188 = scmp.lt.s32.totalorder %s185, 7
          %s189 = scalar_select %p188, %s185, 7
          %s190 = smul.addr %s187, 8
          %s191 = sadd.s32 %s189, %s190
          %s192 = smul.addr %s191, 4
          %s193 = scalar_lea.vmem %s2, %s192
          %s194 = sshra.s32 %s32, 7
          %s195 = sand.u32 %s32, 127
          %s196 = sadd.s32 %s194, %s31
          %s197 = smul.u32 %s196, 128
          %s198 = sshra.s32 %s32, 7
          %s199 = sand.u32 %s32, 127
          %s200 = sadd.s32 %s197, %s199
          %s201 = sld [smem:[#allocation4 + %s200]]
          %s202 = smul.u32 32, %s31
          %s203 = smul.u32 8, %s201
        $region28: #{gcn_forward.5} parent=23 // pred_fallthru
          _
      $region24: #{gcn_forward.5} parent=5 // pred_fallthru
        _
      %p204 = scmp.le.s32.totalorder 1, %s24
      %p205 = scmp.lt.s32.totalorder %s24, 5
      %p206 = pnand %p204, %p205
      %p207 = pneg %p206
      // Predicated region
      $region29: #{gcn_forward.5} parent=5 // pred_check
        _
      $region30: #{gcn_forward.5} parent=5 // pred_check_branch
        %209 = sbr.rel (%p206) target = $region32
      $region31: #{gcn_forward.5} parent=5 // pred_region
        %s210 = ssub.s32 %s24, 1
        %s211 = sshra.s32 %s34, 7
        %s212 = sand.u32 %s34, 127
        %s213 = sadd.s32 %s211, %s33
        %s214 = smul.u32 %s213, 128
        %s215 = sshra.s32 %s34, 7
        %s216 = sand.u32 %s34, 127
        %s217 = sadd.s32 %s214, %s216
        %s218 = sld [smem:[#allocation4 + %s217]]
        %s219 = smul.u32 32, %s33
        %s220 = smul.u32 8, %s218
        %p221 = scmp.lt.s32.totalorder %s219, 127
        %s222 = scalar_select %p221, %s219, 127
        %p223 = scmp.lt.s32.totalorder %s220, 7
        %s224 = scalar_select %p223, %s220, 7
        %s225 = smul.addr %s222, 8
        %s226 = sadd.s32 %s224, %s225
        %s227 = smul.addr %s226, 4
        %s228 = scalar_lea.vmem %s2, %s227
        %p229 = pneg %p80
        %p230 = pneg %p77
        %p231 = pneg %p101
        %p232 = pneg %p98
        %p233 = pneg %p122
        %p234 = pneg %p119
        %p235 = pneg %p148
        %p236 = pneg %p145
        %s237 = sand.u32 %s135, 1
        %s238 = scalar_lea.sflag [#allocation7], %s237
        %s239 = sand.u32 %s135, 1
        %s240 = smul.addr %s239, 256
        %s241 = scalar_lea.vmem [#allocation6], %s240
        %s242 = sshra.s32 %s34, 7
        %s243 = sand.u32 %s34, 127
        %s244 = sadd.s32 %s242, %s33
        %s245 = smul.u32 %s244, 128
        %s246 = sshra.s32 %s34, 7
        %s247 = sand.u32 %s34, 127
        %s248 = sadd.s32 %s245, %s247
        %s249 = sld [smem:[#allocation4 + %s248]]
        %s250 = smul.u32 32, %s33
        %s251 = smul.u32 8, %s249
        %p252 = scmp.lt.s32.totalorder %s250, 127
        %s253 = scalar_select %p252, %s250, 127
        %p254 = scmp.lt.s32.totalorder %s251, 7
        %s255 = scalar_select %p254, %s251, 7
        %s256 = smul.addr %s253, 8
        %s257 = sadd.s32 %s255, %s256
        %s258 = smul.addr %s257, 4
        %s259 = scalar_lea.vmem %s2, %s258
        %s260 = sshra.s32 %s34, 7
        %s261 = sand.u32 %s34, 127
        %s262 = sadd.s32 %s260, %s33
        %s263 = smul.u32 %s262, 128
        %s264 = sshra.s32 %s34, 7
        %s265 = sand.u32 %s34, 127
        %s266 = sadd.s32 %s263, %s265
        %s267 = sld [smem:[#allocation4 + %s266]]
        %s268 = smul.u32 32, %s33
        %s269 = smul.u32 8, %s267
        %s270 = smul.u32 32, %s33
        %p272 = scmp.eq.s32.totalorder %s34, 0
        // Predicated region
        $region33: #{gcn_forward.5} parent=31 // pred_check
          %p273 = pneg %p272
        $region34: #{gcn_forward.5} parent=31 // pred_check_branch
          %275 = sbr.rel (%p273) target = $region36
        $region35: #{gcn_forward.5} parent=31 // pred_region
          %276 = vst [vmem:[#allocation2] sm:$0xff] 0.0
          %277 = vst [vmem:[#allocation2 + $0x8] sm:$0xff] 0.0
          %278 = vst [vmem:[#allocation2 + $0x10] sm:$0xff] 0.0
          %279 = vst [vmem:[#allocation2 + $0x18] sm:$0xff] 0.0
          %280 = vst [vmem:[#allocation2 + $0x20] sm:$0xff] 0.0
          %281 = vst [vmem:[#allocation2 + $0x28] sm:$0xff] 0.0
          %282 = vst [vmem:[#allocation2 + $0x30] sm:$0xff] 0.0
          %283 = vst [vmem:[#allocation2 + $0x38] sm:$0xff] 0.0
          %284 = vst [vmem:[#allocation2 + $0x40] sm:$0xff] 0.0
          %285 = vst [vmem:[#allocation2 + $0x48] sm:$0xff] 0.0
          %286 = vst [vmem:[#allocation2 + $0x50] sm:$0xff] 0.0
          %287 = vst [vmem:[#allocation2 + $0x58] sm:$0xff] 0.0
          %288 = vst [vmem:[#allocation2 + $0x60] sm:$0xff] 0.0
          %289 = vst [vmem:[#allocation2 + $0x68] sm:$0xff] 0.0
          %290 = vst [vmem:[#allocation2 + $0x70] sm:$0xff] 0.0
          %291 = vst [vmem:[#allocation2 + $0x78] sm:$0xff] 0.0
          %292 = vst [vmem:[#allocation2 + $0x80] sm:$0xff] 0.0
          %293 = vst [vmem:[#allocation2 + $0x88] sm:$0xff] 0.0
          %294 = vst [vmem:[#allocation2 + $0x90] sm:$0xff] 0.0
          %295 = vst [vmem:[#allocation2 + $0x98] sm:$0xff] 0.0
          %296 = vst [vmem:[#allocation2 + $0xa0] sm:$0xff] 0.0
          %297 = vst [vmem:[#allocation2 + $0xa8] sm:$0xff] 0.0
          %298 = vst [vmem:[#allocation2 + $0xb0] sm:$0xff] 0.0
          %299 = vst [vmem:[#allocation2 + $0xb8] sm:$0xff] 0.0
          %300 = vst [vmem:[#allocation2 + $0xc0] sm:$0xff] 0.0
          %301 = vst [vmem:[#allocation2 + $0xc8] sm:$0xff] 0.0
          %302 = vst [vmem:[#allocation2 + $0xd0] sm:$0xff] 0.0
          %303 = vst [vmem:[#allocation2 + $0xd8] sm:$0xff] 0.0
          %304 = vst [vmem:[#allocation2 + $0xe0] sm:$0xff] 0.0
          %305 = vst [vmem:[#allocation2 + $0xe8] sm:$0xff] 0.0
          %306 = vst [vmem:[#allocation2 + $0xf0] sm:$0xff] 0.0
          %307 = vst [vmem:[#allocation2 + $0xf8] sm:$0xff] 0.0
        $region36: #{gcn_forward.5} parent=31 // pred_fallthru
          _
        %s308 = sld [smem:[#allocation5 + %s33]]
        %p309 = scmp.lt.s32.totalorder %s34, %s308
        // Predicated region
        $region37: #{gcn_forward.5} parent=31 // pred_check
          %p310 = pneg %p309
        $region38: #{gcn_forward.5} parent=31 // pred_check_branch
          %312 = sbr.rel (%p310) target = $region40
        $region39: #{gcn_forward.5} parent=31 // pred_region
          %s313 = sshra.s32 %s34, 7
          %s314 = sand.u32 %s34, 127
          %s315 = sadd.s32 %s313, %s33
          %s316 = smul.u32 %s315, 128
          %s317 = sshra.s32 %s34, 7
          %s318 = sand.u32 %s34, 127
          %s319 = sadd.s32 %s316, %s318
          %s320 = sld [smem:[#allocation4 + %s319]]
          %s321 = smul.u32 %s320, 128
          %s322 = smul.addr %s321, 4
          %s323 = scalar_lea.vmem %s3, %s322
          %v324 = vld [vmem:[%s323] sm:$0xf]
          %v325 = vld [vmem:[%s323 + $0x4] sm:$0xf]
          %v326 = vld [vmem:[%s323 + $0x8] sm:$0xf]
          %v327 = vld [vmem:[%s323 + $0xc] sm:$0xf]
          %v328 = vld [vmem:[%s323 + $0x10] sm:$0xf]
          %v329 = vld [vmem:[%s323 + $0x14] sm:$0xf]
          %v330 = vld [vmem:[%s323 + $0x18] sm:$0xf]
          %v331 = vld [vmem:[%s323 + $0x1c] sm:$0xf]
          %v332 = vld [vmem:[%s323 + $0x20] sm:$0xf]
          %v333 = vld [vmem:[%s323 + $0x24] sm:$0xf]
          %v334 = vld [vmem:[%s323 + $0x28] sm:$0xf]
          %v335 = vld [vmem:[%s323 + $0x2c] sm:$0xf]
          %v336 = vld [vmem:[%s323 + $0x30] sm:$0xf]
          %v337 = vld [vmem:[%s323 + $0x34] sm:$0xf]
          %v338 = vld [vmem:[%s323 + $0x38] sm:$0xf]
          %v339 = vld [vmem:[%s323 + $0x3c] sm:$0xf]
          %v340 = vld [vmem:[%s323 + $0x40] sm:$0xf]
          %v341 = vld [vmem:[%s323 + $0x44] sm:$0xf]
          %v342 = vld [vmem:[%s323 + $0x48] sm:$0xf]
          %v343 = vld [vmem:[%s323 + $0x4c] sm:$0xf]
          %v344 = vld [vmem:[%s323 + $0x50] sm:$0xf]
          %v345 = vld [vmem:[%s323 + $0x54] sm:$0xf]
          %v346 = vld [vmem:[%s323 + $0x58] sm:$0xf]
          %v347 = vld [vmem:[%s323 + $0x5c] sm:$0xf]
          %v348 = vld [vmem:[%s323 + $0x60] sm:$0xf]
          %v349 = vld [vmem:[%s323 + $0x64] sm:$0xf]
          %v350 = vld [vmem:[%s323 + $0x68] sm:$0xf]
          %v351 = vld [vmem:[%s323 + $0x6c] sm:$0xf]
          %v352 = vld [vmem:[%s323 + $0x70] sm:$0xf]
          %v353 = vld [vmem:[%s323 + $0x74] sm:$0xf]
          %v354 = vld [vmem:[%s323 + $0x78] sm:$0xf]
          %v355 = vld [vmem:[%s323 + $0x7c] sm:$0xf]
          %v356 = vld [vmem:[%s323 + $0x80] sm:$0xf]
          %v357 = vld [vmem:[%s323 + $0x84] sm:$0xf]
          %v358 = vld [vmem:[%s323 + $0x88] sm:$0xf]
          %v359 = vld [vmem:[%s323 + $0x8c] sm:$0xf]
          %v360 = vld [vmem:[%s323 + $0x90] sm:$0xf]
          %v361 = vld [vmem:[%s323 + $0x94] sm:$0xf]
          %v362 = vld [vmem:[%s323 + $0x98] sm:$0xf]
          %v363 = vld [vmem:[%s323 + $0x9c] sm:$0xf]
          %v364 = vld [vmem:[%s323 + $0xa0] sm:$0xf]
          %v365 = vld [vmem:[%s323 + $0xa4] sm:$0xf]
          %v366 = vld [vmem:[%s323 + $0xa8] sm:$0xf]
          %v367 = vld [vmem:[%s323 + $0xac] sm:$0xf]
          %v368 = vld [vmem:[%s323 + $0xb0] sm:$0xf]
          %v369 = vld [vmem:[%s323 + $0xb4] sm:$0xf]
          %v370 = vld [vmem:[%s323 + $0xb8] sm:$0xf]
          %v371 = vld [vmem:[%s323 + $0xbc] sm:$0xf]
          %v372 = vld [vmem:[%s323 + $0xc0] sm:$0xf]
          %v373 = vld [vmem:[%s323 + $0xc4] sm:$0xf]
          %v374 = vld [vmem:[%s323 + $0xc8] sm:$0xf]
          %v375 = vld [vmem:[%s323 + $0xcc] sm:$0xf]
          %v376 = vld [vmem:[%s323 + $0xd0] sm:$0xf]
          %v377 = vld [vmem:[%s323 + $0xd4] sm:$0xf]
          %v378 = vld [vmem:[%s323 + $0xd8] sm:$0xf]
          %v379 = vld [vmem:[%s323 + $0xdc] sm:$0xf]
          %v380 = vld [vmem:[%s323 + $0xe0] sm:$0xf]
          %v381 = vld [vmem:[%s323 + $0xe4] sm:$0xf]
          %v382 = vld [vmem:[%s323 + $0xe8] sm:$0xf]
          %v383 = vld [vmem:[%s323 + $0xec] sm:$0xf]
          %v384 = vld [vmem:[%s323 + $0xf0] sm:$0xf]
          %v385 = vld [vmem:[%s323 + $0xf4] sm:$0xf]
          %v386 = vld [vmem:[%s323 + $0xf8] sm:$0xf]
          %v387 = vld [vmem:[%s323 + $0xfc] sm:$0xf]
          %v388 = vld [vmem:[%s323 + $0x100] sm:$0xf]
          %v389 = vld [vmem:[%s323 + $0x104] sm:$0xf]
          %v390 = vld [vmem:[%s323 + $0x108] sm:$0xf]
          %v391 = vld [vmem:[%s323 + $0x10c] sm:$0xf]
          %v392 = vld [vmem:[%s323 + $0x110] sm:$0xf]
          %v393 = vld [vmem:[%s323 + $0x114] sm:$0xf]
          %v394 = vld [vmem:[%s323 + $0x118] sm:$0xf]
          %v395 = vld [vmem:[%s323 + $0x11c] sm:$0xf]
          %v396 = vld [vmem:[%s323 + $0x120] sm:$0xf]
          %v397 = vld [vmem:[%s323 + $0x124] sm:$0xf]
          %v398 = vld [vmem:[%s323 + $0x128] sm:$0xf]
          %v399 = vld [vmem:[%s323 + $0x12c] sm:$0xf]
          %v400 = vld [vmem:[%s323 + $0x130] sm:$0xf]
          %v401 = vld [vmem:[%s323 + $0x134] sm:$0xf]
          %v402 = vld [vmem:[%s323 + $0x138] sm:$0xf]
          %v403 = vld [vmem:[%s323 + $0x13c] sm:$0xf]
          %v404 = vld [vmem:[%s323 + $0x140] sm:$0xf]
          %v405 = vld [vmem:[%s323 + $0x144] sm:$0xf]
          %v406 = vld [vmem:[%s323 + $0x148] sm:$0xf]
          %v407 = vld [vmem:[%s323 + $0x14c] sm:$0xf]
          %v408 = vld [vmem:[%s323 + $0x150] sm:$0xf]
          %v409 = vld [vmem:[%s323 + $0x154] sm:$0xf]
          %v410 = vld [vmem:[%s323 + $0x158] sm:$0xf]
          %v411 = vld [vmem:[%s323 + $0x15c] sm:$0xf]
          %v412 = vld [vmem:[%s323 + $0x160] sm:$0xf]
          %v413 = vld [vmem:[%s323 + $0x164] sm:$0xf]
          %v414 = vld [vmem:[%s323 + $0x168] sm:$0xf]
          %v415 = vld [vmem:[%s323 + $0x16c] sm:$0xf]
          %v416 = vld [vmem:[%s323 + $0x170] sm:$0xf]
          %v417 = vld [vmem:[%s323 + $0x174] sm:$0xf]
          %v418 = vld [vmem:[%s323 + $0x178] sm:$0xf]
          %v419 = vld [vmem:[%s323 + $0x17c] sm:$0xf]
          %v420 = vld [vmem:[%s323 + $0x180] sm:$0xf]
          %v421 = vld [vmem:[%s323 + $0x184] sm:$0xf]
          %v422 = vld [vmem:[%s323 + $0x188] sm:$0xf]
          %v423 = vld [vmem:[%s323 + $0x18c] sm:$0xf]
          %v424 = vld [vmem:[%s323 + $0x190] sm:$0xf]
          %v425 = vld [vmem:[%s323 + $0x194] sm:$0xf]
          %v426 = vld [vmem:[%s323 + $0x198] sm:$0xf]
          %v427 = vld [vmem:[%s323 + $0x19c] sm:$0xf]
          %v428 = vld [vmem:[%s323 + $0x1a0] sm:$0xf]
          %v429 = vld [vmem:[%s323 + $0x1a4] sm:$0xf]
          %v430 = vld [vmem:[%s323 + $0x1a8] sm:$0xf]
          %v431 = vld [vmem:[%s323 + $0x1ac] sm:$0xf]
          %v432 = vld [vmem:[%s323 + $0x1b0] sm:$0xf]
          %v433 = vld [vmem:[%s323 + $0x1b4] sm:$0xf]
          %v434 = vld [vmem:[%s323 + $0x1b8] sm:$0xf]
          %v435 = vld [vmem:[%s323 + $0x1bc] sm:$0xf]
          %v436 = vld [vmem:[%s323 + $0x1c0] sm:$0xf]
          %v437 = vld [vmem:[%s323 + $0x1c4] sm:$0xf]
          %v438 = vld [vmem:[%s323 + $0x1c8] sm:$0xf]
          %v439 = vld [vmem:[%s323 + $0x1cc] sm:$0xf]
          %v440 = vld [vmem:[%s323 + $0x1d0] sm:$0xf]
          %v441 = vld [vmem:[%s323 + $0x1d4] sm:$0xf]
          %v442 = vld [vmem:[%s323 + $0x1d8] sm:$0xf]
          %v443 = vld [vmem:[%s323 + $0x1dc] sm:$0xf]
          %v444 = vld [vmem:[%s323 + $0x1e0] sm:$0xf]
          %v445 = vld [vmem:[%s323 + $0x1e4] sm:$0xf]
          %v446 = vld [vmem:[%s323 + $0x1e8] sm:$0xf]
          %v447 = vld [vmem:[%s323 + $0x1ec] sm:$0xf]
          %v448 = vld [vmem:[%s323 + $0x1f0] sm:$0xf]
          %v449 = vld [vmem:[%s323 + $0x1f4] sm:$0xf]
          %v450 = vld [vmem:[%s323 + $0x1f8] sm:$0xf]
          %v451 = vld [vmem:[%s323 + $0x1fc] sm:$0xf]
          %v452 = vld [vmem:[#allocation2] sm:$0xff]
          %v453 = vld [vmem:[#allocation2 + $0x8] sm:$0xff]
          %v454 = vld [vmem:[#allocation2 + $0x10] sm:$0xff]
          %v455 = vld [vmem:[#allocation2 + $0x18] sm:$0xff]
          %v456 = vld [vmem:[#allocation2 + $0x20] sm:$0xff]
          %v457 = vld [vmem:[#allocation2 + $0x28] sm:$0xff]
          %v458 = vld [vmem:[#allocation2 + $0x30] sm:$0xff]
          %v459 = vld [vmem:[#allocation2 + $0x38] sm:$0xff]
          %v460 = vld [vmem:[#allocation2 + $0x40] sm:$0xff]
          %v461 = vld [vmem:[#allocation2 + $0x48] sm:$0xff]
          %v462 = vld [vmem:[#allocation2 + $0x50] sm:$0xff]
          %v463 = vld [vmem:[#allocation2 + $0x58] sm:$0xff]
          %v464 = vld [vmem:[#allocation2 + $0x60] sm:$0xff]
          %v465 = vld [vmem:[#allocation2 + $0x68] sm:$0xff]
          %v466 = vld [vmem:[#allocation2 + $0x70] sm:$0xff]
          %v467 = vld [vmem:[#allocation2 + $0x78] sm:$0xff]
          %v468 = vld [vmem:[#allocation2 + $0x80] sm:$0xff]
          %v469 = vld [vmem:[#allocation2 + $0x88] sm:$0xff]
          %v470 = vld [vmem:[#allocation2 + $0x90] sm:$0xff]
          %v471 = vld [vmem:[#allocation2 + $0x98] sm:$0xff]
          %v472 = vld [vmem:[#allocation2 + $0xa0] sm:$0xff]
          %v473 = vld [vmem:[#allocation2 + $0xa8] sm:$0xff]
          %v474 = vld [vmem:[#allocation2 + $0xb0] sm:$0xff]
          %v475 = vld [vmem:[#allocation2 + $0xb8] sm:$0xff]
          %v476 = vld [vmem:[#allocation2 + $0xc0] sm:$0xff]
          %v477 = vld [vmem:[#allocation2 + $0xc8] sm:$0xff]
          %v478 = vld [vmem:[#allocation2 + $0xd0] sm:$0xff]
          %v479 = vld [vmem:[#allocation2 + $0xd8] sm:$0xff]
          %v480 = vld [vmem:[#allocation2 + $0xe0] sm:$0xff]
          %v481 = vld [vmem:[#allocation2 + $0xe8] sm:$0xff]
          %v482 = vld [vmem:[#allocation2 + $0xf0] sm:$0xff]
          %v483 = vld [vmem:[#allocation2 + $0xf8] sm:$0xff]
          %v484 = vld [vmem:[%s259] sm:$0xff]
          %v485 = vld [vmem:[%s259 + $0x8] sm:$0xff]
          %v486 = vld [vmem:[%s259 + $0x10] sm:$0xff]
          %v487 = vld [vmem:[%s259 + $0x18] sm:$0xff]
          %v488 = vld [vmem:[%s259 + $0x20] sm:$0xff]
          %v489 = vld [vmem:[%s259 + $0x28] sm:$0xff]
          %v490 = vld [vmem:[%s259 + $0x30] sm:$0xff]
          %v491 = vld [vmem:[%s259 + $0x38] sm:$0xff]
          %v492 = vld [vmem:[%s259 + $0x40] sm:$0xff]
          %v493 = vld [vmem:[%s259 + $0x48] sm:$0xff]
          %v494 = vld [vmem:[%s259 + $0x50] sm:$0xff]
          %v495 = vld [vmem:[%s259 + $0x58] sm:$0xff]
          %v496 = vld [vmem:[%s259 + $0x60] sm:$0xff]
          %v497 = vld [vmem:[%s259 + $0x68] sm:$0xff]
          %v498 = vld [vmem:[%s259 + $0x70] sm:$0xff]
          %v499 = vld [vmem:[%s259 + $0x78] sm:$0xff]
          %v500 = vld [vmem:[%s259 + $0x80] sm:$0xff]
          %v501 = vld [vmem:[%s259 + $0x88] sm:$0xff]
          %v502 = vld [vmem:[%s259 + $0x90] sm:$0xff]
          %v503 = vld [vmem:[%s259 + $0x98] sm:$0xff]
          %v504 = vld [vmem:[%s259 + $0xa0] sm:$0xff]
          %v505 = vld [vmem:[%s259 + $0xa8] sm:$0xff]
          %v506 = vld [vmem:[%s259 + $0xb0] sm:$0xff]
          %v507 = vld [vmem:[%s259 + $0xb8] sm:$0xff]
          %v508 = vld [vmem:[%s259 + $0xc0] sm:$0xff]
          %v509 = vld [vmem:[%s259 + $0xc8] sm:$0xff]
          %v510 = vld [vmem:[%s259 + $0xd0] sm:$0xff]
          %v511 = vld [vmem:[%s259 + $0xd8] sm:$0xff]
          %v512 = vld [vmem:[%s259 + $0xe0] sm:$0xff]
          %v513 = vld [vmem:[%s259 + $0xe8] sm:$0xff]
          %v514 = vld [vmem:[%s259 + $0xf0] sm:$0xff]
          %v515 = vld [vmem:[%s259 + $0xf8] sm:$0xff]
          %v516 = vld [vmem:[%s259 + $0x100] sm:$0xff]
          %v517 = vld [vmem:[%s259 + $0x108] sm:$0xff]
          %v518 = vld [vmem:[%s259 + $0x110] sm:$0xff]
          %v519 = vld [vmem:[%s259 + $0x118] sm:$0xff]
          %v520 = vld [vmem:[%s259 + $0x120] sm:$0xff]
          %v521 = vld [vmem:[%s259 + $0x128] sm:$0xff]
          %v522 = vld [vmem:[%s259 + $0x130] sm:$0xff]
          %v523 = vld [vmem:[%s259 + $0x138] sm:$0xff]
          %v524 = vld [vmem:[%s259 + $0x140] sm:$0xff]
          %v525 = vld [vmem:[%s259 + $0x148] sm:$0xff]
          %v526 = vld [vmem:[%s259 + $0x150] sm:$0xff]
          %v527 = vld [vmem:[%s259 + $0x158] sm:$0xff]
          %v528 = vld [vmem:[%s259 + $0x160] sm:$0xff]
          %v529 = vld [vmem:[%s259 + $0x168] sm:$0xff]
          %v530 = vld [vmem:[%s259 + $0x170] sm:$0xff]
          %v531 = vld [vmem:[%s259 + $0x178] sm:$0xff]
          %v532 = vld [vmem:[%s259 + $0x180] sm:$0xff]
          %v533 = vld [vmem:[%s259 + $0x188] sm:$0xff]
          %v534 = vld [vmem:[%s259 + $0x190] sm:$0xff]
          %v535 = vld [vmem:[%s259 + $0x198] sm:$0xff]
          %v536 = vld [vmem:[%s259 + $0x1a0] sm:$0xff]
          %v537 = vld [vmem:[%s259 + $0x1a8] sm:$0xff]
          %v538 = vld [vmem:[%s259 + $0x1b0] sm:$0xff]
          %v539 = vld [vmem:[%s259 + $0x1b8] sm:$0xff]
          %v540 = vld [vmem:[%s259 + $0x1c0] sm:$0xff]
          %v541 = vld [vmem:[%s259 + $0x1c8] sm:$0xff]
          %v542 = vld [vmem:[%s259 + $0x1d0] sm:$0xff]
          %v543 = vld [vmem:[%s259 + $0x1d8] sm:$0xff]
          %v544 = vld [vmem:[%s259 + $0x1e0] sm:$0xff]
          %v545 = vld [vmem:[%s259 + $0x1e8] sm:$0xff]
          %v546 = vld [vmem:[%s259 + $0x1f0] sm:$0xff]
          %v547 = vld [vmem:[%s259 + $0x1f8] sm:$0xff]
          %v548 = vld [vmem:[%s259 + $0x200] sm:$0xff]
          %v549 = vld [vmem:[%s259 + $0x208] sm:$0xff]
          %v550 = vld [vmem:[%s259 + $0x210] sm:$0xff]
          %v551 = vld [vmem:[%s259 + $0x218] sm:$0xff]
          %v552 = vld [vmem:[%s259 + $0x220] sm:$0xff]
          %v553 = vld [vmem:[%s259 + $0x228] sm:$0xff]
          %v554 = vld [vmem:[%s259 + $0x230] sm:$0xff]
          %v555 = vld [vmem:[%s259 + $0x238] sm:$0xff]
          %v556 = vld [vmem:[%s259 + $0x240] sm:$0xff]
          %v557 = vld [vmem:[%s259 + $0x248] sm:$0xff]
          %v558 = vld [vmem:[%s259 + $0x250] sm:$0xff]
          %v559 = vld [vmem:[%s259 + $0x258] sm:$0xff]
          %v560 = vld [vmem:[%s259 + $0x260] sm:$0xff]
          %v561 = vld [vmem:[%s259 + $0x268] sm:$0xff]
          %v562 = vld [vmem:[%s259 + $0x270] sm:$0xff]
          %v563 = vld [vmem:[%s259 + $0x278] sm:$0xff]
          %v564 = vld [vmem:[%s259 + $0x280] sm:$0xff]
          %v565 = vld [vmem:[%s259 + $0x288] sm:$0xff]
          %v566 = vld [vmem:[%s259 + $0x290] sm:$0xff]
          %v567 = vld [vmem:[%s259 + $0x298] sm:$0xff]
          %v568 = vld [vmem:[%s259 + $0x2a0] sm:$0xff]
          %v569 = vld [vmem:[%s259 + $0x2a8] sm:$0xff]
          %v570 = vld [vmem:[%s259 + $0x2b0] sm:$0xff]
          %v571 = vld [vmem:[%s259 + $0x2b8] sm:$0xff]
          %v572 = vld [vmem:[%s259 + $0x2c0] sm:$0xff]
          %v573 = vld [vmem:[%s259 + $0x2c8] sm:$0xff]
          %v574 = vld [vmem:[%s259 + $0x2d0] sm:$0xff]
          %v575 = vld [vmem:[%s259 + $0x2d8] sm:$0xff]
          %v576 = vld [vmem:[%s259 + $0x2e0] sm:$0xff]
          %v577 = vld [vmem:[%s259 + $0x2e8] sm:$0xff]
          %v578 = vld [vmem:[%s259 + $0x2f0] sm:$0xff]
          %v579 = vld [vmem:[%s259 + $0x2f8] sm:$0xff]
          %v580 = vld [vmem:[%s259 + $0x300] sm:$0xff]
          %v581 = vld [vmem:[%s259 + $0x308] sm:$0xff]
          %v582 = vld [vmem:[%s259 + $0x310] sm:$0xff]
          %v583 = vld [vmem:[%s259 + $0x318] sm:$0xff]
          %v584 = vld [vmem:[%s259 + $0x320] sm:$0xff]
          %v585 = vld [vmem:[%s259 + $0x328] sm:$0xff]
          %v586 = vld [vmem:[%s259 + $0x330] sm:$0xff]
          %v587 = vld [vmem:[%s259 + $0x338] sm:$0xff]
          %v588 = vld [vmem:[%s259 + $0x340] sm:$0xff]
          %v589 = vld [vmem:[%s259 + $0x348] sm:$0xff]
          %v590 = vld [vmem:[%s259 + $0x350] sm:$0xff]
          %v591 = vld [vmem:[%s259 + $0x358] sm:$0xff]
          %v592 = vld [vmem:[%s259 + $0x360] sm:$0xff]
          %v593 = vld [vmem:[%s259 + $0x368] sm:$0xff]
          %v594 = vld [vmem:[%s259 + $0x370] sm:$0xff]
          %v595 = vld [vmem:[%s259 + $0x378] sm:$0xff]
          %v596 = vld [vmem:[%s259 + $0x380] sm:$0xff]
          %v597 = vld [vmem:[%s259 + $0x388] sm:$0xff]
          %v598 = vld [vmem:[%s259 + $0x390] sm:$0xff]
          %v599 = vld [vmem:[%s259 + $0x398] sm:$0xff]
          %v600 = vld [vmem:[%s259 + $0x3a0] sm:$0xff]
          %v601 = vld [vmem:[%s259 + $0x3a8] sm:$0xff]
          %v602 = vld [vmem:[%s259 + $0x3b0] sm:$0xff]
          %v603 = vld [vmem:[%s259 + $0x3b8] sm:$0xff]
          %v604 = vld [vmem:[%s259 + $0x3c0] sm:$0xff]
          %v605 = vld [vmem:[%s259 + $0x3c8] sm:$0xff]
          %v606 = vld [vmem:[%s259 + $0x3d0] sm:$0xff]
          %v607 = vld [vmem:[%s259 + $0x3d8] sm:$0xff]
          %v608 = vld [vmem:[%s259 + $0x3e0] sm:$0xff]
          %v609 = vld [vmem:[%s259 + $0x3e8] sm:$0xff]
          %v610 = vld [vmem:[%s259 + $0x3f0] sm:$0xff]
          %v611 = vld [vmem:[%s259 + $0x3f8] sm:$0xff]
          %v740 = vunpack.c.l.b16 %v484
          %v741 = vunpack.c.h.b16 %v484
          %v742 = vunpack.c.l.b16 %v485
          %v743 = vunpack.c.h.b16 %v485
          %v744 = vunpack.c.l.b16 %v486
          %v745 = vunpack.c.h.b16 %v486
          %v746 = vunpack.c.l.b16 %v487
          %v747 = vunpack.c.h.b16 %v487
          %v748 = vunpack.c.l.b16 %v488
          %v749 = vunpack.c.h.b16 %v488
          %v750 = vunpack.c.l.b16 %v489
          %v751 = vunpack.c.h.b16 %v489
          %v752 = vunpack.c.l.b16 %v490
          %v753 = vunpack.c.h.b16 %v490
          %v754 = vunpack.c.l.b16 %v491
          %v755 = vunpack.c.h.b16 %v491
          %v756 = vunpack.c.l.b16 %v492
          %v757 = vunpack.c.h.b16 %v492
          %v758 = vunpack.c.l.b16 %v493
          %v759 = vunpack.c.h.b16 %v493
          %v760 = vunpack.c.l.b16 %v494
          %v761 = vunpack.c.h.b16 %v494
          %v762 = vunpack.c.l.b16 %v495
          %v763 = vunpack.c.h.b16 %v495
          %v764 = vunpack.c.l.b16 %v496
          %v765 = vunpack.c.h.b16 %v496
          %v766 = vunpack.c.l.b16 %v497
          %v767 = vunpack.c.h.b16 %v497
          %v768 = vunpack.c.l.b16 %v498
          %v769 = vunpack.c.h.b16 %v498
          %v770 = vunpack.c.l.b16 %v499
          %v771 = vunpack.c.h.b16 %v499
          %v772 = vunpack.c.l.b16 %v500
          %v773 = vunpack.c.h.b16 %v500
          %v774 = vunpack.c.l.b16 %v501
          %v775 = vunpack.c.h.b16 %v501
          %v776 = vunpack.c.l.b16 %v502
          %v777 = vunpack.c.h.b16 %v502
          %v778 = vunpack.c.l.b16 %v503
          %v779 = vunpack.c.h.b16 %v503
          %v780 = vunpack.c.l.b16 %v504
          %v781 = vunpack.c.h.b16 %v504
          %v782 = vunpack.c.l.b16 %v505
          %v783 = vunpack.c.h.b16 %v505
          %v784 = vunpack.c.l.b16 %v506
          %v785 = vunpack.c.h.b16 %v506
          %v786 = vunpack.c.l.b16 %v507
          %v787 = vunpack.c.h.b16 %v507
          %v788 = vunpack.c.l.b16 %v508
          %v789 = vunpack.c.h.b16 %v508
          %v790 = vunpack.c.l.b16 %v509
          %v791 = vunpack.c.h.b16 %v509
          %v792 = vunpack.c.l.b16 %v510
          %v793 = vunpack.c.h.b16 %v510
          %v794 = vunpack.c.l.b16 %v511
          %v795 = vunpack.c.h.b16 %v511
          %v796 = vunpack.c.l.b16 %v512
          %v797 = vunpack.c.h.b16 %v512
          %v798 = vunpack.c.l.b16 %v513
          %v799 = vunpack.c.h.b16 %v513
          %v800 = vunpack.c.l.b16 %v514
          %v801 = vunpack.c.h.b16 %v514
          %v802 = vunpack.c.l.b16 %v515
          %v803 = vunpack.c.h.b16 %v515
          %v804 = vunpack.c.l.b16 %v516
          %v805 = vunpack.c.h.b16 %v516
          %v806 = vunpack.c.l.b16 %v517
          %v807 = vunpack.c.h.b16 %v517
          %v808 = vunpack.c.l.b16 %v518
          %v809 = vunpack.c.h.b16 %v518
          %v810 = vunpack.c.l.b16 %v519
          %v811 = vunpack.c.h.b16 %v519
          %v812 = vunpack.c.l.b16 %v520
          %v813 = vunpack.c.h.b16 %v520
          %v814 = vunpack.c.l.b16 %v521
          %v815 = vunpack.c.h.b16 %v521
          %v816 = vunpack.c.l.b16 %v522
          %v817 = vunpack.c.h.b16 %v522
          %v818 = vunpack.c.l.b16 %v523
          %v819 = vunpack.c.h.b16 %v523
          %v820 = vunpack.c.l.b16 %v524
          %v821 = vunpack.c.h.b16 %v524
          %v822 = vunpack.c.l.b16 %v525
          %v823 = vunpack.c.h.b16 %v525
          %v824 = vunpack.c.l.b16 %v526
          %v825 = vunpack.c.h.b16 %v526
          %v826 = vunpack.c.l.b16 %v527
          %v827 = vunpack.c.h.b16 %v527
          %v828 = vunpack.c.l.b16 %v528
          %v829 = vunpack.c.h.b16 %v528
          %v830 = vunpack.c.l.b16 %v529
          %v831 = vunpack.c.h.b16 %v529
          %v832 = vunpack.c.l.b16 %v530
          %v833 = vunpack.c.h.b16 %v530
          %v834 = vunpack.c.l.b16 %v531
          %v835 = vunpack.c.h.b16 %v531
          %v836 = vunpack.c.l.b16 %v532
          %v837 = vunpack.c.h.b16 %v532
          %v838 = vunpack.c.l.b16 %v533
          %v839 = vunpack.c.h.b16 %v533
          %v840 = vunpack.c.l.b16 %v534
          %v841 = vunpack.c.h.b16 %v534
          %v842 = vunpack.c.l.b16 %v535
          %v843 = vunpack.c.h.b16 %v535
          %v844 = vunpack.c.l.b16 %v536
          %v845 = vunpack.c.h.b16 %v536
          %v846 = vunpack.c.l.b16 %v537
          %v847 = vunpack.c.h.b16 %v537
          %v848 = vunpack.c.l.b16 %v538
          %v849 = vunpack.c.h.b16 %v538
          %v850 = vunpack.c.l.b16 %v539
          %v851 = vunpack.c.h.b16 %v539
          %v852 = vunpack.c.l.b16 %v540
          %v853 = vunpack.c.h.b16 %v540
          %v854 = vunpack.c.l.b16 %v541
          %v855 = vunpack.c.h.b16 %v541
          %v856 = vunpack.c.l.b16 %v542
          %v857 = vunpack.c.h.b16 %v542
          %v858 = vunpack.c.l.b16 %v543
          %v859 = vunpack.c.h.b16 %v543
          %v860 = vunpack.c.l.b16 %v544
          %v861 = vunpack.c.h.b16 %v544
          %v862 = vunpack.c.l.b16 %v545
          %v863 = vunpack.c.h.b16 %v545
          %v864 = vunpack.c.l.b16 %v546
          %v865 = vunpack.c.h.b16 %v546
          %v866 = vunpack.c.l.b16 %v547
          %v867 = vunpack.c.h.b16 %v547
          %v868 = vunpack.c.l.b16 %v548
          %v869 = vunpack.c.h.b16 %v548
          %v870 = vunpack.c.l.b16 %v549
          %v871 = vunpack.c.h.b16 %v549
          %v872 = vunpack.c.l.b16 %v550
          %v873 = vunpack.c.h.b16 %v550
          %v874 = vunpack.c.l.b16 %v551
          %v875 = vunpack.c.h.b16 %v551
          %v876 = vunpack.c.l.b16 %v552
          %v877 = vunpack.c.h.b16 %v552
          %v878 = vunpack.c.l.b16 %v553
          %v879 = vunpack.c.h.b16 %v553
          %v880 = vunpack.c.l.b16 %v554
          %v881 = vunpack.c.h.b16 %v554
          %v882 = vunpack.c.l.b16 %v555
          %v883 = vunpack.c.h.b16 %v555
          %v884 = vunpack.c.l.b16 %v556
          %v885 = vunpack.c.h.b16 %v556
          %v886 = vunpack.c.l.b16 %v557
          %v887 = vunpack.c.h.b16 %v557
          %v888 = vunpack.c.l.b16 %v558
          %v889 = vunpack.c.h.b16 %v558
          %v890 = vunpack.c.l.b16 %v559
          %v891 = vunpack.c.h.b16 %v559
          %v892 = vunpack.c.l.b16 %v560
          %v893 = vunpack.c.h.b16 %v560
          %v894 = vunpack.c.l.b16 %v561
          %v895 = vunpack.c.h.b16 %v561
          %v896 = vunpack.c.l.b16 %v562
          %v897 = vunpack.c.h.b16 %v562
          %v898 = vunpack.c.l.b16 %v563
          %v899 = vunpack.c.h.b16 %v563
          %v900 = vunpack.c.l.b16 %v564
          %v901 = vunpack.c.h.b16 %v564
          %v902 = vunpack.c.l.b16 %v565
          %v903 = vunpack.c.h.b16 %v565
          %v904 = vunpack.c.l.b16 %v566
          %v905 = vunpack.c.h.b16 %v566
          %v906 = vunpack.c.l.b16 %v567
          %v907 = vunpack.c.h.b16 %v567
          %v908 = vunpack.c.l.b16 %v568
          %v909 = vunpack.c.h.b16 %v568
          %v910 = vunpack.c.l.b16 %v569
          %v911 = vunpack.c.h.b16 %v569
          %v912 = vunpack.c.l.b16 %v570
          %v913 = vunpack.c.h.b16 %v570
          %v914 = vunpack.c.l.b16 %v571
          %v915 = vunpack.c.h.b16 %v571
          %v916 = vunpack.c.l.b16 %v572
          %v917 = vunpack.c.h.b16 %v572
          %v918 = vunpack.c.l.b16 %v573
          %v919 = vunpack.c.h.b16 %v573
          %v920 = vunpack.c.l.b16 %v574
          %v921 = vunpack.c.h.b16 %v574
          %v922 = vunpack.c.l.b16 %v575
          %v923 = vunpack.c.h.b16 %v575
          %v924 = vunpack.c.l.b16 %v576
          %v925 = vunpack.c.h.b16 %v576
          %v926 = vunpack.c.l.b16 %v577
          %v927 = vunpack.c.h.b16 %v577
          %v928 = vunpack.c.l.b16 %v578
          %v929 = vunpack.c.h.b16 %v578
          %v930 = vunpack.c.l.b16 %v579
          %v931 = vunpack.c.h.b16 %v579
          %v932 = vunpack.c.l.b16 %v580
          %v933 = vunpack.c.h.b16 %v580
          %v934 = vunpack.c.l.b16 %v581
          %v935 = vunpack.c.h.b16 %v581
          %v936 = vunpack.c.l.b16 %v582
          %v937 = vunpack.c.h.b16 %v582
          %v938 = vunpack.c.l.b16 %v583
          %v939 = vunpack.c.h.b16 %v583
          %v940 = vunpack.c.l.b16 %v584
          %v941 = vunpack.c.h.b16 %v584
          %v942 = vunpack.c.l.b16 %v585
          %v943 = vunpack.c.h.b16 %v585
          %v944 = vunpack.c.l.b16 %v586
          %v945 = vunpack.c.h.b16 %v586
          %v946 = vunpack.c.l.b16 %v587
          %v947 = vunpack.c.h.b16 %v587
          %v948 = vunpack.c.l.b16 %v588
          %v949 = vunpack.c.h.b16 %v588
          %v950 = vunpack.c.l.b16 %v589
          %v951 = vunpack.c.h.b16 %v589
          %v952 = vunpack.c.l.b16 %v590
          %v953 = vunpack.c.h.b16 %v590
          %v954 = vunpack.c.l.b16 %v591
          %v955 = vunpack.c.h.b16 %v591
          %v956 = vunpack.c.l.b16 %v592
          %v957 = vunpack.c.h.b16 %v592
          %v958 = vunpack.c.l.b16 %v593
          %v959 = vunpack.c.h.b16 %v593
          %v960 = vunpack.c.l.b16 %v594
          %v961 = vunpack.c.h.b16 %v594
          %v962 = vunpack.c.l.b16 %v595
          %v963 = vunpack.c.h.b16 %v595
          %v964 = vunpack.c.l.b16 %v596
          %v965 = vunpack.c.h.b16 %v596
          %v966 = vunpack.c.l.b16 %v597
          %v967 = vunpack.c.h.b16 %v597
          %v968 = vunpack.c.l.b16 %v598
          %v969 = vunpack.c.h.b16 %v598
          %v970 = vunpack.c.l.b16 %v599
          %v971 = vunpack.c.h.b16 %v599
          %v972 = vunpack.c.l.b16 %v600
          %v973 = vunpack.c.h.b16 %v600
          %v974 = vunpack.c.l.b16 %v601
          %v975 = vunpack.c.h.b16 %v601
          %v976 = vunpack.c.l.b16 %v602
          %v977 = vunpack.c.h.b16 %v602
          %v978 = vunpack.c.l.b16 %v603
          %v979 = vunpack.c.h.b16 %v603
          %v980 = vunpack.c.l.b16 %v604
          %v981 = vunpack.c.h.b16 %v604
          %v982 = vunpack.c.l.b16 %v605
          %v983 = vunpack.c.h.b16 %v605
          %v984 = vunpack.c.l.b16 %v606
          %v985 = vunpack.c.h.b16 %v606
          %v986 = vunpack.c.l.b16 %v607
          %v987 = vunpack.c.h.b16 %v607
          %v988 = vunpack.c.l.b16 %v608
          %v989 = vunpack.c.h.b16 %v608
          %v990 = vunpack.c.l.b16 %v609
          %v991 = vunpack.c.h.b16 %v609
          %v992 = vunpack.c.l.b16 %v610
          %v993 = vunpack.c.h.b16 %v610
          %v994 = vunpack.c.l.b16 %v611
          %v995 = vunpack.c.h.b16 %v611
          %v996 = vpack.c.b16 %v748, %v740
          %v997 = vpack.c.b16 %v749, %v741
          %v998 = vpack.c.b16 %v750, %v742
          %v999 = vpack.c.b16 %v751, %v743
          %v1000 = vpack.c.b16 %v752, %v744
          %v1001 = vpack.c.b16 %v753, %v745
          %v1002 = vpack.c.b16 %v754, %v746
          %v1003 = vpack.c.b16 %v755, %v747
          %v1004 = vpack.c.b16 %v764, %v756
          %v1005 = vpack.c.b16 %v765, %v757
          %v1006 = vpack.c.b16 %v766, %v758
          %v1007 = vpack.c.b16 %v767, %v759
          %v1008 = vpack.c.b16 %v768, %v760
          %v1009 = vpack.c.b16 %v769, %v761
          %v1010 = vpack.c.b16 %v770, %v762
          %v1011 = vpack.c.b16 %v771, %v763
          %v1012 = vpack.c.b16 %v780, %v772
          %v1013 = vpack.c.b16 %v781, %v773
          %v1014 = vpack.c.b16 %v782, %v774
          %v1015 = vpack.c.b16 %v783, %v775
          %v1016 = vpack.c.b16 %v784, %v776
          %v1017 = vpack.c.b16 %v785, %v777
          %v1018 = vpack.c.b16 %v786, %v778
          %v1019 = vpack.c.b16 %v787, %v779
          %v1020 = vpack.c.b16 %v796, %v788
          %v1021 = vpack.c.b16 %v797, %v789
          %v1022 = vpack.c.b16 %v798, %v790
          %v1023 = vpack.c.b16 %v799, %v791
          %v1024 = vpack.c.b16 %v800, %v792
          %v1025 = vpack.c.b16 %v801, %v793
          %v1026 = vpack.c.b16 %v802, %v794
          %v1027 = vpack.c.b16 %v803, %v795
          %v1028 = vpack.c.b16 %v812, %v804
          %v1029 = vpack.c.b16 %v813, %v805
          %v1030 = vpack.c.b16 %v814, %v806
          %v1031 = vpack.c.b16 %v815, %v807
          %v1032 = vpack.c.b16 %v816, %v808
          %v1033 = vpack.c.b16 %v817, %v809
          %v1034 = vpack.c.b16 %v818, %v810
          %v1035 = vpack.c.b16 %v819, %v811
          %v1036 = vpack.c.b16 %v828, %v820
          %v1037 = vpack.c.b16 %v829, %v821
          %v1038 = vpack.c.b16 %v830, %v822
          %v1039 = vpack.c.b16 %v831, %v823
          %v1040 = vpack.c.b16 %v832, %v824
          %v1041 = vpack.c.b16 %v833, %v825
          %v1042 = vpack.c.b16 %v834, %v826
          %v1043 = vpack.c.b16 %v835, %v827
          %v1044 = vpack.c.b16 %v844, %v836
          %v1045 = vpack.c.b16 %v845, %v837
          %v1046 = vpack.c.b16 %v846, %v838
          %v1047 = vpack.c.b16 %v847, %v839
          %v1048 = vpack.c.b16 %v848, %v840
          %v1049 = vpack.c.b16 %v849, %v841
          %v1050 = vpack.c.b16 %v850, %v842
          %v1051 = vpack.c.b16 %v851, %v843
          %v1052 = vpack.c.b16 %v860, %v852
          %v1053 = vpack.c.b16 %v861, %v853
          %v1054 = vpack.c.b16 %v862, %v854
          %v1055 = vpack.c.b16 %v863, %v855
          %v1056 = vpack.c.b16 %v864, %v856
          %v1057 = vpack.c.b16 %v865, %v857
          %v1058 = vpack.c.b16 %v866, %v858
          %v1059 = vpack.c.b16 %v867, %v859
          %v1060 = vpack.c.b16 %v876, %v868
          %v1061 = vpack.c.b16 %v877, %v869
          %v1062 = vpack.c.b16 %v878, %v870
          %v1063 = vpack.c.b16 %v879, %v871
          %v1064 = vpack.c.b16 %v880, %v872
          %v1065 = vpack.c.b16 %v881, %v873
          %v1066 = vpack.c.b16 %v882, %v874
          %v1067 = vpack.c.b16 %v883, %v875
          %v1068 = vpack.c.b16 %v892, %v884
          %v1069 = vpack.c.b16 %v893, %v885
          %v1070 = vpack.c.b16 %v894, %v886
          %v1071 = vpack.c.b16 %v895, %v887
          %v1072 = vpack.c.b16 %v896, %v888
          %v1073 = vpack.c.b16 %v897, %v889
          %v1074 = vpack.c.b16 %v898, %v890
          %v1075 = vpack.c.b16 %v899, %v891
          %v1076 = vpack.c.b16 %v908, %v900
          %v1077 = vpack.c.b16 %v909, %v901
          %v1078 = vpack.c.b16 %v910, %v902
          %v1079 = vpack.c.b16 %v911, %v903
          %v1080 = vpack.c.b16 %v912, %v904
          %v1081 = vpack.c.b16 %v913, %v905
          %v1082 = vpack.c.b16 %v914, %v906
          %v1083 = vpack.c.b16 %v915, %v907
          %v1084 = vpack.c.b16 %v924, %v916
          %v1085 = vpack.c.b16 %v925, %v917
          %v1086 = vpack.c.b16 %v926, %v918
          %v1087 = vpack.c.b16 %v927, %v919
          %v1088 = vpack.c.b16 %v928, %v920
          %v1089 = vpack.c.b16 %v929, %v921
          %v1090 = vpack.c.b16 %v930, %v922
          %v1091 = vpack.c.b16 %v931, %v923
          %v1092 = vpack.c.b16 %v940, %v932
          %v1093 = vpack.c.b16 %v941, %v933
          %v1094 = vpack.c.b16 %v942, %v934
          %v1095 = vpack.c.b16 %v943, %v935
          %v1096 = vpack.c.b16 %v944, %v936
          %v1097 = vpack.c.b16 %v945, %v937
          %v1098 = vpack.c.b16 %v946, %v938
          %v1099 = vpack.c.b16 %v947, %v939
          %v1100 = vpack.c.b16 %v956, %v948
          %v1101 = vpack.c.b16 %v957, %v949
          %v1102 = vpack.c.b16 %v958, %v950
          %v1103 = vpack.c.b16 %v959, %v951
          %v1104 = vpack.c.b16 %v960, %v952
          %v1105 = vpack.c.b16 %v961, %v953
          %v1106 = vpack.c.b16 %v962, %v954
          %v1107 = vpack.c.b16 %v963, %v955
          %v1108 = vpack.c.b16 %v972, %v964
          %v1109 = vpack.c.b16 %v973, %v965
          %v1110 = vpack.c.b16 %v974, %v966
          %v1111 = vpack.c.b16 %v975, %v967
          %v1112 = vpack.c.b16 %v976, %v968
          %v1113 = vpack.c.b16 %v977, %v969
          %v1114 = vpack.c.b16 %v978, %v970
          %v1115 = vpack.c.b16 %v979, %v971
          %v1116 = vpack.c.b16 %v988, %v980
          %v1117 = vpack.c.b16 %v989, %v981
          %v1118 = vpack.c.b16 %v990, %v982
          %v1119 = vpack.c.b16 %v991, %v983
          %v1120 = vpack.c.b16 %v992, %v984
          %v1121 = vpack.c.b16 %v993, %v985
          %v1122 = vpack.c.b16 %v994, %v986
          %v1123 = vpack.c.b16 %v995, %v987
          %v1380 = vunpack.c.l.b16 %v324
          %v1381 = vunpack.c.l.b16 %v325
          %v1382 = vunpack.c.l.b16 %v326
          %v1383 = vunpack.c.l.b16 %v327
          %v1384 = vunpack.c.l.b16 %v328
          %v1385 = vunpack.c.l.b16 %v329
          %v1386 = vunpack.c.l.b16 %v330
          %v1387 = vunpack.c.l.b16 %v331
          %v1388 = vunpack.c.l.b16 %v332
          %v1389 = vunpack.c.l.b16 %v333
          %v1390 = vunpack.c.l.b16 %v334
          %v1391 = vunpack.c.l.b16 %v335
          %v1392 = vunpack.c.l.b16 %v336
          %v1393 = vunpack.c.l.b16 %v337
          %v1394 = vunpack.c.l.b16 %v338
          %v1395 = vunpack.c.l.b16 %v339
          %v1396 = vunpack.c.l.b16 %v340
          %v1397 = vunpack.c.l.b16 %v341
          %v1398 = vunpack.c.l.b16 %v342
          %v1399 = vunpack.c.l.b16 %v343
          %v1400 = vunpack.c.l.b16 %v344
          %v1401 = vunpack.c.l.b16 %v345
          %v1402 = vunpack.c.l.b16 %v346
          %v1403 = vunpack.c.l.b16 %v347
          %v1404 = vunpack.c.l.b16 %v348
          %v1405 = vunpack.c.l.b16 %v349
          %v1406 = vunpack.c.l.b16 %v350
          %v1407 = vunpack.c.l.b16 %v351
          %v1408 = vunpack.c.l.b16 %v352
          %v1409 = vunpack.c.l.b16 %v353
          %v1410 = vunpack.c.l.b16 %v354
          %v1411 = vunpack.c.l.b16 %v355
          %v1412 = vunpack.c.l.b16 %v356
          %v1413 = vunpack.c.l.b16 %v357
          %v1414 = vunpack.c.l.b16 %v358
          %v1415 = vunpack.c.l.b16 %v359
          %v1416 = vunpack.c.l.b16 %v360
          %v1417 = vunpack.c.l.b16 %v361
          %v1418 = vunpack.c.l.b16 %v362
          %v1419 = vunpack.c.l.b16 %v363
          %v1420 = vunpack.c.l.b16 %v364
          %v1421 = vunpack.c.l.b16 %v365
          %v1422 = vunpack.c.l.b16 %v366
          %v1423 = vunpack.c.l.b16 %v367
          %v1424 = vunpack.c.l.b16 %v368
          %v1425 = vunpack.c.l.b16 %v369
          %v1426 = vunpack.c.l.b16 %v370
          %v1427 = vunpack.c.l.b16 %v371
          %v1428 = vunpack.c.l.b16 %v372
          %v1429 = vunpack.c.l.b16 %v373
          %v1430 = vunpack.c.l.b16 %v374
          %v1431 = vunpack.c.l.b16 %v375
          %v1432 = vunpack.c.l.b16 %v376
          %v1433 = vunpack.c.l.b16 %v377
          %v1434 = vunpack.c.l.b16 %v378
          %v1435 = vunpack.c.l.b16 %v379
          %v1436 = vunpack.c.l.b16 %v380
          %v1437 = vunpack.c.l.b16 %v381
          %v1438 = vunpack.c.l.b16 %v382
          %v1439 = vunpack.c.l.b16 %v383
          %v1440 = vunpack.c.l.b16 %v384
          %v1441 = vunpack.c.l.b16 %v385
          %v1442 = vunpack.c.l.b16 %v386
          %v1443 = vunpack.c.l.b16 %v387
          %v1444 = vunpack.c.l.b16 %v388
          %v1445 = vunpack.c.l.b16 %v389
          %v1446 = vunpack.c.l.b16 %v390
          %v1447 = vunpack.c.l.b16 %v391
          %v1448 = vunpack.c.l.b16 %v392
          %v1449 = vunpack.c.l.b16 %v393
          %v1450 = vunpack.c.l.b16 %v394
          %v1451 = vunpack.c.l.b16 %v395
          %v1452 = vunpack.c.l.b16 %v396
          %v1453 = vunpack.c.l.b16 %v397
          %v1454 = vunpack.c.l.b16 %v398
          %v1455 = vunpack.c.l.b16 %v399
          %v1456 = vunpack.c.l.b16 %v400
          %v1457 = vunpack.c.l.b16 %v401
          %v1458 = vunpack.c.l.b16 %v402
          %v1459 = vunpack.c.l.b16 %v403
          %v1460 = vunpack.c.l.b16 %v404
          %v1461 = vunpack.c.l.b16 %v405
          %v1462 = vunpack.c.l.b16 %v406
          %v1463 = vunpack.c.l.b16 %v407
          %v1464 = vunpack.c.l.b16 %v408
          %v1465 = vunpack.c.l.b16 %v409
          %v1466 = vunpack.c.l.b16 %v410
          %v1467 = vunpack.c.l.b16 %v411
          %v1468 = vunpack.c.l.b16 %v412
          %v1469 = vunpack.c.l.b16 %v413
          %v1470 = vunpack.c.l.b16 %v414
          %v1471 = vunpack.c.l.b16 %v415
          %v1472 = vunpack.c.l.b16 %v416
          %v1473 = vunpack.c.l.b16 %v417
          %v1474 = vunpack.c.l.b16 %v418
          %v1475 = vunpack.c.l.b16 %v419
          %v1476 = vunpack.c.l.b16 %v420
          %v1477 = vunpack.c.l.b16 %v421
          %v1478 = vunpack.c.l.b16 %v422
          %v1479 = vunpack.c.l.b16 %v423
          %v1480 = vunpack.c.l.b16 %v424
          %v1481 = vunpack.c.l.b16 %v425
          %v1482 = vunpack.c.l.b16 %v426
          %v1483 = vunpack.c.l.b16 %v427
          %v1484 = vunpack.c.l.b16 %v428
          %v1485 = vunpack.c.l.b16 %v429
          %v1486 = vunpack.c.l.b16 %v430
          %v1487 = vunpack.c.l.b16 %v431
          %v1488 = vunpack.c.l.b16 %v432
          %v1489 = vunpack.c.l.b16 %v433
          %v1490 = vunpack.c.l.b16 %v434
          %v1491 = vunpack.c.l.b16 %v435
          %v1492 = vunpack.c.l.b16 %v436
          %v1493 = vunpack.c.l.b16 %v437
          %v1494 = vunpack.c.l.b16 %v438
          %v1495 = vunpack.c.l.b16 %v439
          %v1496 = vunpack.c.l.b16 %v440
          %v1497 = vunpack.c.l.b16 %v441
          %v1498 = vunpack.c.l.b16 %v442
          %v1499 = vunpack.c.l.b16 %v443
          %v1500 = vunpack.c.l.b16 %v444
          %v1501 = vunpack.c.l.b16 %v445
          %v1502 = vunpack.c.l.b16 %v446
          %v1503 = vunpack.c.l.b16 %v447
          %v1504 = vunpack.c.l.b16 %v448
          %v1505 = vunpack.c.l.b16 %v449
          %v1506 = vunpack.c.l.b16 %v450
          %v1507 = vunpack.c.l.b16 %v451
          %v1508 = vpack.c.b16 %v1381, %v1380
          %v1509 = vpack.c.b16 %v1383, %v1382
          %v1510 = vpack.c.b16 %v1385, %v1384
          %v1511 = vpack.c.b16 %v1387, %v1386
          %v1512 = vpack.c.b16 %v1389, %v1388
          %v1513 = vpack.c.b16 %v1391, %v1390
          %v1514 = vpack.c.b16 %v1393, %v1392
          %v1515 = vpack.c.b16 %v1395, %v1394
          %v1516 = vpack.c.b16 %v1397, %v1396
          %v1517 = vpack.c.b16 %v1399, %v1398
          %v1518 = vpack.c.b16 %v1401, %v1400
          %v1519 = vpack.c.b16 %v1403, %v1402
          %v1520 = vpack.c.b16 %v1405, %v1404
          %v1521 = vpack.c.b16 %v1407, %v1406
          %v1522 = vpack.c.b16 %v1409, %v1408
          %v1523 = vpack.c.b16 %v1411, %v1410
          %v1524 = vpack.c.b16 %v1413, %v1412
          %v1525 = vpack.c.b16 %v1415, %v1414
          %v1526 = vpack.c.b16 %v1417, %v1416
          %v1527 = vpack.c.b16 %v1419, %v1418
          %v1528 = vpack.c.b16 %v1421, %v1420
          %v1529 = vpack.c.b16 %v1423, %v1422
          %v1530 = vpack.c.b16 %v1425, %v1424
          %v1531 = vpack.c.b16 %v1427, %v1426
          %v1532 = vpack.c.b16 %v1429, %v1428
          %v1533 = vpack.c.b16 %v1431, %v1430
          %v1534 = vpack.c.b16 %v1433, %v1432
          %v1535 = vpack.c.b16 %v1435, %v1434
          %v1536 = vpack.c.b16 %v1437, %v1436
          %v1537 = vpack.c.b16 %v1439, %v1438
          %v1538 = vpack.c.b16 %v1441, %v1440
          %v1539 = vpack.c.b16 %v1443, %v1442
          %v1540 = vpack.c.b16 %v1445, %v1444
          %v1541 = vpack.c.b16 %v1447, %v1446
          %v1542 = vpack.c.b16 %v1449, %v1448
          %v1543 = vpack.c.b16 %v1451, %v1450
          %v1544 = vpack.c.b16 %v1453, %v1452
          %v1545 = vpack.c.b16 %v1455, %v1454
          %v1546 = vpack.c.b16 %v1457, %v1456
          %v1547 = vpack.c.b16 %v1459, %v1458
          %v1548 = vpack.c.b16 %v1461, %v1460
          %v1549 = vpack.c.b16 %v1463, %v1462
          %v1550 = vpack.c.b16 %v1465, %v1464
          %v1551 = vpack.c.b16 %v1467, %v1466
          %v1552 = vpack.c.b16 %v1469, %v1468
          %v1553 = vpack.c.b16 %v1471, %v1470
          %v1554 = vpack.c.b16 %v1473, %v1472
          %v1555 = vpack.c.b16 %v1475, %v1474
          %v1556 = vpack.c.b16 %v1477, %v1476
          %v1557 = vpack.c.b16 %v1479, %v1478
          %v1558 = vpack.c.b16 %v1481, %v1480
          %v1559 = vpack.c.b16 %v1483, %v1482
          %v1560 = vpack.c.b16 %v1485, %v1484
          %v1561 = vpack.c.b16 %v1487, %v1486
          %v1562 = vpack.c.b16 %v1489, %v1488
          %v1563 = vpack.c.b16 %v1491, %v1490
          %v1564 = vpack.c.b16 %v1493, %v1492
          %v1565 = vpack.c.b16 %v1495, %v1494
          %v1566 = vpack.c.b16 %v1497, %v1496
          %v1567 = vpack.c.b16 %v1499, %v1498
          %v1568 = vpack.c.b16 %v1501, %v1500
          %v1569 = vpack.c.b16 %v1503, %v1502
          %v1570 = vpack.c.b16 %v1505, %v1504
          %v1571 = vpack.c.b16 %v1507, %v1506
          %1636 = vmatprep.subr.bf16.mxu0 0
          %1637 = vmatpush1.bf16.msra.mxu0 %v1508
          %1638 = vmatprep.subr.bf16.mxu0 0
          %1639 = vmatpush1.bf16.msra.mxu0 %v1509
          %1640 = vmatprep.subr.bf16.mxu0 0
          %1641 = vmatpush1.bf16.msra.mxu0 %v1510
          %1642 = vmatprep.subr.bf16.mxu0 0
          %1643 = vmatpush1.bf16.msra.mxu0 %v1511
          %1644 = vmatprep.subr.bf16.mxu0 0
          %1645 = vmatpush1.bf16.msra.mxu0 %v1512
          %1646 = vmatprep.subr.bf16.mxu0 0
          %1647 = vmatpush1.bf16.msra.mxu0 %v1513
          %1648 = vmatprep.subr.bf16.mxu0 0
          %1649 = vmatpush1.bf16.msra.mxu0 %v1514
          %1650 = vmatprep.subr.bf16.mxu0 0
          %1651 = vmatpush1.bf16.msra.mxu0 %v1515
          %1652 = vmatprep.subr.bf16.mxu0 0
          %1653 = vmatpush1.bf16.msra.mxu0 %v1516
          %1654 = vmatprep.subr.bf16.mxu0 0
          %1655 = vmatpush1.bf16.msra.mxu0 %v1517
          %1656 = vmatprep.subr.bf16.mxu0 0
          %1657 = vmatpush1.bf16.msra.mxu0 %v1518
          %1658 = vmatprep.subr.bf16.mxu0 0
          %1659 = vmatpush1.bf16.msra.mxu0 %v1519
          %1660 = vmatprep.subr.bf16.mxu0 0
          %1661 = vmatpush1.bf16.msra.mxu0 %v1520
          %1662 = vmatprep.subr.bf16.mxu0 0
          %1663 = vmatpush1.bf16.msra.mxu0 %v1521
          %1664 = vmatprep.subr.bf16.mxu0 0
          %1665 = vmatpush1.bf16.msra.mxu0 %v1522
          %1666 = vmatprep.subr.bf16.mxu0 0
          %1667 = vmatpush1.bf16.msra.mxu0 %v1523
          %1668 = vmatprep.mubr.bf16.mxu0 %v997
          %1669 = vmatmul.mubr.bf16.gmra.mrb[0].mxu0 %v996
          %v1670 = vpop.f32.mrb[0].mxu0
          %v1671 = vadd.f32 0.0, %v1670
          %v1672 = vpop.f32.mrb[0].mxu0
          %v1673 = vpop.f32.mrb[0].mxu0
          %v1674 = vadd.f32 0.0, %v1673
          %v1675 = vpop.f32.mrb[0].mxu0
          %1676 = vmatprep.mubr.bf16.mxu0 %v1005
          %1677 = vmatmul.mubr.bf16.gmra.mrb[0].mxu0 %v1004
          %v1678 = vpop.f32.mrb[0].mxu0
          %v1679 = vadd.f32 0.0, %v1678
          %v1680 = vpop.f32.mrb[0].mxu0
          %v1681 = vpop.f32.mrb[0].mxu0
          %v1682 = vadd.f32 0.0, %v1681
          %v1683 = vpop.f32.mrb[0].mxu0
          %1684 = vmatprep.mubr.bf16.mxu0 %v1013
          %1685 = vmatmul.mubr.bf16.gmra.mrb[0].mxu0 %v1012
          %v1686 = vpop.f32.mrb[0].mxu0
          %v1687 = vadd.f32 0.0, %v1686
          %v1688 = vpop.f32.mrb[0].mxu0
          %v1689 = vpop.f32.mrb[0].mxu0
          %v1690 = vadd.f32 0.0, %v1689
          %v1691 = vpop.f32.mrb[0].mxu0
          %1692 = vmatprep.mubr.bf16.mxu0 %v1021
          %1693 = vmatmul.mubr.bf16.gmra.mrb[0].mxu0 %v1020
          %v1694 = vpop.f32.mrb[0].mxu0
          %v1695 = vadd.f32 0.0, %v1694
          %v1696 = vpop.f32.mrb[0].mxu0
          %v1697 = vpop.f32.mrb[0].mxu0
          %v1698 = vadd.f32 0.0, %v1697
          %v1699 = vpop.f32.mrb[0].mxu0
          %1700 = vmatprep.mubr.bf16.mxu0 %v1029
          %1701 = vmatmul.mubr.bf16.gmra.mrb[0].mxu0 %v1028
          %v1702 = vpop.f32.mrb[0].mxu0
          %v1703 = vadd.f32 0.0, %v1702
          %v1704 = vpop.f32.mrb[0].mxu0
          %v1705 = vpop.f32.mrb[0].mxu0
          %v1706 = vadd.f32 0.0, %v1705
          %v1707 = vpop.f32.mrb[0].mxu0
          %1708 = vmatprep.mubr.bf16.mxu0 %v1037
          %1709 = vmatmul.mubr.bf16.gmra.mrb[0].mxu0 %v1036
          %v1710 = vpop.f32.mrb[0].mxu0
          %v1711 = vadd.f32 0.0, %v1710
          %v1712 = vpop.f32.mrb[0].mxu0
          %v1713 = vpop.f32.mrb[0].mxu0
          %v1714 = vadd.f32 0.0, %v1713
          %v1715 = vpop.f32.mrb[0].mxu0
          %1716 = vmatprep.mubr.bf16.mxu0 %v1045
          %1717 = vmatmul.mubr.bf16.gmra.mrb[0].mxu0 %v1044
          %v1718 = vpop.f32.mrb[0].mxu0
          %v1719 = vadd.f32 0.0, %v1718
          %v1720 = vpop.f32.mrb[0].mxu0
          %v1721 = vpop.f32.mrb[0].mxu0
          %v1722 = vadd.f32 0.0, %v1721
          %v1723 = vpop.f32.mrb[0].mxu0
          %1724 = vmatprep.mubr.bf16.mxu0 %v1053
          %1725 = vmatmul.mubr.bf16.gmra.mrb[0].mxu0 %v1052
          %v1726 = vpop.f32.mrb[0].mxu0
          %v1727 = vadd.f32 0.0, %v1726
          %v1728 = vpop.f32.mrb[0].mxu0
          %v1729 = vpop.f32.mrb[0].mxu0
          %v1730 = vadd.f32 0.0, %v1729
          %v1731 = vpop.f32.mrb[0].mxu0
          %1732 = vmatprep.mubr.bf16.mxu0 %v1061
          %1733 = vmatmul.mubr.bf16.gmra.mrb[0].mxu0 %v1060
          %v1734 = vpop.f32.mrb[0].mxu0
          %v1735 = vadd.f32 0.0, %v1734
          %v1736 = vpop.f32.mrb[0].mxu0
          %v1737 = vpop.f32.mrb[0].mxu0
          %v1738 = vadd.f32 0.0, %v1737
          %v1739 = vpop.f32.mrb[0].mxu0
          %1740 = vmatprep.mubr.bf16.mxu0 %v1069
          %1741 = vmatmul.mubr.bf16.gmra.mrb[0].mxu0 %v1068
          %v1742 = vpop.f32.mrb[0].mxu0
          %v1743 = vadd.f32 0.0, %v1742
          %v1744 = vpop.f32.mrb[0].mxu0
          %v1745 = vpop.f32.mrb[0].mxu0
          %v1746 = vadd.f32 0.0, %v1745
          %v1747 = vpop.f32.mrb[0].mxu0
          %1748 = vmatprep.mubr.bf16.mxu0 %v1077
          %1749 = vmatmul.mubr.bf16.gmra.mrb[0].mxu0 %v1076
          %v1750 = vpop.f32.mrb[0].mxu0
          %v1751 = vadd.f32 0.0, %v1750
          %v1752 = vpop.f32.mrb[0].mxu0
          %v1753 = vpop.f32.mrb[0].mxu0
          %v1754 = vadd.f32 0.0, %v1753
          %v1755 = vpop.f32.mrb[0].mxu0
          %1756 = vmatprep.mubr.bf16.mxu0 %v1085
          %1757 = vmatmul.mubr.bf16.gmra.mrb[0].mxu0 %v1084
          %v1758 = vpop.f32.mrb[0].mxu0
          %v1759 = vadd.f32 0.0, %v1758
          %v1760 = vpop.f32.mrb[0].mxu0
          %v1761 = vpop.f32.mrb[0].mxu0
          %v1762 = vadd.f32 0.0, %v1761
          %v1763 = vpop.f32.mrb[0].mxu0
          %1764 = vmatprep.mubr.bf16.mxu0 %v1093
          %1765 = vmatmul.mubr.bf16.gmra.mrb[0].mxu0 %v1092
          %v1766 = vpop.f32.mrb[0].mxu0
          %v1767 = vadd.f32 0.0, %v1766
          %v1768 = vpop.f32.mrb[0].mxu0
          %v1769 = vpop.f32.mrb[0].mxu0
          %v1770 = vadd.f32 0.0, %v1769
          %v1771 = vpop.f32.mrb[0].mxu0
          %1772 = vmatprep.mubr.bf16.mxu0 %v1101
          %1773 = vmatmul.mubr.bf16.gmra.mrb[0].mxu0 %v1100
          %v1774 = vpop.f32.mrb[0].mxu0
          %v1775 = vadd.f32 0.0, %v1774
          %v1776 = vpop.f32.mrb[0].mxu0
          %v1777 = vpop.f32.mrb[0].mxu0
          %v1778 = vadd.f32 0.0, %v1777
          %v1779 = vpop.f32.mrb[0].mxu0
          %1780 = vmatprep.mubr.bf16.mxu0 %v1109
          %1781 = vmatmul.mubr.bf16.gmra.mrb[0].mxu0 %v1108
          %v1782 = vpop.f32.mrb[0].mxu0
          %v1783 = vadd.f32 0.0, %v1782
          %v1784 = vpop.f32.mrb[0].mxu0
          %v1785 = vpop.f32.mrb[0].mxu0
          %v1786 = vadd.f32 0.0, %v1785
          %v1787 = vpop.f32.mrb[0].mxu0
          %1788 = vmatprep.mubr.bf16.mxu0 %v1117
          %1789 = vmatmul.mubr.bf16.gmra.mrb[0].mxu0 %v1116
          %v1790 = vpop.f32.mrb[0].mxu0
          %v1791 = vadd.f32 0.0, %v1790
          %v1792 = vpop.f32.mrb[0].mxu0
          %v1793 = vpop.f32.mrb[0].mxu0
          %v1794 = vadd.f32 0.0, %v1793
          %v1795 = vpop.f32.mrb[0].mxu0
          %1796 = vdwg.mxu0
          %1797 = vmatprep.subr.bf16.mxu0 0
          %1798 = vmatpush1.bf16.msra.mxu0 %v1524
          %1799 = vmatprep.subr.bf16.mxu0 0
          %1800 = vmatpush1.bf16.msra.mxu0 %v1525
          %1801 = vmatprep.subr.bf16.mxu0 0
          %1802 = vmatpush1.bf16.msra.mxu0 %v1526
          %1803 = vmatprep.subr.bf16.mxu0 0
          %1804 = vmatpush1.bf16.msra.mxu0 %v1527
          %1805 = vmatprep.subr.bf16.mxu0 0
          %1806 = vmatpush1.bf16.msra.mxu0 %v1528
          %1807 = vmatprep.subr.bf16.mxu0 0
          %1808 = vmatpush1.bf16.msra.mxu0 %v1529
          %1809 = vmatprep.subr.bf16.mxu0 0
          %1810 = vmatpush1.bf16.msra.mxu0 %v1530
          %1811 = vmatprep.subr.bf16.mxu0 0
          %1812 = vmatpush1.bf16.msra.mxu0 %v1531
          %1813 = vmatprep.subr.bf16.mxu0 0
          %1814 = vmatpush1.bf16.msra.mxu0 %v1532
          %1815 = vmatprep.subr.bf16.mxu0 0
          %1816 = vmatpush1.bf16.msra.mxu0 %v1533
          %1817 = vmatprep.subr.bf16.mxu0 0
          %1818 = vmatpush1.bf16.msra.mxu0 %v1534
          %1819 = vmatprep.subr.bf16.mxu0 0
          %1820 = vmatpush1.bf16.msra.mxu0 %v1535
          %1821 = vmatprep.subr.bf16.mxu0 0
          %1822 = vmatpush1.bf16.msra.mxu0 %v1536
          %1823 = vmatprep.subr.bf16.mxu0 0
          %1824 = vmatpush1.bf16.msra.mxu0 %v1537
          %1825 = vmatprep.subr.bf16.mxu0 0
          %1826 = vmatpush1.bf16.msra.mxu0 %v1538
          %1827 = vmatprep.subr.bf16.mxu0 0
          %1828 = vmatpush1.bf16.msra.mxu0 %v1539
          %1829 = vmatprep.mubr.bf16.mxu0 %v999
          %1830 = vmatmul.mubr.bf16.gmra.mrb[0].mxu0 %v998
          %v1831 = vpop.f32.mrb[0].mxu0
          %v1832 = vadd.f32 %v1671, %v1831
          %v1833 = vpop.f32.mrb[0].mxu0
          %v1834 = vpop.f32.mrb[0].mxu0
          %v1835 = vadd.f32 %v1674, %v1834
          %v1836 = vpop.f32.mrb[0].mxu0
          %1837 = vmatprep.mubr.bf16.mxu0 %v1007
          %1838 = vmatmul.mubr.bf16.gmra.mrb[0].mxu0 %v1006
          %v1839 = vpop.f32.mrb[0].mxu0
          %v1840 = vadd.f32 %v1679, %v1839
          %v1841 = vpop.f32.mrb[0].mxu0
          %v1842 = vpop.f32.mrb[0].mxu0
          %v1843 = vadd.f32 %v1682, %v1842
          %v1844 = vpop.f32.mrb[0].mxu0
          %1845 = vmatprep.mubr.bf16.mxu0 %v1015
          %1846 = vmatmul.mubr.bf16.gmra.mrb[0].mxu0 %v1014
          %v1847 = vpop.f32.mrb[0].mxu0
          %v1848 = vadd.f32 %v1687, %v1847
          %v1849 = vpop.f32.mrb[0].mxu0
          %v1850 = vpop.f32.mrb[0].mxu0
          %v1851 = vadd.f32 %v1690, %v1850
          %v1852 = vpop.f32.mrb[0].mxu0
          %1853 = vmatprep.mubr.bf16.mxu0 %v1023
          %1854 = vmatmul.mubr.bf16.gmra.mrb[0].mxu0 %v1022
          %v1855 = vpop.f32.mrb[0].mxu0
          %v1856 = vadd.f32 %v1695, %v1855
          %v1857 = vpop.f32.mrb[0].mxu0
          %v1858 = vpop.f32.mrb[0].mxu0
          %v1859 = vadd.f32 %v1698, %v1858
          %v1860 = vpop.f32.mrb[0].mxu0
          %1861 = vmatprep.mubr.bf16.mxu0 %v1031
          %1862 = vmatmul.mubr.bf16.gmra.mrb[0].mxu0 %v1030
          %v1863 = vpop.f32.mrb[0].mxu0
          %v1864 = vadd.f32 %v1703, %v1863
          %v1865 = vpop.f32.mrb[0].mxu0
          %v1866 = vpop.f32.mrb[0].mxu0
          %v1867 = vadd.f32 %v1706, %v1866
          %v1868 = vpop.f32.mrb[0].mxu0
          %1869 = vmatprep.mubr.bf16.mxu0 %v1039
          %1870 = vmatmul.mubr.bf16.gmra.mrb[0].mxu0 %v1038
          %v1871 = vpop.f32.mrb[0].mxu0
          %v1872 = vadd.f32 %v1711, %v1871
          %v1873 = vpop.f32.mrb[0].mxu0
          %v1874 = vpop.f32.mrb[0].mxu0
          %v1875 = vadd.f32 %v1714, %v1874
          %v1876 = vpop.f32.mrb[0].mxu0
          %1877 = vmatprep.mubr.bf16.mxu0 %v1047
          %1878 = vmatmul.mubr.bf16.gmra.mrb[0].mxu0 %v1046
          %v1879 = vpop.f32.mrb[0].mxu0
          %v1880 = vadd.f32 %v1719, %v1879
          %v1881 = vpop.f32.mrb[0].mxu0
          %v1882 = vpop.f32.mrb[0].mxu0
          %v1883 = vadd.f32 %v1722, %v1882
          %v1884 = vpop.f32.mrb[0].mxu0
          %1885 = vmatprep.mubr.bf16.mxu0 %v1055
          %1886 = vmatmul.mubr.bf16.gmra.mrb[0].mxu0 %v1054
          %v1887 = vpop.f32.mrb[0].mxu0
          %v1888 = vadd.f32 %v1727, %v1887
          %v1889 = vpop.f32.mrb[0].mxu0
          %v1890 = vpop.f32.mrb[0].mxu0
          %v1891 = vadd.f32 %v1730, %v1890
          %v1892 = vpop.f32.mrb[0].mxu0
          %1893 = vmatprep.mubr.bf16.mxu0 %v1063
          %1894 = vmatmul.mubr.bf16.gmra.mrb[0].mxu0 %v1062
          %v1895 = vpop.f32.mrb[0].mxu0
          %v1896 = vadd.f32 %v1735, %v1895
          %v1897 = vpop.f32.mrb[0].mxu0
          %v1898 = vpop.f32.mrb[0].mxu0
          %v1899 = vadd.f32 %v1738, %v1898
          %v1900 = vpop.f32.mrb[0].mxu0
          %1901 = vmatprep.mubr.bf16.mxu0 %v1071
          %1902 = vmatmul.mubr.bf16.gmra.mrb[0].mxu0 %v1070
          %v1903 = vpop.f32.mrb[0].mxu0
          %v1904 = vadd.f32 %v1743, %v1903
          %v1905 = vpop.f32.mrb[0].mxu0
          %v1906 = vpop.f32.mrb[0].mxu0
          %v1907 = vadd.f32 %v1746, %v1906
          %v1908 = vpop.f32.mrb[0].mxu0
          %1909 = vmatprep.mubr.bf16.mxu0 %v1079
          %1910 = vmatmul.mubr.bf16.gmra.mrb[0].mxu0 %v1078
          %v1911 = vpop.f32.mrb[0].mxu0
          %v1912 = vadd.f32 %v1751, %v1911
          %v1913 = vpop.f32.mrb[0].mxu0
          %v1914 = vpop.f32.mrb[0].mxu0
          %v1915 = vadd.f32 %v1754, %v1914
          %v1916 = vpop.f32.mrb[0].mxu0
          %1917 = vmatprep.mubr.bf16.mxu0 %v1087
          %1918 = vmatmul.mubr.bf16.gmra.mrb[0].mxu0 %v1086
          %v1919 = vpop.f32.mrb[0].mxu0
          %v1920 = vadd.f32 %v1759, %v1919
          %v1921 = vpop.f32.mrb[0].mxu0
          %v1922 = vpop.f32.mrb[0].mxu0
          %v1923 = vadd.f32 %v1762, %v1922
          %v1924 = vpop.f32.mrb[0].mxu0
          %1925 = vmatprep.mubr.bf16.mxu0 %v1095
          %1926 = vmatmul.mubr.bf16.gmra.mrb[0].mxu0 %v1094
          %v1927 = vpop.f32.mrb[0].mxu0
          %v1928 = vadd.f32 %v1767, %v1927
          %v1929 = vpop.f32.mrb[0].mxu0
          %v1930 = vpop.f32.mrb[0].mxu0
          %v1931 = vadd.f32 %v1770, %v1930
          %v1932 = vpop.f32.mrb[0].mxu0
          %1933 = vmatprep.mubr.bf16.mxu0 %v1103
          %1934 = vmatmul.mubr.bf16.gmra.mrb[0].mxu0 %v1102
          %v1935 = vpop.f32.mrb[0].mxu0
          %v1936 = vadd.f32 %v1775, %v1935
          %v1937 = vpop.f32.mrb[0].mxu0
          %v1938 = vpop.f32.mrb[0].mxu0
          %v1939 = vadd.f32 %v1778, %v1938
          %v1940 = vpop.f32.mrb[0].mxu0
          %1941 = vmatprep.mubr.bf16.mxu0 %v1111
          %1942 = vmatmul.mubr.bf16.gmra.mrb[0].mxu0 %v1110
          %v1943 = vpop.f32.mrb[0].mxu0
          %v1944 = vadd.f32 %v1783, %v1943
          %v1945 = vpop.f32.mrb[0].mxu0
          %v1946 = vpop.f32.mrb[0].mxu0
          %v1947 = vadd.f32 %v1786, %v1946
          %v1948 = vpop.f32.mrb[0].mxu0
          %1949 = vmatprep.mubr.bf16.mxu0 %v1119
          %1950 = vmatmul.mubr.bf16.gmra.mrb[0].mxu0 %v1118
          %v1951 = vpop.f32.mrb[0].mxu0
          %v1952 = vadd.f32 %v1791, %v1951
          %v1953 = vpop.f32.mrb[0].mxu0
          %v1954 = vpop.f32.mrb[0].mxu0
          %v1955 = vadd.f32 %v1794, %v1954
          %v1956 = vpop.f32.mrb[0].mxu0
          %1957 = vdwg.mxu0
          %1958 = vmatprep.subr.bf16.mxu0 0
          %1959 = vmatpush1.bf16.msra.mxu0 %v1540
          %1960 = vmatprep.subr.bf16.mxu0 0
          %1961 = vmatpush1.bf16.msra.mxu0 %v1541
          %1962 = vmatprep.subr.bf16.mxu0 0
          %1963 = vmatpush1.bf16.msra.mxu0 %v1542
          %1964 = vmatprep.subr.bf16.mxu0 0
          %1965 = vmatpush1.bf16.msra.mxu0 %v1543
          %1966 = vmatprep.subr.bf16.mxu0 0
          %1967 = vmatpush1.bf16.msra.mxu0 %v1544
          %1968 = vmatprep.subr.bf16.mxu0 0
          %1969 = vmatpush1.bf16.msra.mxu0 %v1545
          %1970 = vmatprep.subr.bf16.mxu0 0
          %1971 = vmatpush1.bf16.msra.mxu0 %v1546
          %1972 = vmatprep.subr.bf16.mxu0 0
          %1973 = vmatpush1.bf16.msra.mxu0 %v1547
          %1974 = vmatprep.subr.bf16.mxu0 0
          %1975 = vmatpush1.bf16.msra.mxu0 %v1548
          %1976 = vmatprep.subr.bf16.mxu0 0
          %1977 = vmatpush1.bf16.msra.mxu0 %v1549
          %1978 = vmatprep.subr.bf16.mxu0 0
          %1979 = vmatpush1.bf16.msra.mxu0 %v1550
          %1980 = vmatprep.subr.bf16.mxu0 0
          %1981 = vmatpush1.bf16.msra.mxu0 %v1551
          %1982 = vmatprep.subr.bf16.mxu0 0
          %1983 = vmatpush1.bf16.msra.mxu0 %v1552
          %1984 = vmatprep.subr.bf16.mxu0 0
          %1985 = vmatpush1.bf16.msra.mxu0 %v1553
          %1986 = vmatprep.subr.bf16.mxu0 0
          %1987 = vmatpush1.bf16.msra.mxu0 %v1554
          %1988 = vmatprep.subr.bf16.mxu0 0
          %1989 = vmatpush1.bf16.msra.mxu0 %v1555
          %1990 = vmatprep.mubr.bf16.mxu0 %v1001
          %1991 = vmatmul.mubr.bf16.gmra.mrb[0].mxu0 %v1000
          %v1992 = vpop.f32.mrb[0].mxu0
          %v1993 = vadd.f32 %v1832, %v1992
          %v1994 = vpop.f32.mrb[0].mxu0
          %v1995 = vpop.f32.mrb[0].mxu0
          %v1996 = vadd.f32 %v1835, %v1995
          %v1997 = vpop.f32.mrb[0].mxu0
          %1998 = vmatprep.mubr.bf16.mxu0 %v1009
          %1999 = vmatmul.mubr.bf16.gmra.mrb[0].mxu0 %v1008
          %v2000 = vpop.f32.mrb[0].mxu0
          %v2001 = vadd.f32 %v1840, %v2000
          %v2002 = vpop.f32.mrb[0].mxu0
          %v2003 = vpop.f32.mrb[0].mxu0
          %v2004 = vadd.f32 %v1843, %v2003
          %v2005 = vpop.f32.mrb[0].mxu0
          %2006 = vmatprep.mubr.bf16.mxu0 %v1017
          %2007 = vmatmul.mubr.bf16.gmra.mrb[0].mxu0 %v1016
          %v2008 = vpop.f32.mrb[0].mxu0
          %v2009 = vadd.f32 %v1848, %v2008
          %v2010 = vpop.f32.mrb[0].mxu0
          %v2011 = vpop.f32.mrb[0].mxu0
          %v2012 = vadd.f32 %v1851, %v2011
          %v2013 = vpop.f32.mrb[0].mxu0
          %2014 = vmatprep.mubr.bf16.mxu0 %v1025
          %2015 = vmatmul.mubr.bf16.gmra.mrb[0].mxu0 %v1024
          %v2016 = vpop.f32.mrb[0].mxu0
          %v2017 = vadd.f32 %v1856, %v2016
          %v2018 = vpop.f32.mrb[0].mxu0
          %v2019 = vpop.f32.mrb[0].mxu0
          %v2020 = vadd.f32 %v1859, %v2019
          %v2021 = vpop.f32.mrb[0].mxu0
          %2022 = vmatprep.mubr.bf16.mxu0 %v1033
          %2023 = vmatmul.mubr.bf16.gmra.mrb[0].mxu0 %v1032
          %v2024 = vpop.f32.mrb[0].mxu0
          %v2025 = vadd.f32 %v1864, %v2024
          %v2026 = vpop.f32.mrb[0].mxu0
          %v2027 = vpop.f32.mrb[0].mxu0
          %v2028 = vadd.f32 %v1867, %v2027
          %v2029 = vpop.f32.mrb[0].mxu0
          %2030 = vmatprep.mubr.bf16.mxu0 %v1041
          %2031 = vmatmul.mubr.bf16.gmra.mrb[0].mxu0 %v1040
          %v2032 = vpop.f32.mrb[0].mxu0
          %v2033 = vadd.f32 %v1872, %v2032
          %v2034 = vpop.f32.mrb[0].mxu0
          %v2035 = vpop.f32.mrb[0].mxu0
          %v2036 = vadd.f32 %v1875, %v2035
          %v2037 = vpop.f32.mrb[0].mxu0
          %2038 = vmatprep.mubr.bf16.mxu0 %v1049
          %2039 = vmatmul.mubr.bf16.gmra.mrb[0].mxu0 %v1048
          %v2040 = vpop.f32.mrb[0].mxu0
          %v2041 = vadd.f32 %v1880, %v2040
          %v2042 = vpop.f32.mrb[0].mxu0
          %v2043 = vpop.f32.mrb[0].mxu0
          %v2044 = vadd.f32 %v1883, %v2043
          %v2045 = vpop.f32.mrb[0].mxu0
          %2046 = vmatprep.mubr.bf16.mxu0 %v1057
          %2047 = vmatmul.mubr.bf16.gmra.mrb[0].mxu0 %v1056
          %v2048 = vpop.f32.mrb[0].mxu0
          %v2049 = vadd.f32 %v1888, %v2048
          %v2050 = vpop.f32.mrb[0].mxu0
          %v2051 = vpop.f32.mrb[0].mxu0
          %v2052 = vadd.f32 %v1891, %v2051
          %v2053 = vpop.f32.mrb[0].mxu0
          %2054 = vmatprep.mubr.bf16.mxu0 %v1065
          %2055 = vmatmul.mubr.bf16.gmra.mrb[0].mxu0 %v1064
          %v2056 = vpop.f32.mrb[0].mxu0
          %v2057 = vadd.f32 %v1896, %v2056
          %v2058 = vpop.f32.mrb[0].mxu0
          %v2059 = vpop.f32.mrb[0].mxu0
          %v2060 = vadd.f32 %v1899, %v2059
          %v2061 = vpop.f32.mrb[0].mxu0
          %2062 = vmatprep.mubr.bf16.mxu0 %v1073
          %2063 = vmatmul.mubr.bf16.gmra.mrb[0].mxu0 %v1072
          %v2064 = vpop.f32.mrb[0].mxu0
          %v2065 = vadd.f32 %v1904, %v2064
          %v2066 = vpop.f32.mrb[0].mxu0
          %v2067 = vpop.f32.mrb[0].mxu0
          %v2068 = vadd.f32 %v1907, %v2067
          %v2069 = vpop.f32.mrb[0].mxu0
          %2070 = vmatprep.mubr.bf16.mxu0 %v1081
          %2071 = vmatmul.mubr.bf16.gmra.mrb[0].mxu0 %v1080
          %v2072 = vpop.f32.mrb[0].mxu0
          %v2073 = vadd.f32 %v1912, %v2072
          %v2074 = vpop.f32.mrb[0].mxu0
          %v2075 = vpop.f32.mrb[0].mxu0
          %v2076 = vadd.f32 %v1915, %v2075
          %v2077 = vpop.f32.mrb[0].mxu0
          %2078 = vmatprep.mubr.bf16.mxu0 %v1089
          %2079 = vmatmul.mubr.bf16.gmra.mrb[0].mxu0 %v1088
          %v2080 = vpop.f32.mrb[0].mxu0
          %v2081 = vadd.f32 %v1920, %v2080
          %v2082 = vpop.f32.mrb[0].mxu0
          %v2083 = vpop.f32.mrb[0].mxu0
          %v2084 = vadd.f32 %v1923, %v2083
          %v2085 = vpop.f32.mrb[0].mxu0
          %2086 = vmatprep.mubr.bf16.mxu0 %v1097
          %2087 = vmatmul.mubr.bf16.gmra.mrb[0].mxu0 %v1096
          %v2088 = vpop.f32.mrb[0].mxu0
          %v2089 = vadd.f32 %v1928, %v2088
          %v2090 = vpop.f32.mrb[0].mxu0
          %v2091 = vpop.f32.mrb[0].mxu0
          %v2092 = vadd.f32 %v1931, %v2091
          %v2093 = vpop.f32.mrb[0].mxu0
          %2094 = vmatprep.mubr.bf16.mxu0 %v1105
          %2095 = vmatmul.mubr.bf16.gmra.mrb[0].mxu0 %v1104
          %v2096 = vpop.f32.mrb[0].mxu0
          %v2097 = vadd.f32 %v1936, %v2096
          %v2098 = vpop.f32.mrb[0].mxu0
          %v2099 = vpop.f32.mrb[0].mxu0
          %v2100 = vadd.f32 %v1939, %v2099
          %v2101 = vpop.f32.mrb[0].mxu0
          %2102 = vmatprep.mubr.bf16.mxu0 %v1113
          %2103 = vmatmul.mubr.bf16.gmra.mrb[0].mxu0 %v1112
          %v2104 = vpop.f32.mrb[0].mxu0
          %v2105 = vadd.f32 %v1944, %v2104
          %v2106 = vpop.f32.mrb[0].mxu0
          %v2107 = vpop.f32.mrb[0].mxu0
          %v2108 = vadd.f32 %v1947, %v2107
          %v2109 = vpop.f32.mrb[0].mxu0
          %2110 = vmatprep.mubr.bf16.mxu0 %v1121
          %2111 = vmatmul.mubr.bf16.gmra.mrb[0].mxu0 %v1120
          %v2112 = vpop.f32.mrb[0].mxu0
          %v2113 = vadd.f32 %v1952, %v2112
          %v2114 = vpop.f32.mrb[0].mxu0
          %v2115 = vpop.f32.mrb[0].mxu0
          %v2116 = vadd.f32 %v1955, %v2115
          %v2117 = vpop.f32.mrb[0].mxu0
          %2118 = vdwg.mxu0
          %2119 = vmatprep.subr.bf16.mxu0 0
          %2120 = vmatpush1.bf16.msra.mxu0 %v1556
          %2121 = vmatprep.subr.bf16.mxu0 0
          %2122 = vmatpush1.bf16.msra.mxu0 %v1557
          %2123 = vmatprep.subr.bf16.mxu0 0
          %2124 = vmatpush1.bf16.msra.mxu0 %v1558
          %2125 = vmatprep.subr.bf16.mxu0 0
          %2126 = vmatpush1.bf16.msra.mxu0 %v1559
          %2127 = vmatprep.subr.bf16.mxu0 0
          %2128 = vmatpush1.bf16.msra.mxu0 %v1560
          %2129 = vmatprep.subr.bf16.mxu0 0
          %2130 = vmatpush1.bf16.msra.mxu0 %v1561
          %2131 = vmatprep.subr.bf16.mxu0 0
          %2132 = vmatpush1.bf16.msra.mxu0 %v1562
          %2133 = vmatprep.subr.bf16.mxu0 0
          %2134 = vmatpush1.bf16.msra.mxu0 %v1563
          %2135 = vmatprep.subr.bf16.mxu0 0
          %2136 = vmatpush1.bf16.msra.mxu0 %v1564
          %2137 = vmatprep.subr.bf16.mxu0 0
          %2138 = vmatpush1.bf16.msra.mxu0 %v1565
          %2139 = vmatprep.subr.bf16.mxu0 0
          %2140 = vmatpush1.bf16.msra.mxu0 %v1566
          %2141 = vmatprep.subr.bf16.mxu0 0
          %2142 = vmatpush1.bf16.msra.mxu0 %v1567
          %2143 = vmatprep.subr.bf16.mxu0 0
          %2144 = vmatpush1.bf16.msra.mxu0 %v1568
          %2145 = vmatprep.subr.bf16.mxu0 0
          %2146 = vmatpush1.bf16.msra.mxu0 %v1569
          %2147 = vmatprep.subr.bf16.mxu0 0
          %2148 = vmatpush1.bf16.msra.mxu0 %v1570
          %2149 = vmatprep.subr.bf16.mxu0 0
          %2150 = vmatpush1.bf16.msra.mxu0 %v1571
          %2151 = vmatprep.mubr.bf16.mxu0 %v1003
          %2152 = vmatmul.mubr.bf16.gmra.mrb[0].mxu0 %v1002
          %v2153 = vpop.f32.mrb[0].mxu0
          %v2154 = vadd.f32 %v1993, %v2153
          %v2155 = vpop.f32.mrb[0].mxu0
          %v2156 = vpop.f32.mrb[0].mxu0
          %v2157 = vadd.f32 %v1996, %v2156
          %v2158 = vpop.f32.mrb[0].mxu0
          %2159 = vmatprep.mubr.bf16.mxu0 %v1011
          %2160 = vmatmul.mubr.bf16.gmra.mrb[0].mxu0 %v1010
          %v2161 = vpop.f32.mrb[0].mxu0
          %v2162 = vadd.f32 %v2001, %v2161
          %v2163 = vpop.f32.mrb[0].mxu0
          %v2164 = vpop.f32.mrb[0].mxu0
          %v2165 = vadd.f32 %v2004, %v2164
          %v2166 = vpop.f32.mrb[0].mxu0
          %2167 = vmatprep.mubr.bf16.mxu0 %v1019
          %2168 = vmatmul.mubr.bf16.gmra.mrb[0].mxu0 %v1018
          %v2169 = vpop.f32.mrb[0].mxu0
          %v2170 = vadd.f32 %v2009, %v2169
          %v2171 = vpop.f32.mrb[0].mxu0
          %v2172 = vpop.f32.mrb[0].mxu0
          %v2173 = vadd.f32 %v2012, %v2172
          %v2174 = vpop.f32.mrb[0].mxu0
          %2175 = vmatprep.mubr.bf16.mxu0 %v1027
          %2176 = vmatmul.mubr.bf16.gmra.mrb[0].mxu0 %v1026
          %v2177 = vpop.f32.mrb[0].mxu0
          %v2178 = vadd.f32 %v2017, %v2177
          %v2179 = vpop.f32.mrb[0].mxu0
          %v2180 = vpop.f32.mrb[0].mxu0
          %v2181 = vadd.f32 %v2020, %v2180
          %v2182 = vpop.f32.mrb[0].mxu0
          %2183 = vmatprep.mubr.bf16.mxu0 %v1035
          %2184 = vmatmul.mubr.bf16.gmra.mrb[0].mxu0 %v1034
          %v2185 = vpop.f32.mrb[0].mxu0
          %v2186 = vadd.f32 %v2025, %v2185
          %v2187 = vpop.f32.mrb[0].mxu0
          %v2188 = vpop.f32.mrb[0].mxu0
          %v2189 = vadd.f32 %v2028, %v2188
          %v2190 = vpop.f32.mrb[0].mxu0
          %2191 = vmatprep.mubr.bf16.mxu0 %v1043
          %2192 = vmatmul.mubr.bf16.gmra.mrb[0].mxu0 %v1042
          %v2193 = vpop.f32.mrb[0].mxu0
          %v2194 = vadd.f32 %v2033, %v2193
          %v2195 = vpop.f32.mrb[0].mxu0
          %v2196 = vpop.f32.mrb[0].mxu0
          %v2197 = vadd.f32 %v2036, %v2196
          %v2198 = vpop.f32.mrb[0].mxu0
          %2199 = vmatprep.mubr.bf16.mxu0 %v1051
          %2200 = vmatmul.mubr.bf16.gmra.mrb[0].mxu0 %v1050
          %v2201 = vpop.f32.mrb[0].mxu0
          %v2202 = vadd.f32 %v2041, %v2201
          %v2203 = vpop.f32.mrb[0].mxu0
          %v2204 = vpop.f32.mrb[0].mxu0
          %v2205 = vadd.f32 %v2044, %v2204
          %v2206 = vpop.f32.mrb[0].mxu0
          %2207 = vmatprep.mubr.bf16.mxu0 %v1059
          %2208 = vmatmul.mubr.bf16.gmra.mrb[0].mxu0 %v1058
          %v2209 = vpop.f32.mrb[0].mxu0
          %v2210 = vadd.f32 %v2049, %v2209
          %v2211 = vpop.f32.mrb[0].mxu0
          %v2212 = vpop.f32.mrb[0].mxu0
          %v2213 = vadd.f32 %v2052, %v2212
          %v2214 = vpop.f32.mrb[0].mxu0
          %2215 = vmatprep.mubr.bf16.mxu0 %v1067
          %2216 = vmatmul.mubr.bf16.gmra.mrb[0].mxu0 %v1066
          %v2217 = vpop.f32.mrb[0].mxu0
          %v2218 = vadd.f32 %v2057, %v2217
          %v2219 = vpop.f32.mrb[0].mxu0
          %v2220 = vpop.f32.mrb[0].mxu0
          %v2221 = vadd.f32 %v2060, %v2220
          %v2222 = vpop.f32.mrb[0].mxu0
          %2223 = vmatprep.mubr.bf16.mxu0 %v1075
          %2224 = vmatmul.mubr.bf16.gmra.mrb[0].mxu0 %v1074
          %v2225 = vpop.f32.mrb[0].mxu0
          %v2226 = vadd.f32 %v2065, %v2225
          %v2227 = vpop.f32.mrb[0].mxu0
          %v2228 = vpop.f32.mrb[0].mxu0
          %v2229 = vadd.f32 %v2068, %v2228
          %v2230 = vpop.f32.mrb[0].mxu0
          %2231 = vmatprep.mubr.bf16.mxu0 %v1083
          %2232 = vmatmul.mubr.bf16.gmra.mrb[0].mxu0 %v1082
          %v2233 = vpop.f32.mrb[0].mxu0
          %v2234 = vadd.f32 %v2073, %v2233
          %v2235 = vpop.f32.mrb[0].mxu0
          %v2236 = vpop.f32.mrb[0].mxu0
          %v2237 = vadd.f32 %v2076, %v2236
          %v2238 = vpop.f32.mrb[0].mxu0
          %2239 = vmatprep.mubr.bf16.mxu0 %v1091
          %2240 = vmatmul.mubr.bf16.gmra.mrb[0].mxu0 %v1090
          %v2241 = vpop.f32.mrb[0].mxu0
          %v2242 = vadd.f32 %v2081, %v2241
          %v2243 = vpop.f32.mrb[0].mxu0
          %v2244 = vpop.f32.mrb[0].mxu0
          %v2245 = vadd.f32 %v2084, %v2244
          %v2246 = vpop.f32.mrb[0].mxu0
          %2247 = vmatprep.mubr.bf16.mxu0 %v1099
          %2248 = vmatmul.mubr.bf16.gmra.mrb[0].mxu0 %v1098
          %v2249 = vpop.f32.mrb[0].mxu0
          %v2250 = vadd.f32 %v2089, %v2249
          %v2251 = vpop.f32.mrb[0].mxu0
          %v2252 = vpop.f32.mrb[0].mxu0
          %v2253 = vadd.f32 %v2092, %v2252
          %v2254 = vpop.f32.mrb[0].mxu0
          %2255 = vmatprep.mubr.bf16.mxu0 %v1107
          %2256 = vmatmul.mubr.bf16.gmra.mrb[0].mxu0 %v1106
          %v2257 = vpop.f32.mrb[0].mxu0
          %v2258 = vadd.f32 %v2097, %v2257
          %v2259 = vpop.f32.mrb[0].mxu0
          %v2260 = vpop.f32.mrb[0].mxu0
          %v2261 = vadd.f32 %v2100, %v2260
          %v2262 = vpop.f32.mrb[0].mxu0
          %2263 = vmatprep.mubr.bf16.mxu0 %v1115
          %2264 = vmatmul.mubr.bf16.gmra.mrb[0].mxu0 %v1114
          %v2265 = vpop.f32.mrb[0].mxu0
          %v2266 = vadd.f32 %v2105, %v2265
          %v2267 = vpop.f32.mrb[0].mxu0
          %v2268 = vpop.f32.mrb[0].mxu0
          %v2269 = vadd.f32 %v2108, %v2268
          %v2270 = vpop.f32.mrb[0].mxu0
          %2271 = vmatprep.mubr.bf16.mxu0 %v1123
          %2272 = vmatmul.mubr.bf16.gmra.mrb[0].mxu0 %v1122
          %v2273 = vpop.f32.mrb[0].mxu0
          %v2274 = vadd.f32 %v2113, %v2273
          %v2275 = vpop.f32.mrb[0].mxu0
          %v2276 = vpop.f32.mrb[0].mxu0
          %v2277 = vadd.f32 %v2116, %v2276
          %v2278 = vpop.f32.mrb[0].mxu0
          %2279 = vdwg.mxu0
          %v2280 = vadd.f32 %v452, %v2154
          %v2281 = vadd.f32 %v453, %v2157
          %v2282 = vadd.f32 %v454, %v2162
          %v2283 = vadd.f32 %v455, %v2165
          %v2284 = vadd.f32 %v456, %v2170
          %v2285 = vadd.f32 %v457, %v2173
          %v2286 = vadd.f32 %v458, %v2178
          %v2287 = vadd.f32 %v459, %v2181
          %v2288 = vadd.f32 %v460, %v2186
          %v2289 = vadd.f32 %v461, %v2189
          %v2290 = vadd.f32 %v462, %v2194
          %v2291 = vadd.f32 %v463, %v2197
          %v2292 = vadd.f32 %v464, %v2202
          %v2293 = vadd.f32 %v465, %v2205
          %v2294 = vadd.f32 %v466, %v2210
          %v2295 = vadd.f32 %v467, %v2213
          %v2296 = vadd.f32 %v468, %v2218
          %v2297 = vadd.f32 %v469, %v2221
          %v2298 = vadd.f32 %v470, %v2226
          %v2299 = vadd.f32 %v471, %v2229
          %v2300 = vadd.f32 %v472, %v2234
          %v2301 = vadd.f32 %v473, %v2237
          %v2302 = vadd.f32 %v474, %v2242
          %v2303 = vadd.f32 %v475, %v2245
          %v2304 = vadd.f32 %v476, %v2250
          %v2305 = vadd.f32 %v477, %v2253
          %v2306 = vadd.f32 %v478, %v2258
          %v2307 = vadd.f32 %v479, %v2261
          %v2308 = vadd.f32 %v480, %v2266
          %v2309 = vadd.f32 %v481, %v2269
          %v2310 = vadd.f32 %v482, %v2274
          %v2311 = vadd.f32 %v483, %v2277
          %2312 = vst [vmem:[#allocation2] sm:$0xff] %v2280
          %2313 = vst [vmem:[#allocation2 + $0x8] sm:$0xff] %v2281
          %2314 = vst [vmem:[#allocation2 + $0x10] sm:$0xff] %v2282
          %2315 = vst [vmem:[#allocation2 + $0x18] sm:$0xff] %v2283
          %2316 = vst [vmem:[#allocation2 + $0x20] sm:$0xff] %v2284
          %2317 = vst [vmem:[#allocation2 + $0x28] sm:$0xff] %v2285
          %2318 = vst [vmem:[#allocation2 + $0x30] sm:$0xff] %v2286
          %2319 = vst [vmem:[#allocation2 + $0x38] sm:$0xff] %v2287
          %2320 = vst [vmem:[#allocation2 + $0x40] sm:$0xff] %v2288
          %2321 = vst [vmem:[#allocation2 + $0x48] sm:$0xff] %v2289
          %2322 = vst [vmem:[#allocation2 + $0x50] sm:$0xff] %v2290
          %2323 = vst [vmem:[#allocation2 + $0x58] sm:$0xff] %v2291
          %2324 = vst [vmem:[#allocation2 + $0x60] sm:$0xff] %v2292
          %2325 = vst [vmem:[#allocation2 + $0x68] sm:$0xff] %v2293
          %2326 = vst [vmem:[#allocation2 + $0x70] sm:$0xff] %v2294
          %2327 = vst [vmem:[#allocation2 + $0x78] sm:$0xff] %v2295
          %2328 = vst [vmem:[#allocation2 + $0x80] sm:$0xff] %v2296
          %2329 = vst [vmem:[#allocation2 + $0x88] sm:$0xff] %v2297
          %2330 = vst [vmem:[#allocation2 + $0x90] sm:$0xff] %v2298
          %2331 = vst [vmem:[#allocation2 + $0x98] sm:$0xff] %v2299
          %2332 = vst [vmem:[#allocation2 + $0xa0] sm:$0xff] %v2300
          %2333 = vst [vmem:[#allocation2 + $0xa8] sm:$0xff] %v2301
          %2334 = vst [vmem:[#allocation2 + $0xb0] sm:$0xff] %v2302
          %2335 = vst [vmem:[#allocation2 + $0xb8] sm:$0xff] %v2303
          %2336 = vst [vmem:[#allocation2 + $0xc0] sm:$0xff] %v2304
          %2337 = vst [vmem:[#allocation2 + $0xc8] sm:$0xff] %v2305
          %2338 = vst [vmem:[#allocation2 + $0xd0] sm:$0xff] %v2306
          %2339 = vst [vmem:[#allocation2 + $0xd8] sm:$0xff] %v2307
          %2340 = vst [vmem:[#allocation2 + $0xe0] sm:$0xff] %v2308
          %2341 = vst [vmem:[#allocation2 + $0xe8] sm:$0xff] %v2309
          %2342 = vst [vmem:[#allocation2 + $0xf0] sm:$0xff] %v2310
          %2343 = vst [vmem:[#allocation2 + $0xf8] sm:$0xff] %v2311
        $region40: #{gcn_forward.5} parent=31 // pred_fallthru
          _
        // Predicated region
        $region41: #{gcn_forward.5} parent=31 // pred_check
          %p2344 = pneg %p272
        $region42: #{gcn_forward.5} parent=31 // pred_check_branch
          %2346 = sbr.rel (%p2344) target = $region44
        $region43: #{gcn_forward.5} parent=31 // pred_region
          %v2347 = vld [vmem:[#allocation2] sm:$0xff]
          %v2348 = vld [vmem:[#allocation2 + $0x8] sm:$0xff]
          %v2349 = vld [vmem:[#allocation2 + $0x10] sm:$0xff]
          %v2350 = vld [vmem:[#allocation2 + $0x18] sm:$0xff]
          %v2351 = vld [vmem:[#allocation2 + $0x20] sm:$0xff]
          %v2352 = vld [vmem:[#allocation2 + $0x28] sm:$0xff]
          %v2353 = vld [vmem:[#allocation2 + $0x30] sm:$0xff]
          %v2354 = vld [vmem:[#allocation2 + $0x38] sm:$0xff]
          %v2355 = vld [vmem:[#allocation2 + $0x40] sm:$0xff]
          %v2356 = vld [vmem:[#allocation2 + $0x48] sm:$0xff]
          %v2357 = vld [vmem:[#allocation2 + $0x50] sm:$0xff]
          %v2358 = vld [vmem:[#allocation2 + $0x58] sm:$0xff]
          %v2359 = vld [vmem:[#allocation2 + $0x60] sm:$0xff]
          %v2360 = vld [vmem:[#allocation2 + $0x68] sm:$0xff]
          %v2361 = vld [vmem:[#allocation2 + $0x70] sm:$0xff]
          %v2362 = vld [vmem:[#allocation2 + $0x78] sm:$0xff]
          %v2363 = vld [vmem:[#allocation2 + $0x80] sm:$0xff]
          %v2364 = vld [vmem:[#allocation2 + $0x88] sm:$0xff]
          %v2365 = vld [vmem:[#allocation2 + $0x90] sm:$0xff]
          %v2366 = vld [vmem:[#allocation2 + $0x98] sm:$0xff]
          %v2367 = vld [vmem:[#allocation2 + $0xa0] sm:$0xff]
          %v2368 = vld [vmem:[#allocation2 + $0xa8] sm:$0xff]
          %v2369 = vld [vmem:[#allocation2 + $0xb0] sm:$0xff]
          %v2370 = vld [vmem:[#allocation2 + $0xb8] sm:$0xff]
          %v2371 = vld [vmem:[#allocation2 + $0xc0] sm:$0xff]
          %v2372 = vld [vmem:[#allocation2 + $0xc8] sm:$0xff]
          %v2373 = vld [vmem:[#allocation2 + $0xd0] sm:$0xff]
          %v2374 = vld [vmem:[#allocation2 + $0xd8] sm:$0xff]
          %v2375 = vld [vmem:[#allocation2 + $0xe0] sm:$0xff]
          %v2376 = vld [vmem:[#allocation2 + $0xe8] sm:$0xff]
          %v2377 = vld [vmem:[#allocation2 + $0xf0] sm:$0xff]
          %v2378 = vld [vmem:[#allocation2 + $0xf8] sm:$0xff]
          %v2379 = vld [vmem:[%s4] sm:$0x1]
          %v2381 = vlaneseq
          %v2382 = vshrl.u32 %v2381, 7
          %v2383 = vsub.s32 0, %v2382
          %v2384 = vrot.slane %v2379, %v2383
          %v2386 = vadd.f32 %v2347, %v2384
          %v2387 = vadd.f32 %v2348, %v2384
          %v2388 = vadd.f32 %v2349, %v2384
          %v2389 = vadd.f32 %v2350, %v2384
          %v2390 = vadd.f32 %v2351, %v2384
          %v2391 = vadd.f32 %v2352, %v2384
          %v2392 = vadd.f32 %v2353, %v2384
          %v2393 = vadd.f32 %v2354, %v2384
          %v2394 = vadd.f32 %v2355, %v2384
          %v2395 = vadd.f32 %v2356, %v2384
          %v2396 = vadd.f32 %v2357, %v2384
          %v2397 = vadd.f32 %v2358, %v2384
          %v2398 = vadd.f32 %v2359, %v2384
          %v2399 = vadd.f32 %v2360, %v2384
          %v2400 = vadd.f32 %v2361, %v2384
          %v2401 = vadd.f32 %v2362, %v2384
          %v2402 = vadd.f32 %v2363, %v2384
          %v2403 = vadd.f32 %v2364, %v2384
          %v2404 = vadd.f32 %v2365, %v2384
          %v2405 = vadd.f32 %v2366, %v2384
          %v2406 = vadd.f32 %v2367, %v2384
          %v2407 = vadd.f32 %v2368, %v2384
          %v2408 = vadd.f32 %v2369, %v2384
          %v2409 = vadd.f32 %v2370, %v2384
          %v2410 = vadd.f32 %v2371, %v2384
          %v2411 = vadd.f32 %v2372, %v2384
          %v2412 = vadd.f32 %v2373, %v2384
          %v2413 = vadd.f32 %v2374, %v2384
          %v2414 = vadd.f32 %v2375, %v2384
          %v2415 = vadd.f32 %v2376, %v2384
          %v2416 = vadd.f32 %v2377, %v2384
          %v2417 = vadd.f32 %v2378, %v2384
          %v2418 = vlaneseq
          %v2419 = vand.u32 %v2418, 127
          %vm2420 = vcmp.lt.s32.totalorder %v2419, 8
          %v2421 = vsel %vm2420, %v2386, -inf
          %v2422 = vsel %vm2420, %v2387, -inf
          %v2423 = vsel %vm2420, %v2388, -inf
          %v2424 = vsel %vm2420, %v2389, -inf
          %v2425 = vsel %vm2420, %v2390, -inf
          %v2426 = vsel %vm2420, %v2391, -inf
          %v2427 = vsel %vm2420, %v2392, -inf
          %v2428 = vsel %vm2420, %v2393, -inf
          %v2429 = vsel %vm2420, %v2394, -inf
          %v2430 = vsel %vm2420, %v2395, -inf
          %v2431 = vsel %vm2420, %v2396, -inf
          %v2432 = vsel %vm2420, %v2397, -inf
          %v2433 = vsel %vm2420, %v2398, -inf
          %v2434 = vsel %vm2420, %v2399, -inf
          %v2435 = vsel %vm2420, %v2400, -inf
          %v2436 = vsel %vm2420, %v2401, -inf
          %v2437 = vsel %vm2420, %v2402, -inf
          %v2438 = vsel %vm2420, %v2403, -inf
          %v2439 = vsel %vm2420, %v2404, -inf
          %v2440 = vsel %vm2420, %v2405, -inf
          %v2441 = vsel %vm2420, %v2406, -inf
          %v2442 = vsel %vm2420, %v2407, -inf
          %v2443 = vsel %vm2420, %v2408, -inf
          %v2444 = vsel %vm2420, %v2409, -inf
          %v2445 = vsel %vm2420, %v2410, -inf
          %v2446 = vsel %vm2420, %v2411, -inf
          %v2447 = vsel %vm2420, %v2412, -inf
          %v2448 = vsel %vm2420, %v2413, -inf
          %v2449 = vsel %vm2420, %v2414, -inf
          %v2450 = vsel %vm2420, %v2415, -inf
          %v2451 = vsel %vm2420, %v2416, -inf
          %v2452 = vsel %vm2420, %v2417, -inf
          %2453 = vmax.xlane.f32.xlu0 %v2421
          %v2454 = vpop.xlane.xlu0 %2453
          %2455 = vmax.xlane.f32.xlu0 %v2422
          %v2456 = vpop.xlane.xlu0 %2455
          %2457 = vmax.xlane.f32.xlu0 %v2423
          %v2458 = vpop.xlane.xlu0 %2457
          %2459 = vmax.xlane.f32.xlu0 %v2424
          %v2460 = vpop.xlane.xlu0 %2459
          %2461 = vmax.xlane.f32.xlu0 %v2425
          %v2462 = vpop.xlane.xlu0 %2461
          %2463 = vmax.xlane.f32.xlu0 %v2426
          %v2464 = vpop.xlane.xlu0 %2463
          %2465 = vmax.xlane.f32.xlu0 %v2427
          %v2466 = vpop.xlane.xlu0 %2465
          %2467 = vmax.xlane.f32.xlu0 %v2428
          %v2468 = vpop.xlane.xlu0 %2467
          %2469 = vmax.xlane.f32.xlu0 %v2429
          %v2470 = vpop.xlane.xlu0 %2469
          %2471 = vmax.xlane.f32.xlu0 %v2430
          %v2472 = vpop.xlane.xlu0 %2471
          %2473 = vmax.xlane.f32.xlu0 %v2431
          %v2474 = vpop.xlane.xlu0 %2473
          %2475 = vmax.xlane.f32.xlu0 %v2432
          %v2476 = vpop.xlane.xlu0 %2475
          %2477 = vmax.xlane.f32.xlu0 %v2433
          %v2478 = vpop.xlane.xlu0 %2477
          %2479 = vmax.xlane.f32.xlu0 %v2434
          %v2480 = vpop.xlane.xlu0 %2479
          %2481 = vmax.xlane.f32.xlu0 %v2435
          %v2482 = vpop.xlane.xlu0 %2481
          %2483 = vmax.xlane.f32.xlu0 %v2436
          %v2484 = vpop.xlane.xlu0 %2483
          %2485 = vmax.xlane.f32.xlu0 %v2437
          %v2486 = vpop.xlane.xlu0 %2485
          %2487 = vmax.xlane.f32.xlu0 %v2438
          %v2488 = vpop.xlane.xlu0 %2487
          %2489 = vmax.xlane.f32.xlu0 %v2439
          %v2490 = vpop.xlane.xlu0 %2489
          %2491 = vmax.xlane.f32.xlu0 %v2440
          %v2492 = vpop.xlane.xlu0 %2491
          %2493 = vmax.xlane.f32.xlu0 %v2441
          %v2494 = vpop.xlane.xlu0 %2493
          %2495 = vmax.xlane.f32.xlu0 %v2442
          %v2496 = vpop.xlane.xlu0 %2495
          %2497 = vmax.xlane.f32.xlu0 %v2443
          %v2498 = vpop.xlane.xlu0 %2497
          %2499 = vmax.xlane.f32.xlu0 %v2444
          %v2500 = vpop.xlane.xlu0 %2499
          %2501 = vmax.xlane.f32.xlu0 %v2445
          %v2502 = vpop.xlane.xlu0 %2501
          %2503 = vmax.xlane.f32.xlu0 %v2446
          %v2504 = vpop.xlane.xlu0 %2503
          %2505 = vmax.xlane.f32.xlu0 %v2447
          %v2506 = vpop.xlane.xlu0 %2505
          %2507 = vmax.xlane.f32.xlu0 %v2448
          %v2508 = vpop.xlane.xlu0 %2507
          %2509 = vmax.xlane.f32.xlu0 %v2449
          %v2510 = vpop.xlane.xlu0 %2509
          %2511 = vmax.xlane.f32.xlu0 %v2450
          %v2512 = vpop.xlane.xlu0 %2511
          %2513 = vmax.xlane.f32.xlu0 %v2451
          %v2514 = vpop.xlane.xlu0 %2513
          %2515 = vmax.xlane.f32.xlu0 %v2452
          %v2516 = vpop.xlane.xlu0 %2515
          %v2517 = vsub.f32 %v2421, %v2454
          %v2518 = vsub.f32 %v2422, %v2456
          %v2519 = vsub.f32 %v2423, %v2458
          %v2520 = vsub.f32 %v2424, %v2460
          %v2521 = vsub.f32 %v2425, %v2462
          %v2522 = vsub.f32 %v2426, %v2464
          %v2523 = vsub.f32 %v2427, %v2466
          %v2524 = vsub.f32 %v2428, %v2468
          %v2525 = vsub.f32 %v2429, %v2470
          %v2526 = vsub.f32 %v2430, %v2472
          %v2527 = vsub.f32 %v2431, %v2474
          %v2528 = vsub.f32 %v2432, %v2476
          %v2529 = vsub.f32 %v2433, %v2478
          %v2530 = vsub.f32 %v2434, %v2480
          %v2531 = vsub.f32 %v2435, %v2482
          %v2532 = vsub.f32 %v2436, %v2484
          %v2533 = vsub.f32 %v2437, %v2486
          %v2534 = vsub.f32 %v2438, %v2488
          %v2535 = vsub.f32 %v2439, %v2490
          %v2536 = vsub.f32 %v2440, %v2492
          %v2537 = vsub.f32 %v2441, %v2494
          %v2538 = vsub.f32 %v2442, %v2496
          %v2539 = vsub.f32 %v2443, %v2498
          %v2540 = vsub.f32 %v2444, %v2500
          %v2541 = vsub.f32 %v2445, %v2502
          %v2542 = vsub.f32 %v2446, %v2504
          %v2543 = vsub.f32 %v2447, %v2506
          %v2544 = vsub.f32 %v2448, %v2508
          %v2545 = vsub.f32 %v2449, %v2510
          %v2546 = vsub.f32 %v2450, %v2512
          %v2547 = vsub.f32 %v2451, %v2514
          %v2548 = vsub.f32 %v2452, %v2516
          %v2549 = vmul.f32 %v2517, 1.442695
          %v2550 = vpow.pop %v2549
          %v2551 = vmul.f32 %v2518, 1.442695
          %v2552 = vpow.pop %v2551
          %v2553 = vmul.f32 %v2519, 1.442695
          %v2554 = vpow.pop %v2553
          %v2555 = vmul.f32 %v2520, 1.442695
          %v2556 = vpow.pop %v2555
          %v2557 = vmul.f32 %v2521, 1.442695
          %v2558 = vpow.pop %v2557
          %v2559 = vmul.f32 %v2522, 1.442695
          %v2560 = vpow.pop %v2559
          %v2561 = vmul.f32 %v2523, 1.442695
          %v2562 = vpow.pop %v2561
          %v2563 = vmul.f32 %v2524, 1.442695
          %v2564 = vpow.pop %v2563
          %v2565 = vmul.f32 %v2525, 1.442695
          %v2566 = vpow.pop %v2565
          %v2567 = vmul.f32 %v2526, 1.442695
          %v2568 = vpow.pop %v2567
          %v2569 = vmul.f32 %v2527, 1.442695
          %v2570 = vpow.pop %v2569
          %v2571 = vmul.f32 %v2528, 1.442695
          %v2572 = vpow.pop %v2571
          %v2573 = vmul.f32 %v2529, 1.442695
          %v2574 = vpow.pop %v2573
          %v2575 = vmul.f32 %v2530, 1.442695
          %v2576 = vpow.pop %v2575
          %v2577 = vmul.f32 %v2531, 1.442695
          %v2578 = vpow.pop %v2577
          %v2579 = vmul.f32 %v2532, 1.442695
          %v2580 = vpow.pop %v2579
          %v2581 = vmul.f32 %v2533, 1.442695
          %v2582 = vpow.pop %v2581
          %v2583 = vmul.f32 %v2534, 1.442695
          %v2584 = vpow.pop %v2583
          %v2585 = vmul.f32 %v2535, 1.442695
          %v2586 = vpow.pop %v2585
          %v2587 = vmul.f32 %v2536, 1.442695
          %v2588 = vpow.pop %v2587
          %v2589 = vmul.f32 %v2537, 1.442695
          %v2590 = vpow.pop %v2589
          %v2591 = vmul.f32 %v2538, 1.442695
          %v2592 = vpow.pop %v2591
          %v2593 = vmul.f32 %v2539, 1.442695
          %v2594 = vpow.pop %v2593
          %v2595 = vmul.f32 %v2540, 1.442695
          %v2596 = vpow.pop %v2595
          %v2597 = vmul.f32 %v2541, 1.442695
          %v2598 = vpow.pop %v2597
          %v2599 = vmul.f32 %v2542, 1.442695
          %v2600 = vpow.pop %v2599
          %v2601 = vmul.f32 %v2543, 1.442695
          %v2602 = vpow.pop %v2601
          %v2603 = vmul.f32 %v2544, 1.442695
          %v2604 = vpow.pop %v2603
          %v2605 = vmul.f32 %v2545, 1.442695
          %v2606 = vpow.pop %v2605
          %v2607 = vmul.f32 %v2546, 1.442695
          %v2608 = vpow.pop %v2607
          %v2609 = vmul.f32 %v2547, 1.442695
          %v2610 = vpow.pop %v2609
          %v2611 = vmul.f32 %v2548, 1.442695
          %v2612 = vpow.pop %v2611
          %2613 = vadd.xlane.f32.xlu0 %v2550
          %v2614 = vpop.xlane.xlu0 %2613
          %2615 = vadd.xlane.f32.xlu0 %v2552
          %v2616 = vpop.xlane.xlu0 %2615
          %2617 = vadd.xlane.f32.xlu0 %v2554
          %v2618 = vpop.xlane.xlu0 %2617
          %2619 = vadd.xlane.f32.xlu0 %v2556
          %v2620 = vpop.xlane.xlu0 %2619
          %2621 = vadd.xlane.f32.xlu0 %v2558
          %v2622 = vpop.xlane.xlu0 %2621
          %2623 = vadd.xlane.f32.xlu0 %v2560
          %v2624 = vpop.xlane.xlu0 %2623
          %2625 = vadd.xlane.f32.xlu0 %v2562
          %v2626 = vpop.xlane.xlu0 %2625
          %2627 = vadd.xlane.f32.xlu0 %v2564
          %v2628 = vpop.xlane.xlu0 %2627
          %2629 = vadd.xlane.f32.xlu0 %v2566
          %v2630 = vpop.xlane.xlu0 %2629
          %2631 = vadd.xlane.f32.xlu0 %v2568
          %v2632 = vpop.xlane.xlu0 %2631
          %2633 = vadd.xlane.f32.xlu0 %v2570
          %v2634 = vpop.xlane.xlu0 %2633
          %2635 = vadd.xlane.f32.xlu0 %v2572
          %v2636 = vpop.xlane.xlu0 %2635
          %2637 = vadd.xlane.f32.xlu0 %v2574
          %v2638 = vpop.xlane.xlu0 %2637
          %2639 = vadd.xlane.f32.xlu0 %v2576
          %v2640 = vpop.xlane.xlu0 %2639
          %2641 = vadd.xlane.f32.xlu0 %v2578
          %v2642 = vpop.xlane.xlu0 %2641
          %2643 = vadd.xlane.f32.xlu0 %v2580
          %v2644 = vpop.xlane.xlu0 %2643
          %2645 = vadd.xlane.f32.xlu0 %v2582
          %v2646 = vpop.xlane.xlu0 %2645
          %2647 = vadd.xlane.f32.xlu0 %v2584
          %v2648 = vpop.xlane.xlu0 %2647
          %2649 = vadd.xlane.f32.xlu0 %v2586
          %v2650 = vpop.xlane.xlu0 %2649
          %2651 = vadd.xlane.f32.xlu0 %v2588
          %v2652 = vpop.xlane.xlu0 %2651
          %2653 = vadd.xlane.f32.xlu0 %v2590
          %v2654 = vpop.xlane.xlu0 %2653
          %2655 = vadd.xlane.f32.xlu0 %v2592
          %v2656 = vpop.xlane.xlu0 %2655
          %2657 = vadd.xlane.f32.xlu0 %v2594
          %v2658 = vpop.xlane.xlu0 %2657
          %2659 = vadd.xlane.f32.xlu0 %v2596
          %v2660 = vpop.xlane.xlu0 %2659
          %2661 = vadd.xlane.f32.xlu0 %v2598
          %v2662 = vpop.xlane.xlu0 %2661
          %2663 = vadd.xlane.f32.xlu0 %v2600
          %v2664 = vpop.xlane.xlu0 %2663
          %2665 = vadd.xlane.f32.xlu0 %v2602
          %v2666 = vpop.xlane.xlu0 %2665
          %2667 = vadd.xlane.f32.xlu0 %v2604
          %v2668 = vpop.xlane.xlu0 %2667
          %2669 = vadd.xlane.f32.xlu0 %v2606
          %v2670 = vpop.xlane.xlu0 %2669
          %2671 = vadd.xlane.f32.xlu0 %v2608
          %v2672 = vpop.xlane.xlu0 %2671
          %2673 = vadd.xlane.f32.xlu0 %v2610
          %v2674 = vpop.xlane.xlu0 %2673
          %2675 = vadd.xlane.f32.xlu0 %v2612
          %v2676 = vpop.xlane.xlu0 %2675
          %v2677 = vlog2.pop %v2614
          %v2678 = vmul.f32 %v2677, 0.6931472
          %v2679 = vlog2.pop %v2616
          %v2680 = vmul.f32 %v2679, 0.6931472
          %v2681 = vlog2.pop %v2618
          %v2682 = vmul.f32 %v2681, 0.6931472
          %v2683 = vlog2.pop %v2620
          %v2684 = vmul.f32 %v2683, 0.6931472
          %v2685 = vlog2.pop %v2622
          %v2686 = vmul.f32 %v2685, 0.6931472
          %v2687 = vlog2.pop %v2624
          %v2688 = vmul.f32 %v2687, 0.6931472
          %v2689 = vlog2.pop %v2626
          %v2690 = vmul.f32 %v2689, 0.6931472
          %v2691 = vlog2.pop %v2628
          %v2692 = vmul.f32 %v2691, 0.6931472
          %v2693 = vlog2.pop %v2630
          %v2694 = vmul.f32 %v2693, 0.6931472
          %v2695 = vlog2.pop %v2632
          %v2696 = vmul.f32 %v2695, 0.6931472
          %v2697 = vlog2.pop %v2634
          %v2698 = vmul.f32 %v2697, 0.6931472
          %v2699 = vlog2.pop %v2636
          %v2700 = vmul.f32 %v2699, 0.6931472
          %v2701 = vlog2.pop %v2638
          %v2702 = vmul.f32 %v2701, 0.6931472
          %v2703 = vlog2.pop %v2640
          %v2704 = vmul.f32 %v2703, 0.6931472
          %v2705 = vlog2.pop %v2642
          %v2706 = vmul.f32 %v2705, 0.6931472
          %v2707 = vlog2.pop %v2644
          %v2708 = vmul.f32 %v2707, 0.6931472
          %v2709 = vlog2.pop %v2646
          %v2710 = vmul.f32 %v2709, 0.6931472
          %v2711 = vlog2.pop %v2648
          %v2712 = vmul.f32 %v2711, 0.6931472
          %v2713 = vlog2.pop %v2650
          %v2714 = vmul.f32 %v2713, 0.6931472
          %v2715 = vlog2.pop %v2652
          %v2716 = vmul.f32 %v2715, 0.6931472
          %v2717 = vlog2.pop %v2654
          %v2718 = vmul.f32 %v2717, 0.6931472
          %v2719 = vlog2.pop %v2656
          %v2720 = vmul.f32 %v2719, 0.6931472
          %v2721 = vlog2.pop %v2658
          %v2722 = vmul.f32 %v2721, 0.6931472
          %v2723 = vlog2.pop %v2660
          %v2724 = vmul.f32 %v2723, 0.6931472
          %v2725 = vlog2.pop %v2662
          %v2726 = vmul.f32 %v2725, 0.6931472
          %v2727 = vlog2.pop %v2664
          %v2728 = vmul.f32 %v2727, 0.6931472
          %v2729 = vlog2.pop %v2666
          %v2730 = vmul.f32 %v2729, 0.6931472
          %v2731 = vlog2.pop %v2668
          %v2732 = vmul.f32 %v2731, 0.6931472
          %v2733 = vlog2.pop %v2670
          %v2734 = vmul.f32 %v2733, 0.6931472
          %v2735 = vlog2.pop %v2672
          %v2736 = vmul.f32 %v2735, 0.6931472
          %v2737 = vlog2.pop %v2674
          %v2738 = vmul.f32 %v2737, 0.6931472
          %v2739 = vlog2.pop %v2676
          %v2740 = vmul.f32 %v2739, 0.6931472
          %v2741 = vadd.f32 %v2454, %v2678
          %v2742 = vadd.f32 %v2456, %v2680
          %v2743 = vadd.f32 %v2458, %v2682
          %v2744 = vadd.f32 %v2460, %v2684
          %v2745 = vadd.f32 %v2462, %v2686
          %v2746 = vadd.f32 %v2464, %v2688
          %v2747 = vadd.f32 %v2466, %v2690
          %v2748 = vadd.f32 %v2468, %v2692
          %v2749 = vadd.f32 %v2470, %v2694
          %v2750 = vadd.f32 %v2472, %v2696
          %v2751 = vadd.f32 %v2474, %v2698
          %v2752 = vadd.f32 %v2476, %v2700
          %v2753 = vadd.f32 %v2478, %v2702
          %v2754 = vadd.f32 %v2480, %v2704
          %v2755 = vadd.f32 %v2482, %v2706
          %v2756 = vadd.f32 %v2484, %v2708
          %v2757 = vadd.f32 %v2486, %v2710
          %v2758 = vadd.f32 %v2488, %v2712
          %v2759 = vadd.f32 %v2490, %v2714
          %v2760 = vadd.f32 %v2492, %v2716
          %v2761 = vadd.f32 %v2494, %v2718
          %v2762 = vadd.f32 %v2496, %v2720
          %v2763 = vadd.f32 %v2498, %v2722
          %v2764 = vadd.f32 %v2500, %v2724
          %v2765 = vadd.f32 %v2502, %v2726
          %v2766 = vadd.f32 %v2504, %v2728
          %v2767 = vadd.f32 %v2506, %v2730
          %v2768 = vadd.f32 %v2508, %v2732
          %v2769 = vadd.f32 %v2510, %v2734
          %v2770 = vadd.f32 %v2512, %v2736
          %v2771 = vadd.f32 %v2514, %v2738
          %v2772 = vadd.f32 %v2516, %v2740
          %v2773 = vsub.f32 %v2421, %v2741
          %v2774 = vsub.f32 %v2422, %v2742
          %v2775 = vsub.f32 %v2423, %v2743
          %v2776 = vsub.f32 %v2424, %v2744
          %v2777 = vsub.f32 %v2425, %v2745
          %v2778 = vsub.f32 %v2426, %v2746
          %v2779 = vsub.f32 %v2427, %v2747
          %v2780 = vsub.f32 %v2428, %v2748
          %v2781 = vsub.f32 %v2429, %v2749
          %v2782 = vsub.f32 %v2430, %v2750
          %v2783 = vsub.f32 %v2431, %v2751
          %v2784 = vsub.f32 %v2432, %v2752
          %v2785 = vsub.f32 %v2433, %v2753
          %v2786 = vsub.f32 %v2434, %v2754
          %v2787 = vsub.f32 %v2435, %v2755
          %v2788 = vsub.f32 %v2436, %v2756
          %v2789 = vsub.f32 %v2437, %v2757
          %v2790 = vsub.f32 %v2438, %v2758
          %v2791 = vsub.f32 %v2439, %v2759
          %v2792 = vsub.f32 %v2440, %v2760
          %v2793 = vsub.f32 %v2441, %v2761
          %v2794 = vsub.f32 %v2442, %v2762
          %v2795 = vsub.f32 %v2443, %v2763
          %v2796 = vsub.f32 %v2444, %v2764
          %v2797 = vsub.f32 %v2445, %v2765
          %v2798 = vsub.f32 %v2446, %v2766
          %v2799 = vsub.f32 %v2447, %v2767
          %v2800 = vsub.f32 %v2448, %v2768
          %v2801 = vsub.f32 %v2449, %v2769
          %v2802 = vsub.f32 %v2450, %v2770
          %v2803 = vsub.f32 %v2451, %v2771
          %v2804 = vsub.f32 %v2452, %v2772
          %v2805 = vsel %vm2420, %v2773, 0.0
          %v2806 = vsel %vm2420, %v2774, 0.0
          %v2807 = vsel %vm2420, %v2775, 0.0
          %v2808 = vsel %vm2420, %v2776, 0.0
          %v2809 = vsel %vm2420, %v2777, 0.0
          %v2810 = vsel %vm2420, %v2778, 0.0
          %v2811 = vsel %vm2420, %v2779, 0.0
          %v2812 = vsel %vm2420, %v2780, 0.0
          %v2813 = vsel %vm2420, %v2781, 0.0
          %v2814 = vsel %vm2420, %v2782, 0.0
          %v2815 = vsel %vm2420, %v2783, 0.0
          %v2816 = vsel %vm2420, %v2784, 0.0
          %v2817 = vsel %vm2420, %v2785, 0.0
          %v2818 = vsel %vm2420, %v2786, 0.0
          %v2819 = vsel %vm2420, %v2787, 0.0
          %v2820 = vsel %vm2420, %v2788, 0.0
          %v2821 = vsel %vm2420, %v2789, 0.0
          %v2822 = vsel %vm2420, %v2790, 0.0
          %v2823 = vsel %vm2420, %v2791, 0.0
          %v2824 = vsel %vm2420, %v2792, 0.0
          %v2825 = vsel %vm2420, %v2793, 0.0
          %v2826 = vsel %vm2420, %v2794, 0.0
          %v2827 = vsel %vm2420, %v2795, 0.0
          %v2828 = vsel %vm2420, %v2796, 0.0
          %v2829 = vsel %vm2420, %v2797, 0.0
          %v2830 = vsel %vm2420, %v2798, 0.0
          %v2831 = vsel %vm2420, %v2799, 0.0
          %v2832 = vsel %vm2420, %v2800, 0.0
          %v2833 = vsel %vm2420, %v2801, 0.0
          %v2834 = vsel %vm2420, %v2802, 0.0
          %v2835 = vsel %vm2420, %v2803, 0.0
          %v2836 = vsel %vm2420, %v2804, 0.0
          %2837 = vst [vmem:[%s241] sm:$0xff] %v2805
          %2838 = vst [vmem:[%s241 + $0x8] sm:$0xff] %v2806
          %2839 = vst [vmem:[%s241 + $0x10] sm:$0xff] %v2807
          %2840 = vst [vmem:[%s241 + $0x18] sm:$0xff] %v2808
          %2841 = vst [vmem:[%s241 + $0x20] sm:$0xff] %v2809
          %2842 = vst [vmem:[%s241 + $0x28] sm:$0xff] %v2810
          %2843 = vst [vmem:[%s241 + $0x30] sm:$0xff] %v2811
          %2844 = vst [vmem:[%s241 + $0x38] sm:$0xff] %v2812
          %2845 = vst [vmem:[%s241 + $0x40] sm:$0xff] %v2813
          %2846 = vst [vmem:[%s241 + $0x48] sm:$0xff] %v2814
          %2847 = vst [vmem:[%s241 + $0x50] sm:$0xff] %v2815
          %2848 = vst [vmem:[%s241 + $0x58] sm:$0xff] %v2816
          %2849 = vst [vmem:[%s241 + $0x60] sm:$0xff] %v2817
          %2850 = vst [vmem:[%s241 + $0x68] sm:$0xff] %v2818
          %2851 = vst [vmem:[%s241 + $0x70] sm:$0xff] %v2819
          %2852 = vst [vmem:[%s241 + $0x78] sm:$0xff] %v2820
          %2853 = vst [vmem:[%s241 + $0x80] sm:$0xff] %v2821
          %2854 = vst [vmem:[%s241 + $0x88] sm:$0xff] %v2822
          %2855 = vst [vmem:[%s241 + $0x90] sm:$0xff] %v2823
          %2856 = vst [vmem:[%s241 + $0x98] sm:$0xff] %v2824
          %2857 = vst [vmem:[%s241 + $0xa0] sm:$0xff] %v2825
          %2858 = vst [vmem:[%s241 + $0xa8] sm:$0xff] %v2826
          %2859 = vst [vmem:[%s241 + $0xb0] sm:$0xff] %v2827
          %2860 = vst [vmem:[%s241 + $0xb8] sm:$0xff] %v2828
          %2861 = vst [vmem:[%s241 + $0xc0] sm:$0xff] %v2829
          %2862 = vst [vmem:[%s241 + $0xc8] sm:$0xff] %v2830
          %2863 = vst [vmem:[%s241 + $0xd0] sm:$0xff] %v2831
          %2864 = vst [vmem:[%s241 + $0xd8] sm:$0xff] %v2832
          %2865 = vst [vmem:[%s241 + $0xe0] sm:$0xff] %v2833
          %2866 = vst [vmem:[%s241 + $0xe8] sm:$0xff] %v2834
          %2867 = vst [vmem:[%s241 + $0xf0] sm:$0xff] %v2835
          %2868 = vst [vmem:[%s241 + $0xf8] sm:$0xff] %v2836
        $region44: #{gcn_forward.5} parent=31 // pred_fallthru
          _
        %s2869 = sand.u32 %s135, 1
        %s2870 = scalar_lea.sflag [#allocation7], %s2869
        %s2871 = sand.u32 %s135, 1
        %s2872 = smul.addr %s2871, 256
        %s2873 = scalar_lea.vmem [#allocation6], %s2872
        // Predicated region
        $region45: #{gcn_forward.5} parent=31 // pred_check
          %p2874 = pneg %p145
        $region46: #{gcn_forward.5} parent=31 // pred_check_branch
          %2876 = sbr.rel (%p2874) target = $region48
        $region47: #{gcn_forward.5} parent=31 // pred_region
          %s2877 = smul.u32 32, %s33
          %s2879 = ssub.s32 4096, 4096
          %2880 = vsyncadd %s2870, %s2879
          %s2881 = smul.addr %s2877, 128
          %s2882 = scalar_lea.hbm %s5, %s2881
          %s2883 = sshll.u32 %s2873, 4
          %s2884 = int_to_ptr.vmem [resolvable:$true] %s2883
          %2889 = dma.vmem_to_hbm [thread:$0]  %s2884, 4096, %s2882, %s2870, 128, 128, 8
        $region48: #{gcn_forward.5} parent=31 // pred_fallthru
          _
      $region32: #{gcn_forward.5} parent=5 // pred_fallthru
        _
      %p2890 = scmp.le.s32.totalorder 2, %s24
      // Predicated region
      $region49: #{gcn_forward.5} parent=5 // pred_check
        %p2891 = pneg %p2890
      $region50: #{gcn_forward.5} parent=5 // pred_check_branch
        %2893 = sbr.rel (%p2891) target = $region52
      $region51: #{gcn_forward.5} parent=5 // pred_region
        %s2894 = ssub.s32 %s24, 2
        // Predicated region
        $region53: #{gcn_forward.5} parent=51 // pred_check
          %p2895 = pneg %p151
        $region54: #{gcn_forward.5} parent=51 // pred_check_branch
          %2897 = sbr.rel (%p2895) target = $region56
        $region55: #{gcn_forward.5} parent=51 // pred_region
          %s2898 = sand.u32 %s136, 1
          %s2899 = scalar_lea.sflag [#allocation7], %s2898
          %s2900 = sand.u32 %s136, 1
          %s2901 = smul.addr %s2900, 256
          %s2902 = scalar_lea.vmem [#allocation6], %s2901
          %2903 = dma.done %s2899, 4096
        $region56: #{gcn_forward.5} parent=51 // pred_fallthru
          _
      $region52: #{gcn_forward.5} parent=5 // pred_fallthru
        _
    $region6: #{gcn_forward.5} parent=1 // loop_footer
      %s28 = sadd.s32 1, %s24
    $region7: #{gcn_forward.5} parent=1 // loop_footer_branch
      %23 = sbr.rel target = $region3
    $region8: #{gcn_forward.5} parent=1 // loop_exit
      _
    %2904 = vsyncpa [#allocation7], 1
    %s2905 = scalar_lea.sflag [#allocation7], 1
    %2906 = vsyncpa %s2905, 1

</llo_original>
